<compile_context>
chip_gen: v5e
topology: v5e:2x2
jax: 0.10.0
libtpu: 0.0.40
codegen_flags: <defaults>
</compile_context>

<pallas_src>
import numpy as np

import jax
import jax.numpy as jnp
from jax.experimental import pallas as pl
from jax.experimental.pallas import tpu as pltpu  # noqa: F401  (TPU backend)

BN_EPS = 1e-5
_INV_SQRT2 = 0.7071067811865476


# ---------------------------------------------------------------------------
# Fused Pallas kernel: all conv layers + BN + GELU in a single body
# ---------------------------------------------------------------------------
def _make_fused_kernel(bn_flags):
    """bn_flags[l] == True  -> layer l is conv + BatchNorm + GELU
       bn_flags[l] == False -> layer l is conv only (last layer)."""
    n_layers = len(bn_flags)

    def kernel(*refs):
        # refs layout: [x, (S_0, W_0, g_0, b_0), ..., (S_5, W_5), out]
        o_ref = refs[-1]
        x = refs[0][...]                                   # [M_in, Cin] f32
        pos = 1
        for layer in range(n_layers):
            s_ref = refs[pos]          # [T, M_out, M_in]  0/1 row selectors
            w_ref = refs[pos + 1]      # [T, Cin, Cout]    per-tap weights
            pos += 2
            n_taps = s_ref.shape[0]

            # conv = sum over taps of (row-gather via MXU) @ (tap weight)
            acc = None
            for t in range(n_taps):
                tap_rows = jnp.dot(s_ref[t], x,
                                   preferred_element_type=jnp.float32)
                contrib = jnp.dot(tap_rows, w_ref[t],
                                  preferred_element_type=jnp.float32)
                acc = contrib if acc is None else acc + contrib

            if bn_flags[layer]:
                g_ref, b_ref = refs[pos], refs[pos + 1]    # [1, Cout] each
                pos += 2
                inv_m = 1.0 / acc.shape[0]
                mean = jnp.sum(acc, axis=0, keepdims=True) * inv_m
                mean_sq = jnp.sum(acc * acc, axis=0, keepdims=True) * inv_m
                var = jnp.maximum(mean_sq - mean * mean, 0.0)  # biased (train)
                scale = g_ref[...] * jax.lax.rsqrt(var + BN_EPS)
                shift = b_ref[...] - mean * scale
                z = acc * scale + shift
                # exact GELU: 0.5 * z * (1 + erf(z / sqrt(2)))
                x = 0.5 * z * (1.0 + jax.lax.erf(z * _INV_SQRT2))
            else:
                x = acc

        o_ref[...] = x.astype(o_ref.dtype)

    return kernel


def _full_spec(shape):
    """Whole-array BlockSpec (no grid)."""
    n = len(shape)

    def idx():
        return (0,) * n

    return pl.BlockSpec(tuple(int(d) for d in shape), idx)


# ---------------------------------------------------------------------------
# One-time parameter / network preparation (outside the hot path)
# ---------------------------------------------------------------------------
def _selection_taps(N, H, W, k=3, s=2, p=1):
    """0/1 selection matrices implementing pad+stride-2 im2col, one per tap.
    Taps that only ever hit padding are dropped."""
    Ho = (H + 2 * p - k) // s + 1
    Wo = (W + 2 * p - k) // s + 1
    M_out, M_in = N * Ho * Wo, N * H * W
    taps = []
    for dy in range(k):
        for dx in range(k):
            S = np.zeros((M_out, M_in), np.float32)
            valid = False
            for n in range(N):
                for i in range(Ho):
                    y = s * i + dy - p
                    if y < 0 or y >= H:
                        continue
                    for j in range(Wo):
                        x = s * j + dx - p
                        if x < 0 or x >= W:
                            continue
                        S[(n * Ho + i) * Wo + j, (n * H + y) * W + x] = 1.0
                        valid = True
            if valid:
                taps.append((dy, dx, S))
    return taps, Ho, Wo


def spectral_normalize(w, key, n_iter=1, eps=1e-12):
    """w: [Cout, Cin, kh, kw] -> w / sigma (one power iteration, deterministic u)."""
    cout = w.shape[0]
    wmat = w.reshape(cout, -1)
    u = jax.random.normal(key, (cout,), dtype=jnp.float32)
    u = u / (jnp.linalg.norm(u) + eps)
    v = None
    for _ in range(n_iter):
        v = wmat.T @ u
        v = v / (jnp.linalg.norm(v) + eps)
        u = wmat @ v
        u = u / (jnp.linalg.norm(u) + eps)
    sigma = u @ (wmat @ v)
    return w / sigma


def init_params(key, nc=3, ndf=16):
    chans = [nc, ndf, ndf * 2, ndf * 4, ndf * 8, ndf * 16, 1]
    params = []
    for i in range(6):
        key, wk, uk = jax.random.split(key, 3)
        cin, cout = chans[i], chans[i + 1]
        w = 0.05 * jax.random.normal(wk, (cout, cin, 3, 3), dtype=jnp.float32)
        w = spectral_normalize(w, uk)
        gamma = jnp.ones((cout,), jnp.float32)   # BatchNorm2d default init
        beta = jnp.zeros((cout,), jnp.float32)
        params.append((w, gamma, beta))
    return params


def prepare_network(params, N, H, W):
    """One-time prep: per-layer (selection stack, per-tap weight stack, gamma, beta)."""
    layers = []
    h, w = H, W
    n_layers = len(params)
    for idx, (wt, gamma, beta) in enumerate(params):
        taps, Ho, Wo = _selection_taps(N, h, w)
        S = jnp.asarray(np.stack([t[2] for t in taps], axis=0))       # [T, Mout, Min]
        Wtap = jnp.stack(
            [jnp.transpose(wt[:, :, dy, dx], (1, 0)) for dy, dx, _ in taps],
            axis=0,
        )                                                              # [T, Cin, Cout]
        if idx < n_layers - 1:
            layers.append((S, Wtap, gamma.reshape(1, -1), beta.reshape(1, -1)))
        else:
            layers.append((S, Wtap, None, None))
        h, w = Ho, Wo
    return layers


# ---------------------------------------------------------------------------
# Forward: one pallas_call for the whole network
# ---------------------------------------------------------------------------
def discriminator_forward(x_nchw, layers):
    N, C, H, W = x_nchw.shape
    # NCHW -> NHWC row-major rows: [N*H*W, C]  (only external glue in the path)
    x2d = jnp.transpose(x_nchw, (0, 2, 3, 1)).reshape(N * H * W, C).astype(jnp.float32)

    args = [x2d]
    bn_flags = []
    for S, Wt, g, b in layers:
        args += [S, Wt]
        if g is not None:
            args += [g, b]
        bn_flags.append(g is not None)

    M_out = int(layers[-1][0].shape[1])     # N * Ho_last * Wo_last
    Cout = int(layers[-1][1].shape[2])      # 1

    out = pl.pallas_call(
        _make_fused_kernel(tuple(bn_flags)),
        out_shape=jax.ShapeDtypeStruct((M_out, Cout), jnp.float32),
        in_specs=[_full_spec(a.shape) for a in args],
        out_specs=_full_spec((M_out, Cout)),
    )(*args)

    # last layer has Cout=1 and 1x1 spatial -> equivalent to x.flatten(1)
    return out.reshape(N, -1)


if __name__ == "__main__":
    key = jax.random.PRNGKey(0)
    pkey, xkey = jax.random.split(key)
    params = init_params(pkey, nc=3, ndf=16)
    # deterministic input consistent with the module: NCHW [2, 3, 16, 16]
    x = jax.random.normal(xkey, (2, 3, 16, 16), dtype=jnp.float32)

    layers = prepare_network(params, N=2, H=16, W=16)   # one-time prep
    out = discriminator_forward(x, layers)
    out = jax.block_until_ready(out)

    assert out.shape == (2, 1), out.shape
    assert bool(jnp.all(jnp.isfinite(out)))
    print("KERNEL_OK")
</pallas_src>

<mosaic_0001>
module attributes {stable_mosaic.version = 11 : i64} {
  func.func @kernel(%arg0: memref<512x3xf32, #tpu.memory_space<vmem>>, %arg1: memref<9x128x512xf32, #tpu.memory_space<vmem>>, %arg2: memref<9x3x16xf32, #tpu.memory_space<vmem>>, %arg3: memref<1x16xf32, #tpu.memory_space<vmem>>, %arg4: memref<1x16xf32, #tpu.memory_space<vmem>>, %arg5: memref<9x32x128xf32, #tpu.memory_space<vmem>>, %arg6: memref<9x16x32xf32, #tpu.memory_space<vmem>>, %arg7: memref<1x32xf32, #tpu.memory_space<vmem>>, %arg8: memref<1x32xf32, #tpu.memory_space<vmem>>, %arg9: memref<9x8x32xf32, #tpu.memory_space<vmem>>, %arg10: memref<9x32x64xf32, #tpu.memory_space<vmem>>, %arg11: memref<1x64xf32, #tpu.memory_space<vmem>>, %arg12: memref<1x64xf32, #tpu.memory_space<vmem>>, %arg13: memref<4x2x8xf32, #tpu.memory_space<vmem>>, %arg14: memref<4x64x128xf32, #tpu.memory_space<vmem>>, %arg15: memref<1x128xf32, #tpu.memory_space<vmem>>, %arg16: memref<1x128xf32, #tpu.memory_space<vmem>>, %arg17: memref<1x2x2xf32, #tpu.memory_space<vmem>>, %arg18: memref<1x128x256xf32, #tpu.memory_space<vmem>>, %arg19: memref<1x256xf32, #tpu.memory_space<vmem>>, %arg20: memref<1x256xf32, #tpu.memory_space<vmem>>, %arg21: memref<1x2x2xf32, #tpu.memory_space<vmem>>, %arg22: memref<1x256x1xf32, #tpu.memory_space<vmem>>, %arg23: memref<2x1xf32, #tpu.memory_space<vmem>>) attributes {dimension_semantics = [], scalar_prefetch = 0 : i64, scratch_operands = 0 : i64, tpu.core_type = #tpu.core_type<tc>} {
    %c0 = arith.constant 0 : index
    %c0_0 = arith.constant 0 : index
    %0 = vector.load %arg0[%c0, %c0_0] : memref<512x3xf32, #tpu.memory_space<vmem>>, vector<512x3xf32>
    %c0_1 = arith.constant 0 : index
    %c0_2 = arith.constant 0 : index
    %c0_3 = arith.constant 0 : index
    %1 = vector.load %arg1[%c0_1, %c0_2, %c0_3] : memref<9x128x512xf32, #tpu.memory_space<vmem>>, vector<1x128x512xf32>
    %2 = vector.shape_cast %1 : vector<1x128x512xf32> to vector<128x512xf32>
    %cst = arith.constant dense<0.000000e+00> : vector<128x3xf32>
    %3 = tpu.matmul %2, %0, %cst {dimension_numbers = #tpu.dot_dimension_numbers<[1], [0], [0], [1], [0, 0, 1, 1], [], []>} : vector<128x512xf32>, vector<512x3xf32>, vector<128x3xf32> -> vector<128x3xf32>
    %c0_4 = arith.constant 0 : index
    %c0_5 = arith.constant 0 : index
    %c0_6 = arith.constant 0 : index
    %4 = vector.load %arg2[%c0_4, %c0_5, %c0_6] : memref<9x3x16xf32, #tpu.memory_space<vmem>>, vector<1x3x16xf32>
    %5 = vector.shape_cast %4 : vector<1x3x16xf32> to vector<3x16xf32>
    %cst_7 = arith.constant dense<0.000000e+00> : vector<128x16xf32>
    %6 = tpu.matmul %3, %5, %cst_7 {dimension_numbers = #tpu.dot_dimension_numbers<[1], [0], [0], [1], [0, 0, 1, 1], [], []>} : vector<128x3xf32>, vector<3x16xf32>, vector<128x16xf32> -> vector<128x16xf32>
    %c1 = arith.constant 1 : index
    %c0_8 = arith.constant 0 : index
    %c0_9 = arith.constant 0 : index
    %7 = vector.load %arg1[%c1, %c0_8, %c0_9] : memref<9x128x512xf32, #tpu.memory_space<vmem>>, vector<1x128x512xf32>
    %8 = vector.shape_cast %7 : vector<1x128x512xf32> to vector<128x512xf32>
    %cst_10 = arith.constant dense<0.000000e+00> : vector<128x3xf32>
    %9 = tpu.matmul %8, %0, %cst_10 {dimension_numbers = #tpu.dot_dimension_numbers<[1], [0], [0], [1], [0, 0, 1, 1], [], []>} : vector<128x512xf32>, vector<512x3xf32>, vector<128x3xf32> -> vector<128x3xf32>
    %c1_11 = arith.constant 1 : index
    %c0_12 = arith.constant 0 : index
    %c0_13 = arith.constant 0 : index
    %10 = vector.load %arg2[%c1_11, %c0_12, %c0_13] : memref<9x3x16xf32, #tpu.memory_space<vmem>>, vector<1x3x16xf32>
    %11 = vector.shape_cast %10 : vector<1x3x16xf32> to vector<3x16xf32>
    %cst_14 = arith.constant dense<0.000000e+00> : vector<128x16xf32>
    %12 = tpu.matmul %9, %11, %cst_14 {dimension_numbers = #tpu.dot_dimension_numbers<[1], [0], [0], [1], [0, 0, 1, 1], [], []>} : vector<128x3xf32>, vector<3x16xf32>, vector<128x16xf32> -> vector<128x16xf32>
    %13 = arith.addf %6, %12 : vector<128x16xf32>
    %c2 = arith.constant 2 : index
    %c0_15 = arith.constant 0 : index
    %c0_16 = arith.constant 0 : index
    %14 = vector.load %arg1[%c2, %c0_15, %c0_16] : memref<9x128x512xf32, #tpu.memory_space<vmem>>, vector<1x128x512xf32>
    %15 = vector.shape_cast %14 : vector<1x128x512xf32> to vector<128x512xf32>
    %cst_17 = arith.constant dense<0.000000e+00> : vector<128x3xf32>
    %16 = tpu.matmul %15, %0, %cst_17 {dimension_numbers = #tpu.dot_dimension_numbers<[1], [0], [0], [1], [0, 0, 1, 1], [], []>} : vector<128x512xf32>, vector<512x3xf32>, vector<128x3xf32> -> vector<128x3xf32>
    %c2_18 = arith.constant 2 : index
    %c0_19 = arith.constant 0 : index
    %c0_20 = arith.constant 0 : index
    %17 = vector.load %arg2[%c2_18, %c0_19, %c0_20] : memref<9x3x16xf32, #tpu.memory_space<vmem>>, vector<1x3x16xf32>
    %18 = vector.shape_cast %17 : vector<1x3x16xf32> to vector<3x16xf32>
    %cst_21 = arith.constant dense<0.000000e+00> : vector<128x16xf32>
    %19 = tpu.matmul %16, %18, %cst_21 {dimension_numbers = #tpu.dot_dimension_numbers<[1], [0], [0], [1], [0, 0, 1, 1], [], []>} : vector<128x3xf32>, vector<3x16xf32>, vector<128x16xf32> -> vector<128x16xf32>
    %20 = arith.addf %13, %19 : vector<128x16xf32>
    %c3 = arith.constant 3 : index
    %c0_22 = arith.constant 0 : index
    %c0_23 = arith.constant 0 : index
    %21 = vector.load %arg1[%c3, %c0_22, %c0_23] : memref<9x128x512xf32, #tpu.memory_space<vmem>>, vector<1x128x512xf32>
    %22 = vector.shape_cast %21 : vector<1x128x512xf32> to vector<128x512xf32>
    %cst_24 = arith.constant dense<0.000000e+00> : vector<128x3xf32>
    %23 = tpu.matmul %22, %0, %cst_24 {dimension_numbers = #tpu.dot_dimension_numbers<[1], [0], [0], [1], [0, 0, 1, 1], [], []>} : vector<128x512xf32>, vector<512x3xf32>, vector<128x3xf32> -> vector<128x3xf32>
    %c3_25 = arith.constant 3 : index
    %c0_26 = arith.constant 0 : index
    %c0_27 = arith.constant 0 : index
    %24 = vector.load %arg2[%c3_25, %c0_26, %c0_27] : memref<9x3x16xf32, #tpu.memory_space<vmem>>, vector<1x3x16xf32>
    %25 = vector.shape_cast %24 : vector<1x3x16xf32> to vector<3x16xf32>
    %cst_28 = arith.constant dense<0.000000e+00> : vector<128x16xf32>
    %26 = tpu.matmul %23, %25, %cst_28 {dimension_numbers = #tpu.dot_dimension_numbers<[1], [0], [0], [1], [0, 0, 1, 1], [], []>} : vector<128x3xf32>, vector<3x16xf32>, vector<128x16xf32> -> vector<128x16xf32>
    %27 = arith.addf %20, %26 : vector<128x16xf32>
    %c4 = arith.constant 4 : index
    %c0_29 = arith.constant 0 : index
    %c0_30 = arith.constant 0 : index
    %28 = vector.load %arg1[%c4, %c0_29, %c0_30] : memref<9x128x512xf32, #tpu.memory_space<vmem>>, vector<1x128x512xf32>
    %29 = vector.shape_cast %28 : vector<1x128x512xf32> to vector<128x512xf32>
    %cst_31 = arith.constant dense<0.000000e+00> : vector<128x3xf32>
    %30 = tpu.matmul %29, %0, %cst_31 {dimension_numbers = #tpu.dot_dimension_numbers<[1], [0], [0], [1], [0, 0, 1, 1], [], []>} : vector<128x512xf32>, vector<512x3xf32>, vector<128x3xf32> -> vector<128x3xf32>
    %c4_32 = arith.constant 4 : index
    %c0_33 = arith.constant 0 : index
    %c0_34 = arith.constant 0 : index
    %31 = vector.load %arg2[%c4_32, %c0_33, %c0_34] : memref<9x3x16xf32, #tpu.memory_space<vmem>>, vector<1x3x16xf32>
    %32 = vector.shape_cast %31 : vector<1x3x16xf32> to vector<3x16xf32>
    %cst_35 = arith.constant dense<0.000000e+00> : vector<128x16xf32>
    %33 = tpu.matmul %30, %32, %cst_35 {dimension_numbers = #tpu.dot_dimension_numbers<[1], [0], [0], [1], [0, 0, 1, 1], [], []>} : vector<128x3xf32>, vector<3x16xf32>, vector<128x16xf32> -> vector<128x16xf32>
    %34 = arith.addf %27, %33 : vector<128x16xf32>
    %c5 = arith.constant 5 : index
    %c0_36 = arith.constant 0 : index
    %c0_37 = arith.constant 0 : index
    %35 = vector.load %arg1[%c5, %c0_36, %c0_37] : memref<9x128x512xf32, #tpu.memory_space<vmem>>, vector<1x128x512xf32>
    %36 = vector.shape_cast %35 : vector<1x128x512xf32> to vector<128x512xf32>
    %cst_38 = arith.constant dense<0.000000e+00> : vector<128x3xf32>
    %37 = tpu.matmul %36, %0, %cst_38 {dimension_numbers = #tpu.dot_dimension_numbers<[1], [0], [0], [1], [0, 0, 1, 1], [], []>} : vector<128x512xf32>, vector<512x3xf32>, vector<128x3xf32> -> vector<128x3xf32>
    %c5_39 = arith.constant 5 : index
    %c0_40 = arith.constant 0 : index
    %c0_41 = arith.constant 0 : index
    %38 = vector.load %arg2[%c5_39, %c0_40, %c0_41] : memref<9x3x16xf32, #tpu.memory_space<vmem>>, vector<1x3x16xf32>
    %39 = vector.shape_cast %38 : vector<1x3x16xf32> to vector<3x16xf32>
    %cst_42 = arith.constant dense<0.000000e+00> : vector<128x16xf32>
    %40 = tpu.matmul %37, %39, %cst_42 {dimension_numbers = #tpu.dot_dimension_numbers<[1], [0], [0], [1], [0, 0, 1, 1], [], []>} : vector<128x3xf32>, vector<3x16xf32>, vector<128x16xf32> -> vector<128x16xf32>
    %41 = arith.addf %34, %40 : vector<128x16xf32>
    %c6 = arith.constant 6 : index
    %c0_43 = arith.constant 0 : index
    %c0_44 = arith.constant 0 : index
    %42 = vector.load %arg1[%c6, %c0_43, %c0_44] : memref<9x128x512xf32, #tpu.memory_space<vmem>>, vector<1x128x512xf32>
    %43 = vector.shape_cast %42 : vector<1x128x512xf32> to vector<128x512xf32>
    %cst_45 = arith.constant dense<0.000000e+00> : vector<128x3xf32>
    %44 = tpu.matmul %43, %0, %cst_45 {dimension_numbers = #tpu.dot_dimension_numbers<[1], [0], [0], [1], [0, 0, 1, 1], [], []>} : vector<128x512xf32>, vector<512x3xf32>, vector<128x3xf32> -> vector<128x3xf32>
    %c6_46 = arith.constant 6 : index
    %c0_47 = arith.constant 0 : index
    %c0_48 = arith.constant 0 : index
    %45 = vector.load %arg2[%c6_46, %c0_47, %c0_48] : memref<9x3x16xf32, #tpu.memory_space<vmem>>, vector<1x3x16xf32>
    %46 = vector.shape_cast %45 : vector<1x3x16xf32> to vector<3x16xf32>
    %cst_49 = arith.constant dense<0.000000e+00> : vector<128x16xf32>
    %47 = tpu.matmul %44, %46, %cst_49 {dimension_numbers = #tpu.dot_dimension_numbers<[1], [0], [0], [1], [0, 0, 1, 1], [], []>} : vector<128x3xf32>, vector<3x16xf32>, vector<128x16xf32> -> vector<128x16xf32>
    %48 = arith.addf %41, %47 : vector<128x16xf32>
    %c7 = arith.constant 7 : index
    %c0_50 = arith.constant 0 : index
    %c0_51 = arith.constant 0 : index
    %49 = vector.load %arg1[%c7, %c0_50, %c0_51] : memref<9x128x512xf32, #tpu.memory_space<vmem>>, vector<1x128x512xf32>
    %50 = vector.shape_cast %49 : vector<1x128x512xf32> to vector<128x512xf32>
    %cst_52 = arith.constant dense<0.000000e+00> : vector<128x3xf32>
    %51 = tpu.matmul %50, %0, %cst_52 {dimension_numbers = #tpu.dot_dimension_numbers<[1], [0], [0], [1], [0, 0, 1, 1], [], []>} : vector<128x512xf32>, vector<512x3xf32>, vector<128x3xf32> -> vector<128x3xf32>
    %c7_53 = arith.constant 7 : index
    %c0_54 = arith.constant 0 : index
    %c0_55 = arith.constant 0 : index
    %52 = vector.load %arg2[%c7_53, %c0_54, %c0_55] : memref<9x3x16xf32, #tpu.memory_space<vmem>>, vector<1x3x16xf32>
    %53 = vector.shape_cast %52 : vector<1x3x16xf32> to vector<3x16xf32>
    %cst_56 = arith.constant dense<0.000000e+00> : vector<128x16xf32>
    %54 = tpu.matmul %51, %53, %cst_56 {dimension_numbers = #tpu.dot_dimension_numbers<[1], [0], [0], [1], [0, 0, 1, 1], [], []>} : vector<128x3xf32>, vector<3x16xf32>, vector<128x16xf32> -> vector<128x16xf32>
    %55 = arith.addf %48, %54 : vector<128x16xf32>
    %c8 = arith.constant 8 : index
    %c0_57 = arith.constant 0 : index
    %c0_58 = arith.constant 0 : index
    %56 = vector.load %arg1[%c8, %c0_57, %c0_58] : memref<9x128x512xf32, #tpu.memory_space<vmem>>, vector<1x128x512xf32>
    %57 = vector.shape_cast %56 : vector<1x128x512xf32> to vector<128x512xf32>
    %cst_59 = arith.constant dense<0.000000e+00> : vector<128x3xf32>
    %58 = tpu.matmul %57, %0, %cst_59 {dimension_numbers = #tpu.dot_dimension_numbers<[1], [0], [0], [1], [0, 0, 1, 1], [], []>} : vector<128x512xf32>, vector<512x3xf32>, vector<128x3xf32> -> vector<128x3xf32>
    %c8_60 = arith.constant 8 : index
    %c0_61 = arith.constant 0 : index
    %c0_62 = arith.constant 0 : index
    %59 = vector.load %arg2[%c8_60, %c0_61, %c0_62] : memref<9x3x16xf32, #tpu.memory_space<vmem>>, vector<1x3x16xf32>
    %60 = vector.shape_cast %59 : vector<1x3x16xf32> to vector<3x16xf32>
    %cst_63 = arith.constant dense<0.000000e+00> : vector<128x16xf32>
    %61 = tpu.matmul %58, %60, %cst_63 {dimension_numbers = #tpu.dot_dimension_numbers<[1], [0], [0], [1], [0, 0, 1, 1], [], []>} : vector<128x3xf32>, vector<3x16xf32>, vector<128x16xf32> -> vector<128x16xf32>
    %62 = arith.addf %55, %61 : vector<128x16xf32>
    %cst_64 = arith.constant dense<0.000000e+00> : vector<16xf32>
    %63 = vector.multi_reduction <add>, %62, %cst_64 [0] : vector<128x16xf32> to vector<16xf32>
    %64 = vector.shape_cast %63 : vector<16xf32> to vector<1x16xf32>
    %cst_65 = arith.constant 7.812500e-03 : f32
    %65 = vector.broadcast %cst_65 : f32 to vector<1x16xf32>
    %66 = arith.mulf %64, %65 : vector<1x16xf32>
    %67 = arith.mulf %62, %62 : vector<128x16xf32>
    %cst_66 = arith.constant dense<0.000000e+00> : vector<16xf32>
    %68 = vector.multi_reduction <add>, %67, %cst_66 [0] : vector<128x16xf32> to vector<16xf32>
    %69 = vector.shape_cast %68 : vector<16xf32> to vector<1x16xf32>
    %cst_67 = arith.constant 7.812500e-03 : f32
    %70 = vector.broadcast %cst_67 : f32 to vector<1x16xf32>
    %71 = arith.mulf %69, %70 : vector<1x16xf32>
    %72 = arith.mulf %66, %66 : vector<1x16xf32>
    %73 = arith.subf %71, %72 : vector<1x16xf32>
    %cst_68 = arith.constant 0.000000e+00 : f32
    %74 = vector.broadcast %cst_68 : f32 to vector<1x16xf32>
    %75 = arith.maximumf %73, %74 : vector<1x16xf32>
    %c0_69 = arith.constant 0 : index
    %c0_70 = arith.constant 0 : index
    %76 = vector.load %arg3[%c0_69, %c0_70] : memref<1x16xf32, #tpu.memory_space<vmem>>, vector<1x16xf32>
    %cst_71 = arith.constant 9.99999974E-6 : f32
    %77 = vector.broadcast %cst_71 : f32 to vector<1x16xf32>
    %78 = arith.addf %75, %77 : vector<1x16xf32>
    %79 = math.rsqrt %78 : vector<1x16xf32>
    %80 = arith.mulf %76, %79 : vector<1x16xf32>
    %c0_72 = arith.constant 0 : index
    %c0_73 = arith.constant 0 : index
    %81 = vector.load %arg4[%c0_72, %c0_73] : memref<1x16xf32, #tpu.memory_space<vmem>>, vector<1x16xf32>
    %82 = arith.mulf %66, %80 : vector<1x16xf32>
    %83 = arith.subf %81, %82 : vector<1x16xf32>
    %84 = vector.broadcast %80 : vector<1x16xf32> to vector<128x16xf32>
    %85 = arith.mulf %62, %84 : vector<128x16xf32>
    %86 = vector.broadcast %83 : vector<1x16xf32> to vector<128x16xf32>
    %87 = arith.addf %85, %86 : vector<128x16xf32>
    %cst_74 = arith.constant 5.000000e-01 : f32
    %88 = vector.broadcast %cst_74 : f32 to vector<128x16xf32>
    %89 = arith.mulf %88, %87 : vector<128x16xf32>
    %cst_75 = arith.constant 0.707106769 : f32
    %90 = vector.broadcast %cst_75 : f32 to vector<128x16xf32>
    %91 = arith.mulf %87, %90 : vector<128x16xf32>
    %92 = math.erf %91 : vector<128x16xf32>
    %cst_76 = arith.constant 1.000000e+00 : f32
    %93 = vector.broadcast %cst_76 : f32 to vector<128x16xf32>
    %94 = arith.addf %93, %92 : vector<128x16xf32>
    %95 = arith.mulf %89, %94 : vector<128x16xf32>
    %c0_77 = arith.constant 0 : index
    %c0_78 = arith.constant 0 : index
    %c0_79 = arith.constant 0 : index
    %96 = vector.load %arg5[%c0_77, %c0_78, %c0_79] : memref<9x32x128xf32, #tpu.memory_space<vmem>>, vector<1x32x128xf32>
    %97 = vector.shape_cast %96 : vector<1x32x128xf32> to vector<32x128xf32>
    %cst_80 = arith.constant dense<0.000000e+00> : vector<32x16xf32>
    %98 = tpu.matmul %97, %95, %cst_80 {dimension_numbers = #tpu.dot_dimension_numbers<[1], [0], [0], [1], [0, 0, 1, 1], [], []>} : vector<32x128xf32>, vector<128x16xf32>, vector<32x16xf32> -> vector<32x16xf32>
    %c0_81 = arith.constant 0 : index
    %c0_82 = arith.constant 0 : index
    %c0_83 = arith.constant 0 : index
    %99 = vector.load %arg6[%c0_81, %c0_82, %c0_83] : memref<9x16x32xf32, #tpu.memory_space<vmem>>, vector<1x16x32xf32>
    %100 = vector.shape_cast %99 : vector<1x16x32xf32> to vector<16x32xf32>
    %cst_84 = arith.constant dense<0.000000e+00> : vector<32x32xf32>
    %101 = tpu.matmul %98, %100, %cst_84 {dimension_numbers = #tpu.dot_dimension_numbers<[1], [0], [0], [1], [0, 0, 1, 1], [], []>} : vector<32x16xf32>, vector<16x32xf32>, vector<32x32xf32> -> vector<32x32xf32>
    %c1_85 = arith.constant 1 : index
    %c0_86 = arith.constant 0 : index
    %c0_87 = arith.constant 0 : index
    %102 = vector.load %arg5[%c1_85, %c0_86, %c0_87] : memref<9x32x128xf32, #tpu.memory_space<vmem>>, vector<1x32x128xf32>
    %103 = vector.shape_cast %102 : vector<1x32x128xf32> to vector<32x128xf32>
    %cst_88 = arith.constant dense<0.000000e+00> : vector<32x16xf32>
    %104 = tpu.matmul %103, %95, %cst_88 {dimension_numbers = #tpu.dot_dimension_numbers<[1], [0], [0], [1], [0, 0, 1, 1], [], []>} : vector<32x128xf32>, vector<128x16xf32>, vector<32x16xf32> -> vector<32x16xf32>
    %c1_89 = arith.constant 1 : index
    %c0_90 = arith.constant 0 : index
    %c0_91 = arith.constant 0 : index
    %105 = vector.load %arg6[%c1_89, %c0_90, %c0_91] : memref<9x16x32xf32, #tpu.memory_space<vmem>>, vector<1x16x32xf32>
    %106 = vector.shape_cast %105 : vector<1x16x32xf32> to vector<16x32xf32>
    %cst_92 = arith.constant dense<0.000000e+00> : vector<32x32xf32>
    %107 = tpu.matmul %104, %106, %cst_92 {dimension_numbers = #tpu.dot_dimension_numbers<[1], [0], [0], [1], [0, 0, 1, 1], [], []>} : vector<32x16xf32>, vector<16x32xf32>, vector<32x32xf32> -> vector<32x32xf32>
    %108 = arith.addf %101, %107 : vector<32x32xf32>
    %c2_93 = arith.constant 2 : index
    %c0_94 = arith.constant 0 : index
    %c0_95 = arith.constant 0 : index
    %109 = vector.load %arg5[%c2_93, %c0_94, %c0_95] : memref<9x32x128xf32, #tpu.memory_space<vmem>>, vector<1x32x128xf32>
    %110 = vector.shape_cast %109 : vector<1x32x128xf32> to vector<32x128xf32>
    %cst_96 = arith.constant dense<0.000000e+00> : vector<32x16xf32>
    %111 = tpu.matmul %110, %95, %cst_96 {dimension_numbers = #tpu.dot_dimension_numbers<[1], [0], [0], [1], [0, 0, 1, 1], [], []>} : vector<32x128xf32>, vector<128x16xf32>, vector<32x16xf32> -> vector<32x16xf32>
    %c2_97 = arith.constant 2 : index
    %c0_98 = arith.constant 0 : index
    %c0_99 = arith.constant 0 : index
    %112 = vector.load %arg6[%c2_97, %c0_98, %c0_99] : memref<9x16x32xf32, #tpu.memory_space<vmem>>, vector<1x16x32xf32>
    %113 = vector.shape_cast %112 : vector<1x16x32xf32> to vector<16x32xf32>
    %cst_100 = arith.constant dense<0.000000e+00> : vector<32x32xf32>
    %114 = tpu.matmul %111, %113, %cst_100 {dimension_numbers = #tpu.dot_dimension_numbers<[1], [0], [0], [1], [0, 0, 1, 1], [], []>} : vector<32x16xf32>, vector<16x32xf32>, vector<32x32xf32> -> vector<32x32xf32>
    %115 = arith.addf %108, %114 : vector<32x32xf32>
    %c3_101 = arith.constant 3 : index
    %c0_102 = arith.constant 0 : index
    %c0_103 = arith.constant 0 : index
    %116 = vector.load %arg5[%c3_101, %c0_102, %c0_103] : memref<9x32x128xf32, #tpu.memory_space<vmem>>, vector<1x32x128xf32>
    %117 = vector.shape_cast %116 : vector<1x32x128xf32> to vector<32x128xf32>
    %cst_104 = arith.constant dense<0.000000e+00> : vector<32x16xf32>
    %118 = tpu.matmul %117, %95, %cst_104 {dimension_numbers = #tpu.dot_dimension_numbers<[1], [0], [0], [1], [0, 0, 1, 1], [], []>} : vector<32x128xf32>, vector<128x16xf32>, vector<32x16xf32> -> vector<32x16xf32>
    %c3_105 = arith.constant 3 : index
    %c0_106 = arith.constant 0 : index
    %c0_107 = arith.constant 0 : index
    %119 = vector.load %arg6[%c3_105, %c0_106, %c0_107] : memref<9x16x32xf32, #tpu.memory_space<vmem>>, vector<1x16x32xf32>
    %120 = vector.shape_cast %119 : vector<1x16x32xf32> to vector<16x32xf32>
    %cst_108 = arith.constant dense<0.000000e+00> : vector<32x32xf32>
    %121 = tpu.matmul %118, %120, %cst_108 {dimension_numbers = #tpu.dot_dimension_numbers<[1], [0], [0], [1], [0, 0, 1, 1], [], []>} : vector<32x16xf32>, vector<16x32xf32>, vector<32x32xf32> -> vector<32x32xf32>
    %122 = arith.addf %115, %121 : vector<32x32xf32>
    %c4_109 = arith.constant 4 : index
    %c0_110 = arith.constant 0 : index
    %c0_111 = arith.constant 0 : index
    %123 = vector.load %arg5[%c4_109, %c0_110, %c0_111] : memref<9x32x128xf32, #tpu.memory_space<vmem>>, vector<1x32x128xf32>
    %124 = vector.shape_cast %123 : vector<1x32x128xf32> to vector<32x128xf32>
    %cst_112 = arith.constant dense<0.000000e+00> : vector<32x16xf32>
    %125 = tpu.matmul %124, %95, %cst_112 {dimension_numbers = #tpu.dot_dimension_numbers<[1], [0], [0], [1], [0, 0, 1, 1], [], []>} : vector<32x128xf32>, vector<128x16xf32>, vector<32x16xf32> -> vector<32x16xf32>
    %c4_113 = arith.constant 4 : index
    %c0_114 = arith.constant 0 : index
    %c0_115 = arith.constant 0 : index
    %126 = vector.load %arg6[%c4_113, %c0_114, %c0_115] : memref<9x16x32xf32, #tpu.memory_space<vmem>>, vector<1x16x32xf32>
    %127 = vector.shape_cast %126 : vector<1x16x32xf32> to vector<16x32xf32>
    %cst_116 = arith.constant dense<0.000000e+00> : vector<32x32xf32>
    %128 = tpu.matmul %125, %127, %cst_116 {dimension_numbers = #tpu.dot_dimension_numbers<[1], [0], [0], [1], [0, 0, 1, 1], [], []>} : vector<32x16xf32>, vector<16x32xf32>, vector<32x32xf32> -> vector<32x32xf32>
    %129 = arith.addf %122, %128 : vector<32x32xf32>
    %c5_117 = arith.constant 5 : index
    %c0_118 = arith.constant 0 : index
    %c0_119 = arith.constant 0 : index
    %130 = vector.load %arg5[%c5_117, %c0_118, %c0_119] : memref<9x32x128xf32, #tpu.memory_space<vmem>>, vector<1x32x128xf32>
    %131 = vector.shape_cast %130 : vector<1x32x128xf32> to vector<32x128xf32>
    %cst_120 = arith.constant dense<0.000000e+00> : vector<32x16xf32>
    %132 = tpu.matmul %131, %95, %cst_120 {dimension_numbers = #tpu.dot_dimension_numbers<[1], [0], [0], [1], [0, 0, 1, 1], [], []>} : vector<32x128xf32>, vector<128x16xf32>, vector<32x16xf32> -> vector<32x16xf32>
    %c5_121 = arith.constant 5 : index
    %c0_122 = arith.constant 0 : index
    %c0_123 = arith.constant 0 : index
    %133 = vector.load %arg6[%c5_121, %c0_122, %c0_123] : memref<9x16x32xf32, #tpu.memory_space<vmem>>, vector<1x16x32xf32>
    %134 = vector.shape_cast %133 : vector<1x16x32xf32> to vector<16x32xf32>
    %cst_124 = arith.constant dense<0.000000e+00> : vector<32x32xf32>
    %135 = tpu.matmul %132, %134, %cst_124 {dimension_numbers = #tpu.dot_dimension_numbers<[1], [0], [0], [1], [0, 0, 1, 1], [], []>} : vector<32x16xf32>, vector<16x32xf32>, vector<32x32xf32> -> vector<32x32xf32>
    %136 = arith.addf %129, %135 : vector<32x32xf32>
    %c6_125 = arith.constant 6 : index
    %c0_126 = arith.constant 0 : index
    %c0_127 = arith.constant 0 : index
    %137 = vector.load %arg5[%c6_125, %c0_126, %c0_127] : memref<9x32x128xf32, #tpu.memory_space<vmem>>, vector<1x32x128xf32>
    %138 = vector.shape_cast %137 : vector<1x32x128xf32> to vector<32x128xf32>
    %cst_128 = arith.constant dense<0.000000e+00> : vector<32x16xf32>
    %139 = tpu.matmul %138, %95, %cst_128 {dimension_numbers = #tpu.dot_dimension_numbers<[1], [0], [0], [1], [0, 0, 1, 1], [], []>} : vector<32x128xf32>, vector<128x16xf32>, vector<32x16xf32> -> vector<32x16xf32>
    %c6_129 = arith.constant 6 : index
    %c0_130 = arith.constant 0 : index
    %c0_131 = arith.constant 0 : index
    %140 = vector.load %arg6[%c6_129, %c0_130, %c0_131] : memref<9x16x32xf32, #tpu.memory_space<vmem>>, vector<1x16x32xf32>
    %141 = vector.shape_cast %140 : vector<1x16x32xf32> to vector<16x32xf32>
    %cst_132 = arith.constant dense<0.000000e+00> : vector<32x32xf32>
    %142 = tpu.matmul %139, %141, %cst_132 {dimension_numbers = #tpu.dot_dimension_numbers<[1], [0], [0], [1], [0, 0, 1, 1], [], []>} : vector<32x16xf32>, vector<16x32xf32>, vector<32x32xf32> -> vector<32x32xf32>
    %143 = arith.addf %136, %142 : vector<32x32xf32>
    %c7_133 = arith.constant 7 : index
    %c0_134 = arith.constant 0 : index
    %c0_135 = arith.constant 0 : index
    %144 = vector.load %arg5[%c7_133, %c0_134, %c0_135] : memref<9x32x128xf32, #tpu.memory_space<vmem>>, vector<1x32x128xf32>
    %145 = vector.shape_cast %144 : vector<1x32x128xf32> to vector<32x128xf32>
    %cst_136 = arith.constant dense<0.000000e+00> : vector<32x16xf32>
    %146 = tpu.matmul %145, %95, %cst_136 {dimension_numbers = #tpu.dot_dimension_numbers<[1], [0], [0], [1], [0, 0, 1, 1], [], []>} : vector<32x128xf32>, vector<128x16xf32>, vector<32x16xf32> -> vector<32x16xf32>
    %c7_137 = arith.constant 7 : index
    %c0_138 = arith.constant 0 : index
    %c0_139 = arith.constant 0 : index
    %147 = vector.load %arg6[%c7_137, %c0_138, %c0_139] : memref<9x16x32xf32, #tpu.memory_space<vmem>>, vector<1x16x32xf32>
    %148 = vector.shape_cast %147 : vector<1x16x32xf32> to vector<16x32xf32>
    %cst_140 = arith.constant dense<0.000000e+00> : vector<32x32xf32>
    %149 = tpu.matmul %146, %148, %cst_140 {dimension_numbers = #tpu.dot_dimension_numbers<[1], [0], [0], [1], [0, 0, 1, 1], [], []>} : vector<32x16xf32>, vector<16x32xf32>, vector<32x32xf32> -> vector<32x32xf32>
    %150 = arith.addf %143, %149 : vector<32x32xf32>
    %c8_141 = arith.constant 8 : index
    %c0_142 = arith.constant 0 : index
    %c0_143 = arith.constant 0 : index
    %151 = vector.load %arg5[%c8_141, %c0_142, %c0_143] : memref<9x32x128xf32, #tpu.memory_space<vmem>>, vector<1x32x128xf32>
    %152 = vector.shape_cast %151 : vector<1x32x128xf32> to vector<32x128xf32>
    %cst_144 = arith.constant dense<0.000000e+00> : vector<32x16xf32>
    %153 = tpu.matmul %152, %95, %cst_144 {dimension_numbers = #tpu.dot_dimension_numbers<[1], [0], [0], [1], [0, 0, 1, 1], [], []>} : vector<32x128xf32>, vector<128x16xf32>, vector<32x16xf32> -> vector<32x16xf32>
    %c8_145 = arith.constant 8 : index
    %c0_146 = arith.constant 0 : index
    %c0_147 = arith.constant 0 : index
    %154 = vector.load %arg6[%c8_145, %c0_146, %c0_147] : memref<9x16x32xf32, #tpu.memory_space<vmem>>, vector<1x16x32xf32>
    %155 = vector.shape_cast %154 : vector<1x16x32xf32> to vector<16x32xf32>
    %cst_148 = arith.constant dense<0.000000e+00> : vector<32x32xf32>
    %156 = tpu.matmul %153, %155, %cst_148 {dimension_numbers = #tpu.dot_dimension_numbers<[1], [0], [0], [1], [0, 0, 1, 1], [], []>} : vector<32x16xf32>, vector<16x32xf32>, vector<32x32xf32> -> vector<32x32xf32>
    %157 = arith.addf %150, %156 : vector<32x32xf32>
    %cst_149 = arith.constant dense<0.000000e+00> : vector<32xf32>
    %158 = vector.multi_reduction <add>, %157, %cst_149 [0] : vector<32x32xf32> to vector<32xf32>
    %159 = vector.shape_cast %158 : vector<32xf32> to vector<1x32xf32>
    %cst_150 = arith.constant 3.125000e-02 : f32
    %160 = vector.broadcast %cst_150 : f32 to vector<1x32xf32>
    %161 = arith.mulf %159, %160 : vector<1x32xf32>
    %162 = arith.mulf %157, %157 : vector<32x32xf32>
    %cst_151 = arith.constant dense<0.000000e+00> : vector<32xf32>
    %163 = vector.multi_reduction <add>, %162, %cst_151 [0] : vector<32x32xf32> to vector<32xf32>
    %164 = vector.shape_cast %163 : vector<32xf32> to vector<1x32xf32>
    %cst_152 = arith.constant 3.125000e-02 : f32
    %165 = vector.broadcast %cst_152 : f32 to vector<1x32xf32>
    %166 = arith.mulf %164, %165 : vector<1x32xf32>
    %167 = arith.mulf %161, %161 : vector<1x32xf32>
    %168 = arith.subf %166, %167 : vector<1x32xf32>
    %cst_153 = arith.constant 0.000000e+00 : f32
    %169 = vector.broadcast %cst_153 : f32 to vector<1x32xf32>
    %170 = arith.maximumf %168, %169 : vector<1x32xf32>
    %c0_154 = arith.constant 0 : index
    %c0_155 = arith.constant 0 : index
    %171 = vector.load %arg7[%c0_154, %c0_155] : memref<1x32xf32, #tpu.memory_space<vmem>>, vector<1x32xf32>
    %cst_156 = arith.constant 9.99999974E-6 : f32
    %172 = vector.broadcast %cst_156 : f32 to vector<1x32xf32>
    %173 = arith.addf %170, %172 : vector<1x32xf32>
    %174 = math.rsqrt %173 : vector<1x32xf32>
    %175 = arith.mulf %171, %174 : vector<1x32xf32>
    %c0_157 = arith.constant 0 : index
    %c0_158 = arith.constant 0 : index
    %176 = vector.load %arg8[%c0_157, %c0_158] : memref<1x32xf32, #tpu.memory_space<vmem>>, vector<1x32xf32>
    %177 = arith.mulf %161, %175 : vector<1x32xf32>
    %178 = arith.subf %176, %177 : vector<1x32xf32>
    %179 = vector.broadcast %175 : vector<1x32xf32> to vector<32x32xf32>
    %180 = arith.mulf %157, %179 : vector<32x32xf32>
    %181 = vector.broadcast %178 : vector<1x32xf32> to vector<32x32xf32>
    %182 = arith.addf %180, %181 : vector<32x32xf32>
    %cst_159 = arith.constant 5.000000e-01 : f32
    %183 = vector.broadcast %cst_159 : f32 to vector<32x32xf32>
    %184 = arith.mulf %183, %182 : vector<32x32xf32>
    %cst_160 = arith.constant 0.707106769 : f32
    %185 = vector.broadcast %cst_160 : f32 to vector<32x32xf32>
    %186 = arith.mulf %182, %185 : vector<32x32xf32>
    %187 = math.erf %186 : vector<32x32xf32>
    %cst_161 = arith.constant 1.000000e+00 : f32
    %188 = vector.broadcast %cst_161 : f32 to vector<32x32xf32>
    %189 = arith.addf %188, %187 : vector<32x32xf32>
    %190 = arith.mulf %184, %189 : vector<32x32xf32>
    %c0_162 = arith.constant 0 : index
    %c0_163 = arith.constant 0 : index
    %c0_164 = arith.constant 0 : index
    %191 = vector.load %arg9[%c0_162, %c0_163, %c0_164] : memref<9x8x32xf32, #tpu.memory_space<vmem>>, vector<1x8x32xf32>
    %192 = vector.shape_cast %191 : vector<1x8x32xf32> to vector<8x32xf32>
    %cst_165 = arith.constant dense<0.000000e+00> : vector<8x32xf32>
    %193 = tpu.matmul %192, %190, %cst_165 {dimension_numbers = #tpu.dot_dimension_numbers<[1], [0], [0], [1], [0, 0, 1, 1], [], []>} : vector<8x32xf32>, vector<32x32xf32>, vector<8x32xf32> -> vector<8x32xf32>
    %c0_166 = arith.constant 0 : index
    %c0_167 = arith.constant 0 : index
    %c0_168 = arith.constant 0 : index
    %194 = vector.load %arg10[%c0_166, %c0_167, %c0_168] : memref<9x32x64xf32, #tpu.memory_space<vmem>>, vector<1x32x64xf32>
    %195 = vector.shape_cast %194 : vector<1x32x64xf32> to vector<32x64xf32>
    %cst_169 = arith.constant dense<0.000000e+00> : vector<8x64xf32>
    %196 = tpu.matmul %193, %195, %cst_169 {dimension_numbers = #tpu.dot_dimension_numbers<[1], [0], [0], [1], [0, 0, 1, 1], [], []>} : vector<8x32xf32>, vector<32x64xf32>, vector<8x64xf32> -> vector<8x64xf32>
    %c1_170 = arith.constant 1 : index
    %c0_171 = arith.constant 0 : index
    %c0_172 = arith.constant 0 : index
    %197 = vector.load %arg9[%c1_170, %c0_171, %c0_172] : memref<9x8x32xf32, #tpu.memory_space<vmem>>, vector<1x8x32xf32>
    %198 = vector.shape_cast %197 : vector<1x8x32xf32> to vector<8x32xf32>
    %cst_173 = arith.constant dense<0.000000e+00> : vector<8x32xf32>
    %199 = tpu.matmul %198, %190, %cst_173 {dimension_numbers = #tpu.dot_dimension_numbers<[1], [0], [0], [1], [0, 0, 1, 1], [], []>} : vector<8x32xf32>, vector<32x32xf32>, vector<8x32xf32> -> vector<8x32xf32>
    %c1_174 = arith.constant 1 : index
    %c0_175 = arith.constant 0 : index
    %c0_176 = arith.constant 0 : index
    %200 = vector.load %arg10[%c1_174, %c0_175, %c0_176] : memref<9x32x64xf32, #tpu.memory_space<vmem>>, vector<1x32x64xf32>
    %201 = vector.shape_cast %200 : vector<1x32x64xf32> to vector<32x64xf32>
    %cst_177 = arith.constant dense<0.000000e+00> : vector<8x64xf32>
    %202 = tpu.matmul %199, %201, %cst_177 {dimension_numbers = #tpu.dot_dimension_numbers<[1], [0], [0], [1], [0, 0, 1, 1], [], []>} : vector<8x32xf32>, vector<32x64xf32>, vector<8x64xf32> -> vector<8x64xf32>
    %203 = arith.addf %196, %202 : vector<8x64xf32>
    %c2_178 = arith.constant 2 : index
    %c0_179 = arith.constant 0 : index
    %c0_180 = arith.constant 0 : index
    %204 = vector.load %arg9[%c2_178, %c0_179, %c0_180] : memref<9x8x32xf32, #tpu.memory_space<vmem>>, vector<1x8x32xf32>
    %205 = vector.shape_cast %204 : vector<1x8x32xf32> to vector<8x32xf32>
    %cst_181 = arith.constant dense<0.000000e+00> : vector<8x32xf32>
    %206 = tpu.matmul %205, %190, %cst_181 {dimension_numbers = #tpu.dot_dimension_numbers<[1], [0], [0], [1], [0, 0, 1, 1], [], []>} : vector<8x32xf32>, vector<32x32xf32>, vector<8x32xf32> -> vector<8x32xf32>
    %c2_182 = arith.constant 2 : index
    %c0_183 = arith.constant 0 : index
    %c0_184 = arith.constant 0 : index
    %207 = vector.load %arg10[%c2_182, %c0_183, %c0_184] : memref<9x32x64xf32, #tpu.memory_space<vmem>>, vector<1x32x64xf32>
    %208 = vector.shape_cast %207 : vector<1x32x64xf32> to vector<32x64xf32>
    %cst_185 = arith.constant dense<0.000000e+00> : vector<8x64xf32>
    %209 = tpu.matmul %206, %208, %cst_185 {dimension_numbers = #tpu.dot_dimension_numbers<[1], [0], [0], [1], [0, 0, 1, 1], [], []>} : vector<8x32xf32>, vector<32x64xf32>, vector<8x64xf32> -> vector<8x64xf32>
    %210 = arith.addf %203, %209 : vector<8x64xf32>
    %c3_186 = arith.constant 3 : index
    %c0_187 = arith.constant 0 : index
    %c0_188 = arith.constant 0 : index
    %211 = vector.load %arg9[%c3_186, %c0_187, %c0_188] : memref<9x8x32xf32, #tpu.memory_space<vmem>>, vector<1x8x32xf32>
    %212 = vector.shape_cast %211 : vector<1x8x32xf32> to vector<8x32xf32>
    %cst_189 = arith.constant dense<0.000000e+00> : vector<8x32xf32>
    %213 = tpu.matmul %212, %190, %cst_189 {dimension_numbers = #tpu.dot_dimension_numbers<[1], [0], [0], [1], [0, 0, 1, 1], [], []>} : vector<8x32xf32>, vector<32x32xf32>, vector<8x32xf32> -> vector<8x32xf32>
    %c3_190 = arith.constant 3 : index
    %c0_191 = arith.constant 0 : index
    %c0_192 = arith.constant 0 : index
    %214 = vector.load %arg10[%c3_190, %c0_191, %c0_192] : memref<9x32x64xf32, #tpu.memory_space<vmem>>, vector<1x32x64xf32>
    %215 = vector.shape_cast %214 : vector<1x32x64xf32> to vector<32x64xf32>
    %cst_193 = arith.constant dense<0.000000e+00> : vector<8x64xf32>
    %216 = tpu.matmul %213, %215, %cst_193 {dimension_numbers = #tpu.dot_dimension_numbers<[1], [0], [0], [1], [0, 0, 1, 1], [], []>} : vector<8x32xf32>, vector<32x64xf32>, vector<8x64xf32> -> vector<8x64xf32>
    %217 = arith.addf %210, %216 : vector<8x64xf32>
    %c4_194 = arith.constant 4 : index
    %c0_195 = arith.constant 0 : index
    %c0_196 = arith.constant 0 : index
    %218 = vector.load %arg9[%c4_194, %c0_195, %c0_196] : memref<9x8x32xf32, #tpu.memory_space<vmem>>, vector<1x8x32xf32>
    %219 = vector.shape_cast %218 : vector<1x8x32xf32> to vector<8x32xf32>
    %cst_197 = arith.constant dense<0.000000e+00> : vector<8x32xf32>
    %220 = tpu.matmul %219, %190, %cst_197 {dimension_numbers = #tpu.dot_dimension_numbers<[1], [0], [0], [1], [0, 0, 1, 1], [], []>} : vector<8x32xf32>, vector<32x32xf32>, vector<8x32xf32> -> vector<8x32xf32>
    %c4_198 = arith.constant 4 : index
    %c0_199 = arith.constant 0 : index
    %c0_200 = arith.constant 0 : index
    %221 = vector.load %arg10[%c4_198, %c0_199, %c0_200] : memref<9x32x64xf32, #tpu.memory_space<vmem>>, vector<1x32x64xf32>
    %222 = vector.shape_cast %221 : vector<1x32x64xf32> to vector<32x64xf32>
    %cst_201 = arith.constant dense<0.000000e+00> : vector<8x64xf32>
    %223 = tpu.matmul %220, %222, %cst_201 {dimension_numbers = #tpu.dot_dimension_numbers<[1], [0], [0], [1], [0, 0, 1, 1], [], []>} : vector<8x32xf32>, vector<32x64xf32>, vector<8x64xf32> -> vector<8x64xf32>
    %224 = arith.addf %217, %223 : vector<8x64xf32>
    %c5_202 = arith.constant 5 : index
    %c0_203 = arith.constant 0 : index
    %c0_204 = arith.constant 0 : index
    %225 = vector.load %arg9[%c5_202, %c0_203, %c0_204] : memref<9x8x32xf32, #tpu.memory_space<vmem>>, vector<1x8x32xf32>
    %226 = vector.shape_cast %225 : vector<1x8x32xf32> to vector<8x32xf32>
    %cst_205 = arith.constant dense<0.000000e+00> : vector<8x32xf32>
    %227 = tpu.matmul %226, %190, %cst_205 {dimension_numbers = #tpu.dot_dimension_numbers<[1], [0], [0], [1], [0, 0, 1, 1], [], []>} : vector<8x32xf32>, vector<32x32xf32>, vector<8x32xf32> -> vector<8x32xf32>
    %c5_206 = arith.constant 5 : index
    %c0_207 = arith.constant 0 : index
    %c0_208 = arith.constant 0 : index
    %228 = vector.load %arg10[%c5_206, %c0_207, %c0_208] : memref<9x32x64xf32, #tpu.memory_space<vmem>>, vector<1x32x64xf32>
    %229 = vector.shape_cast %228 : vector<1x32x64xf32> to vector<32x64xf32>
    %cst_209 = arith.constant dense<0.000000e+00> : vector<8x64xf32>
    %230 = tpu.matmul %227, %229, %cst_209 {dimension_numbers = #tpu.dot_dimension_numbers<[1], [0], [0], [1], [0, 0, 1, 1], [], []>} : vector<8x32xf32>, vector<32x64xf32>, vector<8x64xf32> -> vector<8x64xf32>
    %231 = arith.addf %224, %230 : vector<8x64xf32>
    %c6_210 = arith.constant 6 : index
    %c0_211 = arith.constant 0 : index
    %c0_212 = arith.constant 0 : index
    %232 = vector.load %arg9[%c6_210, %c0_211, %c0_212] : memref<9x8x32xf32, #tpu.memory_space<vmem>>, vector<1x8x32xf32>
    %233 = vector.shape_cast %232 : vector<1x8x32xf32> to vector<8x32xf32>
    %cst_213 = arith.constant dense<0.000000e+00> : vector<8x32xf32>
    %234 = tpu.matmul %233, %190, %cst_213 {dimension_numbers = #tpu.dot_dimension_numbers<[1], [0], [0], [1], [0, 0, 1, 1], [], []>} : vector<8x32xf32>, vector<32x32xf32>, vector<8x32xf32> -> vector<8x32xf32>
    %c6_214 = arith.constant 6 : index
    %c0_215 = arith.constant 0 : index
    %c0_216 = arith.constant 0 : index
    %235 = vector.load %arg10[%c6_214, %c0_215, %c0_216] : memref<9x32x64xf32, #tpu.memory_space<vmem>>, vector<1x32x64xf32>
    %236 = vector.shape_cast %235 : vector<1x32x64xf32> to vector<32x64xf32>
    %cst_217 = arith.constant dense<0.000000e+00> : vector<8x64xf32>
    %237 = tpu.matmul %234, %236, %cst_217 {dimension_numbers = #tpu.dot_dimension_numbers<[1], [0], [0], [1], [0, 0, 1, 1], [], []>} : vector<8x32xf32>, vector<32x64xf32>, vector<8x64xf32> -> vector<8x64xf32>
    %238 = arith.addf %231, %237 : vector<8x64xf32>
    %c7_218 = arith.constant 7 : index
    %c0_219 = arith.constant 0 : index
    %c0_220 = arith.constant 0 : index
    %239 = vector.load %arg9[%c7_218, %c0_219, %c0_220] : memref<9x8x32xf32, #tpu.memory_space<vmem>>, vector<1x8x32xf32>
    %240 = vector.shape_cast %239 : vector<1x8x32xf32> to vector<8x32xf32>
    %cst_221 = arith.constant dense<0.000000e+00> : vector<8x32xf32>
    %241 = tpu.matmul %240, %190, %cst_221 {dimension_numbers = #tpu.dot_dimension_numbers<[1], [0], [0], [1], [0, 0, 1, 1], [], []>} : vector<8x32xf32>, vector<32x32xf32>, vector<8x32xf32> -> vector<8x32xf32>
    %c7_222 = arith.constant 7 : index
    %c0_223 = arith.constant 0 : index
    %c0_224 = arith.constant 0 : index
    %242 = vector.load %arg10[%c7_222, %c0_223, %c0_224] : memref<9x32x64xf32, #tpu.memory_space<vmem>>, vector<1x32x64xf32>
    %243 = vector.shape_cast %242 : vector<1x32x64xf32> to vector<32x64xf32>
    %cst_225 = arith.constant dense<0.000000e+00> : vector<8x64xf32>
    %244 = tpu.matmul %241, %243, %cst_225 {dimension_numbers = #tpu.dot_dimension_numbers<[1], [0], [0], [1], [0, 0, 1, 1], [], []>} : vector<8x32xf32>, vector<32x64xf32>, vector<8x64xf32> -> vector<8x64xf32>
    %245 = arith.addf %238, %244 : vector<8x64xf32>
    %c8_226 = arith.constant 8 : index
    %c0_227 = arith.constant 0 : index
    %c0_228 = arith.constant 0 : index
    %246 = vector.load %arg9[%c8_226, %c0_227, %c0_228] : memref<9x8x32xf32, #tpu.memory_space<vmem>>, vector<1x8x32xf32>
    %247 = vector.shape_cast %246 : vector<1x8x32xf32> to vector<8x32xf32>
    %cst_229 = arith.constant dense<0.000000e+00> : vector<8x32xf32>
    %248 = tpu.matmul %247, %190, %cst_229 {dimension_numbers = #tpu.dot_dimension_numbers<[1], [0], [0], [1], [0, 0, 1, 1], [], []>} : vector<8x32xf32>, vector<32x32xf32>, vector<8x32xf32> -> vector<8x32xf32>
    %c8_230 = arith.constant 8 : index
    %c0_231 = arith.constant 0 : index
    %c0_232 = arith.constant 0 : index
    %249 = vector.load %arg10[%c8_230, %c0_231, %c0_232] : memref<9x32x64xf32, #tpu.memory_space<vmem>>, vector<1x32x64xf32>
    %250 = vector.shape_cast %249 : vector<1x32x64xf32> to vector<32x64xf32>
    %cst_233 = arith.constant dense<0.000000e+00> : vector<8x64xf32>
    %251 = tpu.matmul %248, %250, %cst_233 {dimension_numbers = #tpu.dot_dimension_numbers<[1], [0], [0], [1], [0, 0, 1, 1], [], []>} : vector<8x32xf32>, vector<32x64xf32>, vector<8x64xf32> -> vector<8x64xf32>
    %252 = arith.addf %245, %251 : vector<8x64xf32>
    %cst_234 = arith.constant dense<0.000000e+00> : vector<64xf32>
    %253 = vector.multi_reduction <add>, %252, %cst_234 [0] : vector<8x64xf32> to vector<64xf32>
    %254 = vector.shape_cast %253 : vector<64xf32> to vector<1x64xf32>
    %cst_235 = arith.constant 1.250000e-01 : f32
    %255 = vector.broadcast %cst_235 : f32 to vector<1x64xf32>
    %256 = arith.mulf %254, %255 : vector<1x64xf32>
    %257 = arith.mulf %252, %252 : vector<8x64xf32>
    %cst_236 = arith.constant dense<0.000000e+00> : vector<64xf32>
    %258 = vector.multi_reduction <add>, %257, %cst_236 [0] : vector<8x64xf32> to vector<64xf32>
    %259 = vector.shape_cast %258 : vector<64xf32> to vector<1x64xf32>
    %cst_237 = arith.constant 1.250000e-01 : f32
    %260 = vector.broadcast %cst_237 : f32 to vector<1x64xf32>
    %261 = arith.mulf %259, %260 : vector<1x64xf32>
    %262 = arith.mulf %256, %256 : vector<1x64xf32>
    %263 = arith.subf %261, %262 : vector<1x64xf32>
    %cst_238 = arith.constant 0.000000e+00 : f32
    %264 = vector.broadcast %cst_238 : f32 to vector<1x64xf32>
    %265 = arith.maximumf %263, %264 : vector<1x64xf32>
    %c0_239 = arith.constant 0 : index
    %c0_240 = arith.constant 0 : index
    %266 = vector.load %arg11[%c0_239, %c0_240] : memref<1x64xf32, #tpu.memory_space<vmem>>, vector<1x64xf32>
    %cst_241 = arith.constant 9.99999974E-6 : f32
    %267 = vector.broadcast %cst_241 : f32 to vector<1x64xf32>
    %268 = arith.addf %265, %267 : vector<1x64xf32>
    %269 = math.rsqrt %268 : vector<1x64xf32>
    %270 = arith.mulf %266, %269 : vector<1x64xf32>
    %c0_242 = arith.constant 0 : index
    %c0_243 = arith.constant 0 : index
    %271 = vector.load %arg12[%c0_242, %c0_243] : memref<1x64xf32, #tpu.memory_space<vmem>>, vector<1x64xf32>
    %272 = arith.mulf %256, %270 : vector<1x64xf32>
    %273 = arith.subf %271, %272 : vector<1x64xf32>
    %274 = vector.broadcast %270 : vector<1x64xf32> to vector<8x64xf32>
    %275 = arith.mulf %252, %274 : vector<8x64xf32>
    %276 = vector.broadcast %273 : vector<1x64xf32> to vector<8x64xf32>
    %277 = arith.addf %275, %276 : vector<8x64xf32>
    %cst_244 = arith.constant 5.000000e-01 : f32
    %278 = vector.broadcast %cst_244 : f32 to vector<8x64xf32>
    %279 = arith.mulf %278, %277 : vector<8x64xf32>
    %cst_245 = arith.constant 0.707106769 : f32
    %280 = vector.broadcast %cst_245 : f32 to vector<8x64xf32>
    %281 = arith.mulf %277, %280 : vector<8x64xf32>
    %282 = math.erf %281 : vector<8x64xf32>
    %cst_246 = arith.constant 1.000000e+00 : f32
    %283 = vector.broadcast %cst_246 : f32 to vector<8x64xf32>
    %284 = arith.addf %283, %282 : vector<8x64xf32>
    %285 = arith.mulf %279, %284 : vector<8x64xf32>
    %c0_247 = arith.constant 0 : index
    %c0_248 = arith.constant 0 : index
    %c0_249 = arith.constant 0 : index
    %286 = vector.load %arg13[%c0_247, %c0_248, %c0_249] : memref<4x2x8xf32, #tpu.memory_space<vmem>>, vector<1x2x8xf32>
    %287 = vector.shape_cast %286 : vector<1x2x8xf32> to vector<2x8xf32>
    %cst_250 = arith.constant dense<0.000000e+00> : vector<2x64xf32>
    %288 = tpu.matmul %287, %285, %cst_250 {dimension_numbers = #tpu.dot_dimension_numbers<[1], [0], [0], [1], [0, 0, 1, 1], [], []>} : vector<2x8xf32>, vector<8x64xf32>, vector<2x64xf32> -> vector<2x64xf32>
    %c0_251 = arith.constant 0 : index
    %c0_252 = arith.constant 0 : index
    %c0_253 = arith.constant 0 : index
    %289 = vector.load %arg14[%c0_251, %c0_252, %c0_253] : memref<4x64x128xf32, #tpu.memory_space<vmem>>, vector<1x64x128xf32>
    %290 = vector.shape_cast %289 : vector<1x64x128xf32> to vector<64x128xf32>
    %cst_254 = arith.constant dense<0.000000e+00> : vector<2x128xf32>
    %291 = tpu.matmul %288, %290, %cst_254 {dimension_numbers = #tpu.dot_dimension_numbers<[1], [0], [0], [1], [0, 0, 1, 1], [], []>} : vector<2x64xf32>, vector<64x128xf32>, vector<2x128xf32> -> vector<2x128xf32>
    %c1_255 = arith.constant 1 : index
    %c0_256 = arith.constant 0 : index
    %c0_257 = arith.constant 0 : index
    %292 = vector.load %arg13[%c1_255, %c0_256, %c0_257] : memref<4x2x8xf32, #tpu.memory_space<vmem>>, vector<1x2x8xf32>
    %293 = vector.shape_cast %292 : vector<1x2x8xf32> to vector<2x8xf32>
    %cst_258 = arith.constant dense<0.000000e+00> : vector<2x64xf32>
    %294 = tpu.matmul %293, %285, %cst_258 {dimension_numbers = #tpu.dot_dimension_numbers<[1], [0], [0], [1], [0, 0, 1, 1], [], []>} : vector<2x8xf32>, vector<8x64xf32>, vector<2x64xf32> -> vector<2x64xf32>
    %c1_259 = arith.constant 1 : index
    %c0_260 = arith.constant 0 : index
    %c0_261 = arith.constant 0 : index
    %295 = vector.load %arg14[%c1_259, %c0_260, %c0_261] : memref<4x64x128xf32, #tpu.memory_space<vmem>>, vector<1x64x128xf32>
    %296 = vector.shape_cast %295 : vector<1x64x128xf32> to vector<64x128xf32>
    %cst_262 = arith.constant dense<0.000000e+00> : vector<2x128xf32>
    %297 = tpu.matmul %294, %296, %cst_262 {dimension_numbers = #tpu.dot_dimension_numbers<[1], [0], [0], [1], [0, 0, 1, 1], [], []>} : vector<2x64xf32>, vector<64x128xf32>, vector<2x128xf32> -> vector<2x128xf32>
    %298 = arith.addf %291, %297 : vector<2x128xf32>
    %c2_263 = arith.constant 2 : index
    %c0_264 = arith.constant 0 : index
    %c0_265 = arith.constant 0 : index
    %299 = vector.load %arg13[%c2_263, %c0_264, %c0_265] : memref<4x2x8xf32, #tpu.memory_space<vmem>>, vector<1x2x8xf32>
    %300 = vector.shape_cast %299 : vector<1x2x8xf32> to vector<2x8xf32>
    %cst_266 = arith.constant dense<0.000000e+00> : vector<2x64xf32>
    %301 = tpu.matmul %300, %285, %cst_266 {dimension_numbers = #tpu.dot_dimension_numbers<[1], [0], [0], [1], [0, 0, 1, 1], [], []>} : vector<2x8xf32>, vector<8x64xf32>, vector<2x64xf32> -> vector<2x64xf32>
    %c2_267 = arith.constant 2 : index
    %c0_268 = arith.constant 0 : index
    %c0_269 = arith.constant 0 : index
    %302 = vector.load %arg14[%c2_267, %c0_268, %c0_269] : memref<4x64x128xf32, #tpu.memory_space<vmem>>, vector<1x64x128xf32>
    %303 = vector.shape_cast %302 : vector<1x64x128xf32> to vector<64x128xf32>
    %cst_270 = arith.constant dense<0.000000e+00> : vector<2x128xf32>
    %304 = tpu.matmul %301, %303, %cst_270 {dimension_numbers = #tpu.dot_dimension_numbers<[1], [0], [0], [1], [0, 0, 1, 1], [], []>} : vector<2x64xf32>, vector<64x128xf32>, vector<2x128xf32> -> vector<2x128xf32>
    %305 = arith.addf %298, %304 : vector<2x128xf32>
    %c3_271 = arith.constant 3 : index
    %c0_272 = arith.constant 0 : index
    %c0_273 = arith.constant 0 : index
    %306 = vector.load %arg13[%c3_271, %c0_272, %c0_273] : memref<4x2x8xf32, #tpu.memory_space<vmem>>, vector<1x2x8xf32>
    %307 = vector.shape_cast %306 : vector<1x2x8xf32> to vector<2x8xf32>
    %cst_274 = arith.constant dense<0.000000e+00> : vector<2x64xf32>
    %308 = tpu.matmul %307, %285, %cst_274 {dimension_numbers = #tpu.dot_dimension_numbers<[1], [0], [0], [1], [0, 0, 1, 1], [], []>} : vector<2x8xf32>, vector<8x64xf32>, vector<2x64xf32> -> vector<2x64xf32>
    %c3_275 = arith.constant 3 : index
    %c0_276 = arith.constant 0 : index
    %c0_277 = arith.constant 0 : index
    %309 = vector.load %arg14[%c3_275, %c0_276, %c0_277] : memref<4x64x128xf32, #tpu.memory_space<vmem>>, vector<1x64x128xf32>
    %310 = vector.shape_cast %309 : vector<1x64x128xf32> to vector<64x128xf32>
    %cst_278 = arith.constant dense<0.000000e+00> : vector<2x128xf32>
    %311 = tpu.matmul %308, %310, %cst_278 {dimension_numbers = #tpu.dot_dimension_numbers<[1], [0], [0], [1], [0, 0, 1, 1], [], []>} : vector<2x64xf32>, vector<64x128xf32>, vector<2x128xf32> -> vector<2x128xf32>
    %312 = arith.addf %305, %311 : vector<2x128xf32>
    %cst_279 = arith.constant dense<0.000000e+00> : vector<128xf32>
    %313 = vector.multi_reduction <add>, %312, %cst_279 [0] : vector<2x128xf32> to vector<128xf32>
    %314 = vector.shape_cast %313 : vector<128xf32> to vector<1x128xf32>
    %cst_280 = arith.constant 5.000000e-01 : f32
    %315 = vector.broadcast %cst_280 : f32 to vector<1x128xf32>
    %316 = arith.mulf %314, %315 : vector<1x128xf32>
    %317 = arith.mulf %312, %312 : vector<2x128xf32>
    %cst_281 = arith.constant dense<0.000000e+00> : vector<128xf32>
    %318 = vector.multi_reduction <add>, %317, %cst_281 [0] : vector<2x128xf32> to vector<128xf32>
    %319 = vector.shape_cast %318 : vector<128xf32> to vector<1x128xf32>
    %cst_282 = arith.constant 5.000000e-01 : f32
    %320 = vector.broadcast %cst_282 : f32 to vector<1x128xf32>
    %321 = arith.mulf %319, %320 : vector<1x128xf32>
    %322 = arith.mulf %316, %316 : vector<1x128xf32>
    %323 = arith.subf %321, %322 : vector<1x128xf32>
    %cst_283 = arith.constant 0.000000e+00 : f32
    %324 = vector.broadcast %cst_283 : f32 to vector<1x128xf32>
    %325 = arith.maximumf %323, %324 : vector<1x128xf32>
    %c0_284 = arith.constant 0 : index
    %c0_285 = arith.constant 0 : index
    %326 = vector.load %arg15[%c0_284, %c0_285] : memref<1x128xf32, #tpu.memory_space<vmem>>, vector<1x128xf32>
    %cst_286 = arith.constant 9.99999974E-6 : f32
    %327 = vector.broadcast %cst_286 : f32 to vector<1x128xf32>
    %328 = arith.addf %325, %327 : vector<1x128xf32>
    %329 = math.rsqrt %328 : vector<1x128xf32>
    %330 = arith.mulf %326, %329 : vector<1x128xf32>
    %c0_287 = arith.constant 0 : index
    %c0_288 = arith.constant 0 : index
    %331 = vector.load %arg16[%c0_287, %c0_288] : memref<1x128xf32, #tpu.memory_space<vmem>>, vector<1x128xf32>
    %332 = arith.mulf %316, %330 : vector<1x128xf32>
    %333 = arith.subf %331, %332 : vector<1x128xf32>
    %334 = vector.broadcast %330 : vector<1x128xf32> to vector<2x128xf32>
    %335 = arith.mulf %312, %334 : vector<2x128xf32>
    %336 = vector.broadcast %333 : vector<1x128xf32> to vector<2x128xf32>
    %337 = arith.addf %335, %336 : vector<2x128xf32>
    %cst_289 = arith.constant 5.000000e-01 : f32
    %338 = vector.broadcast %cst_289 : f32 to vector<2x128xf32>
    %339 = arith.mulf %338, %337 : vector<2x128xf32>
    %cst_290 = arith.constant 0.707106769 : f32
    %340 = vector.broadcast %cst_290 : f32 to vector<2x128xf32>
    %341 = arith.mulf %337, %340 : vector<2x128xf32>
    %342 = math.erf %341 : vector<2x128xf32>
    %cst_291 = arith.constant 1.000000e+00 : f32
    %343 = vector.broadcast %cst_291 : f32 to vector<2x128xf32>
    %344 = arith.addf %343, %342 : vector<2x128xf32>
    %345 = arith.mulf %339, %344 : vector<2x128xf32>
    %c0_292 = arith.constant 0 : index
    %c0_293 = arith.constant 0 : index
    %c0_294 = arith.constant 0 : index
    %346 = vector.load %arg17[%c0_292, %c0_293, %c0_294] : memref<1x2x2xf32, #tpu.memory_space<vmem>>, vector<1x2x2xf32>
    %347 = vector.shape_cast %346 : vector<1x2x2xf32> to vector<2x2xf32>
    %cst_295 = arith.constant dense<0.000000e+00> : vector<2x128xf32>
    %348 = tpu.matmul %347, %345, %cst_295 {dimension_numbers = #tpu.dot_dimension_numbers<[1], [0], [0], [1], [0, 0, 1, 1], [], []>} : vector<2x2xf32>, vector<2x128xf32>, vector<2x128xf32> -> vector<2x128xf32>
    %c0_296 = arith.constant 0 : index
    %c0_297 = arith.constant 0 : index
    %c0_298 = arith.constant 0 : index
    %349 = vector.load %arg18[%c0_296, %c0_297, %c0_298] : memref<1x128x256xf32, #tpu.memory_space<vmem>>, vector<1x128x256xf32>
    %350 = vector.shape_cast %349 : vector<1x128x256xf32> to vector<128x256xf32>
    %cst_299 = arith.constant dense<0.000000e+00> : vector<2x256xf32>
    %351 = tpu.matmul %348, %350, %cst_299 {dimension_numbers = #tpu.dot_dimension_numbers<[1], [0], [0], [1], [0, 0, 1, 1], [], []>} : vector<2x128xf32>, vector<128x256xf32>, vector<2x256xf32> -> vector<2x256xf32>
    %cst_300 = arith.constant dense<0.000000e+00> : vector<256xf32>
    %352 = vector.multi_reduction <add>, %351, %cst_300 [0] : vector<2x256xf32> to vector<256xf32>
    %353 = vector.shape_cast %352 : vector<256xf32> to vector<1x256xf32>
    %cst_301 = arith.constant 5.000000e-01 : f32
    %354 = vector.broadcast %cst_301 : f32 to vector<1x256xf32>
    %355 = arith.mulf %353, %354 : vector<1x256xf32>
    %356 = arith.mulf %351, %351 : vector<2x256xf32>
    %cst_302 = arith.constant dense<0.000000e+00> : vector<256xf32>
    %357 = vector.multi_reduction <add>, %356, %cst_302 [0] : vector<2x256xf32> to vector<256xf32>
    %358 = vector.shape_cast %357 : vector<256xf32> to vector<1x256xf32>
    %cst_303 = arith.constant 5.000000e-01 : f32
    %359 = vector.broadcast %cst_303 : f32 to vector<1x256xf32>
    %360 = arith.mulf %358, %359 : vector<1x256xf32>
    %361 = arith.mulf %355, %355 : vector<1x256xf32>
    %362 = arith.subf %360, %361 : vector<1x256xf32>
    %cst_304 = arith.constant 0.000000e+00 : f32
    %363 = vector.broadcast %cst_304 : f32 to vector<1x256xf32>
    %364 = arith.maximumf %362, %363 : vector<1x256xf32>
    %c0_305 = arith.constant 0 : index
    %c0_306 = arith.constant 0 : index
    %365 = vector.load %arg19[%c0_305, %c0_306] : memref<1x256xf32, #tpu.memory_space<vmem>>, vector<1x256xf32>
    %cst_307 = arith.constant 9.99999974E-6 : f32
    %366 = vector.broadcast %cst_307 : f32 to vector<1x256xf32>
    %367 = arith.addf %364, %366 : vector<1x256xf32>
    %368 = math.rsqrt %367 : vector<1x256xf32>
    %369 = arith.mulf %365, %368 : vector<1x256xf32>
    %c0_308 = arith.constant 0 : index
    %c0_309 = arith.constant 0 : index
    %370 = vector.load %arg20[%c0_308, %c0_309] : memref<1x256xf32, #tpu.memory_space<vmem>>, vector<1x256xf32>
    %371 = arith.mulf %355, %369 : vector<1x256xf32>
    %372 = arith.subf %370, %371 : vector<1x256xf32>
    %373 = vector.broadcast %369 : vector<1x256xf32> to vector<2x256xf32>
    %374 = arith.mulf %351, %373 : vector<2x256xf32>
    %375 = vector.broadcast %372 : vector<1x256xf32> to vector<2x256xf32>
    %376 = arith.addf %374, %375 : vector<2x256xf32>
    %cst_310 = arith.constant 5.000000e-01 : f32
    %377 = vector.broadcast %cst_310 : f32 to vector<2x256xf32>
    %378 = arith.mulf %377, %376 : vector<2x256xf32>
    %cst_311 = arith.constant 0.707106769 : f32
    %379 = vector.broadcast %cst_311 : f32 to vector<2x256xf32>
    %380 = arith.mulf %376, %379 : vector<2x256xf32>
    %381 = math.erf %380 : vector<2x256xf32>
    %cst_312 = arith.constant 1.000000e+00 : f32
    %382 = vector.broadcast %cst_312 : f32 to vector<2x256xf32>
    %383 = arith.addf %382, %381 : vector<2x256xf32>
    %384 = arith.mulf %378, %383 : vector<2x256xf32>
    %c0_313 = arith.constant 0 : index
    %c0_314 = arith.constant 0 : index
    %c0_315 = arith.constant 0 : index
    %385 = vector.load %arg21[%c0_313, %c0_314, %c0_315] : memref<1x2x2xf32, #tpu.memory_space<vmem>>, vector<1x2x2xf32>
    %386 = vector.shape_cast %385 : vector<1x2x2xf32> to vector<2x2xf32>
    %cst_316 = arith.constant dense<0.000000e+00> : vector<2x256xf32>
    %387 = tpu.matmul %386, %384, %cst_316 {dimension_numbers = #tpu.dot_dimension_numbers<[1], [0], [0], [1], [0, 0, 1, 1], [], []>} : vector<2x2xf32>, vector<2x256xf32>, vector<2x256xf32> -> vector<2x256xf32>
    %c0_317 = arith.constant 0 : index
    %c0_318 = arith.constant 0 : index
    %c0_319 = arith.constant 0 : index
    %388 = vector.load %arg22[%c0_317, %c0_318, %c0_319] : memref<1x256x1xf32, #tpu.memory_space<vmem>>, vector<1x256x1xf32>
    %389 = vector.shape_cast %388 : vector<1x256x1xf32> to vector<256x1xf32>
    %cst_320 = arith.constant dense<0.000000e+00> : vector<2x1xf32>
    %390 = tpu.matmul %387, %389, %cst_320 {dimension_numbers = #tpu.dot_dimension_numbers<[1], [0], [0], [1], [0, 0, 1, 1], [], []>} : vector<2x256xf32>, vector<256x1xf32>, vector<2x1xf32> -> vector<2x1xf32>
    %c0_321 = arith.constant 0 : index
    %c0_322 = arith.constant 0 : index
    %391 = vector.load %arg23[%c0_321, %c0_322] : memref<2x1xf32, #tpu.memory_space<vmem>>, vector<2x1xf32>
    tpu.vector_store %arg23[%c0_321, %c0_322], %390 {strides = array<i32>} : memref<2x1xf32, #tpu.memory_space<vmem>>, vector<2x1xf32>,
    return
  }
}

</mosaic_0001>

<llo_original>
// kernel: tpu_custom_call.1
$region0: #{tpu_custom_call.1}
  #allocation0 [shape = 'u32[]', space=smem, size = 0x4, offset = 0x4, fixed_abs, tag = 'smem constant byte address 0x4 - core index']
  #allocation1 [shape = 'u32[72,128]{1,0:T(1,128)}', space=vmem, size = 0x9000, scoped, tag = 'internal scratch']
  %s0 = inlined_call_operand.vmem [shape: f32[512,3], index: 0, kind: input, shape index: {}]
  %s1 = inlined_call_operand.hbm [shape: f32[9,128,512], index: 1, kind: input, shape index: {}]
  %s2 = inlined_call_operand.hbm [shape: f32[9,3,16], index: 2, kind: input, shape index: {}]
  %s3 = inlined_call_operand.hbm [shape: f32[1,16], index: 3, kind: input, shape index: {}]
  %s4 = inlined_call_operand.hbm [shape: f32[1,16], index: 4, kind: input, shape index: {}]
  %s5 = inlined_call_operand.hbm [shape: f32[9,32,128], index: 5, kind: input, shape index: {}]
  %s6 = inlined_call_operand.hbm [shape: f32[9,16,32], index: 6, kind: input, shape index: {}]
  %s7 = inlined_call_operand.hbm [shape: f32[1,32], index: 7, kind: input, shape index: {}]
  %s8 = inlined_call_operand.hbm [shape: f32[1,32], index: 8, kind: input, shape index: {}]
  %s9 = inlined_call_operand.hbm [shape: f32[9,8,32], index: 9, kind: input, shape index: {}]
  %s10 = inlined_call_operand.hbm [shape: f32[9,32,64], index: 10, kind: input, shape index: {}]
  %s11 = inlined_call_operand.hbm [shape: f32[1,64], index: 11, kind: input, shape index: {}]
  %s12 = inlined_call_operand.hbm [shape: f32[1,64], index: 12, kind: input, shape index: {}]
  %s13 = inlined_call_operand.hbm [shape: f32[4,2,8], index: 13, kind: input, shape index: {}]
  %s14 = inlined_call_operand.hbm [shape: f32[4,64,128], index: 14, kind: input, shape index: {}]
  %s15 = inlined_call_operand.hbm [shape: f32[1,128], index: 15, kind: input, shape index: {}]
  %s16 = inlined_call_operand.hbm [shape: f32[1,128], index: 16, kind: input, shape index: {}]
  %s17 = inlined_call_operand.hbm [shape: f32[1,2,2], index: 17, kind: input, shape index: {}]
  %s18 = inlined_call_operand.hbm [shape: f32[1,128,256], index: 18, kind: input, shape index: {}]
  %s19 = inlined_call_operand.hbm [shape: f32[1,256], index: 19, kind: input, shape index: {}]
  %s20 = inlined_call_operand.hbm [shape: f32[1,256], index: 20, kind: input, shape index: {}]
  %s21 = inlined_call_operand.hbm [shape: f32[1,2,2], index: 21, kind: input, shape index: {}]
  %s22 = inlined_call_operand.vmem [shape: f32[1,256,1], index: 22, kind: input, shape index: {}]
  %s23 = inlined_call_operand.vmem [shape: f32[2,1], index: 23, kind: output, shape index: {}]
  %s24 = sld [smem:[#allocation0]]
  $region186: #{tpu_custom_call.1} parent=0
    _
  %s26 = ssub.s32 1, %s24
  %s27 = scalar_select 0, %s26, %s24
  $region1: #{tpu_custom_call.1} parent=0
    #allocation2 [shape = 'u8[2359296]{0}', space=vmem, size = 0x240000, scoped, tag = 'input window, operand 1, single buffered']
    #allocation3 [shape = 's32[1]{0}', space=sflag, size = 0x4, scoped, tag = 'scoped memory for tpu_custom_call.1']
    #allocation4 [shape = 'u8[18432]{0}', space=vmem, size = 0x4800, scoped, tag = 'input window, operand 2, single buffered']
    #allocation5 [shape = 's32[1]{0}', space=sflag, size = 0x4, scoped, tag = 'scoped memory for tpu_custom_call.1']
    #allocation6 [shape = 'u8[512]{0}', space=vmem, size = 0x400, scoped, tag = 'input window, operand 3, single buffered']
    #allocation7 [shape = 'u8[512]{0}', space=vmem, size = 0x400, scoped, tag = 'input window, operand 4, single buffered']
    #allocation8 [shape = 's32[1]{0}', space=sflag, size = 0x4, scoped, tag = 'scoped memory for tpu_custom_call.1']
    #allocation9 [shape = 'u8[147456]{0}', space=vmem, size = 0x24000, scoped, tag = 'input window, operand 5, single buffered']
    #allocation10 [shape = 'u8[73728]{0}', space=vmem, size = 0x12000, scoped, tag = 'input window, operand 6, single buffered']
    #allocation11 [shape = 's32[1]{0}', space=sflag, size = 0x4, scoped, tag = 'scoped memory for tpu_custom_call.1']
    #allocation12 [shape = 'u8[512]{0}', space=vmem, size = 0x400, scoped, tag = 'input window, operand 7, single buffered']
    #allocation13 [shape = 'u8[512]{0}', space=vmem, size = 0x400, scoped, tag = 'input window, operand 8, single buffered']
    #allocation14 [shape = 's32[1]{0}', space=sflag, size = 0x4, scoped, tag = 'scoped memory for tpu_custom_call.1']
    #allocation15 [shape = 'u8[36864]{0}', space=vmem, size = 0x9000, scoped, tag = 'input window, operand 9, single buffered']
    #allocation16 [shape = 'u8[147456]{0}', space=vmem, size = 0x24000, scoped, tag = 'input window, operand 10, single buffered']
    #allocation17 [shape = 's32[1]{0}', space=sflag, size = 0x4, scoped, tag = 'scoped memory for tpu_custom_call.1']
    #allocation18 [shape = 'u8[512]{0}', space=vmem, size = 0x400, scoped, tag = 'input window, operand 11, single buffered']
    #allocation19 [shape = 'u8[512]{0}', space=vmem, size = 0x400, scoped, tag = 'input window, operand 12, single buffered']
    #allocation20 [shape = 's32[1]{0}', space=sflag, size = 0x4, scoped, tag = 'scoped memory for tpu_custom_call.1']
    #allocation21 [shape = 'u8[4096]{0}', space=vmem, size = 0x1000, scoped, tag = 'input window, operand 13, single buffered']
    #allocation22 [shape = 'u8[131072]{0}', space=vmem, size = 0x20000, scoped, tag = 'input window, operand 14, single buffered']
    #allocation23 [shape = 's32[1]{0}', space=sflag, size = 0x4, scoped, tag = 'scoped memory for tpu_custom_call.1']
    #allocation24 [shape = 'u8[512]{0}', space=vmem, size = 0x400, scoped, tag = 'input window, operand 15, single buffered']
    #allocation25 [shape = 'u8[512]{0}', space=vmem, size = 0x400, scoped, tag = 'input window, operand 16, single buffered']
    #allocation26 [shape = 's32[1]{0}', space=sflag, size = 0x4, scoped, tag = 'scoped memory for tpu_custom_call.1']
    #allocation27 [shape = 'u8[1024]{0}', space=vmem, size = 0x400, scoped, tag = 'input window, operand 17, single buffered']
    #allocation28 [shape = 'u8[131072]{0}', space=vmem, size = 0x20000, scoped, tag = 'input window, operand 18, single buffered']
    #allocation29 [shape = 's32[1]{0}', space=sflag, size = 0x4, scoped, tag = 'scoped memory for tpu_custom_call.1']
    #allocation30 [shape = 'u8[1024]{0}', space=vmem, size = 0x400, scoped, tag = 'input window, operand 19, single buffered']
    #allocation31 [shape = 'u8[1024]{0}', space=vmem, size = 0x400, scoped, tag = 'input window, operand 20, single buffered']
    #allocation32 [shape = 's32[1]{0}', space=sflag, size = 0x4, scoped, tag = 'scoped memory for tpu_custom_call.1']
    #allocation33 [shape = 'u8[1024]{0}', space=vmem, size = 0x400, scoped, tag = 'input window, operand 21, single buffered']
    %28 = vsyncpa [#allocation3], 0
    %29 = vsyncpa [#allocation5], 0
    %30 = vsyncpa [#allocation8], 0
    %31 = vsyncpa [#allocation11], 0
    %32 = vsyncpa [#allocation14], 0
    %33 = vsyncpa [#allocation17], 0
    %34 = vsyncpa [#allocation20], 0
    %35 = vsyncpa [#allocation23], 0
    %36 = vsyncpa [#allocation26], 0
    %37 = vsyncpa [#allocation29], 0
    %38 = vsyncpa [#allocation32], 0
    // Predicated region
    $region2: #{tpu_custom_call.1} parent=1 // pred_check
      _
    $region3: #{tpu_custom_call.1} parent=1 // pred_check_branch
      %40 = sbr.rel (0) target = $region5
    $region4: #{tpu_custom_call.1} parent=1 // pred_region
      _
    $region5: #{tpu_custom_call.1} parent=1 // pred_fallthru
      _
    // Predicated region
    $region6: #{tpu_custom_call.1} parent=1 // pred_check
      _
    $region7: #{tpu_custom_call.1} parent=1 // pred_check_branch
      %42 = sbr.rel (0) target = $region9
    $region8: #{tpu_custom_call.1} parent=1 // pred_region
      %44 = vsyncadd [#allocation3], 0
      %s45 = sshll.u32 %s1, 4
      %s46 = int_to_ptr.hbm [resolvable:$true] %s45
      %s47 = sshll.u32 [#allocation2], 4
      %s48 = int_to_ptr.vmem [resolvable:$true] %s47
      %53 = dma.hbm_to_vmem [thread:$0]  %s46, 73728, %s48, [#allocation3], 512, 512, 32
    $region9: #{tpu_custom_call.1} parent=1 // pred_fallthru
      _
    // Predicated region
    $region10: #{tpu_custom_call.1} parent=1 // pred_check
      _
    $region11: #{tpu_custom_call.1} parent=1 // pred_check_branch
      %55 = sbr.rel (0) target = $region13
    $region12: #{tpu_custom_call.1} parent=1 // pred_region
      %57 = vsyncadd [#allocation5], 0
      %s58 = sshll.u32 %s2, 4
      %s59 = int_to_ptr.hbm [resolvable:$true] %s58
      %s60 = sshll.u32 [#allocation4], 4
      %s61 = int_to_ptr.vmem [resolvable:$true] %s60
      %66 = dma.hbm_to_vmem [thread:$0]  %s59, 576, %s61, [#allocation5], 64, 64, 4
    $region13: #{tpu_custom_call.1} parent=1 // pred_fallthru
      _
    // Predicated region
    $region14: #{tpu_custom_call.1} parent=1 // pred_check
      _
    $region15: #{tpu_custom_call.1} parent=1 // pred_check_branch
      %68 = sbr.rel (0) target = $region17
    $region16: #{tpu_custom_call.1} parent=1 // pred_region
      %70 = vsyncadd [#allocation5], 0
      %s72 = sshll.u32 %s3, 4
      %s73 = int_to_ptr.hbm [resolvable:$true] %s72
      %s74 = sshll.u32 [#allocation6], 4
      %s75 = int_to_ptr.vmem [resolvable:$true] %s74
      %77 = dma.hbm_to_vmem [thread:$0]  %s73, 16, %s75, [#allocation5]
    $region17: #{tpu_custom_call.1} parent=1 // pred_fallthru
      _
    // Predicated region
    $region18: #{tpu_custom_call.1} parent=1 // pred_check
      _
    $region19: #{tpu_custom_call.1} parent=1 // pred_check_branch
      %79 = sbr.rel (0) target = $region21
    $region20: #{tpu_custom_call.1} parent=1 // pred_region
      %81 = vsyncadd [#allocation8], 0
      %s83 = sshll.u32 %s4, 4
      %s84 = int_to_ptr.hbm [resolvable:$true] %s83
      %s85 = sshll.u32 [#allocation7], 4
      %s86 = int_to_ptr.vmem [resolvable:$true] %s85
      %88 = dma.hbm_to_vmem [thread:$0]  %s84, 16, %s86, [#allocation8]
    $region21: #{tpu_custom_call.1} parent=1 // pred_fallthru
      _
    // Predicated region
    $region22: #{tpu_custom_call.1} parent=1 // pred_check
      _
    $region23: #{tpu_custom_call.1} parent=1 // pred_check_branch
      %90 = sbr.rel (0) target = $region25
    $region24: #{tpu_custom_call.1} parent=1 // pred_region
      %92 = vsyncadd [#allocation8], 0
      %s93 = sshll.u32 %s5, 4
      %s94 = int_to_ptr.hbm [resolvable:$true] %s93
      %s95 = sshll.u32 [#allocation9], 4
      %s96 = int_to_ptr.vmem [resolvable:$true] %s95
      %101 = dma.hbm_to_vmem [thread:$0]  %s94, 4608, %s96, [#allocation8], 128, 128, 8
    $region25: #{tpu_custom_call.1} parent=1 // pred_fallthru
      _
    // Predicated region
    $region26: #{tpu_custom_call.1} parent=1 // pred_check
      _
    $region27: #{tpu_custom_call.1} parent=1 // pred_check_branch
      %103 = sbr.rel (0) target = $region29
    $region28: #{tpu_custom_call.1} parent=1 // pred_region
      %105 = vsyncadd [#allocation11], 0
      %s106 = sshll.u32 %s6, 4
      %s107 = int_to_ptr.hbm [resolvable:$true] %s106
      %s108 = sshll.u32 [#allocation10], 4
      %s109 = int_to_ptr.vmem [resolvable:$true] %s108
      %114 = dma.hbm_to_vmem [thread:$0]  %s107, 2304, %s109, [#allocation11], 128, 128, 8
    $region29: #{tpu_custom_call.1} parent=1 // pred_fallthru
      _
    // Predicated region
    $region30: #{tpu_custom_call.1} parent=1 // pred_check
      _
    $region31: #{tpu_custom_call.1} parent=1 // pred_check_branch
      %116 = sbr.rel (0) target = $region33
    $region32: #{tpu_custom_call.1} parent=1 // pred_region
      %118 = vsyncadd [#allocation11], 0
      %s120 = sshll.u32 %s7, 4
      %s121 = int_to_ptr.hbm [resolvable:$true] %s120
      %s122 = sshll.u32 [#allocation12], 4
      %s123 = int_to_ptr.vmem [resolvable:$true] %s122
      %125 = dma.hbm_to_vmem [thread:$0]  %s121, 16, %s123, [#allocation11]
    $region33: #{tpu_custom_call.1} parent=1 // pred_fallthru
      _
    // Predicated region
    $region34: #{tpu_custom_call.1} parent=1 // pred_check
      _
    $region35: #{tpu_custom_call.1} parent=1 // pred_check_branch
      %127 = sbr.rel (0) target = $region37
    $region36: #{tpu_custom_call.1} parent=1 // pred_region
      %129 = vsyncadd [#allocation14], 0
      %s131 = sshll.u32 %s8, 4
      %s132 = int_to_ptr.hbm [resolvable:$true] %s131
      %s133 = sshll.u32 [#allocation13], 4
      %s134 = int_to_ptr.vmem [resolvable:$true] %s133
      %136 = dma.hbm_to_vmem [thread:$0]  %s132, 16, %s134, [#allocation14]
    $region37: #{tpu_custom_call.1} parent=1 // pred_fallthru
      _
    // Predicated region
    $region38: #{tpu_custom_call.1} parent=1 // pred_check
      _
    $region39: #{tpu_custom_call.1} parent=1 // pred_check_branch
      %138 = sbr.rel (0) target = $region41
    $region40: #{tpu_custom_call.1} parent=1 // pred_region
      %140 = vsyncadd [#allocation14], 0
      %s141 = sshll.u32 %s9, 4
      %s142 = int_to_ptr.hbm [resolvable:$true] %s141
      %s143 = sshll.u32 [#allocation15], 4
      %s144 = int_to_ptr.vmem [resolvable:$true] %s143
      %149 = dma.hbm_to_vmem [thread:$0]  %s142, 1152, %s144, [#allocation14], 128, 128, 8
    $region41: #{tpu_custom_call.1} parent=1 // pred_fallthru
      _
    // Predicated region
    $region42: #{tpu_custom_call.1} parent=1 // pred_check
      _
    $region43: #{tpu_custom_call.1} parent=1 // pred_check_branch
      %151 = sbr.rel (0) target = $region45
    $region44: #{tpu_custom_call.1} parent=1 // pred_region
      %153 = vsyncadd [#allocation17], 0
      %s154 = sshll.u32 %s10, 4
      %s155 = int_to_ptr.hbm [resolvable:$true] %s154
      %s156 = sshll.u32 [#allocation16], 4
      %s157 = int_to_ptr.vmem [resolvable:$true] %s156
      %162 = dma.hbm_to_vmem [thread:$0]  %s155, 4608, %s157, [#allocation17], 128, 128, 8
    $region45: #{tpu_custom_call.1} parent=1 // pred_fallthru
      _
    // Predicated region
    $region46: #{tpu_custom_call.1} parent=1 // pred_check
      _
    $region47: #{tpu_custom_call.1} parent=1 // pred_check_branch
      %164 = sbr.rel (0) target = $region49
    $region48: #{tpu_custom_call.1} parent=1 // pred_region
      %166 = vsyncadd [#allocation17], 0
      %s168 = sshll.u32 %s11, 4
      %s169 = int_to_ptr.hbm [resolvable:$true] %s168
      %s170 = sshll.u32 [#allocation18], 4
      %s171 = int_to_ptr.vmem [resolvable:$true] %s170
      %173 = dma.hbm_to_vmem [thread:$0]  %s169, 16, %s171, [#allocation17]
    $region49: #{tpu_custom_call.1} parent=1 // pred_fallthru
      _
    // Predicated region
    $region50: #{tpu_custom_call.1} parent=1 // pred_check
      _
    $region51: #{tpu_custom_call.1} parent=1 // pred_check_branch
      %175 = sbr.rel (0) target = $region53
    $region52: #{tpu_custom_call.1} parent=1 // pred_region
      %177 = vsyncadd [#allocation20], 0
      %s179 = sshll.u32 %s12, 4
      %s180 = int_to_ptr.hbm [resolvable:$true] %s179
      %s181 = sshll.u32 [#allocation19], 4
      %s182 = int_to_ptr.vmem [resolvable:$true] %s181
      %184 = dma.hbm_to_vmem [thread:$0]  %s180, 16, %s182, [#allocation20]
    $region53: #{tpu_custom_call.1} parent=1 // pred_fallthru
      _
    // Predicated region
    $region54: #{tpu_custom_call.1} parent=1 // pred_check
      _
    $region55: #{tpu_custom_call.1} parent=1 // pred_check_branch
      %186 = sbr.rel (0) target = $region57
    $region56: #{tpu_custom_call.1} parent=1 // pred_region
      %188 = vsyncadd [#allocation20], 0
      %s189 = sshll.u32 %s13, 4
      %s190 = int_to_ptr.hbm [resolvable:$true] %s189
      %s191 = sshll.u32 [#allocation21], 4
      %s192 = int_to_ptr.vmem [resolvable:$true] %s191
      %197 = dma.hbm_to_vmem [thread:$0]  %s190, 128, %s192, [#allocation20], 32, 32, 2
    $region57: #{tpu_custom_call.1} parent=1 // pred_fallthru
      _
    // Predicated region
    $region58: #{tpu_custom_call.1} parent=1 // pred_check
      _
    $region59: #{tpu_custom_call.1} parent=1 // pred_check_branch
      %199 = sbr.rel (0) target = $region61
    $region60: #{tpu_custom_call.1} parent=1 // pred_region
      %201 = vsyncadd [#allocation23], 0
      %s202 = sshll.u32 %s14, 4
      %s203 = int_to_ptr.hbm [resolvable:$true] %s202
      %s204 = sshll.u32 [#allocation22], 4
      %s205 = int_to_ptr.vmem [resolvable:$true] %s204
      %210 = dma.hbm_to_vmem [thread:$0]  %s203, 4096, %s205, [#allocation23], 128, 128, 8
    $region61: #{tpu_custom_call.1} parent=1 // pred_fallthru
      _
    // Predicated region
    $region62: #{tpu_custom_call.1} parent=1 // pred_check
      _
    $region63: #{tpu_custom_call.1} parent=1 // pred_check_branch
      %212 = sbr.rel (0) target = $region65
    $region64: #{tpu_custom_call.1} parent=1 // pred_region
      %214 = vsyncadd [#allocation23], 0
      %s216 = sshll.u32 %s15, 4
      %s217 = int_to_ptr.hbm [resolvable:$true] %s216
      %s218 = sshll.u32 [#allocation24], 4
      %s219 = int_to_ptr.vmem [resolvable:$true] %s218
      %221 = dma.hbm_to_vmem [thread:$0]  %s217, 16, %s219, [#allocation23]
    $region65: #{tpu_custom_call.1} parent=1 // pred_fallthru
      _
    // Predicated region
    $region66: #{tpu_custom_call.1} parent=1 // pred_check
      _
    $region67: #{tpu_custom_call.1} parent=1 // pred_check_branch
      %223 = sbr.rel (0) target = $region69
    $region68: #{tpu_custom_call.1} parent=1 // pred_region
      %225 = vsyncadd [#allocation26], 0
      %s227 = sshll.u32 %s16, 4
      %s228 = int_to_ptr.hbm [resolvable:$true] %s227
      %s229 = sshll.u32 [#allocation25], 4
      %s230 = int_to_ptr.vmem [resolvable:$true] %s229
      %232 = dma.hbm_to_vmem [thread:$0]  %s228, 16, %s230, [#allocation26]
    $region69: #{tpu_custom_call.1} parent=1 // pred_fallthru
      _
    // Predicated region
    $region70: #{tpu_custom_call.1} parent=1 // pred_check
      _
    $region71: #{tpu_custom_call.1} parent=1 // pred_check_branch
      %234 = sbr.rel (0) target = $region73
    $region72: #{tpu_custom_call.1} parent=1 // pred_region
      %236 = vsyncadd [#allocation26], 0
      %s238 = sshll.u32 %s17, 4
      %s239 = int_to_ptr.hbm [resolvable:$true] %s238
      %s240 = sshll.u32 [#allocation27], 4
      %s241 = int_to_ptr.vmem [resolvable:$true] %s240
      %243 = dma.hbm_to_vmem [thread:$0]  %s239, 32, %s241, [#allocation26]
    $region73: #{tpu_custom_call.1} parent=1 // pred_fallthru
      _
    // Predicated region
    $region74: #{tpu_custom_call.1} parent=1 // pred_check
      _
    $region75: #{tpu_custom_call.1} parent=1 // pred_check_branch
      %245 = sbr.rel (0) target = $region77
    $region76: #{tpu_custom_call.1} parent=1 // pred_region
      %247 = vsyncadd [#allocation29], 0
      %s248 = sshll.u32 %s18, 4
      %s249 = int_to_ptr.hbm [resolvable:$true] %s248
      %s250 = sshll.u32 [#allocation28], 4
      %s251 = int_to_ptr.vmem [resolvable:$true] %s250
      %256 = dma.hbm_to_vmem [thread:$0]  %s249, 4096, %s251, [#allocation29], 256, 256, 16
    $region77: #{tpu_custom_call.1} parent=1 // pred_fallthru
      _
    // Predicated region
    $region78: #{tpu_custom_call.1} parent=1 // pred_check
      _
    $region79: #{tpu_custom_call.1} parent=1 // pred_check_branch
      %258 = sbr.rel (0) target = $region81
    $region80: #{tpu_custom_call.1} parent=1 // pred_region
      %260 = vsyncadd [#allocation29], 0
      %s262 = sshll.u32 %s19, 4
      %s263 = int_to_ptr.hbm [resolvable:$true] %s262
      %s264 = sshll.u32 [#allocation30], 4
      %s265 = int_to_ptr.vmem [resolvable:$true] %s264
      %267 = dma.hbm_to_vmem [thread:$0]  %s263, 32, %s265, [#allocation29]
    $region81: #{tpu_custom_call.1} parent=1 // pred_fallthru
      _
    // Predicated region
    $region82: #{tpu_custom_call.1} parent=1 // pred_check
      _
    $region83: #{tpu_custom_call.1} parent=1 // pred_check_branch
      %269 = sbr.rel (0) target = $region85
    $region84: #{tpu_custom_call.1} parent=1 // pred_region
      %271 = vsyncadd [#allocation32], 0
      %s273 = sshll.u32 %s20, 4
      %s274 = int_to_ptr.hbm [resolvable:$true] %s273
      %s275 = sshll.u32 [#allocation31], 4
      %s276 = int_to_ptr.vmem [resolvable:$true] %s275
      %278 = dma.hbm_to_vmem [thread:$0]  %s274, 32, %s276, [#allocation32]
    $region85: #{tpu_custom_call.1} parent=1 // pred_fallthru
      _
    // Predicated region
    $region86: #{tpu_custom_call.1} parent=1 // pred_check
      _
    $region87: #{tpu_custom_call.1} parent=1 // pred_check_branch
      %280 = sbr.rel (0) target = $region89
    $region88: #{tpu_custom_call.1} parent=1 // pred_region
      %282 = vsyncadd [#allocation32], 0
      %s284 = sshll.u32 %s21, 4
      %s285 = int_to_ptr.hbm [resolvable:$true] %s284
      %s286 = sshll.u32 [#allocation33], 4
      %s287 = int_to_ptr.vmem [resolvable:$true] %s286
      %289 = dma.hbm_to_vmem [thread:$0]  %s285, 32, %s287, [#allocation32]
    $region89: #{tpu_custom_call.1} parent=1 // pred_fallthru
      _
    // Predicated region
    $region90: #{tpu_custom_call.1} parent=1 // pred_check
      _
    $region91: #{tpu_custom_call.1} parent=1 // pred_check_branch
      %291 = sbr.rel (0) target = $region93
    $region92: #{tpu_custom_call.1} parent=1 // pred_region
      _
    $region93: #{tpu_custom_call.1} parent=1 // pred_fallthru
      _
    // Predicated region
    $region94: #{tpu_custom_call.1} parent=1 // pred_check
      _
    $region95: #{tpu_custom_call.1} parent=1 // pred_check_branch
      %293 = sbr.rel (0) target = $region97
    $region96: #{tpu_custom_call.1} parent=1 // pred_region
      %295 = dma.done [#allocation3], 73728
    $region97: #{tpu_custom_call.1} parent=1 // pred_fallthru
      _
    // Predicated region
    $region98: #{tpu_custom_call.1} parent=1 // pred_check
      _
    $region99: #{tpu_custom_call.1} parent=1 // pred_check_branch
      %297 = sbr.rel (0) target = $region101
    $region100: #{tpu_custom_call.1} parent=1 // pred_region
      %299 = dma.done [#allocation5], 576
    $region101: #{tpu_custom_call.1} parent=1 // pred_fallthru
      _
    // Predicated region
    $region102: #{tpu_custom_call.1} parent=1 // pred_check
      _
    $region103: #{tpu_custom_call.1} parent=1 // pred_check_branch
      %301 = sbr.rel (0) target = $region105
    $region104: #{tpu_custom_call.1} parent=1 // pred_region
      %303 = dma.done [#allocation5], 16
    $region105: #{tpu_custom_call.1} parent=1 // pred_fallthru
      _
    // Predicated region
    $region106: #{tpu_custom_call.1} parent=1 // pred_check
      _
    $region107: #{tpu_custom_call.1} parent=1 // pred_check_branch
      %305 = sbr.rel (0) target = $region109
    $region108: #{tpu_custom_call.1} parent=1 // pred_region
      %307 = dma.done [#allocation8], 16
    $region109: #{tpu_custom_call.1} parent=1 // pred_fallthru
      _
    // Predicated region
    $region110: #{tpu_custom_call.1} parent=1 // pred_check
      _
    $region111: #{tpu_custom_call.1} parent=1 // pred_check_branch
      %309 = sbr.rel (0) target = $region113
    $region112: #{tpu_custom_call.1} parent=1 // pred_region
      %311 = dma.done [#allocation8], 4608
    $region113: #{tpu_custom_call.1} parent=1 // pred_fallthru
      _
    // Predicated region
    $region114: #{tpu_custom_call.1} parent=1 // pred_check
      _
    $region115: #{tpu_custom_call.1} parent=1 // pred_check_branch
      %313 = sbr.rel (0) target = $region117
    $region116: #{tpu_custom_call.1} parent=1 // pred_region
      %315 = dma.done [#allocation11], 2304
    $region117: #{tpu_custom_call.1} parent=1 // pred_fallthru
      _
    // Predicated region
    $region118: #{tpu_custom_call.1} parent=1 // pred_check
      _
    $region119: #{tpu_custom_call.1} parent=1 // pred_check_branch
      %317 = sbr.rel (0) target = $region121
    $region120: #{tpu_custom_call.1} parent=1 // pred_region
      %319 = dma.done [#allocation11], 16
    $region121: #{tpu_custom_call.1} parent=1 // pred_fallthru
      _
    // Predicated region
    $region122: #{tpu_custom_call.1} parent=1 // pred_check
      _
    $region123: #{tpu_custom_call.1} parent=1 // pred_check_branch
      %321 = sbr.rel (0) target = $region125
    $region124: #{tpu_custom_call.1} parent=1 // pred_region
      %323 = dma.done [#allocation14], 16
    $region125: #{tpu_custom_call.1} parent=1 // pred_fallthru
      _
    // Predicated region
    $region126: #{tpu_custom_call.1} parent=1 // pred_check
      _
    $region127: #{tpu_custom_call.1} parent=1 // pred_check_branch
      %325 = sbr.rel (0) target = $region129
    $region128: #{tpu_custom_call.1} parent=1 // pred_region
      %327 = dma.done [#allocation14], 1152
    $region129: #{tpu_custom_call.1} parent=1 // pred_fallthru
      _
    // Predicated region
    $region130: #{tpu_custom_call.1} parent=1 // pred_check
      _
    $region131: #{tpu_custom_call.1} parent=1 // pred_check_branch
      %329 = sbr.rel (0) target = $region133
    $region132: #{tpu_custom_call.1} parent=1 // pred_region
      %331 = dma.done [#allocation17], 4608
    $region133: #{tpu_custom_call.1} parent=1 // pred_fallthru
      _
    // Predicated region
    $region134: #{tpu_custom_call.1} parent=1 // pred_check
      _
    $region135: #{tpu_custom_call.1} parent=1 // pred_check_branch
      %333 = sbr.rel (0) target = $region137
    $region136: #{tpu_custom_call.1} parent=1 // pred_region
      %335 = dma.done [#allocation17], 16
    $region137: #{tpu_custom_call.1} parent=1 // pred_fallthru
      _
    // Predicated region
    $region138: #{tpu_custom_call.1} parent=1 // pred_check
      _
    $region139: #{tpu_custom_call.1} parent=1 // pred_check_branch
      %337 = sbr.rel (0) target = $region141
    $region140: #{tpu_custom_call.1} parent=1 // pred_region
      %339 = dma.done [#allocation20], 16
    $region141: #{tpu_custom_call.1} parent=1 // pred_fallthru
      _
    // Predicated region
    $region142: #{tpu_custom_call.1} parent=1 // pred_check
      _
    $region143: #{tpu_custom_call.1} parent=1 // pred_check_branch
      %341 = sbr.rel (0) target = $region145
    $region144: #{tpu_custom_call.1} parent=1 // pred_region
      %343 = dma.done [#allocation20], 128
    $region145: #{tpu_custom_call.1} parent=1 // pred_fallthru
      _
    // Predicated region
    $region146: #{tpu_custom_call.1} parent=1 // pred_check
      _
    $region147: #{tpu_custom_call.1} parent=1 // pred_check_branch
      %345 = sbr.rel (0) target = $region149
    $region148: #{tpu_custom_call.1} parent=1 // pred_region
      %347 = dma.done [#allocation23], 4096
    $region149: #{tpu_custom_call.1} parent=1 // pred_fallthru
      _
    // Predicated region
    $region150: #{tpu_custom_call.1} parent=1 // pred_check
      _
    $region151: #{tpu_custom_call.1} parent=1 // pred_check_branch
      %349 = sbr.rel (0) target = $region153
    $region152: #{tpu_custom_call.1} parent=1 // pred_region
      %351 = dma.done [#allocation23], 16
    $region153: #{tpu_custom_call.1} parent=1 // pred_fallthru
      _
    // Predicated region
    $region154: #{tpu_custom_call.1} parent=1 // pred_check
      _
    $region155: #{tpu_custom_call.1} parent=1 // pred_check_branch
      %353 = sbr.rel (0) target = $region157
    $region156: #{tpu_custom_call.1} parent=1 // pred_region
      %355 = dma.done [#allocation26], 16
    $region157: #{tpu_custom_call.1} parent=1 // pred_fallthru
      _
    // Predicated region
    $region158: #{tpu_custom_call.1} parent=1 // pred_check
      _
    $region159: #{tpu_custom_call.1} parent=1 // pred_check_branch
      %357 = sbr.rel (0) target = $region161
    $region160: #{tpu_custom_call.1} parent=1 // pred_region
      %359 = dma.done [#allocation26], 32
    $region161: #{tpu_custom_call.1} parent=1 // pred_fallthru
      _
    // Predicated region
    $region162: #{tpu_custom_call.1} parent=1 // pred_check
      _
    $region163: #{tpu_custom_call.1} parent=1 // pred_check_branch
      %361 = sbr.rel (0) target = $region165
    $region164: #{tpu_custom_call.1} parent=1 // pred_region
      %363 = dma.done [#allocation29], 4096
    $region165: #{tpu_custom_call.1} parent=1 // pred_fallthru
      _
    // Predicated region
    $region166: #{tpu_custom_call.1} parent=1 // pred_check
      _
    $region167: #{tpu_custom_call.1} parent=1 // pred_check_branch
      %365 = sbr.rel (0) target = $region169
    $region168: #{tpu_custom_call.1} parent=1 // pred_region
      %367 = dma.done [#allocation29], 32
    $region169: #{tpu_custom_call.1} parent=1 // pred_fallthru
      _
    // Predicated region
    $region170: #{tpu_custom_call.1} parent=1 // pred_check
      _
    $region171: #{tpu_custom_call.1} parent=1 // pred_check_branch
      %369 = sbr.rel (0) target = $region173
    $region172: #{tpu_custom_call.1} parent=1 // pred_region
      %371 = dma.done [#allocation32], 32
    $region173: #{tpu_custom_call.1} parent=1 // pred_fallthru
      _
    // Predicated region
    $region174: #{tpu_custom_call.1} parent=1 // pred_check
      _
    $region175: #{tpu_custom_call.1} parent=1 // pred_check_branch
      %373 = sbr.rel (0) target = $region177
    $region176: #{tpu_custom_call.1} parent=1 // pred_region
      %375 = dma.done [#allocation32], 32
    $region177: #{tpu_custom_call.1} parent=1 // pred_fallthru
      _
    %v376 = vld [vmem:[%s0] sm:$0xff]
    %v377 = vld [vmem:[%s0 + $0x8] sm:$0xff]
    %v378 = vld [vmem:[%s0 + $0x10] sm:$0xff]
    %v379 = vld [vmem:[%s0 + $0x18] sm:$0xff]
    %v380 = vld [vmem:[%s0 + $0x20] sm:$0xff]
    %v381 = vld [vmem:[%s0 + $0x28] sm:$0xff]
    %v382 = vld [vmem:[%s0 + $0x30] sm:$0xff]
    %v383 = vld [vmem:[%s0 + $0x38] sm:$0xff]
    %v384 = vld [vmem:[%s0 + $0x40] sm:$0xff]
    %v385 = vld [vmem:[%s0 + $0x48] sm:$0xff]
    %v386 = vld [vmem:[%s0 + $0x50] sm:$0xff]
    %v387 = vld [vmem:[%s0 + $0x58] sm:$0xff]
    %v388 = vld [vmem:[%s0 + $0x60] sm:$0xff]
    %v389 = vld [vmem:[%s0 + $0x68] sm:$0xff]
    %v390 = vld [vmem:[%s0 + $0x70] sm:$0xff]
    %v391 = vld [vmem:[%s0 + $0x78] sm:$0xff]
    %v392 = vld [vmem:[%s0 + $0x80] sm:$0xff]
    %v393 = vld [vmem:[%s0 + $0x88] sm:$0xff]
    %v394 = vld [vmem:[%s0 + $0x90] sm:$0xff]
    %v395 = vld [vmem:[%s0 + $0x98] sm:$0xff]
    %v396 = vld [vmem:[%s0 + $0xa0] sm:$0xff]
    %v397 = vld [vmem:[%s0 + $0xa8] sm:$0xff]
    %v398 = vld [vmem:[%s0 + $0xb0] sm:$0xff]
    %v399 = vld [vmem:[%s0 + $0xb8] sm:$0xff]
    %v400 = vld [vmem:[%s0 + $0xc0] sm:$0xff]
    %v401 = vld [vmem:[%s0 + $0xc8] sm:$0xff]
    %v402 = vld [vmem:[%s0 + $0xd0] sm:$0xff]
    %v403 = vld [vmem:[%s0 + $0xd8] sm:$0xff]
    %v404 = vld [vmem:[%s0 + $0xe0] sm:$0xff]
    %v405 = vld [vmem:[%s0 + $0xe8] sm:$0xff]
    %v406 = vld [vmem:[%s0 + $0xf0] sm:$0xff]
    %v407 = vld [vmem:[%s0 + $0xf8] sm:$0xff]
    %v408 = vld [vmem:[%s0 + $0x100] sm:$0xff]
    %v409 = vld [vmem:[%s0 + $0x108] sm:$0xff]
    %v410 = vld [vmem:[%s0 + $0x110] sm:$0xff]
    %v411 = vld [vmem:[%s0 + $0x118] sm:$0xff]
    %v412 = vld [vmem:[%s0 + $0x120] sm:$0xff]
    %v413 = vld [vmem:[%s0 + $0x128] sm:$0xff]
    %v414 = vld [vmem:[%s0 + $0x130] sm:$0xff]
    %v415 = vld [vmem:[%s0 + $0x138] sm:$0xff]
    %v416 = vld [vmem:[%s0 + $0x140] sm:$0xff]
    %v417 = vld [vmem:[%s0 + $0x148] sm:$0xff]
    %v418 = vld [vmem:[%s0 + $0x150] sm:$0xff]
    %v419 = vld [vmem:[%s0 + $0x158] sm:$0xff]
    %v420 = vld [vmem:[%s0 + $0x160] sm:$0xff]
    %v421 = vld [vmem:[%s0 + $0x168] sm:$0xff]
    %v422 = vld [vmem:[%s0 + $0x170] sm:$0xff]
    %v423 = vld [vmem:[%s0 + $0x178] sm:$0xff]
    %v424 = vld [vmem:[%s0 + $0x180] sm:$0xff]
    %v425 = vld [vmem:[%s0 + $0x188] sm:$0xff]
    %v426 = vld [vmem:[%s0 + $0x190] sm:$0xff]
    %v427 = vld [vmem:[%s0 + $0x198] sm:$0xff]
    %v428 = vld [vmem:[%s0 + $0x1a0] sm:$0xff]
    %v429 = vld [vmem:[%s0 + $0x1a8] sm:$0xff]
    %v430 = vld [vmem:[%s0 + $0x1b0] sm:$0xff]
    %v431 = vld [vmem:[%s0 + $0x1b8] sm:$0xff]
    %v432 = vld [vmem:[%s0 + $0x1c0] sm:$0xff]
    %v433 = vld [vmem:[%s0 + $0x1c8] sm:$0xff]
    %v434 = vld [vmem:[%s0 + $0x1d0] sm:$0xff]
    %v435 = vld [vmem:[%s0 + $0x1d8] sm:$0xff]
    %v436 = vld [vmem:[%s0 + $0x1e0] sm:$0xff]
    %v437 = vld [vmem:[%s0 + $0x1e8] sm:$0xff]
    %v438 = vld [vmem:[%s0 + $0x1f0] sm:$0xff]
    %v439 = vld [vmem:[%s0 + $0x1f8] sm:$0xff]
    %v440 = vld [vmem:[#allocation2] sm:$0xff]
    %v441 = vld [vmem:[#allocation2 + $0x8] sm:$0xff]
    %v442 = vld [vmem:[#allocation2 + $0x10] sm:$0xff]
    %v443 = vld [vmem:[#allocation2 + $0x18] sm:$0xff]
    %v444 = vld [vmem:[#allocation2 + $0x20] sm:$0xff]
    %v445 = vld [vmem:[#allocation2 + $0x28] sm:$0xff]
    %v446 = vld [vmem:[#allocation2 + $0x30] sm:$0xff]
    %v447 = vld [vmem:[#allocation2 + $0x38] sm:$0xff]
    %v448 = vld [vmem:[#allocation2 + $0x40] sm:$0xff]
    %v449 = vld [vmem:[#allocation2 + $0x48] sm:$0xff]
    %v450 = vld [vmem:[#allocation2 + $0x50] sm:$0xff]
    %v451 = vld [vmem:[#allocation2 + $0x58] sm:$0xff]
    %v452 = vld [vmem:[#allocation2 + $0x60] sm:$0xff]
    %v453 = vld [vmem:[#allocation2 + $0x68] sm:$0xff]
    %v454 = vld [vmem:[#allocation2 + $0x70] sm:$0xff]
    %v455 = vld [vmem:[#allocation2 + $0x78] sm:$0xff]
    %v456 = vld [vmem:[#allocation2 + $0x80] sm:$0xff]
    %v457 = vld [vmem:[#allocation2 + $0x88] sm:$0xff]
    %v458 = vld [vmem:[#allocation2 + $0x90] sm:$0xff]
    %v459 = vld [vmem:[#allocation2 + $0x98] sm:$0xff]
    %v460 = vld [vmem:[#allocation2 + $0xa0] sm:$0xff]
    %v461 = vld [vmem:[#allocation2 + $0xa8] sm:$0xff]
    %v462 = vld [vmem:[#allocation2 + $0xb0] sm:$0xff]
    %v463 = vld [vmem:[#allocation2 + $0xb8] sm:$0xff]
    %v464 = vld [vmem:[#allocation2 + $0xc0] sm:$0xff]
    %v465 = vld [vmem:[#allocation2 + $0xc8] sm:$0xff]
    %v466 = vld [vmem:[#allocation2 + $0xd0] sm:$0xff]
    %v467 = vld [vmem:[#allocation2 + $0xd8] sm:$0xff]
    %v468 = vld [vmem:[#allocation2 + $0xe0] sm:$0xff]
    %v469 = vld [vmem:[#allocation2 + $0xe8] sm:$0xff]
    %v470 = vld [vmem:[#allocation2 + $0xf0] sm:$0xff]
    %v471 = vld [vmem:[#allocation2 + $0xf8] sm:$0xff]
    %v472 = vld [vmem:[#allocation2 + $0x100] sm:$0xff]
    %v473 = vld [vmem:[#allocation2 + $0x108] sm:$0xff]
    %v474 = vld [vmem:[#allocation2 + $0x110] sm:$0xff]
    %v475 = vld [vmem:[#allocation2 + $0x118] sm:$0xff]
    %v476 = vld [vmem:[#allocation2 + $0x120] sm:$0xff]
    %v477 = vld [vmem:[#allocation2 + $0x128] sm:$0xff]
    %v478 = vld [vmem:[#allocation2 + $0x130] sm:$0xff]
    %v479 = vld [vmem:[#allocation2 + $0x138] sm:$0xff]
    %v480 = vld [vmem:[#allocation2 + $0x140] sm:$0xff]
    %v481 = vld [vmem:[#allocation2 + $0x148] sm:$0xff]
    %v482 = vld [vmem:[#allocation2 + $0x150] sm:$0xff]
    %v483 = vld [vmem:[#allocation2 + $0x158] sm:$0xff]
    %v484 = vld [vmem:[#allocation2 + $0x160] sm:$0xff]
    %v485 = vld [vmem:[#allocation2 + $0x168] sm:$0xff]
    %v486 = vld [vmem:[#allocation2 + $0x170] sm:$0xff]
    %v487 = vld [vmem:[#allocation2 + $0x178] sm:$0xff]
    %v488 = vld [vmem:[#allocation2 + $0x180] sm:$0xff]
    %v489 = vld [vmem:[#allocation2 + $0x188] sm:$0xff]
    %v490 = vld [vmem:[#allocation2 + $0x190] sm:$0xff]
    %v491 = vld [vmem:[#allocation2 + $0x198] sm:$0xff]
    %v492 = vld [vmem:[#allocation2 + $0x1a0] sm:$0xff]
    %v493 = vld [vmem:[#allocation2 + $0x1a8] sm:$0xff]
    %v494 = vld [vmem:[#allocation2 + $0x1b0] sm:$0xff]
    %v495 = vld [vmem:[#allocation2 + $0x1b8] sm:$0xff]
    %v496 = vld [vmem:[#allocation2 + $0x1c0] sm:$0xff]
    %v497 = vld [vmem:[#allocation2 + $0x1c8] sm:$0xff]
    %v498 = vld [vmem:[#allocation2 + $0x1d0] sm:$0xff]
    %v499 = vld [vmem:[#allocation2 + $0x1d8] sm:$0xff]
    %v500 = vld [vmem:[#allocation2 + $0x1e0] sm:$0xff]
    %v501 = vld [vmem:[#allocation2 + $0x1e8] sm:$0xff]
    %v502 = vld [vmem:[#allocation2 + $0x1f0] sm:$0xff]
    %v503 = vld [vmem:[#allocation2 + $0x1f8] sm:$0xff]
    %504 = vmatpush.msra.mxu0 %v391
    %505 = vmatpush.msra.mxu0 %v390
    %506 = vmatpush.msra.mxu0 %v389
    %507 = vmatpush.msra.mxu0 %v388
    %508 = vmatpush.msra.mxu0 %v387
    %509 = vmatpush.msra.mxu0 %v386
    %510 = vmatpush.msra.mxu0 %v385
    %511 = vmatpush.msra.mxu0 %v384
    %512 = vmatpush.msra.mxu0 %v383
    %513 = vmatpush.msra.mxu0 %v382
    %514 = vmatpush.msra.mxu0 %v381
    %515 = vmatpush.msra.mxu0 %v380
    %516 = vmatpush.msra.mxu0 %v379
    %517 = vmatpush.msra.mxu0 %v378
    %518 = vmatpush.msra.mxu0 %v377
    %519 = vmatpush.msra.mxu0 %v376
    %520 = vmatmul.f32.gmra.mxu0 %v440
    %v521 = vpop.f32.mrf.mxu0
    %v522 = vadd.f32 0.0, %v521
    %523 = vmatmul.f32.gmra.mxu0 %v444
    %v524 = vpop.f32.mrf.mxu0
    %v525 = vadd.f32 0.0, %v524
    %526 = vmatmul.f32.gmra.mxu0 %v448
    %v527 = vpop.f32.mrf.mxu0
    %v528 = vadd.f32 0.0, %v527
    %529 = vmatmul.f32.gmra.mxu0 %v452
    %v530 = vpop.f32.mrf.mxu0
    %v531 = vadd.f32 0.0, %v530
    %532 = vmatmul.f32.gmra.mxu0 %v456
    %v533 = vpop.f32.mrf.mxu0
    %v534 = vadd.f32 0.0, %v533
    %535 = vmatmul.f32.gmra.mxu0 %v460
    %v536 = vpop.f32.mrf.mxu0
    %v537 = vadd.f32 0.0, %v536
    %538 = vmatmul.f32.gmra.mxu0 %v464
    %v539 = vpop.f32.mrf.mxu0
    %v540 = vadd.f32 0.0, %v539
    %541 = vmatmul.f32.gmra.mxu0 %v468
    %v542 = vpop.f32.mrf.mxu0
    %v543 = vadd.f32 0.0, %v542
    %544 = vmatmul.f32.gmra.mxu0 %v472
    %v545 = vpop.f32.mrf.mxu0
    %v546 = vadd.f32 0.0, %v545
    %547 = vmatmul.f32.gmra.mxu0 %v476
    %v548 = vpop.f32.mrf.mxu0
    %v549 = vadd.f32 0.0, %v548
    %550 = vmatmul.f32.gmra.mxu0 %v480
    %v551 = vpop.f32.mrf.mxu0
    %v552 = vadd.f32 0.0, %v551
    %553 = vmatmul.f32.gmra.mxu0 %v484
    %v554 = vpop.f32.mrf.mxu0
    %v555 = vadd.f32 0.0, %v554
    %556 = vmatmul.f32.gmra.mxu0 %v488
    %v557 = vpop.f32.mrf.mxu0
    %v558 = vadd.f32 0.0, %v557
    %559 = vmatmul.f32.gmra.mxu0 %v492
    %v560 = vpop.f32.mrf.mxu0
    %v561 = vadd.f32 0.0, %v560
    %562 = vmatmul.f32.gmra.mxu0 %v496
    %v563 = vpop.f32.mrf.mxu0
    %v564 = vadd.f32 0.0, %v563
    %565 = vmatmul.f32.gmra.mxu0 %v500
    %v566 = vpop.f32.mrf.mxu0
    %v567 = vadd.f32 0.0, %v566
    %568 = vdwg.mxu0
    %569 = vmatpush.msra.mxu0 %v407
    %570 = vmatpush.msra.mxu0 %v406
    %571 = vmatpush.msra.mxu0 %v405
    %572 = vmatpush.msra.mxu0 %v404
    %573 = vmatpush.msra.mxu0 %v403
    %574 = vmatpush.msra.mxu0 %v402
    %575 = vmatpush.msra.mxu0 %v401
    %576 = vmatpush.msra.mxu0 %v400
    %577 = vmatpush.msra.mxu0 %v399
    %578 = vmatpush.msra.mxu0 %v398
    %579 = vmatpush.msra.mxu0 %v397
    %580 = vmatpush.msra.mxu0 %v396
    %581 = vmatpush.msra.mxu0 %v395
    %582 = vmatpush.msra.mxu0 %v394
    %583 = vmatpush.msra.mxu0 %v393
    %584 = vmatpush.msra.mxu0 %v392
    %585 = vmatmul.f32.gmra.mxu0 %v441
    %v586 = vpop.f32.mrf.mxu0
    %v587 = vadd.f32 %v522, %v586
    %588 = vmatmul.f32.gmra.mxu0 %v445
    %v589 = vpop.f32.mrf.mxu0
    %v590 = vadd.f32 %v525, %v589
    %591 = vmatmul.f32.gmra.mxu0 %v449
    %v592 = vpop.f32.mrf.mxu0
    %v593 = vadd.f32 %v528, %v592
    %594 = vmatmul.f32.gmra.mxu0 %v453
    %v595 = vpop.f32.mrf.mxu0
    %v596 = vadd.f32 %v531, %v595
    %597 = vmatmul.f32.gmra.mxu0 %v457
    %v598 = vpop.f32.mrf.mxu0
    %v599 = vadd.f32 %v534, %v598
    %600 = vmatmul.f32.gmra.mxu0 %v461
    %v601 = vpop.f32.mrf.mxu0
    %v602 = vadd.f32 %v537, %v601
    %603 = vmatmul.f32.gmra.mxu0 %v465
    %v604 = vpop.f32.mrf.mxu0
    %v605 = vadd.f32 %v540, %v604
    %606 = vmatmul.f32.gmra.mxu0 %v469
    %v607 = vpop.f32.mrf.mxu0
    %v608 = vadd.f32 %v543, %v607
    %609 = vmatmul.f32.gmra.mxu0 %v473
    %v610 = vpop.f32.mrf.mxu0
    %v611 = vadd.f32 %v546, %v610
    %612 = vmatmul.f32.gmra.mxu0 %v477
    %v613 = vpop.f32.mrf.mxu0
    %v614 = vadd.f32 %v549, %v613
    %615 = vmatmul.f32.gmra.mxu0 %v481
    %v616 = vpop.f32.mrf.mxu0
    %v617 = vadd.f32 %v552, %v616
    %618 = vmatmul.f32.gmra.mxu0 %v485
    %v619 = vpop.f32.mrf.mxu0
    %v620 = vadd.f32 %v555, %v619
    %621 = vmatmul.f32.gmra.mxu0 %v489
    %v622 = vpop.f32.mrf.mxu0
    %v623 = vadd.f32 %v558, %v622
    %624 = vmatmul.f32.gmra.mxu0 %v493
    %v625 = vpop.f32.mrf.mxu0
    %v626 = vadd.f32 %v561, %v625
    %627 = vmatmul.f32.gmra.mxu0 %v497
    %v628 = vpop.f32.mrf.mxu0
    %v629 = vadd.f32 %v564, %v628
    %630 = vmatmul.f32.gmra.mxu0 %v501
    %v631 = vpop.f32.mrf.mxu0
    %v632 = vadd.f32 %v567, %v631
    %633 = vdwg.mxu0
    %634 = vmatpush.msra.mxu0 %v423
    %635 = vmatpush.msra.mxu0 %v422
    %636 = vmatpush.msra.mxu0 %v421
    %637 = vmatpush.msra.mxu0 %v420
    %638 = vmatpush.msra.mxu0 %v419
    %639 = vmatpush.msra.mxu0 %v418
    %640 = vmatpush.msra.mxu0 %v417
    %641 = vmatpush.msra.mxu0 %v416
    %642 = vmatpush.msra.mxu0 %v415
    %643 = vmatpush.msra.mxu0 %v414
    %644 = vmatpush.msra.mxu0 %v413
    %645 = vmatpush.msra.mxu0 %v412
    %646 = vmatpush.msra.mxu0 %v411
    %647 = vmatpush.msra.mxu0 %v410
    %648 = vmatpush.msra.mxu0 %v409
    %649 = vmatpush.msra.mxu0 %v408
    %650 = vmatmul.f32.gmra.mxu0 %v442
    %v651 = vpop.f32.mrf.mxu0
    %v652 = vadd.f32 %v587, %v651
    %653 = vmatmul.f32.gmra.mxu0 %v446
    %v654 = vpop.f32.mrf.mxu0
    %v655 = vadd.f32 %v590, %v654
    %656 = vmatmul.f32.gmra.mxu0 %v450
    %v657 = vpop.f32.mrf.mxu0
    %v658 = vadd.f32 %v593, %v657
    %659 = vmatmul.f32.gmra.mxu0 %v454
    %v660 = vpop.f32.mrf.mxu0
    %v661 = vadd.f32 %v596, %v660
    %662 = vmatmul.f32.gmra.mxu0 %v458
    %v663 = vpop.f32.mrf.mxu0
    %v664 = vadd.f32 %v599, %v663
    %665 = vmatmul.f32.gmra.mxu0 %v462
    %v666 = vpop.f32.mrf.mxu0
    %v667 = vadd.f32 %v602, %v666
    %668 = vmatmul.f32.gmra.mxu0 %v466
    %v669 = vpop.f32.mrf.mxu0
    %v670 = vadd.f32 %v605, %v669
    %671 = vmatmul.f32.gmra.mxu0 %v470
    %v672 = vpop.f32.mrf.mxu0
    %v673 = vadd.f32 %v608, %v672
    %674 = vmatmul.f32.gmra.mxu0 %v474
    %v675 = vpop.f32.mrf.mxu0
    %v676 = vadd.f32 %v611, %v675
    %677 = vmatmul.f32.gmra.mxu0 %v478
    %v678 = vpop.f32.mrf.mxu0
    %v679 = vadd.f32 %v614, %v678
    %680 = vmatmul.f32.gmra.mxu0 %v482
    %v681 = vpop.f32.mrf.mxu0
    %v682 = vadd.f32 %v617, %v681
    %683 = vmatmul.f32.gmra.mxu0 %v486
    %v684 = vpop.f32.mrf.mxu0
    %v685 = vadd.f32 %v620, %v684
    %686 = vmatmul.f32.gmra.mxu0 %v490
    %v687 = vpop.f32.mrf.mxu0
    %v688 = vadd.f32 %v623, %v687
    %689 = vmatmul.f32.gmra.mxu0 %v494
    %v690 = vpop.f32.mrf.mxu0
    %v691 = vadd.f32 %v626, %v690
    %692 = vmatmul.f32.gmra.mxu0 %v498
    %v693 = vpop.f32.mrf.mxu0
    %v694 = vadd.f32 %v629, %v693
    %695 = vmatmul.f32.gmra.mxu0 %v502
    %v696 = vpop.f32.mrf.mxu0
    %v697 = vadd.f32 %v632, %v696
    %698 = vdwg.mxu0
    %699 = vmatpush.msra.mxu0 %v439
    %700 = vmatpush.msra.mxu0 %v438
    %701 = vmatpush.msra.mxu0 %v437
    %702 = vmatpush.msra.mxu0 %v436
    %703 = vmatpush.msra.mxu0 %v435
    %704 = vmatpush.msra.mxu0 %v434
    %705 = vmatpush.msra.mxu0 %v433
    %706 = vmatpush.msra.mxu0 %v432
    %707 = vmatpush.msra.mxu0 %v431
    %708 = vmatpush.msra.mxu0 %v430
    %709 = vmatpush.msra.mxu0 %v429
    %710 = vmatpush.msra.mxu0 %v428
    %711 = vmatpush.msra.mxu0 %v427
    %712 = vmatpush.msra.mxu0 %v426
    %713 = vmatpush.msra.mxu0 %v425
    %714 = vmatpush.msra.mxu0 %v424
    %715 = vmatmul.f32.gmra.mxu0 %v443
    %v716 = vpop.f32.mrf.mxu0
    %v717 = vadd.f32 %v652, %v716
    %718 = vmatmul.f32.gmra.mxu0 %v447
    %v719 = vpop.f32.mrf.mxu0
    %v720 = vadd.f32 %v655, %v719
    %721 = vmatmul.f32.gmra.mxu0 %v451
    %v722 = vpop.f32.mrf.mxu0
    %v723 = vadd.f32 %v658, %v722
    %724 = vmatmul.f32.gmra.mxu0 %v455
    %v725 = vpop.f32.mrf.mxu0
    %v726 = vadd.f32 %v661, %v725
    %727 = vmatmul.f32.gmra.mxu0 %v459
    %v728 = vpop.f32.mrf.mxu0
    %v729 = vadd.f32 %v664, %v728
    %730 = vmatmul.f32.gmra.mxu0 %v463
    %v731 = vpop.f32.mrf.mxu0
    %v732 = vadd.f32 %v667, %v731
    %733 = vmatmul.f32.gmra.mxu0 %v467
    %v734 = vpop.f32.mrf.mxu0
    %v735 = vadd.f32 %v670, %v734
    %736 = vmatmul.f32.gmra.mxu0 %v471
    %v737 = vpop.f32.mrf.mxu0
    %v738 = vadd.f32 %v673, %v737
    %739 = vmatmul.f32.gmra.mxu0 %v475
    %v740 = vpop.f32.mrf.mxu0
    %v741 = vadd.f32 %v676, %v740
    %742 = vmatmul.f32.gmra.mxu0 %v479
    %v743 = vpop.f32.mrf.mxu0
    %v744 = vadd.f32 %v679, %v743
    %745 = vmatmul.f32.gmra.mxu0 %v483
    %v746 = vpop.f32.mrf.mxu0
    %v747 = vadd.f32 %v682, %v746
    %748 = vmatmul.f32.gmra.mxu0 %v487
    %v749 = vpop.f32.mrf.mxu0
    %v750 = vadd.f32 %v685, %v749
    %751 = vmatmul.f32.gmra.mxu0 %v491
    %v752 = vpop.f32.mrf.mxu0
    %v753 = vadd.f32 %v688, %v752
    %754 = vmatmul.f32.gmra.mxu0 %v495
    %v755 = vpop.f32.mrf.mxu0
    %v756 = vadd.f32 %v691, %v755
    %757 = vmatmul.f32.gmra.mxu0 %v499
    %v758 = vpop.f32.mrf.mxu0
    %v759 = vadd.f32 %v694, %v758
    %760 = vmatmul.f32.gmra.mxu0 %v503
    %v761 = vpop.f32.mrf.mxu0
    %v762 = vadd.f32 %v697, %v761
    %763 = vdwg.mxu0
    %v764 = vld [vmem:[#allocation4] sm:$0x7]
    %s765 = scalar_lea.vmem [#allocation2], 512
    %v766 = vld [vmem:[%s765] sm:$0xff]
    %v767 = vld [vmem:[%s765 + $0x8] sm:$0xff]
    %v768 = vld [vmem:[%s765 + $0x10] sm:$0xff]
    %v769 = vld [vmem:[%s765 + $0x18] sm:$0xff]
    %v770 = vld [vmem:[%s765 + $0x20] sm:$0xff]
    %v771 = vld [vmem:[%s765 + $0x28] sm:$0xff]
    %v772 = vld [vmem:[%s765 + $0x30] sm:$0xff]
    %v773 = vld [vmem:[%s765 + $0x38] sm:$0xff]
    %v774 = vld [vmem:[%s765 + $0x40] sm:$0xff]
    %v775 = vld [vmem:[%s765 + $0x48] sm:$0xff]
    %v776 = vld [vmem:[%s765 + $0x50] sm:$0xff]
    %v777 = vld [vmem:[%s765 + $0x58] sm:$0xff]
    %v778 = vld [vmem:[%s765 + $0x60] sm:$0xff]
    %v779 = vld [vmem:[%s765 + $0x68] sm:$0xff]
    %v780 = vld [vmem:[%s765 + $0x70] sm:$0xff]
    %v781 = vld [vmem:[%s765 + $0x78] sm:$0xff]
    %v782 = vld [vmem:[%s765 + $0x80] sm:$0xff]
    %v783 = vld [vmem:[%s765 + $0x88] sm:$0xff]
    %v784 = vld [vmem:[%s765 + $0x90] sm:$0xff]
    %v785 = vld [vmem:[%s765 + $0x98] sm:$0xff]
    %v786 = vld [vmem:[%s765 + $0xa0] sm:$0xff]
    %v787 = vld [vmem:[%s765 + $0xa8] sm:$0xff]
    %v788 = vld [vmem:[%s765 + $0xb0] sm:$0xff]
    %v789 = vld [vmem:[%s765 + $0xb8] sm:$0xff]
    %v790 = vld [vmem:[%s765 + $0xc0] sm:$0xff]
    %v791 = vld [vmem:[%s765 + $0xc8] sm:$0xff]
    %v792 = vld [vmem:[%s765 + $0xd0] sm:$0xff]
    %v793 = vld [vmem:[%s765 + $0xd8] sm:$0xff]
    %v794 = vld [vmem:[%s765 + $0xe0] sm:$0xff]
    %v795 = vld [vmem:[%s765 + $0xe8] sm:$0xff]
    %v796 = vld [vmem:[%s765 + $0xf0] sm:$0xff]
    %v797 = vld [vmem:[%s765 + $0xf8] sm:$0xff]
    %v798 = vld [vmem:[%s765 + $0x100] sm:$0xff]
    %v799 = vld [vmem:[%s765 + $0x108] sm:$0xff]
    %v800 = vld [vmem:[%s765 + $0x110] sm:$0xff]
    %v801 = vld [vmem:[%s765 + $0x118] sm:$0xff]
    %v802 = vld [vmem:[%s765 + $0x120] sm:$0xff]
    %v803 = vld [vmem:[%s765 + $0x128] sm:$0xff]
    %v804 = vld [vmem:[%s765 + $0x130] sm:$0xff]
    %v805 = vld [vmem:[%s765 + $0x138] sm:$0xff]
    %v806 = vld [vmem:[%s765 + $0x140] sm:$0xff]
    %v807 = vld [vmem:[%s765 + $0x148] sm:$0xff]
    %v808 = vld [vmem:[%s765 + $0x150] sm:$0xff]
    %v809 = vld [vmem:[%s765 + $0x158] sm:$0xff]
    %v810 = vld [vmem:[%s765 + $0x160] sm:$0xff]
    %v811 = vld [vmem:[%s765 + $0x168] sm:$0xff]
    %v812 = vld [vmem:[%s765 + $0x170] sm:$0xff]
    %v813 = vld [vmem:[%s765 + $0x178] sm:$0xff]
    %v814 = vld [vmem:[%s765 + $0x180] sm:$0xff]
    %v815 = vld [vmem:[%s765 + $0x188] sm:$0xff]
    %v816 = vld [vmem:[%s765 + $0x190] sm:$0xff]
    %v817 = vld [vmem:[%s765 + $0x198] sm:$0xff]
    %v818 = vld [vmem:[%s765 + $0x1a0] sm:$0xff]
    %v819 = vld [vmem:[%s765 + $0x1a8] sm:$0xff]
    %v820 = vld [vmem:[%s765 + $0x1b0] sm:$0xff]
    %v821 = vld [vmem:[%s765 + $0x1b8] sm:$0xff]
    %v822 = vld [vmem:[%s765 + $0x1c0] sm:$0xff]
    %v823 = vld [vmem:[%s765 + $0x1c8] sm:$0xff]
    %v824 = vld [vmem:[%s765 + $0x1d0] sm:$0xff]
    %v825 = vld [vmem:[%s765 + $0x1d8] sm:$0xff]
    %v826 = vld [vmem:[%s765 + $0x1e0] sm:$0xff]
    %v827 = vld [vmem:[%s765 + $0x1e8] sm:$0xff]
    %v828 = vld [vmem:[%s765 + $0x1f0] sm:$0xff]
    %v829 = vld [vmem:[%s765 + $0x1f8] sm:$0xff]
    %830 = vmatpush.msra.mxu0 %v391
    %831 = vmatpush.msra.mxu0 %v390
    %832 = vmatpush.msra.mxu0 %v389
    %833 = vmatpush.msra.mxu0 %v388
    %834 = vmatpush.msra.mxu0 %v387
    %835 = vmatpush.msra.mxu0 %v386
    %836 = vmatpush.msra.mxu0 %v385
    %837 = vmatpush.msra.mxu0 %v384
    %838 = vmatpush.msra.mxu0 %v383
    %839 = vmatpush.msra.mxu0 %v382
    %840 = vmatpush.msra.mxu0 %v381
    %841 = vmatpush.msra.mxu0 %v380
    %842 = vmatpush.msra.mxu0 %v379
    %843 = vmatpush.msra.mxu0 %v378
    %844 = vmatpush.msra.mxu0 %v377
    %845 = vmatpush.msra.mxu0 %v376
    %846 = vmatmul.f32.gmra.mxu0 %v766
    %v847 = vpop.f32.mrf.mxu0
    %v848 = vadd.f32 0.0, %v847
    %849 = vmatmul.f32.gmra.mxu0 %v770
    %v850 = vpop.f32.mrf.mxu0
    %v851 = vadd.f32 0.0, %v850
    %852 = vmatmul.f32.gmra.mxu0 %v774
    %v853 = vpop.f32.mrf.mxu0
    %v854 = vadd.f32 0.0, %v853
    %855 = vmatmul.f32.gmra.mxu0 %v778
    %v856 = vpop.f32.mrf.mxu0
    %v857 = vadd.f32 0.0, %v856
    %858 = vmatmul.f32.gmra.mxu0 %v782
    %v859 = vpop.f32.mrf.mxu0
    %v860 = vadd.f32 0.0, %v859
    %861 = vmatmul.f32.gmra.mxu0 %v786
    %v862 = vpop.f32.mrf.mxu0
    %v863 = vadd.f32 0.0, %v862
    %864 = vmatmul.f32.gmra.mxu0 %v790
    %v865 = vpop.f32.mrf.mxu0
    %v866 = vadd.f32 0.0, %v865
    %867 = vmatmul.f32.gmra.mxu0 %v794
    %v868 = vpop.f32.mrf.mxu0
    %v869 = vadd.f32 0.0, %v868
    %870 = vmatmul.f32.gmra.mxu0 %v798
    %v871 = vpop.f32.mrf.mxu0
    %v872 = vadd.f32 0.0, %v871
    %873 = vmatmul.f32.gmra.mxu0 %v802
    %v874 = vpop.f32.mrf.mxu0
    %v875 = vadd.f32 0.0, %v874
    %876 = vmatmul.f32.gmra.mxu0 %v806
    %v877 = vpop.f32.mrf.mxu0
    %v878 = vadd.f32 0.0, %v877
    %879 = vmatmul.f32.gmra.mxu0 %v810
    %v880 = vpop.f32.mrf.mxu0
    %v881 = vadd.f32 0.0, %v880
    %882 = vmatmul.f32.gmra.mxu0 %v814
    %v883 = vpop.f32.mrf.mxu0
    %v884 = vadd.f32 0.0, %v883
    %885 = vmatmul.f32.gmra.mxu0 %v818
    %v886 = vpop.f32.mrf.mxu0
    %v887 = vadd.f32 0.0, %v886
    %888 = vmatmul.f32.gmra.mxu0 %v822
    %v889 = vpop.f32.mrf.mxu0
    %v890 = vadd.f32 0.0, %v889
    %891 = vmatmul.f32.gmra.mxu0 %v826
    %v892 = vpop.f32.mrf.mxu0
    %v893 = vadd.f32 0.0, %v892
    %894 = vdwg.mxu0
    %895 = vmatpush.msra.mxu0 %v407
    %896 = vmatpush.msra.mxu0 %v406
    %897 = vmatpush.msra.mxu0 %v405
    %898 = vmatpush.msra.mxu0 %v404
    %899 = vmatpush.msra.mxu0 %v403
    %900 = vmatpush.msra.mxu0 %v402
    %901 = vmatpush.msra.mxu0 %v401
    %902 = vmatpush.msra.mxu0 %v400
    %903 = vmatpush.msra.mxu0 %v399
    %904 = vmatpush.msra.mxu0 %v398
    %905 = vmatpush.msra.mxu0 %v397
    %906 = vmatpush.msra.mxu0 %v396
    %907 = vmatpush.msra.mxu0 %v395
    %908 = vmatpush.msra.mxu0 %v394
    %909 = vmatpush.msra.mxu0 %v393
    %910 = vmatpush.msra.mxu0 %v392
    %911 = vmatmul.f32.gmra.mxu0 %v767
    %v912 = vpop.f32.mrf.mxu0
    %v913 = vadd.f32 %v848, %v912
    %914 = vmatmul.f32.gmra.mxu0 %v771
    %v915 = vpop.f32.mrf.mxu0
    %v916 = vadd.f32 %v851, %v915
    %917 = vmatmul.f32.gmra.mxu0 %v775
    %v918 = vpop.f32.mrf.mxu0
    %v919 = vadd.f32 %v854, %v918
    %920 = vmatmul.f32.gmra.mxu0 %v779
    %v921 = vpop.f32.mrf.mxu0
    %v922 = vadd.f32 %v857, %v921
    %923 = vmatmul.f32.gmra.mxu0 %v783
    %v924 = vpop.f32.mrf.mxu0
    %v925 = vadd.f32 %v860, %v924
    %926 = vmatmul.f32.gmra.mxu0 %v787
    %v927 = vpop.f32.mrf.mxu0
    %v928 = vadd.f32 %v863, %v927
    %929 = vmatmul.f32.gmra.mxu0 %v791
    %v930 = vpop.f32.mrf.mxu0
    %v931 = vadd.f32 %v866, %v930
    %932 = vmatmul.f32.gmra.mxu0 %v795
    %v933 = vpop.f32.mrf.mxu0
    %v934 = vadd.f32 %v869, %v933
    %935 = vmatmul.f32.gmra.mxu0 %v799
    %v936 = vpop.f32.mrf.mxu0
    %v937 = vadd.f32 %v872, %v936
    %938 = vmatmul.f32.gmra.mxu0 %v803
    %v939 = vpop.f32.mrf.mxu0
    %v940 = vadd.f32 %v875, %v939
    %941 = vmatmul.f32.gmra.mxu0 %v807
    %v942 = vpop.f32.mrf.mxu0
    %v943 = vadd.f32 %v878, %v942
    %944 = vmatmul.f32.gmra.mxu0 %v811
    %v945 = vpop.f32.mrf.mxu0
    %v946 = vadd.f32 %v881, %v945
    %947 = vmatmul.f32.gmra.mxu0 %v815
    %v948 = vpop.f32.mrf.mxu0
    %v949 = vadd.f32 %v884, %v948
    %950 = vmatmul.f32.gmra.mxu0 %v819
    %v951 = vpop.f32.mrf.mxu0
    %v952 = vadd.f32 %v887, %v951
    %953 = vmatmul.f32.gmra.mxu0 %v823
    %v954 = vpop.f32.mrf.mxu0
    %v955 = vadd.f32 %v890, %v954
    %956 = vmatmul.f32.gmra.mxu0 %v827
    %v957 = vpop.f32.mrf.mxu0
    %v958 = vadd.f32 %v893, %v957
    %959 = vdwg.mxu0
    %960 = vmatpush.msra.mxu0 %v423
    %961 = vmatpush.msra.mxu0 %v422
    %962 = vmatpush.msra.mxu0 %v421
    %963 = vmatpush.msra.mxu0 %v420
    %964 = vmatpush.msra.mxu0 %v419
    %965 = vmatpush.msra.mxu0 %v418
    %966 = vmatpush.msra.mxu0 %v417
    %967 = vmatpush.msra.mxu0 %v416
    %968 = vmatpush.msra.mxu0 %v415
    %969 = vmatpush.msra.mxu0 %v414
    %970 = vmatpush.msra.mxu0 %v413
    %971 = vmatpush.msra.mxu0 %v412
    %972 = vmatpush.msra.mxu0 %v411
    %973 = vmatpush.msra.mxu0 %v410
    %974 = vmatpush.msra.mxu0 %v409
    %975 = vmatpush.msra.mxu0 %v408
    %976 = vmatmul.f32.gmra.mxu0 %v768
    %v977 = vpop.f32.mrf.mxu0
    %v978 = vadd.f32 %v913, %v977
    %979 = vmatmul.f32.gmra.mxu0 %v772
    %v980 = vpop.f32.mrf.mxu0
    %v981 = vadd.f32 %v916, %v980
    %982 = vmatmul.f32.gmra.mxu0 %v776
    %v983 = vpop.f32.mrf.mxu0
    %v984 = vadd.f32 %v919, %v983
    %985 = vmatmul.f32.gmra.mxu0 %v780
    %v986 = vpop.f32.mrf.mxu0
    %v987 = vadd.f32 %v922, %v986
    %988 = vmatmul.f32.gmra.mxu0 %v784
    %v989 = vpop.f32.mrf.mxu0
    %v990 = vadd.f32 %v925, %v989
    %991 = vmatmul.f32.gmra.mxu0 %v788
    %v992 = vpop.f32.mrf.mxu0
    %v993 = vadd.f32 %v928, %v992
    %994 = vmatmul.f32.gmra.mxu0 %v792
    %v995 = vpop.f32.mrf.mxu0
    %v996 = vadd.f32 %v931, %v995
    %997 = vmatmul.f32.gmra.mxu0 %v796
    %v998 = vpop.f32.mrf.mxu0
    %v999 = vadd.f32 %v934, %v998
    %1000 = vmatmul.f32.gmra.mxu0 %v800
    %v1001 = vpop.f32.mrf.mxu0
    %v1002 = vadd.f32 %v937, %v1001
    %1003 = vmatmul.f32.gmra.mxu0 %v804
    %v1004 = vpop.f32.mrf.mxu0
    %v1005 = vadd.f32 %v940, %v1004
    %1006 = vmatmul.f32.gmra.mxu0 %v808
    %v1007 = vpop.f32.mrf.mxu0
    %v1008 = vadd.f32 %v943, %v1007
    %1009 = vmatmul.f32.gmra.mxu0 %v812
    %v1010 = vpop.f32.mrf.mxu0
    %v1011 = vadd.f32 %v946, %v1010
    %1012 = vmatmul.f32.gmra.mxu0 %v816
    %v1013 = vpop.f32.mrf.mxu0
    %v1014 = vadd.f32 %v949, %v1013
    %1015 = vmatmul.f32.gmra.mxu0 %v820
    %v1016 = vpop.f32.mrf.mxu0
    %v1017 = vadd.f32 %v952, %v1016
    %1018 = vmatmul.f32.gmra.mxu0 %v824
    %v1019 = vpop.f32.mrf.mxu0
    %v1020 = vadd.f32 %v955, %v1019
    %1021 = vmatmul.f32.gmra.mxu0 %v828
    %v1022 = vpop.f32.mrf.mxu0
    %v1023 = vadd.f32 %v958, %v1022
    %1024 = vdwg.mxu0
    %1025 = vmatpush.msra.mxu0 %v439
    %1026 = vmatpush.msra.mxu0 %v438
    %1027 = vmatpush.msra.mxu0 %v437
    %1028 = vmatpush.msra.mxu0 %v436
    %1029 = vmatpush.msra.mxu0 %v435
    %1030 = vmatpush.msra.mxu0 %v434
    %1031 = vmatpush.msra.mxu0 %v433
    %1032 = vmatpush.msra.mxu0 %v432
    %1033 = vmatpush.msra.mxu0 %v431
    %1034 = vmatpush.msra.mxu0 %v430
    %1035 = vmatpush.msra.mxu0 %v429
    %1036 = vmatpush.msra.mxu0 %v428
    %1037 = vmatpush.msra.mxu0 %v427
    %1038 = vmatpush.msra.mxu0 %v426
    %1039 = vmatpush.msra.mxu0 %v425
    %1040 = vmatpush.msra.mxu0 %v424
    %1041 = vmatmul.f32.gmra.mxu0 %v769
    %v1042 = vpop.f32.mrf.mxu0
    %v1043 = vadd.f32 %v978, %v1042
    %1044 = vmatmul.f32.gmra.mxu0 %v773
    %v1045 = vpop.f32.mrf.mxu0
    %v1046 = vadd.f32 %v981, %v1045
    %1047 = vmatmul.f32.gmra.mxu0 %v777
    %v1048 = vpop.f32.mrf.mxu0
    %v1049 = vadd.f32 %v984, %v1048
    %1050 = vmatmul.f32.gmra.mxu0 %v781
    %v1051 = vpop.f32.mrf.mxu0
    %v1052 = vadd.f32 %v987, %v1051
    %1053 = vmatmul.f32.gmra.mxu0 %v785
    %v1054 = vpop.f32.mrf.mxu0
    %v1055 = vadd.f32 %v990, %v1054
    %1056 = vmatmul.f32.gmra.mxu0 %v789
    %v1057 = vpop.f32.mrf.mxu0
    %v1058 = vadd.f32 %v993, %v1057
    %1059 = vmatmul.f32.gmra.mxu0 %v793
    %v1060 = vpop.f32.mrf.mxu0
    %v1061 = vadd.f32 %v996, %v1060
    %1062 = vmatmul.f32.gmra.mxu0 %v797
    %v1063 = vpop.f32.mrf.mxu0
    %v1064 = vadd.f32 %v999, %v1063
    %1065 = vmatmul.f32.gmra.mxu0 %v801
    %v1066 = vpop.f32.mrf.mxu0
    %v1067 = vadd.f32 %v1002, %v1066
    %1068 = vmatmul.f32.gmra.mxu0 %v805
    %v1069 = vpop.f32.mrf.mxu0
    %v1070 = vadd.f32 %v1005, %v1069
    %1071 = vmatmul.f32.gmra.mxu0 %v809
    %v1072 = vpop.f32.mrf.mxu0
    %v1073 = vadd.f32 %v1008, %v1072
    %1074 = vmatmul.f32.gmra.mxu0 %v813
    %v1075 = vpop.f32.mrf.mxu0
    %v1076 = vadd.f32 %v1011, %v1075
    %1077 = vmatmul.f32.gmra.mxu0 %v817
    %v1078 = vpop.f32.mrf.mxu0
    %v1079 = vadd.f32 %v1014, %v1078
    %1080 = vmatmul.f32.gmra.mxu0 %v821
    %v1081 = vpop.f32.mrf.mxu0
    %v1082 = vadd.f32 %v1017, %v1081
    %1083 = vmatmul.f32.gmra.mxu0 %v825
    %v1084 = vpop.f32.mrf.mxu0
    %v1085 = vadd.f32 %v1020, %v1084
    %1086 = vmatmul.f32.gmra.mxu0 %v829
    %v1087 = vpop.f32.mrf.mxu0
    %v1088 = vadd.f32 %v1023, %v1087
    %1089 = vdwg.mxu0
    %s1090 = scalar_lea.vmem [#allocation4], 4
    %v1091 = vld [vmem:[%s1090] sm:$0x7]
    %vm1092 = vcmask 23552
    %v1094 = vsel %vm1092, %v1043, 0
    %v1097 = vsel %vm1092, %v1046, 0
    %v1100 = vsel %vm1092, %v1049, 0
    %v1103 = vsel %vm1092, %v1052, 0
    %v1106 = vsel %vm1092, %v1055, 0
    %v1109 = vsel %vm1092, %v1058, 0
    %v1112 = vsel %vm1092, %v1061, 0
    %v1115 = vsel %vm1092, %v1064, 0
    %v1118 = vsel %vm1092, %v1067, 0
    %v1121 = vsel %vm1092, %v1070, 0
    %v1124 = vsel %vm1092, %v1073, 0
    %v1127 = vsel %vm1092, %v1076, 0
    %v1130 = vsel %vm1092, %v1079, 0
    %v1133 = vsel %vm1092, %v1082, 0
    %v1136 = vsel %vm1092, %v1085, 0
    %v1139 = vsel %vm1092, %v1088, 0
    %vm1141 = vcmask 1042432
    %v1143 = vsel %vm1141, %v1091, 0
    %1145 = vmatpush.msra.mxu0 0.0
    %1146 = vmatpush.msra.mxu0 0.0
    %1147 = vmatpush.msra.mxu0 0.0
    %1148 = vmatpush.msra.mxu0 0.0
    %1149 = vmatpush.msra.mxu0 0.0
    %1150 = vmatpush.msra.mxu0 0.0
    %1151 = vmatpush.msra.mxu0 0.0
    %1152 = vmatpush.msra.mxu0 0.0
    %1153 = vmatpush.msra.mxu0 0.0
    %1154 = vmatpush.msra.mxu0 0.0
    %1155 = vmatpush.msra.mxu0 0.0
    %1156 = vmatpush.msra.mxu0 0.0
    %1157 = vmatpush.msra.mxu0 0.0
    %1158 = vmatpush.msra.mxu0 0.0
    %1159 = vmatpush.msra.mxu0 0.0
    %1160 = vmatpush.msra.mxu0 %v1143
    %1161 = vmatmul.f32.gmra.mxu0 %v1094
    %v1162 = vpop.f32.mrf.mxu0
    %v1163 = vadd.f32 0.0, %v1162
    %1164 = vmatmul.f32.gmra.mxu0 %v1097
    %v1165 = vpop.f32.mrf.mxu0
    %v1166 = vadd.f32 0.0, %v1165
    %1167 = vmatmul.f32.gmra.mxu0 %v1100
    %v1168 = vpop.f32.mrf.mxu0
    %v1169 = vadd.f32 0.0, %v1168
    %1170 = vmatmul.f32.gmra.mxu0 %v1103
    %v1171 = vpop.f32.mrf.mxu0
    %v1172 = vadd.f32 0.0, %v1171
    %1173 = vmatmul.f32.gmra.mxu0 %v1106
    %v1174 = vpop.f32.mrf.mxu0
    %v1175 = vadd.f32 0.0, %v1174
    %1176 = vmatmul.f32.gmra.mxu0 %v1109
    %v1177 = vpop.f32.mrf.mxu0
    %v1178 = vadd.f32 0.0, %v1177
    %1179 = vmatmul.f32.gmra.mxu0 %v1112
    %v1180 = vpop.f32.mrf.mxu0
    %v1181 = vadd.f32 0.0, %v1180
    %1182 = vmatmul.f32.gmra.mxu0 %v1115
    %v1183 = vpop.f32.mrf.mxu0
    %v1184 = vadd.f32 0.0, %v1183
    %1185 = vmatmul.f32.gmra.mxu0 %v1118
    %v1186 = vpop.f32.mrf.mxu0
    %v1187 = vadd.f32 0.0, %v1186
    %1188 = vmatmul.f32.gmra.mxu0 %v1121
    %v1189 = vpop.f32.mrf.mxu0
    %v1190 = vadd.f32 0.0, %v1189
    %1191 = vmatmul.f32.gmra.mxu0 %v1124
    %v1192 = vpop.f32.mrf.mxu0
    %v1193 = vadd.f32 0.0, %v1192
    %1194 = vmatmul.f32.gmra.mxu0 %v1127
    %v1195 = vpop.f32.mrf.mxu0
    %v1196 = vadd.f32 0.0, %v1195
    %1197 = vmatmul.f32.gmra.mxu0 %v1130
    %v1198 = vpop.f32.mrf.mxu0
    %v1199 = vadd.f32 0.0, %v1198
    %1200 = vmatmul.f32.gmra.mxu0 %v1133
    %v1201 = vpop.f32.mrf.mxu0
    %v1202 = vadd.f32 0.0, %v1201
    %1203 = vmatmul.f32.gmra.mxu0 %v1136
    %v1204 = vpop.f32.mrf.mxu0
    %v1205 = vadd.f32 0.0, %v1204
    %1206 = vmatmul.f32.gmra.mxu0 %v1139
    %v1207 = vpop.f32.mrf.mxu0
    %v1208 = vadd.f32 0.0, %v1207
    %1209 = vdwg.mxu0
    %v1211 = vsel %vm1092, %v717, 0
    %v1214 = vsel %vm1092, %v720, 0
    %v1217 = vsel %vm1092, %v723, 0
    %v1220 = vsel %vm1092, %v726, 0
    %v1223 = vsel %vm1092, %v729, 0
    %v1226 = vsel %vm1092, %v732, 0
    %v1229 = vsel %vm1092, %v735, 0
    %v1232 = vsel %vm1092, %v738, 0
    %v1235 = vsel %vm1092, %v741, 0
    %v1238 = vsel %vm1092, %v744, 0
    %v1241 = vsel %vm1092, %v747, 0
    %v1244 = vsel %vm1092, %v750, 0
    %v1247 = vsel %vm1092, %v753, 0
    %v1250 = vsel %vm1092, %v756, 0
    %v1253 = vsel %vm1092, %v759, 0
    %v1256 = vsel %vm1092, %v762, 0
    %v1259 = vsel %vm1141, %v764, 0
    %1261 = vmatpush.msra.mxu0 0.0
    %1262 = vmatpush.msra.mxu0 0.0
    %1263 = vmatpush.msra.mxu0 0.0
    %1264 = vmatpush.msra.mxu0 0.0
    %1265 = vmatpush.msra.mxu0 0.0
    %1266 = vmatpush.msra.mxu0 0.0
    %1267 = vmatpush.msra.mxu0 0.0
    %1268 = vmatpush.msra.mxu0 0.0
    %1269 = vmatpush.msra.mxu0 0.0
    %1270 = vmatpush.msra.mxu0 0.0
    %1271 = vmatpush.msra.mxu0 0.0
    %1272 = vmatpush.msra.mxu0 0.0
    %1273 = vmatpush.msra.mxu0 0.0
    %1274 = vmatpush.msra.mxu0 0.0
    %1275 = vmatpush.msra.mxu0 0.0
    %1276 = vmatpush.msra.mxu0 %v1259
    %1277 = vmatmul.f32.gmra.mxu0 %v1211
    %v1278 = vpop.f32.mrf.mxu0
    %v1279 = vadd.f32 %v1163, %v1278
    %1280 = vmatmul.f32.gmra.mxu0 %v1214
    %v1281 = vpop.f32.mrf.mxu0
    %v1282 = vadd.f32 %v1166, %v1281
    %1283 = vmatmul.f32.gmra.mxu0 %v1217
    %v1284 = vpop.f32.mrf.mxu0
    %v1285 = vadd.f32 %v1169, %v1284
    %1286 = vmatmul.f32.gmra.mxu0 %v1220
    %v1287 = vpop.f32.mrf.mxu0
    %v1288 = vadd.f32 %v1172, %v1287
    %1289 = vmatmul.f32.gmra.mxu0 %v1223
    %v1290 = vpop.f32.mrf.mxu0
    %v1291 = vadd.f32 %v1175, %v1290
    %1292 = vmatmul.f32.gmra.mxu0 %v1226
    %v1293 = vpop.f32.mrf.mxu0
    %v1294 = vadd.f32 %v1178, %v1293
    %1295 = vmatmul.f32.gmra.mxu0 %v1229
    %v1296 = vpop.f32.mrf.mxu0
    %v1297 = vadd.f32 %v1181, %v1296
    %1298 = vmatmul.f32.gmra.mxu0 %v1232
    %v1299 = vpop.f32.mrf.mxu0
    %v1300 = vadd.f32 %v1184, %v1299
    %1301 = vmatmul.f32.gmra.mxu0 %v1235
    %v1302 = vpop.f32.mrf.mxu0
    %v1303 = vadd.f32 %v1187, %v1302
    %1304 = vmatmul.f32.gmra.mxu0 %v1238
    %v1305 = vpop.f32.mrf.mxu0
    %v1306 = vadd.f32 %v1190, %v1305
    %1307 = vmatmul.f32.gmra.mxu0 %v1241
    %v1308 = vpop.f32.mrf.mxu0
    %v1309 = vadd.f32 %v1193, %v1308
    %1310 = vmatmul.f32.gmra.mxu0 %v1244
    %v1311 = vpop.f32.mrf.mxu0
    %v1312 = vadd.f32 %v1196, %v1311
    %1313 = vmatmul.f32.gmra.mxu0 %v1247
    %v1314 = vpop.f32.mrf.mxu0
    %v1315 = vadd.f32 %v1199, %v1314
    %1316 = vmatmul.f32.gmra.mxu0 %v1250
    %v1317 = vpop.f32.mrf.mxu0
    %v1318 = vadd.f32 %v1202, %v1317
    %1319 = vmatmul.f32.gmra.mxu0 %v1253
    %v1320 = vpop.f32.mrf.mxu0
    %v1321 = vadd.f32 %v1205, %v1320
    %1322 = vmatmul.f32.gmra.mxu0 %v1256
    %v1323 = vpop.f32.mrf.mxu0
    %v1324 = vadd.f32 %v1208, %v1323
    %1325 = vdwg.mxu0
    %s1326 = scalar_lea.vmem [#allocation2], 1024
    %v1327 = vld [vmem:[%s1326] sm:$0xff]
    %v1328 = vld [vmem:[%s1326 + $0x8] sm:$0xff]
    %v1329 = vld [vmem:[%s1326 + $0x10] sm:$0xff]
    %v1330 = vld [vmem:[%s1326 + $0x18] sm:$0xff]
    %v1331 = vld [vmem:[%s1326 + $0x20] sm:$0xff]
    %v1332 = vld [vmem:[%s1326 + $0x28] sm:$0xff]
    %v1333 = vld [vmem:[%s1326 + $0x30] sm:$0xff]
    %v1334 = vld [vmem:[%s1326 + $0x38] sm:$0xff]
    %v1335 = vld [vmem:[%s1326 + $0x40] sm:$0xff]
    %v1336 = vld [vmem:[%s1326 + $0x48] sm:$0xff]
    %v1337 = vld [vmem:[%s1326 + $0x50] sm:$0xff]
    %v1338 = vld [vmem:[%s1326 + $0x58] sm:$0xff]
    %v1339 = vld [vmem:[%s1326 + $0x60] sm:$0xff]
    %v1340 = vld [vmem:[%s1326 + $0x68] sm:$0xff]
    %v1341 = vld [vmem:[%s1326 + $0x70] sm:$0xff]
    %v1342 = vld [vmem:[%s1326 + $0x78] sm:$0xff]
    %v1343 = vld [vmem:[%s1326 + $0x80] sm:$0xff]
    %v1344 = vld [vmem:[%s1326 + $0x88] sm:$0xff]
    %v1345 = vld [vmem:[%s1326 + $0x90] sm:$0xff]
    %v1346 = vld [vmem:[%s1326 + $0x98] sm:$0xff]
    %v1347 = vld [vmem:[%s1326 + $0xa0] sm:$0xff]
    %v1348 = vld [vmem:[%s1326 + $0xa8] sm:$0xff]
    %v1349 = vld [vmem:[%s1326 + $0xb0] sm:$0xff]
    %v1350 = vld [vmem:[%s1326 + $0xb8] sm:$0xff]
    %v1351 = vld [vmem:[%s1326 + $0xc0] sm:$0xff]
    %v1352 = vld [vmem:[%s1326 + $0xc8] sm:$0xff]
    %v1353 = vld [vmem:[%s1326 + $0xd0] sm:$0xff]
    %v1354 = vld [vmem:[%s1326 + $0xd8] sm:$0xff]
    %v1355 = vld [vmem:[%s1326 + $0xe0] sm:$0xff]
    %v1356 = vld [vmem:[%s1326 + $0xe8] sm:$0xff]
    %v1357 = vld [vmem:[%s1326 + $0xf0] sm:$0xff]
    %v1358 = vld [vmem:[%s1326 + $0xf8] sm:$0xff]
    %v1359 = vld [vmem:[%s1326 + $0x100] sm:$0xff]
    %v1360 = vld [vmem:[%s1326 + $0x108] sm:$0xff]
    %v1361 = vld [vmem:[%s1326 + $0x110] sm:$0xff]
    %v1362 = vld [vmem:[%s1326 + $0x118] sm:$0xff]
    %v1363 = vld [vmem:[%s1326 + $0x120] sm:$0xff]
    %v1364 = vld [vmem:[%s1326 + $0x128] sm:$0xff]
    %v1365 = vld [vmem:[%s1326 + $0x130] sm:$0xff]
    %v1366 = vld [vmem:[%s1326 + $0x138] sm:$0xff]
    %v1367 = vld [vmem:[%s1326 + $0x140] sm:$0xff]
    %v1368 = vld [vmem:[%s1326 + $0x148] sm:$0xff]
    %v1369 = vld [vmem:[%s1326 + $0x150] sm:$0xff]
    %v1370 = vld [vmem:[%s1326 + $0x158] sm:$0xff]
    %v1371 = vld [vmem:[%s1326 + $0x160] sm:$0xff]
    %v1372 = vld [vmem:[%s1326 + $0x168] sm:$0xff]
    %v1373 = vld [vmem:[%s1326 + $0x170] sm:$0xff]
    %v1374 = vld [vmem:[%s1326 + $0x178] sm:$0xff]
    %v1375 = vld [vmem:[%s1326 + $0x180] sm:$0xff]
    %v1376 = vld [vmem:[%s1326 + $0x188] sm:$0xff]
    %v1377 = vld [vmem:[%s1326 + $0x190] sm:$0xff]
    %v1378 = vld [vmem:[%s1326 + $0x198] sm:$0xff]
    %v1379 = vld [vmem:[%s1326 + $0x1a0] sm:$0xff]
    %v1380 = vld [vmem:[%s1326 + $0x1a8] sm:$0xff]
    %v1381 = vld [vmem:[%s1326 + $0x1b0] sm:$0xff]
    %v1382 = vld [vmem:[%s1326 + $0x1b8] sm:$0xff]
    %v1383 = vld [vmem:[%s1326 + $0x1c0] sm:$0xff]
    %v1384 = vld [vmem:[%s1326 + $0x1c8] sm:$0xff]
    %v1385 = vld [vmem:[%s1326 + $0x1d0] sm:$0xff]
    %v1386 = vld [vmem:[%s1326 + $0x1d8] sm:$0xff]
    %v1387 = vld [vmem:[%s1326 + $0x1e0] sm:$0xff]
    %v1388 = vld [vmem:[%s1326 + $0x1e8] sm:$0xff]
    %v1389 = vld [vmem:[%s1326 + $0x1f0] sm:$0xff]
    %v1390 = vld [vmem:[%s1326 + $0x1f8] sm:$0xff]
    %1391 = vmatpush.msra.mxu0 %v391
    %1392 = vmatpush.msra.mxu0 %v390
    %1393 = vmatpush.msra.mxu0 %v389
    %1394 = vmatpush.msra.mxu0 %v388
    %1395 = vmatpush.msra.mxu0 %v387
    %1396 = vmatpush.msra.mxu0 %v386
    %1397 = vmatpush.msra.mxu0 %v385
    %1398 = vmatpush.msra.mxu0 %v384
    %1399 = vmatpush.msra.mxu0 %v383
    %1400 = vmatpush.msra.mxu0 %v382
    %1401 = vmatpush.msra.mxu0 %v381
    %1402 = vmatpush.msra.mxu0 %v380
    %1403 = vmatpush.msra.mxu0 %v379
    %1404 = vmatpush.msra.mxu0 %v378
    %1405 = vmatpush.msra.mxu0 %v377
    %1406 = vmatpush.msra.mxu0 %v376
    %1407 = vmatmul.f32.gmra.mxu0 %v1327
    %v1408 = vpop.f32.mrf.mxu0
    %v1409 = vadd.f32 0.0, %v1408
    %1410 = vmatmul.f32.gmra.mxu0 %v1331
    %v1411 = vpop.f32.mrf.mxu0
    %v1412 = vadd.f32 0.0, %v1411
    %1413 = vmatmul.f32.gmra.mxu0 %v1335
    %v1414 = vpop.f32.mrf.mxu0
    %v1415 = vadd.f32 0.0, %v1414
    %1416 = vmatmul.f32.gmra.mxu0 %v1339
    %v1417 = vpop.f32.mrf.mxu0
    %v1418 = vadd.f32 0.0, %v1417
    %1419 = vmatmul.f32.gmra.mxu0 %v1343
    %v1420 = vpop.f32.mrf.mxu0
    %v1421 = vadd.f32 0.0, %v1420
    %1422 = vmatmul.f32.gmra.mxu0 %v1347
    %v1423 = vpop.f32.mrf.mxu0
    %v1424 = vadd.f32 0.0, %v1423
    %1425 = vmatmul.f32.gmra.mxu0 %v1351
    %v1426 = vpop.f32.mrf.mxu0
    %v1427 = vadd.f32 0.0, %v1426
    %1428 = vmatmul.f32.gmra.mxu0 %v1355
    %v1429 = vpop.f32.mrf.mxu0
    %v1430 = vadd.f32 0.0, %v1429
    %1431 = vmatmul.f32.gmra.mxu0 %v1359
    %v1432 = vpop.f32.mrf.mxu0
    %v1433 = vadd.f32 0.0, %v1432
    %1434 = vmatmul.f32.gmra.mxu0 %v1363
    %v1435 = vpop.f32.mrf.mxu0
    %v1436 = vadd.f32 0.0, %v1435
    %1437 = vmatmul.f32.gmra.mxu0 %v1367
    %v1438 = vpop.f32.mrf.mxu0
    %v1439 = vadd.f32 0.0, %v1438
    %1440 = vmatmul.f32.gmra.mxu0 %v1371
    %v1441 = vpop.f32.mrf.mxu0
    %v1442 = vadd.f32 0.0, %v1441
    %1443 = vmatmul.f32.gmra.mxu0 %v1375
    %v1444 = vpop.f32.mrf.mxu0
    %v1445 = vadd.f32 0.0, %v1444
    %1446 = vmatmul.f32.gmra.mxu0 %v1379
    %v1447 = vpop.f32.mrf.mxu0
    %v1448 = vadd.f32 0.0, %v1447
    %1449 = vmatmul.f32.gmra.mxu0 %v1383
    %v1450 = vpop.f32.mrf.mxu0
    %v1451 = vadd.f32 0.0, %v1450
    %1452 = vmatmul.f32.gmra.mxu0 %v1387
    %v1453 = vpop.f32.mrf.mxu0
    %v1454 = vadd.f32 0.0, %v1453
    %1455 = vdwg.mxu0
    %1456 = vmatpush.msra.mxu0 %v407
    %1457 = vmatpush.msra.mxu0 %v406
    %1458 = vmatpush.msra.mxu0 %v405
    %1459 = vmatpush.msra.mxu0 %v404
    %1460 = vmatpush.msra.mxu0 %v403
    %1461 = vmatpush.msra.mxu0 %v402
    %1462 = vmatpush.msra.mxu0 %v401
    %1463 = vmatpush.msra.mxu0 %v400
    %1464 = vmatpush.msra.mxu0 %v399
    %1465 = vmatpush.msra.mxu0 %v398
    %1466 = vmatpush.msra.mxu0 %v397
    %1467 = vmatpush.msra.mxu0 %v396
    %1468 = vmatpush.msra.mxu0 %v395
    %1469 = vmatpush.msra.mxu0 %v394
    %1470 = vmatpush.msra.mxu0 %v393
    %1471 = vmatpush.msra.mxu0 %v392
    %1472 = vmatmul.f32.gmra.mxu0 %v1328
    %v1473 = vpop.f32.mrf.mxu0
    %v1474 = vadd.f32 %v1409, %v1473
    %1475 = vmatmul.f32.gmra.mxu0 %v1332
    %v1476 = vpop.f32.mrf.mxu0
    %v1477 = vadd.f32 %v1412, %v1476
    %1478 = vmatmul.f32.gmra.mxu0 %v1336
    %v1479 = vpop.f32.mrf.mxu0
    %v1480 = vadd.f32 %v1415, %v1479
    %1481 = vmatmul.f32.gmra.mxu0 %v1340
    %v1482 = vpop.f32.mrf.mxu0
    %v1483 = vadd.f32 %v1418, %v1482
    %1484 = vmatmul.f32.gmra.mxu0 %v1344
    %v1485 = vpop.f32.mrf.mxu0
    %v1486 = vadd.f32 %v1421, %v1485
    %1487 = vmatmul.f32.gmra.mxu0 %v1348
    %v1488 = vpop.f32.mrf.mxu0
    %v1489 = vadd.f32 %v1424, %v1488
    %1490 = vmatmul.f32.gmra.mxu0 %v1352
    %v1491 = vpop.f32.mrf.mxu0
    %v1492 = vadd.f32 %v1427, %v1491
    %1493 = vmatmul.f32.gmra.mxu0 %v1356
    %v1494 = vpop.f32.mrf.mxu0
    %v1495 = vadd.f32 %v1430, %v1494
    %1496 = vmatmul.f32.gmra.mxu0 %v1360
    %v1497 = vpop.f32.mrf.mxu0
    %v1498 = vadd.f32 %v1433, %v1497
    %1499 = vmatmul.f32.gmra.mxu0 %v1364
    %v1500 = vpop.f32.mrf.mxu0
    %v1501 = vadd.f32 %v1436, %v1500
    %1502 = vmatmul.f32.gmra.mxu0 %v1368
    %v1503 = vpop.f32.mrf.mxu0
    %v1504 = vadd.f32 %v1439, %v1503
    %1505 = vmatmul.f32.gmra.mxu0 %v1372
    %v1506 = vpop.f32.mrf.mxu0
    %v1507 = vadd.f32 %v1442, %v1506
    %1508 = vmatmul.f32.gmra.mxu0 %v1376
    %v1509 = vpop.f32.mrf.mxu0
    %v1510 = vadd.f32 %v1445, %v1509
    %1511 = vmatmul.f32.gmra.mxu0 %v1380
    %v1512 = vpop.f32.mrf.mxu0
    %v1513 = vadd.f32 %v1448, %v1512
    %1514 = vmatmul.f32.gmra.mxu0 %v1384
    %v1515 = vpop.f32.mrf.mxu0
    %v1516 = vadd.f32 %v1451, %v1515
    %1517 = vmatmul.f32.gmra.mxu0 %v1388
    %v1518 = vpop.f32.mrf.mxu0
    %v1519 = vadd.f32 %v1454, %v1518
    %1520 = vdwg.mxu0
    %1521 = vmatpush.msra.mxu0 %v423
    %1522 = vmatpush.msra.mxu0 %v422
    %1523 = vmatpush.msra.mxu0 %v421
    %1524 = vmatpush.msra.mxu0 %v420
    %1525 = vmatpush.msra.mxu0 %v419
    %1526 = vmatpush.msra.mxu0 %v418
    %1527 = vmatpush.msra.mxu0 %v417
    %1528 = vmatpush.msra.mxu0 %v416
    %1529 = vmatpush.msra.mxu0 %v415
    %1530 = vmatpush.msra.mxu0 %v414
    %1531 = vmatpush.msra.mxu0 %v413
    %1532 = vmatpush.msra.mxu0 %v412
    %1533 = vmatpush.msra.mxu0 %v411
    %1534 = vmatpush.msra.mxu0 %v410
    %1535 = vmatpush.msra.mxu0 %v409
    %1536 = vmatpush.msra.mxu0 %v408
    %1537 = vmatmul.f32.gmra.mxu0 %v1329
    %v1538 = vpop.f32.mrf.mxu0
    %v1539 = vadd.f32 %v1474, %v1538
    %1540 = vmatmul.f32.gmra.mxu0 %v1333
    %v1541 = vpop.f32.mrf.mxu0
    %v1542 = vadd.f32 %v1477, %v1541
    %1543 = vmatmul.f32.gmra.mxu0 %v1337
    %v1544 = vpop.f32.mrf.mxu0
    %v1545 = vadd.f32 %v1480, %v1544
    %1546 = vmatmul.f32.gmra.mxu0 %v1341
    %v1547 = vpop.f32.mrf.mxu0
    %v1548 = vadd.f32 %v1483, %v1547
    %1549 = vmatmul.f32.gmra.mxu0 %v1345
    %v1550 = vpop.f32.mrf.mxu0
    %v1551 = vadd.f32 %v1486, %v1550
    %1552 = vmatmul.f32.gmra.mxu0 %v1349
    %v1553 = vpop.f32.mrf.mxu0
    %v1554 = vadd.f32 %v1489, %v1553
    %1555 = vmatmul.f32.gmra.mxu0 %v1353
    %v1556 = vpop.f32.mrf.mxu0
    %v1557 = vadd.f32 %v1492, %v1556
    %1558 = vmatmul.f32.gmra.mxu0 %v1357
    %v1559 = vpop.f32.mrf.mxu0
    %v1560 = vadd.f32 %v1495, %v1559
    %1561 = vmatmul.f32.gmra.mxu0 %v1361
    %v1562 = vpop.f32.mrf.mxu0
    %v1563 = vadd.f32 %v1498, %v1562
    %1564 = vmatmul.f32.gmra.mxu0 %v1365
    %v1565 = vpop.f32.mrf.mxu0
    %v1566 = vadd.f32 %v1501, %v1565
    %1567 = vmatmul.f32.gmra.mxu0 %v1369
    %v1568 = vpop.f32.mrf.mxu0
    %v1569 = vadd.f32 %v1504, %v1568
    %1570 = vmatmul.f32.gmra.mxu0 %v1373
    %v1571 = vpop.f32.mrf.mxu0
    %v1572 = vadd.f32 %v1507, %v1571
    %1573 = vmatmul.f32.gmra.mxu0 %v1377
    %v1574 = vpop.f32.mrf.mxu0
    %v1575 = vadd.f32 %v1510, %v1574
    %1576 = vmatmul.f32.gmra.mxu0 %v1381
    %v1577 = vpop.f32.mrf.mxu0
    %v1578 = vadd.f32 %v1513, %v1577
    %1579 = vmatmul.f32.gmra.mxu0 %v1385
    %v1580 = vpop.f32.mrf.mxu0
    %v1581 = vadd.f32 %v1516, %v1580
    %1582 = vmatmul.f32.gmra.mxu0 %v1389
    %v1583 = vpop.f32.mrf.mxu0
    %v1584 = vadd.f32 %v1519, %v1583
    %1585 = vdwg.mxu0
    %1586 = vmatpush.msra.mxu0 %v439
    %1587 = vmatpush.msra.mxu0 %v438
    %1588 = vmatpush.msra.mxu0 %v437
    %1589 = vmatpush.msra.mxu0 %v436
    %1590 = vmatpush.msra.mxu0 %v435
    %1591 = vmatpush.msra.mxu0 %v434
    %1592 = vmatpush.msra.mxu0 %v433
    %1593 = vmatpush.msra.mxu0 %v432
    %1594 = vmatpush.msra.mxu0 %v431
    %1595 = vmatpush.msra.mxu0 %v430
    %1596 = vmatpush.msra.mxu0 %v429
    %1597 = vmatpush.msra.mxu0 %v428
    %1598 = vmatpush.msra.mxu0 %v427
    %1599 = vmatpush.msra.mxu0 %v426
    %1600 = vmatpush.msra.mxu0 %v425
    %1601 = vmatpush.msra.mxu0 %v424
    %1602 = vmatmul.f32.gmra.mxu0 %v1330
    %v1603 = vpop.f32.mrf.mxu0
    %v1604 = vadd.f32 %v1539, %v1603
    %1605 = vmatmul.f32.gmra.mxu0 %v1334
    %v1606 = vpop.f32.mrf.mxu0
    %v1607 = vadd.f32 %v1542, %v1606
    %1608 = vmatmul.f32.gmra.mxu0 %v1338
    %v1609 = vpop.f32.mrf.mxu0
    %v1610 = vadd.f32 %v1545, %v1609
    %1611 = vmatmul.f32.gmra.mxu0 %v1342
    %v1612 = vpop.f32.mrf.mxu0
    %v1613 = vadd.f32 %v1548, %v1612
    %1614 = vmatmul.f32.gmra.mxu0 %v1346
    %v1615 = vpop.f32.mrf.mxu0
    %v1616 = vadd.f32 %v1551, %v1615
    %1617 = vmatmul.f32.gmra.mxu0 %v1350
    %v1618 = vpop.f32.mrf.mxu0
    %v1619 = vadd.f32 %v1554, %v1618
    %1620 = vmatmul.f32.gmra.mxu0 %v1354
    %v1621 = vpop.f32.mrf.mxu0
    %v1622 = vadd.f32 %v1557, %v1621
    %1623 = vmatmul.f32.gmra.mxu0 %v1358
    %v1624 = vpop.f32.mrf.mxu0
    %v1625 = vadd.f32 %v1560, %v1624
    %1626 = vmatmul.f32.gmra.mxu0 %v1362
    %v1627 = vpop.f32.mrf.mxu0
    %v1628 = vadd.f32 %v1563, %v1627
    %1629 = vmatmul.f32.gmra.mxu0 %v1366
    %v1630 = vpop.f32.mrf.mxu0
    %v1631 = vadd.f32 %v1566, %v1630
    %1632 = vmatmul.f32.gmra.mxu0 %v1370
    %v1633 = vpop.f32.mrf.mxu0
    %v1634 = vadd.f32 %v1569, %v1633
    %1635 = vmatmul.f32.gmra.mxu0 %v1374
    %v1636 = vpop.f32.mrf.mxu0
    %v1637 = vadd.f32 %v1572, %v1636
    %1638 = vmatmul.f32.gmra.mxu0 %v1378
    %v1639 = vpop.f32.mrf.mxu0
    %v1640 = vadd.f32 %v1575, %v1639
    %1641 = vmatmul.f32.gmra.mxu0 %v1382
    %v1642 = vpop.f32.mrf.mxu0
    %v1643 = vadd.f32 %v1578, %v1642
    %1644 = vmatmul.f32.gmra.mxu0 %v1386
    %v1645 = vpop.f32.mrf.mxu0
    %v1646 = vadd.f32 %v1581, %v1645
    %1647 = vmatmul.f32.gmra.mxu0 %v1390
    %v1648 = vpop.f32.mrf.mxu0
    %v1649 = vadd.f32 %v1584, %v1648
    %1650 = vdwg.mxu0
    %s1651 = scalar_lea.vmem [#allocation4], 8
    %v1652 = vld [vmem:[%s1651] sm:$0x7]
    %v1654 = vsel %vm1092, %v1604, 0
    %v1657 = vsel %vm1092, %v1607, 0
    %v1660 = vsel %vm1092, %v1610, 0
    %v1663 = vsel %vm1092, %v1613, 0
    %v1666 = vsel %vm1092, %v1616, 0
    %v1669 = vsel %vm1092, %v1619, 0
    %v1672 = vsel %vm1092, %v1622, 0
    %v1675 = vsel %vm1092, %v1625, 0
    %v1678 = vsel %vm1092, %v1628, 0
    %v1681 = vsel %vm1092, %v1631, 0
    %v1684 = vsel %vm1092, %v1634, 0
    %v1687 = vsel %vm1092, %v1637, 0
    %v1690 = vsel %vm1092, %v1640, 0
    %v1693 = vsel %vm1092, %v1643, 0
    %v1696 = vsel %vm1092, %v1646, 0
    %v1699 = vsel %vm1092, %v1649, 0
    %v1702 = vsel %vm1141, %v1652, 0
    %1704 = vmatpush.msra.mxu0 0.0
    %1705 = vmatpush.msra.mxu0 0.0
    %1706 = vmatpush.msra.mxu0 0.0
    %1707 = vmatpush.msra.mxu0 0.0
    %1708 = vmatpush.msra.mxu0 0.0
    %1709 = vmatpush.msra.mxu0 0.0
    %1710 = vmatpush.msra.mxu0 0.0
    %1711 = vmatpush.msra.mxu0 0.0
    %1712 = vmatpush.msra.mxu0 0.0
    %1713 = vmatpush.msra.mxu0 0.0
    %1714 = vmatpush.msra.mxu0 0.0
    %1715 = vmatpush.msra.mxu0 0.0
    %1716 = vmatpush.msra.mxu0 0.0
    %1717 = vmatpush.msra.mxu0 0.0
    %1718 = vmatpush.msra.mxu0 0.0
    %1719 = vmatpush.msra.mxu0 %v1702
    %1720 = vmatmul.f32.gmra.mxu0 %v1654
    %v1721 = vpop.f32.mrf.mxu0
    %v1722 = vadd.f32 0.0, %v1721
    %1723 = vmatmul.f32.gmra.mxu0 %v1657
    %v1724 = vpop.f32.mrf.mxu0
    %v1725 = vadd.f32 0.0, %v1724
    %1726 = vmatmul.f32.gmra.mxu0 %v1660
    %v1727 = vpop.f32.mrf.mxu0
    %v1728 = vadd.f32 0.0, %v1727
    %1729 = vmatmul.f32.gmra.mxu0 %v1663
    %v1730 = vpop.f32.mrf.mxu0
    %v1731 = vadd.f32 0.0, %v1730
    %1732 = vmatmul.f32.gmra.mxu0 %v1666
    %v1733 = vpop.f32.mrf.mxu0
    %v1734 = vadd.f32 0.0, %v1733
    %1735 = vmatmul.f32.gmra.mxu0 %v1669
    %v1736 = vpop.f32.mrf.mxu0
    %v1737 = vadd.f32 0.0, %v1736
    %1738 = vmatmul.f32.gmra.mxu0 %v1672
    %v1739 = vpop.f32.mrf.mxu0
    %v1740 = vadd.f32 0.0, %v1739
    %1741 = vmatmul.f32.gmra.mxu0 %v1675
    %v1742 = vpop.f32.mrf.mxu0
    %v1743 = vadd.f32 0.0, %v1742
    %1744 = vmatmul.f32.gmra.mxu0 %v1678
    %v1745 = vpop.f32.mrf.mxu0
    %v1746 = vadd.f32 0.0, %v1745
    %1747 = vmatmul.f32.gmra.mxu0 %v1681
    %v1748 = vpop.f32.mrf.mxu0
    %v1749 = vadd.f32 0.0, %v1748
    %1750 = vmatmul.f32.gmra.mxu0 %v1684
    %v1751 = vpop.f32.mrf.mxu0
    %v1752 = vadd.f32 0.0, %v1751
    %1753 = vmatmul.f32.gmra.mxu0 %v1687
    %v1754 = vpop.f32.mrf.mxu0
    %v1755 = vadd.f32 0.0, %v1754
    %1756 = vmatmul.f32.gmra.mxu0 %v1690
    %v1757 = vpop.f32.mrf.mxu0
    %v1758 = vadd.f32 0.0, %v1757
    %1759 = vmatmul.f32.gmra.mxu0 %v1693
    %v1760 = vpop.f32.mrf.mxu0
    %v1761 = vadd.f32 0.0, %v1760
    %1762 = vmatmul.f32.gmra.mxu0 %v1696
    %v1763 = vpop.f32.mrf.mxu0
    %v1764 = vadd.f32 0.0, %v1763
    %1765 = vmatmul.f32.gmra.mxu0 %v1699
    %v1766 = vpop.f32.mrf.mxu0
    %v1767 = vadd.f32 0.0, %v1766
    %1768 = vdwg.mxu0
    %v1769 = vadd.f32 %v1279, %v1722
    %v1770 = vadd.f32 %v1282, %v1725
    %v1771 = vadd.f32 %v1285, %v1728
    %v1772 = vadd.f32 %v1288, %v1731
    %v1773 = vadd.f32 %v1291, %v1734
    %v1774 = vadd.f32 %v1294, %v1737
    %v1775 = vadd.f32 %v1297, %v1740
    %v1776 = vadd.f32 %v1300, %v1743
    %v1777 = vadd.f32 %v1303, %v1746
    %v1778 = vadd.f32 %v1306, %v1749
    %v1779 = vadd.f32 %v1309, %v1752
    %v1780 = vadd.f32 %v1312, %v1755
    %v1781 = vadd.f32 %v1315, %v1758
    %v1782 = vadd.f32 %v1318, %v1761
    %v1783 = vadd.f32 %v1321, %v1764
    %v1784 = vadd.f32 %v1324, %v1767
    %s1785 = scalar_lea.vmem [#allocation2], 1536
    %v1786 = vld [vmem:[%s1785] sm:$0xff]
    %v1787 = vld [vmem:[%s1785 + $0x8] sm:$0xff]
    %v1788 = vld [vmem:[%s1785 + $0x10] sm:$0xff]
    %v1789 = vld [vmem:[%s1785 + $0x18] sm:$0xff]
    %v1790 = vld [vmem:[%s1785 + $0x20] sm:$0xff]
    %v1791 = vld [vmem:[%s1785 + $0x28] sm:$0xff]
    %v1792 = vld [vmem:[%s1785 + $0x30] sm:$0xff]
    %v1793 = vld [vmem:[%s1785 + $0x38] sm:$0xff]
    %v1794 = vld [vmem:[%s1785 + $0x40] sm:$0xff]
    %v1795 = vld [vmem:[%s1785 + $0x48] sm:$0xff]
    %v1796 = vld [vmem:[%s1785 + $0x50] sm:$0xff]
    %v1797 = vld [vmem:[%s1785 + $0x58] sm:$0xff]
    %v1798 = vld [vmem:[%s1785 + $0x60] sm:$0xff]
    %v1799 = vld [vmem:[%s1785 + $0x68] sm:$0xff]
    %v1800 = vld [vmem:[%s1785 + $0x70] sm:$0xff]
    %v1801 = vld [vmem:[%s1785 + $0x78] sm:$0xff]
    %v1802 = vld [vmem:[%s1785 + $0x80] sm:$0xff]
    %v1803 = vld [vmem:[%s1785 + $0x88] sm:$0xff]
    %v1804 = vld [vmem:[%s1785 + $0x90] sm:$0xff]
    %v1805 = vld [vmem:[%s1785 + $0x98] sm:$0xff]
    %v1806 = vld [vmem:[%s1785 + $0xa0] sm:$0xff]
    %v1807 = vld [vmem:[%s1785 + $0xa8] sm:$0xff]
    %v1808 = vld [vmem:[%s1785 + $0xb0] sm:$0xff]
    %v1809 = vld [vmem:[%s1785 + $0xb8] sm:$0xff]
    %v1810 = vld [vmem:[%s1785 + $0xc0] sm:$0xff]
    %v1811 = vld [vmem:[%s1785 + $0xc8] sm:$0xff]
    %v1812 = vld [vmem:[%s1785 + $0xd0] sm:$0xff]
    %v1813 = vld [vmem:[%s1785 + $0xd8] sm:$0xff]
    %v1814 = vld [vmem:[%s1785 + $0xe0] sm:$0xff]
    %v1815 = vld [vmem:[%s1785 + $0xe8] sm:$0xff]
    %v1816 = vld [vmem:[%s1785 + $0xf0] sm:$0xff]
    %v1817 = vld [vmem:[%s1785 + $0xf8] sm:$0xff]
    %v1818 = vld [vmem:[%s1785 + $0x100] sm:$0xff]
    %v1819 = vld [vmem:[%s1785 + $0x108] sm:$0xff]
    %v1820 = vld [vmem:[%s1785 + $0x110] sm:$0xff]
    %v1821 = vld [vmem:[%s1785 + $0x118] sm:$0xff]
    %v1822 = vld [vmem:[%s1785 + $0x120] sm:$0xff]
    %v1823 = vld [vmem:[%s1785 + $0x128] sm:$0xff]
    %v1824 = vld [vmem:[%s1785 + $0x130] sm:$0xff]
    %v1825 = vld [vmem:[%s1785 + $0x138] sm:$0xff]
    %v1826 = vld [vmem:[%s1785 + $0x140] sm:$0xff]
    %v1827 = vld [vmem:[%s1785 + $0x148] sm:$0xff]
    %v1828 = vld [vmem:[%s1785 + $0x150] sm:$0xff]
    %v1829 = vld [vmem:[%s1785 + $0x158] sm:$0xff]
    %v1830 = vld [vmem:[%s1785 + $0x160] sm:$0xff]
    %v1831 = vld [vmem:[%s1785 + $0x168] sm:$0xff]
    %v1832 = vld [vmem:[%s1785 + $0x170] sm:$0xff]
    %v1833 = vld [vmem:[%s1785 + $0x178] sm:$0xff]
    %v1834 = vld [vmem:[%s1785 + $0x180] sm:$0xff]
    %v1835 = vld [vmem:[%s1785 + $0x188] sm:$0xff]
    %v1836 = vld [vmem:[%s1785 + $0x190] sm:$0xff]
    %v1837 = vld [vmem:[%s1785 + $0x198] sm:$0xff]
    %v1838 = vld [vmem:[%s1785 + $0x1a0] sm:$0xff]
    %v1839 = vld [vmem:[%s1785 + $0x1a8] sm:$0xff]
    %v1840 = vld [vmem:[%s1785 + $0x1b0] sm:$0xff]
    %v1841 = vld [vmem:[%s1785 + $0x1b8] sm:$0xff]
    %v1842 = vld [vmem:[%s1785 + $0x1c0] sm:$0xff]
    %v1843 = vld [vmem:[%s1785 + $0x1c8] sm:$0xff]
    %v1844 = vld [vmem:[%s1785 + $0x1d0] sm:$0xff]
    %v1845 = vld [vmem:[%s1785 + $0x1d8] sm:$0xff]
    %v1846 = vld [vmem:[%s1785 + $0x1e0] sm:$0xff]
    %v1847 = vld [vmem:[%s1785 + $0x1e8] sm:$0xff]
    %v1848 = vld [vmem:[%s1785 + $0x1f0] sm:$0xff]
    %v1849 = vld [vmem:[%s1785 + $0x1f8] sm:$0xff]
    %1850 = vmatpush.msra.mxu0 %v391
    %1851 = vmatpush.msra.mxu0 %v390
    %1852 = vmatpush.msra.mxu0 %v389
    %1853 = vmatpush.msra.mxu0 %v388
    %1854 = vmatpush.msra.mxu0 %v387
    %1855 = vmatpush.msra.mxu0 %v386
    %1856 = vmatpush.msra.mxu0 %v385
    %1857 = vmatpush.msra.mxu0 %v384
    %1858 = vmatpush.msra.mxu0 %v383
    %1859 = vmatpush.msra.mxu0 %v382
    %1860 = vmatpush.msra.mxu0 %v381
    %1861 = vmatpush.msra.mxu0 %v380
    %1862 = vmatpush.msra.mxu0 %v379
    %1863 = vmatpush.msra.mxu0 %v378
    %1864 = vmatpush.msra.mxu0 %v377
    %1865 = vmatpush.msra.mxu0 %v376
    %1866 = vmatmul.f32.gmra.mxu0 %v1786
    %v1867 = vpop.f32.mrf.mxu0
    %v1868 = vadd.f32 0.0, %v1867
    %1869 = vmatmul.f32.gmra.mxu0 %v1790
    %v1870 = vpop.f32.mrf.mxu0
    %v1871 = vadd.f32 0.0, %v1870
    %1872 = vmatmul.f32.gmra.mxu0 %v1794
    %v1873 = vpop.f32.mrf.mxu0
    %v1874 = vadd.f32 0.0, %v1873
    %1875 = vmatmul.f32.gmra.mxu0 %v1798
    %v1876 = vpop.f32.mrf.mxu0
    %v1877 = vadd.f32 0.0, %v1876
    %1878 = vmatmul.f32.gmra.mxu0 %v1802
    %v1879 = vpop.f32.mrf.mxu0
    %v1880 = vadd.f32 0.0, %v1879
    %1881 = vmatmul.f32.gmra.mxu0 %v1806
    %v1882 = vpop.f32.mrf.mxu0
    %v1883 = vadd.f32 0.0, %v1882
    %1884 = vmatmul.f32.gmra.mxu0 %v1810
    %v1885 = vpop.f32.mrf.mxu0
    %v1886 = vadd.f32 0.0, %v1885
    %1887 = vmatmul.f32.gmra.mxu0 %v1814
    %v1888 = vpop.f32.mrf.mxu0
    %v1889 = vadd.f32 0.0, %v1888
    %1890 = vmatmul.f32.gmra.mxu0 %v1818
    %v1891 = vpop.f32.mrf.mxu0
    %v1892 = vadd.f32 0.0, %v1891
    %1893 = vmatmul.f32.gmra.mxu0 %v1822
    %v1894 = vpop.f32.mrf.mxu0
    %v1895 = vadd.f32 0.0, %v1894
    %1896 = vmatmul.f32.gmra.mxu0 %v1826
    %v1897 = vpop.f32.mrf.mxu0
    %v1898 = vadd.f32 0.0, %v1897
    %1899 = vmatmul.f32.gmra.mxu0 %v1830
    %v1900 = vpop.f32.mrf.mxu0
    %v1901 = vadd.f32 0.0, %v1900
    %1902 = vmatmul.f32.gmra.mxu0 %v1834
    %v1903 = vpop.f32.mrf.mxu0
    %v1904 = vadd.f32 0.0, %v1903
    %1905 = vmatmul.f32.gmra.mxu0 %v1838
    %v1906 = vpop.f32.mrf.mxu0
    %v1907 = vadd.f32 0.0, %v1906
    %1908 = vmatmul.f32.gmra.mxu0 %v1842
    %v1909 = vpop.f32.mrf.mxu0
    %v1910 = vadd.f32 0.0, %v1909
    %1911 = vmatmul.f32.gmra.mxu0 %v1846
    %v1912 = vpop.f32.mrf.mxu0
    %v1913 = vadd.f32 0.0, %v1912
    %1914 = vdwg.mxu0
    %1915 = vmatpush.msra.mxu0 %v407
    %1916 = vmatpush.msra.mxu0 %v406
    %1917 = vmatpush.msra.mxu0 %v405
    %1918 = vmatpush.msra.mxu0 %v404
    %1919 = vmatpush.msra.mxu0 %v403
    %1920 = vmatpush.msra.mxu0 %v402
    %1921 = vmatpush.msra.mxu0 %v401
    %1922 = vmatpush.msra.mxu0 %v400
    %1923 = vmatpush.msra.mxu0 %v399
    %1924 = vmatpush.msra.mxu0 %v398
    %1925 = vmatpush.msra.mxu0 %v397
    %1926 = vmatpush.msra.mxu0 %v396
    %1927 = vmatpush.msra.mxu0 %v395
    %1928 = vmatpush.msra.mxu0 %v394
    %1929 = vmatpush.msra.mxu0 %v393
    %1930 = vmatpush.msra.mxu0 %v392
    %1931 = vmatmul.f32.gmra.mxu0 %v1787
    %v1932 = vpop.f32.mrf.mxu0
    %v1933 = vadd.f32 %v1868, %v1932
    %1934 = vmatmul.f32.gmra.mxu0 %v1791
    %v1935 = vpop.f32.mrf.mxu0
    %v1936 = vadd.f32 %v1871, %v1935
    %1937 = vmatmul.f32.gmra.mxu0 %v1795
    %v1938 = vpop.f32.mrf.mxu0
    %v1939 = vadd.f32 %v1874, %v1938
    %1940 = vmatmul.f32.gmra.mxu0 %v1799
    %v1941 = vpop.f32.mrf.mxu0
    %v1942 = vadd.f32 %v1877, %v1941
    %1943 = vmatmul.f32.gmra.mxu0 %v1803
    %v1944 = vpop.f32.mrf.mxu0
    %v1945 = vadd.f32 %v1880, %v1944
    %1946 = vmatmul.f32.gmra.mxu0 %v1807
    %v1947 = vpop.f32.mrf.mxu0
    %v1948 = vadd.f32 %v1883, %v1947
    %1949 = vmatmul.f32.gmra.mxu0 %v1811
    %v1950 = vpop.f32.mrf.mxu0
    %v1951 = vadd.f32 %v1886, %v1950
    %1952 = vmatmul.f32.gmra.mxu0 %v1815
    %v1953 = vpop.f32.mrf.mxu0
    %v1954 = vadd.f32 %v1889, %v1953
    %1955 = vmatmul.f32.gmra.mxu0 %v1819
    %v1956 = vpop.f32.mrf.mxu0
    %v1957 = vadd.f32 %v1892, %v1956
    %1958 = vmatmul.f32.gmra.mxu0 %v1823
    %v1959 = vpop.f32.mrf.mxu0
    %v1960 = vadd.f32 %v1895, %v1959
    %1961 = vmatmul.f32.gmra.mxu0 %v1827
    %v1962 = vpop.f32.mrf.mxu0
    %v1963 = vadd.f32 %v1898, %v1962
    %1964 = vmatmul.f32.gmra.mxu0 %v1831
    %v1965 = vpop.f32.mrf.mxu0
    %v1966 = vadd.f32 %v1901, %v1965
    %1967 = vmatmul.f32.gmra.mxu0 %v1835
    %v1968 = vpop.f32.mrf.mxu0
    %v1969 = vadd.f32 %v1904, %v1968
    %1970 = vmatmul.f32.gmra.mxu0 %v1839
    %v1971 = vpop.f32.mrf.mxu0
    %v1972 = vadd.f32 %v1907, %v1971
    %1973 = vmatmul.f32.gmra.mxu0 %v1843
    %v1974 = vpop.f32.mrf.mxu0
    %v1975 = vadd.f32 %v1910, %v1974
    %1976 = vmatmul.f32.gmra.mxu0 %v1847
    %v1977 = vpop.f32.mrf.mxu0
    %v1978 = vadd.f32 %v1913, %v1977
    %1979 = vdwg.mxu0
    %1980 = vmatpush.msra.mxu0 %v423
    %1981 = vmatpush.msra.mxu0 %v422
    %1982 = vmatpush.msra.mxu0 %v421
    %1983 = vmatpush.msra.mxu0 %v420
    %1984 = vmatpush.msra.mxu0 %v419
    %1985 = vmatpush.msra.mxu0 %v418
    %1986 = vmatpush.msra.mxu0 %v417
    %1987 = vmatpush.msra.mxu0 %v416
    %1988 = vmatpush.msra.mxu0 %v415
    %1989 = vmatpush.msra.mxu0 %v414
    %1990 = vmatpush.msra.mxu0 %v413
    %1991 = vmatpush.msra.mxu0 %v412
    %1992 = vmatpush.msra.mxu0 %v411
    %1993 = vmatpush.msra.mxu0 %v410
    %1994 = vmatpush.msra.mxu0 %v409
    %1995 = vmatpush.msra.mxu0 %v408
    %1996 = vmatmul.f32.gmra.mxu0 %v1788
    %v1997 = vpop.f32.mrf.mxu0
    %v1998 = vadd.f32 %v1933, %v1997
    %1999 = vmatmul.f32.gmra.mxu0 %v1792
    %v2000 = vpop.f32.mrf.mxu0
    %v2001 = vadd.f32 %v1936, %v2000
    %2002 = vmatmul.f32.gmra.mxu0 %v1796
    %v2003 = vpop.f32.mrf.mxu0
    %v2004 = vadd.f32 %v1939, %v2003
    %2005 = vmatmul.f32.gmra.mxu0 %v1800
    %v2006 = vpop.f32.mrf.mxu0
    %v2007 = vadd.f32 %v1942, %v2006
    %2008 = vmatmul.f32.gmra.mxu0 %v1804
    %v2009 = vpop.f32.mrf.mxu0
    %v2010 = vadd.f32 %v1945, %v2009
    %2011 = vmatmul.f32.gmra.mxu0 %v1808
    %v2012 = vpop.f32.mrf.mxu0
    %v2013 = vadd.f32 %v1948, %v2012
    %2014 = vmatmul.f32.gmra.mxu0 %v1812
    %v2015 = vpop.f32.mrf.mxu0
    %v2016 = vadd.f32 %v1951, %v2015
    %2017 = vmatmul.f32.gmra.mxu0 %v1816
    %v2018 = vpop.f32.mrf.mxu0
    %v2019 = vadd.f32 %v1954, %v2018
    %2020 = vmatmul.f32.gmra.mxu0 %v1820
    %v2021 = vpop.f32.mrf.mxu0
    %v2022 = vadd.f32 %v1957, %v2021
    %2023 = vmatmul.f32.gmra.mxu0 %v1824
    %v2024 = vpop.f32.mrf.mxu0
    %v2025 = vadd.f32 %v1960, %v2024
    %2026 = vmatmul.f32.gmra.mxu0 %v1828
    %v2027 = vpop.f32.mrf.mxu0
    %v2028 = vadd.f32 %v1963, %v2027
    %2029 = vmatmul.f32.gmra.mxu0 %v1832
    %v2030 = vpop.f32.mrf.mxu0
    %v2031 = vadd.f32 %v1966, %v2030
    %2032 = vmatmul.f32.gmra.mxu0 %v1836
    %v2033 = vpop.f32.mrf.mxu0
    %v2034 = vadd.f32 %v1969, %v2033
    %2035 = vmatmul.f32.gmra.mxu0 %v1840
    %v2036 = vpop.f32.mrf.mxu0
    %v2037 = vadd.f32 %v1972, %v2036
    %2038 = vmatmul.f32.gmra.mxu0 %v1844
    %v2039 = vpop.f32.mrf.mxu0
    %v2040 = vadd.f32 %v1975, %v2039
    %2041 = vmatmul.f32.gmra.mxu0 %v1848
    %v2042 = vpop.f32.mrf.mxu0
    %v2043 = vadd.f32 %v1978, %v2042
    %2044 = vdwg.mxu0
    %2045 = vmatpush.msra.mxu0 %v439
    %2046 = vmatpush.msra.mxu0 %v438
    %2047 = vmatpush.msra.mxu0 %v437
    %2048 = vmatpush.msra.mxu0 %v436
    %2049 = vmatpush.msra.mxu0 %v435
    %2050 = vmatpush.msra.mxu0 %v434
    %2051 = vmatpush.msra.mxu0 %v433
    %2052 = vmatpush.msra.mxu0 %v432
    %2053 = vmatpush.msra.mxu0 %v431
    %2054 = vmatpush.msra.mxu0 %v430
    %2055 = vmatpush.msra.mxu0 %v429
    %2056 = vmatpush.msra.mxu0 %v428
    %2057 = vmatpush.msra.mxu0 %v427
    %2058 = vmatpush.msra.mxu0 %v426
    %2059 = vmatpush.msra.mxu0 %v425
    %2060 = vmatpush.msra.mxu0 %v424
    %2061 = vmatmul.f32.gmra.mxu0 %v1789
    %v2062 = vpop.f32.mrf.mxu0
    %v2063 = vadd.f32 %v1998, %v2062
    %2064 = vmatmul.f32.gmra.mxu0 %v1793
    %v2065 = vpop.f32.mrf.mxu0
    %v2066 = vadd.f32 %v2001, %v2065
    %2067 = vmatmul.f32.gmra.mxu0 %v1797
    %v2068 = vpop.f32.mrf.mxu0
    %v2069 = vadd.f32 %v2004, %v2068
    %2070 = vmatmul.f32.gmra.mxu0 %v1801
    %v2071 = vpop.f32.mrf.mxu0
    %v2072 = vadd.f32 %v2007, %v2071
    %2073 = vmatmul.f32.gmra.mxu0 %v1805
    %v2074 = vpop.f32.mrf.mxu0
    %v2075 = vadd.f32 %v2010, %v2074
    %2076 = vmatmul.f32.gmra.mxu0 %v1809
    %v2077 = vpop.f32.mrf.mxu0
    %v2078 = vadd.f32 %v2013, %v2077
    %2079 = vmatmul.f32.gmra.mxu0 %v1813
    %v2080 = vpop.f32.mrf.mxu0
    %v2081 = vadd.f32 %v2016, %v2080
    %2082 = vmatmul.f32.gmra.mxu0 %v1817
    %v2083 = vpop.f32.mrf.mxu0
    %v2084 = vadd.f32 %v2019, %v2083
    %2085 = vmatmul.f32.gmra.mxu0 %v1821
    %v2086 = vpop.f32.mrf.mxu0
    %v2087 = vadd.f32 %v2022, %v2086
    %2088 = vmatmul.f32.gmra.mxu0 %v1825
    %v2089 = vpop.f32.mrf.mxu0
    %v2090 = vadd.f32 %v2025, %v2089
    %2091 = vmatmul.f32.gmra.mxu0 %v1829
    %v2092 = vpop.f32.mrf.mxu0
    %v2093 = vadd.f32 %v2028, %v2092
    %2094 = vmatmul.f32.gmra.mxu0 %v1833
    %v2095 = vpop.f32.mrf.mxu0
    %v2096 = vadd.f32 %v2031, %v2095
    %2097 = vmatmul.f32.gmra.mxu0 %v1837
    %v2098 = vpop.f32.mrf.mxu0
    %v2099 = vadd.f32 %v2034, %v2098
    %2100 = vmatmul.f32.gmra.mxu0 %v1841
    %v2101 = vpop.f32.mrf.mxu0
    %v2102 = vadd.f32 %v2037, %v2101
    %2103 = vmatmul.f32.gmra.mxu0 %v1845
    %v2104 = vpop.f32.mrf.mxu0
    %v2105 = vadd.f32 %v2040, %v2104
    %2106 = vmatmul.f32.gmra.mxu0 %v1849
    %v2107 = vpop.f32.mrf.mxu0
    %v2108 = vadd.f32 %v2043, %v2107
    %2109 = vdwg.mxu0
    %s2110 = scalar_lea.vmem [#allocation4], 12
    %v2111 = vld [vmem:[%s2110] sm:$0x7]
    %v2113 = vsel %vm1092, %v2063, 0
    %v2116 = vsel %vm1092, %v2066, 0
    %v2119 = vsel %vm1092, %v2069, 0
    %v2122 = vsel %vm1092, %v2072, 0
    %v2125 = vsel %vm1092, %v2075, 0
    %v2128 = vsel %vm1092, %v2078, 0
    %v2131 = vsel %vm1092, %v2081, 0
    %v2134 = vsel %vm1092, %v2084, 0
    %v2137 = vsel %vm1092, %v2087, 0
    %v2140 = vsel %vm1092, %v2090, 0
    %v2143 = vsel %vm1092, %v2093, 0
    %v2146 = vsel %vm1092, %v2096, 0
    %v2149 = vsel %vm1092, %v2099, 0
    %v2152 = vsel %vm1092, %v2102, 0
    %v2155 = vsel %vm1092, %v2105, 0
    %v2158 = vsel %vm1092, %v2108, 0
    %v2161 = vsel %vm1141, %v2111, 0
    %2163 = vmatpush.msra.mxu0 0.0
    %2164 = vmatpush.msra.mxu0 0.0
    %2165 = vmatpush.msra.mxu0 0.0
    %2166 = vmatpush.msra.mxu0 0.0
    %2167 = vmatpush.msra.mxu0 0.0
    %2168 = vmatpush.msra.mxu0 0.0
    %2169 = vmatpush.msra.mxu0 0.0
    %2170 = vmatpush.msra.mxu0 0.0
    %2171 = vmatpush.msra.mxu0 0.0
    %2172 = vmatpush.msra.mxu0 0.0
    %2173 = vmatpush.msra.mxu0 0.0
    %2174 = vmatpush.msra.mxu0 0.0
    %2175 = vmatpush.msra.mxu0 0.0
    %2176 = vmatpush.msra.mxu0 0.0
    %2177 = vmatpush.msra.mxu0 0.0
    %2178 = vmatpush.msra.mxu0 %v2161
    %2179 = vmatmul.f32.gmra.mxu0 %v2113
    %v2180 = vpop.f32.mrf.mxu0
    %v2181 = vadd.f32 0.0, %v2180
    %2182 = vmatmul.f32.gmra.mxu0 %v2116
    %v2183 = vpop.f32.mrf.mxu0
    %v2184 = vadd.f32 0.0, %v2183
    %2185 = vmatmul.f32.gmra.mxu0 %v2119
    %v2186 = vpop.f32.mrf.mxu0
    %v2187 = vadd.f32 0.0, %v2186
    %2188 = vmatmul.f32.gmra.mxu0 %v2122
    %v2189 = vpop.f32.mrf.mxu0
    %v2190 = vadd.f32 0.0, %v2189
    %2191 = vmatmul.f32.gmra.mxu0 %v2125
    %v2192 = vpop.f32.mrf.mxu0
    %v2193 = vadd.f32 0.0, %v2192
    %2194 = vmatmul.f32.gmra.mxu0 %v2128
    %v2195 = vpop.f32.mrf.mxu0
    %v2196 = vadd.f32 0.0, %v2195
    %2197 = vmatmul.f32.gmra.mxu0 %v2131
    %v2198 = vpop.f32.mrf.mxu0
    %v2199 = vadd.f32 0.0, %v2198
    %2200 = vmatmul.f32.gmra.mxu0 %v2134
    %v2201 = vpop.f32.mrf.mxu0
    %v2202 = vadd.f32 0.0, %v2201
    %2203 = vmatmul.f32.gmra.mxu0 %v2137
    %v2204 = vpop.f32.mrf.mxu0
    %v2205 = vadd.f32 0.0, %v2204
    %2206 = vmatmul.f32.gmra.mxu0 %v2140
    %v2207 = vpop.f32.mrf.mxu0
    %v2208 = vadd.f32 0.0, %v2207
    %2209 = vmatmul.f32.gmra.mxu0 %v2143
    %v2210 = vpop.f32.mrf.mxu0
    %v2211 = vadd.f32 0.0, %v2210
    %2212 = vmatmul.f32.gmra.mxu0 %v2146
    %v2213 = vpop.f32.mrf.mxu0
    %v2214 = vadd.f32 0.0, %v2213
    %2215 = vmatmul.f32.gmra.mxu0 %v2149
    %v2216 = vpop.f32.mrf.mxu0
    %v2217 = vadd.f32 0.0, %v2216
    %2218 = vmatmul.f32.gmra.mxu0 %v2152
    %v2219 = vpop.f32.mrf.mxu0
    %v2220 = vadd.f32 0.0, %v2219
    %2221 = vmatmul.f32.gmra.mxu0 %v2155
    %v2222 = vpop.f32.mrf.mxu0
    %v2223 = vadd.f32 0.0, %v2222
    %2224 = vmatmul.f32.gmra.mxu0 %v2158
    %v2225 = vpop.f32.mrf.mxu0
    %v2226 = vadd.f32 0.0, %v2225
    %2227 = vdwg.mxu0
    %v2228 = vadd.f32 %v1769, %v2181
    %v2229 = vadd.f32 %v1770, %v2184
    %v2230 = vadd.f32 %v1771, %v2187
    %v2231 = vadd.f32 %v1772, %v2190
    %v2232 = vadd.f32 %v1773, %v2193
    %v2233 = vadd.f32 %v1774, %v2196
    %v2234 = vadd.f32 %v1775, %v2199
    %v2235 = vadd.f32 %v1776, %v2202
    %v2236 = vadd.f32 %v1777, %v2205
    %v2237 = vadd.f32 %v1778, %v2208
    %v2238 = vadd.f32 %v1779, %v2211
    %v2239 = vadd.f32 %v1780, %v2214
    %v2240 = vadd.f32 %v1781, %v2217
    %v2241 = vadd.f32 %v1782, %v2220
    %v2242 = vadd.f32 %v1783, %v2223
    %v2243 = vadd.f32 %v1784, %v2226
    %s2244 = scalar_lea.vmem [#allocation2], 2048
    %v2245 = vld [vmem:[%s2244] sm:$0xff]
    %v2246 = vld [vmem:[%s2244 + $0x8] sm:$0xff]
    %v2247 = vld [vmem:[%s2244 + $0x10] sm:$0xff]
    %v2248 = vld [vmem:[%s2244 + $0x18] sm:$0xff]
    %v2249 = vld [vmem:[%s2244 + $0x20] sm:$0xff]
    %v2250 = vld [vmem:[%s2244 + $0x28] sm:$0xff]
    %v2251 = vld [vmem:[%s2244 + $0x30] sm:$0xff]
    %v2252 = vld [vmem:[%s2244 + $0x38] sm:$0xff]
    %v2253 = vld [vmem:[%s2244 + $0x40] sm:$0xff]
    %v2254 = vld [vmem:[%s2244 + $0x48] sm:$0xff]
    %v2255 = vld [vmem:[%s2244 + $0x50] sm:$0xff]
    %v2256 = vld [vmem:[%s2244 + $0x58] sm:$0xff]
    %v2257 = vld [vmem:[%s2244 + $0x60] sm:$0xff]
    %v2258 = vld [vmem:[%s2244 + $0x68] sm:$0xff]
    %v2259 = vld [vmem:[%s2244 + $0x70] sm:$0xff]
    %v2260 = vld [vmem:[%s2244 + $0x78] sm:$0xff]
    %v2261 = vld [vmem:[%s2244 + $0x80] sm:$0xff]
    %v2262 = vld [vmem:[%s2244 + $0x88] sm:$0xff]
    %v2263 = vld [vmem:[%s2244 + $0x90] sm:$0xff]
    %v2264 = vld [vmem:[%s2244 + $0x98] sm:$0xff]
    %v2265 = vld [vmem:[%s2244 + $0xa0] sm:$0xff]
    %v2266 = vld [vmem:[%s2244 + $0xa8] sm:$0xff]
    %v2267 = vld [vmem:[%s2244 + $0xb0] sm:$0xff]
    %v2268 = vld [vmem:[%s2244 + $0xb8] sm:$0xff]
    %v2269 = vld [vmem:[%s2244 + $0xc0] sm:$0xff]
    %v2270 = vld [vmem:[%s2244 + $0xc8] sm:$0xff]
    %v2271 = vld [vmem:[%s2244 + $0xd0] sm:$0xff]
    %v2272 = vld [vmem:[%s2244 + $0xd8] sm:$0xff]
    %v2273 = vld [vmem:[%s2244 + $0xe0] sm:$0xff]
    %v2274 = vld [vmem:[%s2244 + $0xe8] sm:$0xff]
    %v2275 = vld [vmem:[%s2244 + $0xf0] sm:$0xff]
    %v2276 = vld [vmem:[%s2244 + $0xf8] sm:$0xff]
    %v2277 = vld [vmem:[%s2244 + $0x100] sm:$0xff]
    %v2278 = vld [vmem:[%s2244 + $0x108] sm:$0xff]
    %v2279 = vld [vmem:[%s2244 + $0x110] sm:$0xff]
    %v2280 = vld [vmem:[%s2244 + $0x118] sm:$0xff]
    %v2281 = vld [vmem:[%s2244 + $0x120] sm:$0xff]
    %v2282 = vld [vmem:[%s2244 + $0x128] sm:$0xff]
    %v2283 = vld [vmem:[%s2244 + $0x130] sm:$0xff]
    %v2284 = vld [vmem:[%s2244 + $0x138] sm:$0xff]
    %v2285 = vld [vmem:[%s2244 + $0x140] sm:$0xff]
    %v2286 = vld [vmem:[%s2244 + $0x148] sm:$0xff]
    %v2287 = vld [vmem:[%s2244 + $0x150] sm:$0xff]
    %v2288 = vld [vmem:[%s2244 + $0x158] sm:$0xff]
    %v2289 = vld [vmem:[%s2244 + $0x160] sm:$0xff]
    %v2290 = vld [vmem:[%s2244 + $0x168] sm:$0xff]
    %v2291 = vld [vmem:[%s2244 + $0x170] sm:$0xff]
    %v2292 = vld [vmem:[%s2244 + $0x178] sm:$0xff]
    %v2293 = vld [vmem:[%s2244 + $0x180] sm:$0xff]
    %v2294 = vld [vmem:[%s2244 + $0x188] sm:$0xff]
    %v2295 = vld [vmem:[%s2244 + $0x190] sm:$0xff]
    %v2296 = vld [vmem:[%s2244 + $0x198] sm:$0xff]
    %v2297 = vld [vmem:[%s2244 + $0x1a0] sm:$0xff]
    %v2298 = vld [vmem:[%s2244 + $0x1a8] sm:$0xff]
    %v2299 = vld [vmem:[%s2244 + $0x1b0] sm:$0xff]
    %v2300 = vld [vmem:[%s2244 + $0x1b8] sm:$0xff]
    %v2301 = vld [vmem:[%s2244 + $0x1c0] sm:$0xff]
    %v2302 = vld [vmem:[%s2244 + $0x1c8] sm:$0xff]
    %v2303 = vld [vmem:[%s2244 + $0x1d0] sm:$0xff]
    %v2304 = vld [vmem:[%s2244 + $0x1d8] sm:$0xff]
    %v2305 = vld [vmem:[%s2244 + $0x1e0] sm:$0xff]
    %v2306 = vld [vmem:[%s2244 + $0x1e8] sm:$0xff]
    %v2307 = vld [vmem:[%s2244 + $0x1f0] sm:$0xff]
    %v2308 = vld [vmem:[%s2244 + $0x1f8] sm:$0xff]
    %2309 = vmatpush.msra.mxu0 %v391
    %2310 = vmatpush.msra.mxu0 %v390
    %2311 = vmatpush.msra.mxu0 %v389
    %2312 = vmatpush.msra.mxu0 %v388
    %2313 = vmatpush.msra.mxu0 %v387
    %2314 = vmatpush.msra.mxu0 %v386
    %2315 = vmatpush.msra.mxu0 %v385
    %2316 = vmatpush.msra.mxu0 %v384
    %2317 = vmatpush.msra.mxu0 %v383
    %2318 = vmatpush.msra.mxu0 %v382
    %2319 = vmatpush.msra.mxu0 %v381
    %2320 = vmatpush.msra.mxu0 %v380
    %2321 = vmatpush.msra.mxu0 %v379
    %2322 = vmatpush.msra.mxu0 %v378
    %2323 = vmatpush.msra.mxu0 %v377
    %2324 = vmatpush.msra.mxu0 %v376
    %2325 = vmatmul.f32.gmra.mxu0 %v2245
    %v2326 = vpop.f32.mrf.mxu0
    %v2327 = vadd.f32 0.0, %v2326
    %2328 = vmatmul.f32.gmra.mxu0 %v2249
    %v2329 = vpop.f32.mrf.mxu0
    %v2330 = vadd.f32 0.0, %v2329
    %2331 = vmatmul.f32.gmra.mxu0 %v2253
    %v2332 = vpop.f32.mrf.mxu0
    %v2333 = vadd.f32 0.0, %v2332
    %2334 = vmatmul.f32.gmra.mxu0 %v2257
    %v2335 = vpop.f32.mrf.mxu0
    %v2336 = vadd.f32 0.0, %v2335
    %2337 = vmatmul.f32.gmra.mxu0 %v2261
    %v2338 = vpop.f32.mrf.mxu0
    %v2339 = vadd.f32 0.0, %v2338
    %2340 = vmatmul.f32.gmra.mxu0 %v2265
    %v2341 = vpop.f32.mrf.mxu0
    %v2342 = vadd.f32 0.0, %v2341
    %2343 = vmatmul.f32.gmra.mxu0 %v2269
    %v2344 = vpop.f32.mrf.mxu0
    %v2345 = vadd.f32 0.0, %v2344
    %2346 = vmatmul.f32.gmra.mxu0 %v2273
    %v2347 = vpop.f32.mrf.mxu0
    %v2348 = vadd.f32 0.0, %v2347
    %2349 = vmatmul.f32.gmra.mxu0 %v2277
    %v2350 = vpop.f32.mrf.mxu0
    %v2351 = vadd.f32 0.0, %v2350
    %2352 = vmatmul.f32.gmra.mxu0 %v2281
    %v2353 = vpop.f32.mrf.mxu0
    %v2354 = vadd.f32 0.0, %v2353
    %2355 = vmatmul.f32.gmra.mxu0 %v2285
    %v2356 = vpop.f32.mrf.mxu0
    %v2357 = vadd.f32 0.0, %v2356
    %2358 = vmatmul.f32.gmra.mxu0 %v2289
    %v2359 = vpop.f32.mrf.mxu0
    %v2360 = vadd.f32 0.0, %v2359
    %2361 = vmatmul.f32.gmra.mxu0 %v2293
    %v2362 = vpop.f32.mrf.mxu0
    %v2363 = vadd.f32 0.0, %v2362
    %2364 = vmatmul.f32.gmra.mxu0 %v2297
    %v2365 = vpop.f32.mrf.mxu0
    %v2366 = vadd.f32 0.0, %v2365
    %2367 = vmatmul.f32.gmra.mxu0 %v2301
    %v2368 = vpop.f32.mrf.mxu0
    %v2369 = vadd.f32 0.0, %v2368
    %2370 = vmatmul.f32.gmra.mxu0 %v2305
    %v2371 = vpop.f32.mrf.mxu0
    %v2372 = vadd.f32 0.0, %v2371
    %2373 = vdwg.mxu0
    %2374 = vmatpush.msra.mxu0 %v407
    %2375 = vmatpush.msra.mxu0 %v406
    %2376 = vmatpush.msra.mxu0 %v405
    %2377 = vmatpush.msra.mxu0 %v404
    %2378 = vmatpush.msra.mxu0 %v403
    %2379 = vmatpush.msra.mxu0 %v402
    %2380 = vmatpush.msra.mxu0 %v401
    %2381 = vmatpush.msra.mxu0 %v400
    %2382 = vmatpush.msra.mxu0 %v399
    %2383 = vmatpush.msra.mxu0 %v398
    %2384 = vmatpush.msra.mxu0 %v397
    %2385 = vmatpush.msra.mxu0 %v396
    %2386 = vmatpush.msra.mxu0 %v395
    %2387 = vmatpush.msra.mxu0 %v394
    %2388 = vmatpush.msra.mxu0 %v393
    %2389 = vmatpush.msra.mxu0 %v392
    %2390 = vmatmul.f32.gmra.mxu0 %v2246
    %v2391 = vpop.f32.mrf.mxu0
    %v2392 = vadd.f32 %v2327, %v2391
    %2393 = vmatmul.f32.gmra.mxu0 %v2250
    %v2394 = vpop.f32.mrf.mxu0
    %v2395 = vadd.f32 %v2330, %v2394
    %2396 = vmatmul.f32.gmra.mxu0 %v2254
    %v2397 = vpop.f32.mrf.mxu0
    %v2398 = vadd.f32 %v2333, %v2397
    %2399 = vmatmul.f32.gmra.mxu0 %v2258
    %v2400 = vpop.f32.mrf.mxu0
    %v2401 = vadd.f32 %v2336, %v2400
    %2402 = vmatmul.f32.gmra.mxu0 %v2262
    %v2403 = vpop.f32.mrf.mxu0
    %v2404 = vadd.f32 %v2339, %v2403
    %2405 = vmatmul.f32.gmra.mxu0 %v2266
    %v2406 = vpop.f32.mrf.mxu0
    %v2407 = vadd.f32 %v2342, %v2406
    %2408 = vmatmul.f32.gmra.mxu0 %v2270
    %v2409 = vpop.f32.mrf.mxu0
    %v2410 = vadd.f32 %v2345, %v2409
    %2411 = vmatmul.f32.gmra.mxu0 %v2274
    %v2412 = vpop.f32.mrf.mxu0
    %v2413 = vadd.f32 %v2348, %v2412
    %2414 = vmatmul.f32.gmra.mxu0 %v2278
    %v2415 = vpop.f32.mrf.mxu0
    %v2416 = vadd.f32 %v2351, %v2415
    %2417 = vmatmul.f32.gmra.mxu0 %v2282
    %v2418 = vpop.f32.mrf.mxu0
    %v2419 = vadd.f32 %v2354, %v2418
    %2420 = vmatmul.f32.gmra.mxu0 %v2286
    %v2421 = vpop.f32.mrf.mxu0
    %v2422 = vadd.f32 %v2357, %v2421
    %2423 = vmatmul.f32.gmra.mxu0 %v2290
    %v2424 = vpop.f32.mrf.mxu0
    %v2425 = vadd.f32 %v2360, %v2424
    %2426 = vmatmul.f32.gmra.mxu0 %v2294
    %v2427 = vpop.f32.mrf.mxu0
    %v2428 = vadd.f32 %v2363, %v2427
    %2429 = vmatmul.f32.gmra.mxu0 %v2298
    %v2430 = vpop.f32.mrf.mxu0
    %v2431 = vadd.f32 %v2366, %v2430
    %2432 = vmatmul.f32.gmra.mxu0 %v2302
    %v2433 = vpop.f32.mrf.mxu0
    %v2434 = vadd.f32 %v2369, %v2433
    %2435 = vmatmul.f32.gmra.mxu0 %v2306
    %v2436 = vpop.f32.mrf.mxu0
    %v2437 = vadd.f32 %v2372, %v2436
    %2438 = vdwg.mxu0
    %2439 = vmatpush.msra.mxu0 %v423
    %2440 = vmatpush.msra.mxu0 %v422
    %2441 = vmatpush.msra.mxu0 %v421
    %2442 = vmatpush.msra.mxu0 %v420
    %2443 = vmatpush.msra.mxu0 %v419
    %2444 = vmatpush.msra.mxu0 %v418
    %2445 = vmatpush.msra.mxu0 %v417
    %2446 = vmatpush.msra.mxu0 %v416
    %2447 = vmatpush.msra.mxu0 %v415
    %2448 = vmatpush.msra.mxu0 %v414
    %2449 = vmatpush.msra.mxu0 %v413
    %2450 = vmatpush.msra.mxu0 %v412
    %2451 = vmatpush.msra.mxu0 %v411
    %2452 = vmatpush.msra.mxu0 %v410
    %2453 = vmatpush.msra.mxu0 %v409
    %2454 = vmatpush.msra.mxu0 %v408
    %2455 = vmatmul.f32.gmra.mxu0 %v2247
    %v2456 = vpop.f32.mrf.mxu0
    %v2457 = vadd.f32 %v2392, %v2456
    %2458 = vmatmul.f32.gmra.mxu0 %v2251
    %v2459 = vpop.f32.mrf.mxu0
    %v2460 = vadd.f32 %v2395, %v2459
    %2461 = vmatmul.f32.gmra.mxu0 %v2255
    %v2462 = vpop.f32.mrf.mxu0
    %v2463 = vadd.f32 %v2398, %v2462
    %2464 = vmatmul.f32.gmra.mxu0 %v2259
    %v2465 = vpop.f32.mrf.mxu0
    %v2466 = vadd.f32 %v2401, %v2465
    %2467 = vmatmul.f32.gmra.mxu0 %v2263
    %v2468 = vpop.f32.mrf.mxu0
    %v2469 = vadd.f32 %v2404, %v2468
    %2470 = vmatmul.f32.gmra.mxu0 %v2267
    %v2471 = vpop.f32.mrf.mxu0
    %v2472 = vadd.f32 %v2407, %v2471
    %2473 = vmatmul.f32.gmra.mxu0 %v2271
    %v2474 = vpop.f32.mrf.mxu0
    %v2475 = vadd.f32 %v2410, %v2474
    %2476 = vmatmul.f32.gmra.mxu0 %v2275
    %v2477 = vpop.f32.mrf.mxu0
    %v2478 = vadd.f32 %v2413, %v2477
    %2479 = vmatmul.f32.gmra.mxu0 %v2279
    %v2480 = vpop.f32.mrf.mxu0
    %v2481 = vadd.f32 %v2416, %v2480
    %2482 = vmatmul.f32.gmra.mxu0 %v2283
    %v2483 = vpop.f32.mrf.mxu0
    %v2484 = vadd.f32 %v2419, %v2483
    %2485 = vmatmul.f32.gmra.mxu0 %v2287
    %v2486 = vpop.f32.mrf.mxu0
    %v2487 = vadd.f32 %v2422, %v2486
    %2488 = vmatmul.f32.gmra.mxu0 %v2291
    %v2489 = vpop.f32.mrf.mxu0
    %v2490 = vadd.f32 %v2425, %v2489
    %2491 = vmatmul.f32.gmra.mxu0 %v2295
    %v2492 = vpop.f32.mrf.mxu0
    %v2493 = vadd.f32 %v2428, %v2492
    %2494 = vmatmul.f32.gmra.mxu0 %v2299
    %v2495 = vpop.f32.mrf.mxu0
    %v2496 = vadd.f32 %v2431, %v2495
    %2497 = vmatmul.f32.gmra.mxu0 %v2303
    %v2498 = vpop.f32.mrf.mxu0
    %v2499 = vadd.f32 %v2434, %v2498
    %2500 = vmatmul.f32.gmra.mxu0 %v2307
    %v2501 = vpop.f32.mrf.mxu0
    %v2502 = vadd.f32 %v2437, %v2501
    %2503 = vdwg.mxu0
    %2504 = vmatpush.msra.mxu0 %v439
    %2505 = vmatpush.msra.mxu0 %v438
    %2506 = vmatpush.msra.mxu0 %v437
    %2507 = vmatpush.msra.mxu0 %v436
    %2508 = vmatpush.msra.mxu0 %v435
    %2509 = vmatpush.msra.mxu0 %v434
    %2510 = vmatpush.msra.mxu0 %v433
    %2511 = vmatpush.msra.mxu0 %v432
    %2512 = vmatpush.msra.mxu0 %v431
    %2513 = vmatpush.msra.mxu0 %v430
    %2514 = vmatpush.msra.mxu0 %v429
    %2515 = vmatpush.msra.mxu0 %v428
    %2516 = vmatpush.msra.mxu0 %v427
    %2517 = vmatpush.msra.mxu0 %v426
    %2518 = vmatpush.msra.mxu0 %v425
    %2519 = vmatpush.msra.mxu0 %v424
    %2520 = vmatmul.f32.gmra.mxu0 %v2248
    %v2521 = vpop.f32.mrf.mxu0
    %v2522 = vadd.f32 %v2457, %v2521
    %2523 = vmatmul.f32.gmra.mxu0 %v2252
    %v2524 = vpop.f32.mrf.mxu0
    %v2525 = vadd.f32 %v2460, %v2524
    %2526 = vmatmul.f32.gmra.mxu0 %v2256
    %v2527 = vpop.f32.mrf.mxu0
    %v2528 = vadd.f32 %v2463, %v2527
    %2529 = vmatmul.f32.gmra.mxu0 %v2260
    %v2530 = vpop.f32.mrf.mxu0
    %v2531 = vadd.f32 %v2466, %v2530
    %2532 = vmatmul.f32.gmra.mxu0 %v2264
    %v2533 = vpop.f32.mrf.mxu0
    %v2534 = vadd.f32 %v2469, %v2533
    %2535 = vmatmul.f32.gmra.mxu0 %v2268
    %v2536 = vpop.f32.mrf.mxu0
    %v2537 = vadd.f32 %v2472, %v2536
    %2538 = vmatmul.f32.gmra.mxu0 %v2272
    %v2539 = vpop.f32.mrf.mxu0
    %v2540 = vadd.f32 %v2475, %v2539
    %2541 = vmatmul.f32.gmra.mxu0 %v2276
    %v2542 = vpop.f32.mrf.mxu0
    %v2543 = vadd.f32 %v2478, %v2542
    %2544 = vmatmul.f32.gmra.mxu0 %v2280
    %v2545 = vpop.f32.mrf.mxu0
    %v2546 = vadd.f32 %v2481, %v2545
    %2547 = vmatmul.f32.gmra.mxu0 %v2284
    %v2548 = vpop.f32.mrf.mxu0
    %v2549 = vadd.f32 %v2484, %v2548
    %2550 = vmatmul.f32.gmra.mxu0 %v2288
    %v2551 = vpop.f32.mrf.mxu0
    %v2552 = vadd.f32 %v2487, %v2551
    %2553 = vmatmul.f32.gmra.mxu0 %v2292
    %v2554 = vpop.f32.mrf.mxu0
    %v2555 = vadd.f32 %v2490, %v2554
    %2556 = vmatmul.f32.gmra.mxu0 %v2296
    %v2557 = vpop.f32.mrf.mxu0
    %v2558 = vadd.f32 %v2493, %v2557
    %2559 = vmatmul.f32.gmra.mxu0 %v2300
    %v2560 = vpop.f32.mrf.mxu0
    %v2561 = vadd.f32 %v2496, %v2560
    %2562 = vmatmul.f32.gmra.mxu0 %v2304
    %v2563 = vpop.f32.mrf.mxu0
    %v2564 = vadd.f32 %v2499, %v2563
    %2565 = vmatmul.f32.gmra.mxu0 %v2308
    %v2566 = vpop.f32.mrf.mxu0
    %v2567 = vadd.f32 %v2502, %v2566
    %2568 = vdwg.mxu0
    %s2569 = scalar_lea.vmem [#allocation4], 16
    %v2570 = vld [vmem:[%s2569] sm:$0x7]
    %v2572 = vsel %vm1092, %v2522, 0
    %v2575 = vsel %vm1092, %v2525, 0
    %v2578 = vsel %vm1092, %v2528, 0
    %v2581 = vsel %vm1092, %v2531, 0
    %v2584 = vsel %vm1092, %v2534, 0
    %v2587 = vsel %vm1092, %v2537, 0
    %v2590 = vsel %vm1092, %v2540, 0
    %v2593 = vsel %vm1092, %v2543, 0
    %v2596 = vsel %vm1092, %v2546, 0
    %v2599 = vsel %vm1092, %v2549, 0
    %v2602 = vsel %vm1092, %v2552, 0
    %v2605 = vsel %vm1092, %v2555, 0
    %v2608 = vsel %vm1092, %v2558, 0
    %v2611 = vsel %vm1092, %v2561, 0
    %v2614 = vsel %vm1092, %v2564, 0
    %v2617 = vsel %vm1092, %v2567, 0
    %v2620 = vsel %vm1141, %v2570, 0
    %2622 = vmatpush.msra.mxu0 0.0
    %2623 = vmatpush.msra.mxu0 0.0
    %2624 = vmatpush.msra.mxu0 0.0
    %2625 = vmatpush.msra.mxu0 0.0
    %2626 = vmatpush.msra.mxu0 0.0
    %2627 = vmatpush.msra.mxu0 0.0
    %2628 = vmatpush.msra.mxu0 0.0
    %2629 = vmatpush.msra.mxu0 0.0
    %2630 = vmatpush.msra.mxu0 0.0
    %2631 = vmatpush.msra.mxu0 0.0
    %2632 = vmatpush.msra.mxu0 0.0
    %2633 = vmatpush.msra.mxu0 0.0
    %2634 = vmatpush.msra.mxu0 0.0
    %2635 = vmatpush.msra.mxu0 0.0
    %2636 = vmatpush.msra.mxu0 0.0
    %2637 = vmatpush.msra.mxu0 %v2620
    %2638 = vmatmul.f32.gmra.mxu0 %v2572
    %v2639 = vpop.f32.mrf.mxu0
    %v2640 = vadd.f32 0.0, %v2639
    %2641 = vmatmul.f32.gmra.mxu0 %v2575
    %v2642 = vpop.f32.mrf.mxu0
    %v2643 = vadd.f32 0.0, %v2642
    %2644 = vmatmul.f32.gmra.mxu0 %v2578
    %v2645 = vpop.f32.mrf.mxu0
    %v2646 = vadd.f32 0.0, %v2645
    %2647 = vmatmul.f32.gmra.mxu0 %v2581
    %v2648 = vpop.f32.mrf.mxu0
    %v2649 = vadd.f32 0.0, %v2648
    %2650 = vmatmul.f32.gmra.mxu0 %v2584
    %v2651 = vpop.f32.mrf.mxu0
    %v2652 = vadd.f32 0.0, %v2651
    %2653 = vmatmul.f32.gmra.mxu0 %v2587
    %v2654 = vpop.f32.mrf.mxu0
    %v2655 = vadd.f32 0.0, %v2654
    %2656 = vmatmul.f32.gmra.mxu0 %v2590
    %v2657 = vpop.f32.mrf.mxu0
    %v2658 = vadd.f32 0.0, %v2657
    %2659 = vmatmul.f32.gmra.mxu0 %v2593
    %v2660 = vpop.f32.mrf.mxu0
    %v2661 = vadd.f32 0.0, %v2660
    %2662 = vmatmul.f32.gmra.mxu0 %v2596
    %v2663 = vpop.f32.mrf.mxu0
    %v2664 = vadd.f32 0.0, %v2663
    %2665 = vmatmul.f32.gmra.mxu0 %v2599
    %v2666 = vpop.f32.mrf.mxu0
    %v2667 = vadd.f32 0.0, %v2666
    %2668 = vmatmul.f32.gmra.mxu0 %v2602
    %v2669 = vpop.f32.mrf.mxu0
    %v2670 = vadd.f32 0.0, %v2669
    %2671 = vmatmul.f32.gmra.mxu0 %v2605
    %v2672 = vpop.f32.mrf.mxu0
    %v2673 = vadd.f32 0.0, %v2672
    %2674 = vmatmul.f32.gmra.mxu0 %v2608
    %v2675 = vpop.f32.mrf.mxu0
    %v2676 = vadd.f32 0.0, %v2675
    %2677 = vmatmul.f32.gmra.mxu0 %v2611
    %v2678 = vpop.f32.mrf.mxu0
    %v2679 = vadd.f32 0.0, %v2678
    %2680 = vmatmul.f32.gmra.mxu0 %v2614
    %v2681 = vpop.f32.mrf.mxu0
    %v2682 = vadd.f32 0.0, %v2681
    %2683 = vmatmul.f32.gmra.mxu0 %v2617
    %v2684 = vpop.f32.mrf.mxu0
    %v2685 = vadd.f32 0.0, %v2684
    %2686 = vdwg.mxu0
    %v2687 = vadd.f32 %v2228, %v2640
    %v2688 = vadd.f32 %v2229, %v2643
    %v2689 = vadd.f32 %v2230, %v2646
    %v2690 = vadd.f32 %v2231, %v2649
    %v2691 = vadd.f32 %v2232, %v2652
    %v2692 = vadd.f32 %v2233, %v2655
    %v2693 = vadd.f32 %v2234, %v2658
    %v2694 = vadd.f32 %v2235, %v2661
    %v2695 = vadd.f32 %v2236, %v2664
    %v2696 = vadd.f32 %v2237, %v2667
    %v2697 = vadd.f32 %v2238, %v2670
    %v2698 = vadd.f32 %v2239, %v2673
    %v2699 = vadd.f32 %v2240, %v2676
    %v2700 = vadd.f32 %v2241, %v2679
    %v2701 = vadd.f32 %v2242, %v2682
    %v2702 = vadd.f32 %v2243, %v2685
    %s2703 = scalar_lea.vmem [#allocation2], 2560
    %v2704 = vld [vmem:[%s2703] sm:$0xff]
    %v2705 = vld [vmem:[%s2703 + $0x8] sm:$0xff]
    %v2706 = vld [vmem:[%s2703 + $0x10] sm:$0xff]
    %v2707 = vld [vmem:[%s2703 + $0x18] sm:$0xff]
    %v2708 = vld [vmem:[%s2703 + $0x20] sm:$0xff]
    %v2709 = vld [vmem:[%s2703 + $0x28] sm:$0xff]
    %v2710 = vld [vmem:[%s2703 + $0x30] sm:$0xff]
    %v2711 = vld [vmem:[%s2703 + $0x38] sm:$0xff]
    %v2712 = vld [vmem:[%s2703 + $0x40] sm:$0xff]
    %v2713 = vld [vmem:[%s2703 + $0x48] sm:$0xff]
    %v2714 = vld [vmem:[%s2703 + $0x50] sm:$0xff]
    %v2715 = vld [vmem:[%s2703 + $0x58] sm:$0xff]
    %v2716 = vld [vmem:[%s2703 + $0x60] sm:$0xff]
    %v2717 = vld [vmem:[%s2703 + $0x68] sm:$0xff]
    %v2718 = vld [vmem:[%s2703 + $0x70] sm:$0xff]
    %v2719 = vld [vmem:[%s2703 + $0x78] sm:$0xff]
    %v2720 = vld [vmem:[%s2703 + $0x80] sm:$0xff]
    %v2721 = vld [vmem:[%s2703 + $0x88] sm:$0xff]
    %v2722 = vld [vmem:[%s2703 + $0x90] sm:$0xff]
    %v2723 = vld [vmem:[%s2703 + $0x98] sm:$0xff]
    %v2724 = vld [vmem:[%s2703 + $0xa0] sm:$0xff]
    %v2725 = vld [vmem:[%s2703 + $0xa8] sm:$0xff]
    %v2726 = vld [vmem:[%s2703 + $0xb0] sm:$0xff]
    %v2727 = vld [vmem:[%s2703 + $0xb8] sm:$0xff]
    %v2728 = vld [vmem:[%s2703 + $0xc0] sm:$0xff]
    %v2729 = vld [vmem:[%s2703 + $0xc8] sm:$0xff]
    %v2730 = vld [vmem:[%s2703 + $0xd0] sm:$0xff]
    %v2731 = vld [vmem:[%s2703 + $0xd8] sm:$0xff]
    %v2732 = vld [vmem:[%s2703 + $0xe0] sm:$0xff]
    %v2733 = vld [vmem:[%s2703 + $0xe8] sm:$0xff]
    %v2734 = vld [vmem:[%s2703 + $0xf0] sm:$0xff]
    %v2735 = vld [vmem:[%s2703 + $0xf8] sm:$0xff]
    %v2736 = vld [vmem:[%s2703 + $0x100] sm:$0xff]
    %v2737 = vld [vmem:[%s2703 + $0x108] sm:$0xff]
    %v2738 = vld [vmem:[%s2703 + $0x110] sm:$0xff]
    %v2739 = vld [vmem:[%s2703 + $0x118] sm:$0xff]
    %v2740 = vld [vmem:[%s2703 + $0x120] sm:$0xff]
    %v2741 = vld [vmem:[%s2703 + $0x128] sm:$0xff]
    %v2742 = vld [vmem:[%s2703 + $0x130] sm:$0xff]
    %v2743 = vld [vmem:[%s2703 + $0x138] sm:$0xff]
    %v2744 = vld [vmem:[%s2703 + $0x140] sm:$0xff]
    %v2745 = vld [vmem:[%s2703 + $0x148] sm:$0xff]
    %v2746 = vld [vmem:[%s2703 + $0x150] sm:$0xff]
    %v2747 = vld [vmem:[%s2703 + $0x158] sm:$0xff]
    %v2748 = vld [vmem:[%s2703 + $0x160] sm:$0xff]
    %v2749 = vld [vmem:[%s2703 + $0x168] sm:$0xff]
    %v2750 = vld [vmem:[%s2703 + $0x170] sm:$0xff]
    %v2751 = vld [vmem:[%s2703 + $0x178] sm:$0xff]
    %v2752 = vld [vmem:[%s2703 + $0x180] sm:$0xff]
    %v2753 = vld [vmem:[%s2703 + $0x188] sm:$0xff]
    %v2754 = vld [vmem:[%s2703 + $0x190] sm:$0xff]
    %v2755 = vld [vmem:[%s2703 + $0x198] sm:$0xff]
    %v2756 = vld [vmem:[%s2703 + $0x1a0] sm:$0xff]
    %v2757 = vld [vmem:[%s2703 + $0x1a8] sm:$0xff]
    %v2758 = vld [vmem:[%s2703 + $0x1b0] sm:$0xff]
    %v2759 = vld [vmem:[%s2703 + $0x1b8] sm:$0xff]
    %v2760 = vld [vmem:[%s2703 + $0x1c0] sm:$0xff]
    %v2761 = vld [vmem:[%s2703 + $0x1c8] sm:$0xff]
    %v2762 = vld [vmem:[%s2703 + $0x1d0] sm:$0xff]
    %v2763 = vld [vmem:[%s2703 + $0x1d8] sm:$0xff]
    %v2764 = vld [vmem:[%s2703 + $0x1e0] sm:$0xff]
    %v2765 = vld [vmem:[%s2703 + $0x1e8] sm:$0xff]
    %v2766 = vld [vmem:[%s2703 + $0x1f0] sm:$0xff]
    %v2767 = vld [vmem:[%s2703 + $0x1f8] sm:$0xff]
    %2768 = vmatpush.msra.mxu0 %v391
    %2769 = vmatpush.msra.mxu0 %v390
    %2770 = vmatpush.msra.mxu0 %v389
    %2771 = vmatpush.msra.mxu0 %v388
    %2772 = vmatpush.msra.mxu0 %v387
    %2773 = vmatpush.msra.mxu0 %v386
    %2774 = vmatpush.msra.mxu0 %v385
    %2775 = vmatpush.msra.mxu0 %v384
    %2776 = vmatpush.msra.mxu0 %v383
    %2777 = vmatpush.msra.mxu0 %v382
    %2778 = vmatpush.msra.mxu0 %v381
    %2779 = vmatpush.msra.mxu0 %v380
    %2780 = vmatpush.msra.mxu0 %v379
    %2781 = vmatpush.msra.mxu0 %v378
    %2782 = vmatpush.msra.mxu0 %v377
    %2783 = vmatpush.msra.mxu0 %v376
    %2784 = vmatmul.f32.gmra.mxu0 %v2704
    %v2785 = vpop.f32.mrf.mxu0
    %v2786 = vadd.f32 0.0, %v2785
    %2787 = vmatmul.f32.gmra.mxu0 %v2708
    %v2788 = vpop.f32.mrf.mxu0
    %v2789 = vadd.f32 0.0, %v2788
    %2790 = vmatmul.f32.gmra.mxu0 %v2712
    %v2791 = vpop.f32.mrf.mxu0
    %v2792 = vadd.f32 0.0, %v2791
    %2793 = vmatmul.f32.gmra.mxu0 %v2716
    %v2794 = vpop.f32.mrf.mxu0
    %v2795 = vadd.f32 0.0, %v2794
    %2796 = vmatmul.f32.gmra.mxu0 %v2720
    %v2797 = vpop.f32.mrf.mxu0
    %v2798 = vadd.f32 0.0, %v2797
    %2799 = vmatmul.f32.gmra.mxu0 %v2724
    %v2800 = vpop.f32.mrf.mxu0
    %v2801 = vadd.f32 0.0, %v2800
    %2802 = vmatmul.f32.gmra.mxu0 %v2728
    %v2803 = vpop.f32.mrf.mxu0
    %v2804 = vadd.f32 0.0, %v2803
    %2805 = vmatmul.f32.gmra.mxu0 %v2732
    %v2806 = vpop.f32.mrf.mxu0
    %v2807 = vadd.f32 0.0, %v2806
    %2808 = vmatmul.f32.gmra.mxu0 %v2736
    %v2809 = vpop.f32.mrf.mxu0
    %v2810 = vadd.f32 0.0, %v2809
    %2811 = vmatmul.f32.gmra.mxu0 %v2740
    %v2812 = vpop.f32.mrf.mxu0
    %v2813 = vadd.f32 0.0, %v2812
    %2814 = vmatmul.f32.gmra.mxu0 %v2744
    %v2815 = vpop.f32.mrf.mxu0
    %v2816 = vadd.f32 0.0, %v2815
    %2817 = vmatmul.f32.gmra.mxu0 %v2748
    %v2818 = vpop.f32.mrf.mxu0
    %v2819 = vadd.f32 0.0, %v2818
    %2820 = vmatmul.f32.gmra.mxu0 %v2752
    %v2821 = vpop.f32.mrf.mxu0
    %v2822 = vadd.f32 0.0, %v2821
    %2823 = vmatmul.f32.gmra.mxu0 %v2756
    %v2824 = vpop.f32.mrf.mxu0
    %v2825 = vadd.f32 0.0, %v2824
    %2826 = vmatmul.f32.gmra.mxu0 %v2760
    %v2827 = vpop.f32.mrf.mxu0
    %v2828 = vadd.f32 0.0, %v2827
    %2829 = vmatmul.f32.gmra.mxu0 %v2764
    %v2830 = vpop.f32.mrf.mxu0
    %v2831 = vadd.f32 0.0, %v2830
    %2832 = vdwg.mxu0
    %2833 = vmatpush.msra.mxu0 %v407
    %2834 = vmatpush.msra.mxu0 %v406
    %2835 = vmatpush.msra.mxu0 %v405
    %2836 = vmatpush.msra.mxu0 %v404
    %2837 = vmatpush.msra.mxu0 %v403
    %2838 = vmatpush.msra.mxu0 %v402
    %2839 = vmatpush.msra.mxu0 %v401
    %2840 = vmatpush.msra.mxu0 %v400
    %2841 = vmatpush.msra.mxu0 %v399
    %2842 = vmatpush.msra.mxu0 %v398
    %2843 = vmatpush.msra.mxu0 %v397
    %2844 = vmatpush.msra.mxu0 %v396
    %2845 = vmatpush.msra.mxu0 %v395
    %2846 = vmatpush.msra.mxu0 %v394
    %2847 = vmatpush.msra.mxu0 %v393
    %2848 = vmatpush.msra.mxu0 %v392
    %2849 = vmatmul.f32.gmra.mxu0 %v2705
    %v2850 = vpop.f32.mrf.mxu0
    %v2851 = vadd.f32 %v2786, %v2850
    %2852 = vmatmul.f32.gmra.mxu0 %v2709
    %v2853 = vpop.f32.mrf.mxu0
    %v2854 = vadd.f32 %v2789, %v2853
    %2855 = vmatmul.f32.gmra.mxu0 %v2713
    %v2856 = vpop.f32.mrf.mxu0
    %v2857 = vadd.f32 %v2792, %v2856
    %2858 = vmatmul.f32.gmra.mxu0 %v2717
    %v2859 = vpop.f32.mrf.mxu0
    %v2860 = vadd.f32 %v2795, %v2859
    %2861 = vmatmul.f32.gmra.mxu0 %v2721
    %v2862 = vpop.f32.mrf.mxu0
    %v2863 = vadd.f32 %v2798, %v2862
    %2864 = vmatmul.f32.gmra.mxu0 %v2725
    %v2865 = vpop.f32.mrf.mxu0
    %v2866 = vadd.f32 %v2801, %v2865
    %2867 = vmatmul.f32.gmra.mxu0 %v2729
    %v2868 = vpop.f32.mrf.mxu0
    %v2869 = vadd.f32 %v2804, %v2868
    %2870 = vmatmul.f32.gmra.mxu0 %v2733
    %v2871 = vpop.f32.mrf.mxu0
    %v2872 = vadd.f32 %v2807, %v2871
    %2873 = vmatmul.f32.gmra.mxu0 %v2737
    %v2874 = vpop.f32.mrf.mxu0
    %v2875 = vadd.f32 %v2810, %v2874
    %2876 = vmatmul.f32.gmra.mxu0 %v2741
    %v2877 = vpop.f32.mrf.mxu0
    %v2878 = vadd.f32 %v2813, %v2877
    %2879 = vmatmul.f32.gmra.mxu0 %v2745
    %v2880 = vpop.f32.mrf.mxu0
    %v2881 = vadd.f32 %v2816, %v2880
    %2882 = vmatmul.f32.gmra.mxu0 %v2749
    %v2883 = vpop.f32.mrf.mxu0
    %v2884 = vadd.f32 %v2819, %v2883
    %2885 = vmatmul.f32.gmra.mxu0 %v2753
    %v2886 = vpop.f32.mrf.mxu0
    %v2887 = vadd.f32 %v2822, %v2886
    %2888 = vmatmul.f32.gmra.mxu0 %v2757
    %v2889 = vpop.f32.mrf.mxu0
    %v2890 = vadd.f32 %v2825, %v2889
    %2891 = vmatmul.f32.gmra.mxu0 %v2761
    %v2892 = vpop.f32.mrf.mxu0
    %v2893 = vadd.f32 %v2828, %v2892
    %2894 = vmatmul.f32.gmra.mxu0 %v2765
    %v2895 = vpop.f32.mrf.mxu0
    %v2896 = vadd.f32 %v2831, %v2895
    %2897 = vdwg.mxu0
    %2898 = vmatpush.msra.mxu0 %v423
    %2899 = vmatpush.msra.mxu0 %v422
    %2900 = vmatpush.msra.mxu0 %v421
    %2901 = vmatpush.msra.mxu0 %v420
    %2902 = vmatpush.msra.mxu0 %v419
    %2903 = vmatpush.msra.mxu0 %v418
    %2904 = vmatpush.msra.mxu0 %v417
    %2905 = vmatpush.msra.mxu0 %v416
    %2906 = vmatpush.msra.mxu0 %v415
    %2907 = vmatpush.msra.mxu0 %v414
    %2908 = vmatpush.msra.mxu0 %v413
    %2909 = vmatpush.msra.mxu0 %v412
    %2910 = vmatpush.msra.mxu0 %v411
    %2911 = vmatpush.msra.mxu0 %v410
    %2912 = vmatpush.msra.mxu0 %v409
    %2913 = vmatpush.msra.mxu0 %v408
    %2914 = vmatmul.f32.gmra.mxu0 %v2706
    %v2915 = vpop.f32.mrf.mxu0
    %v2916 = vadd.f32 %v2851, %v2915
    %2917 = vmatmul.f32.gmra.mxu0 %v2710
    %v2918 = vpop.f32.mrf.mxu0
    %v2919 = vadd.f32 %v2854, %v2918
    %2920 = vmatmul.f32.gmra.mxu0 %v2714
    %v2921 = vpop.f32.mrf.mxu0
    %v2922 = vadd.f32 %v2857, %v2921
    %2923 = vmatmul.f32.gmra.mxu0 %v2718
    %v2924 = vpop.f32.mrf.mxu0
    %v2925 = vadd.f32 %v2860, %v2924
    %2926 = vmatmul.f32.gmra.mxu0 %v2722
    %v2927 = vpop.f32.mrf.mxu0
    %v2928 = vadd.f32 %v2863, %v2927
    %2929 = vmatmul.f32.gmra.mxu0 %v2726
    %v2930 = vpop.f32.mrf.mxu0
    %v2931 = vadd.f32 %v2866, %v2930
    %2932 = vmatmul.f32.gmra.mxu0 %v2730
    %v2933 = vpop.f32.mrf.mxu0
    %v2934 = vadd.f32 %v2869, %v2933
    %2935 = vmatmul.f32.gmra.mxu0 %v2734
    %v2936 = vpop.f32.mrf.mxu0
    %v2937 = vadd.f32 %v2872, %v2936
    %2938 = vmatmul.f32.gmra.mxu0 %v2738
    %v2939 = vpop.f32.mrf.mxu0
    %v2940 = vadd.f32 %v2875, %v2939
    %2941 = vmatmul.f32.gmra.mxu0 %v2742
    %v2942 = vpop.f32.mrf.mxu0
    %v2943 = vadd.f32 %v2878, %v2942
    %2944 = vmatmul.f32.gmra.mxu0 %v2746
    %v2945 = vpop.f32.mrf.mxu0
    %v2946 = vadd.f32 %v2881, %v2945
    %2947 = vmatmul.f32.gmra.mxu0 %v2750
    %v2948 = vpop.f32.mrf.mxu0
    %v2949 = vadd.f32 %v2884, %v2948
    %2950 = vmatmul.f32.gmra.mxu0 %v2754
    %v2951 = vpop.f32.mrf.mxu0
    %v2952 = vadd.f32 %v2887, %v2951
    %2953 = vmatmul.f32.gmra.mxu0 %v2758
    %v2954 = vpop.f32.mrf.mxu0
    %v2955 = vadd.f32 %v2890, %v2954
    %2956 = vmatmul.f32.gmra.mxu0 %v2762
    %v2957 = vpop.f32.mrf.mxu0
    %v2958 = vadd.f32 %v2893, %v2957
    %2959 = vmatmul.f32.gmra.mxu0 %v2766
    %v2960 = vpop.f32.mrf.mxu0
    %v2961 = vadd.f32 %v2896, %v2960
    %2962 = vdwg.mxu0
    %2963 = vmatpush.msra.mxu0 %v439
    %2964 = vmatpush.msra.mxu0 %v438
    %2965 = vmatpush.msra.mxu0 %v437
    %2966 = vmatpush.msra.mxu0 %v436
    %2967 = vmatpush.msra.mxu0 %v435
    %2968 = vmatpush.msra.mxu0 %v434
    %2969 = vmatpush.msra.mxu0 %v433
    %2970 = vmatpush.msra.mxu0 %v432
    %2971 = vmatpush.msra.mxu0 %v431
    %2972 = vmatpush.msra.mxu0 %v430
    %2973 = vmatpush.msra.mxu0 %v429
    %2974 = vmatpush.msra.mxu0 %v428
    %2975 = vmatpush.msra.mxu0 %v427
    %2976 = vmatpush.msra.mxu0 %v426
    %2977 = vmatpush.msra.mxu0 %v425
    %2978 = vmatpush.msra.mxu0 %v424
    %2979 = vmatmul.f32.gmra.mxu0 %v2707
    %v2980 = vpop.f32.mrf.mxu0
    %v2981 = vadd.f32 %v2916, %v2980
    %2982 = vmatmul.f32.gmra.mxu0 %v2711
    %v2983 = vpop.f32.mrf.mxu0
    %v2984 = vadd.f32 %v2919, %v2983
    %2985 = vmatmul.f32.gmra.mxu0 %v2715
    %v2986 = vpop.f32.mrf.mxu0
    %v2987 = vadd.f32 %v2922, %v2986
    %2988 = vmatmul.f32.gmra.mxu0 %v2719
    %v2989 = vpop.f32.mrf.mxu0
    %v2990 = vadd.f32 %v2925, %v2989
    %2991 = vmatmul.f32.gmra.mxu0 %v2723
    %v2992 = vpop.f32.mrf.mxu0
    %v2993 = vadd.f32 %v2928, %v2992
    %2994 = vmatmul.f32.gmra.mxu0 %v2727
    %v2995 = vpop.f32.mrf.mxu0
    %v2996 = vadd.f32 %v2931, %v2995
    %2997 = vmatmul.f32.gmra.mxu0 %v2731
    %v2998 = vpop.f32.mrf.mxu0
    %v2999 = vadd.f32 %v2934, %v2998
    %3000 = vmatmul.f32.gmra.mxu0 %v2735
    %v3001 = vpop.f32.mrf.mxu0
    %v3002 = vadd.f32 %v2937, %v3001
    %3003 = vmatmul.f32.gmra.mxu0 %v2739
    %v3004 = vpop.f32.mrf.mxu0
    %v3005 = vadd.f32 %v2940, %v3004
    %3006 = vmatmul.f32.gmra.mxu0 %v2743
    %v3007 = vpop.f32.mrf.mxu0
    %v3008 = vadd.f32 %v2943, %v3007
    %3009 = vmatmul.f32.gmra.mxu0 %v2747
    %v3010 = vpop.f32.mrf.mxu0
    %v3011 = vadd.f32 %v2946, %v3010
    %3012 = vmatmul.f32.gmra.mxu0 %v2751
    %v3013 = vpop.f32.mrf.mxu0
    %v3014 = vadd.f32 %v2949, %v3013
    %3015 = vmatmul.f32.gmra.mxu0 %v2755
    %v3016 = vpop.f32.mrf.mxu0
    %v3017 = vadd.f32 %v2952, %v3016
    %3018 = vmatmul.f32.gmra.mxu0 %v2759
    %v3019 = vpop.f32.mrf.mxu0
    %v3020 = vadd.f32 %v2955, %v3019
    %3021 = vmatmul.f32.gmra.mxu0 %v2763
    %v3022 = vpop.f32.mrf.mxu0
    %v3023 = vadd.f32 %v2958, %v3022
    %3024 = vmatmul.f32.gmra.mxu0 %v2767
    %v3025 = vpop.f32.mrf.mxu0
    %v3026 = vadd.f32 %v2961, %v3025
    %3027 = vdwg.mxu0
    %s3028 = scalar_lea.vmem [#allocation4], 20
    %v3029 = vld [vmem:[%s3028] sm:$0x7]
    %v3031 = vsel %vm1092, %v2981, 0
    %v3034 = vsel %vm1092, %v2984, 0
    %v3037 = vsel %vm1092, %v2987, 0
    %v3040 = vsel %vm1092, %v2990, 0
    %v3043 = vsel %vm1092, %v2993, 0
    %v3046 = vsel %vm1092, %v2996, 0
    %v3049 = vsel %vm1092, %v2999, 0
    %v3052 = vsel %vm1092, %v3002, 0
    %v3055 = vsel %vm1092, %v3005, 0
    %v3058 = vsel %vm1092, %v3008, 0
    %v3061 = vsel %vm1092, %v3011, 0
    %v3064 = vsel %vm1092, %v3014, 0
    %v3067 = vsel %vm1092, %v3017, 0
    %v3070 = vsel %vm1092, %v3020, 0
    %v3073 = vsel %vm1092, %v3023, 0
    %v3076 = vsel %vm1092, %v3026, 0
    %v3079 = vsel %vm1141, %v3029, 0
    %3081 = vmatpush.msra.mxu0 0.0
    %3082 = vmatpush.msra.mxu0 0.0
    %3083 = vmatpush.msra.mxu0 0.0
    %3084 = vmatpush.msra.mxu0 0.0
    %3085 = vmatpush.msra.mxu0 0.0
    %3086 = vmatpush.msra.mxu0 0.0
    %3087 = vmatpush.msra.mxu0 0.0
    %3088 = vmatpush.msra.mxu0 0.0
    %3089 = vmatpush.msra.mxu0 0.0
    %3090 = vmatpush.msra.mxu0 0.0
    %3091 = vmatpush.msra.mxu0 0.0
    %3092 = vmatpush.msra.mxu0 0.0
    %3093 = vmatpush.msra.mxu0 0.0
    %3094 = vmatpush.msra.mxu0 0.0
    %3095 = vmatpush.msra.mxu0 0.0
    %3096 = vmatpush.msra.mxu0 %v3079
    %3097 = vmatmul.f32.gmra.mxu0 %v3031
    %v3098 = vpop.f32.mrf.mxu0
    %v3099 = vadd.f32 0.0, %v3098
    %3100 = vmatmul.f32.gmra.mxu0 %v3034
    %v3101 = vpop.f32.mrf.mxu0
    %v3102 = vadd.f32 0.0, %v3101
    %3103 = vmatmul.f32.gmra.mxu0 %v3037
    %v3104 = vpop.f32.mrf.mxu0
    %v3105 = vadd.f32 0.0, %v3104
    %3106 = vmatmul.f32.gmra.mxu0 %v3040
    %v3107 = vpop.f32.mrf.mxu0
    %v3108 = vadd.f32 0.0, %v3107
    %3109 = vmatmul.f32.gmra.mxu0 %v3043
    %v3110 = vpop.f32.mrf.mxu0
    %v3111 = vadd.f32 0.0, %v3110
    %3112 = vmatmul.f32.gmra.mxu0 %v3046
    %v3113 = vpop.f32.mrf.mxu0
    %v3114 = vadd.f32 0.0, %v3113
    %3115 = vmatmul.f32.gmra.mxu0 %v3049
    %v3116 = vpop.f32.mrf.mxu0
    %v3117 = vadd.f32 0.0, %v3116
    %3118 = vmatmul.f32.gmra.mxu0 %v3052
    %v3119 = vpop.f32.mrf.mxu0
    %v3120 = vadd.f32 0.0, %v3119
    %3121 = vmatmul.f32.gmra.mxu0 %v3055
    %v3122 = vpop.f32.mrf.mxu0
    %v3123 = vadd.f32 0.0, %v3122
    %3124 = vmatmul.f32.gmra.mxu0 %v3058
    %v3125 = vpop.f32.mrf.mxu0
    %v3126 = vadd.f32 0.0, %v3125
    %3127 = vmatmul.f32.gmra.mxu0 %v3061
    %v3128 = vpop.f32.mrf.mxu0
    %v3129 = vadd.f32 0.0, %v3128
    %3130 = vmatmul.f32.gmra.mxu0 %v3064
    %v3131 = vpop.f32.mrf.mxu0
    %v3132 = vadd.f32 0.0, %v3131
    %3133 = vmatmul.f32.gmra.mxu0 %v3067
    %v3134 = vpop.f32.mrf.mxu0
    %v3135 = vadd.f32 0.0, %v3134
    %3136 = vmatmul.f32.gmra.mxu0 %v3070
    %v3137 = vpop.f32.mrf.mxu0
    %v3138 = vadd.f32 0.0, %v3137
    %3139 = vmatmul.f32.gmra.mxu0 %v3073
    %v3140 = vpop.f32.mrf.mxu0
    %v3141 = vadd.f32 0.0, %v3140
    %3142 = vmatmul.f32.gmra.mxu0 %v3076
    %v3143 = vpop.f32.mrf.mxu0
    %v3144 = vadd.f32 0.0, %v3143
    %3145 = vdwg.mxu0
    %v3146 = vadd.f32 %v2687, %v3099
    %v3147 = vadd.f32 %v2688, %v3102
    %v3148 = vadd.f32 %v2689, %v3105
    %v3149 = vadd.f32 %v2690, %v3108
    %v3150 = vadd.f32 %v2691, %v3111
    %v3151 = vadd.f32 %v2692, %v3114
    %v3152 = vadd.f32 %v2693, %v3117
    %v3153 = vadd.f32 %v2694, %v3120
    %v3154 = vadd.f32 %v2695, %v3123
    %v3155 = vadd.f32 %v2696, %v3126
    %v3156 = vadd.f32 %v2697, %v3129
    %v3157 = vadd.f32 %v2698, %v3132
    %v3158 = vadd.f32 %v2699, %v3135
    %v3159 = vadd.f32 %v2700, %v3138
    %v3160 = vadd.f32 %v2701, %v3141
    %v3161 = vadd.f32 %v2702, %v3144
    %s3162 = scalar_lea.vmem [#allocation2], 3072
    %v3163 = vld [vmem:[%s3162] sm:$0xff]
    %v3164 = vld [vmem:[%s3162 + $0x8] sm:$0xff]
    %v3165 = vld [vmem:[%s3162 + $0x10] sm:$0xff]
    %v3166 = vld [vmem:[%s3162 + $0x18] sm:$0xff]
    %v3167 = vld [vmem:[%s3162 + $0x20] sm:$0xff]
    %v3168 = vld [vmem:[%s3162 + $0x28] sm:$0xff]
    %v3169 = vld [vmem:[%s3162 + $0x30] sm:$0xff]
    %v3170 = vld [vmem:[%s3162 + $0x38] sm:$0xff]
    %v3171 = vld [vmem:[%s3162 + $0x40] sm:$0xff]
    %v3172 = vld [vmem:[%s3162 + $0x48] sm:$0xff]
    %v3173 = vld [vmem:[%s3162 + $0x50] sm:$0xff]
    %v3174 = vld [vmem:[%s3162 + $0x58] sm:$0xff]
    %v3175 = vld [vmem:[%s3162 + $0x60] sm:$0xff]
    %v3176 = vld [vmem:[%s3162 + $0x68] sm:$0xff]
    %v3177 = vld [vmem:[%s3162 + $0x70] sm:$0xff]
    %v3178 = vld [vmem:[%s3162 + $0x78] sm:$0xff]
    %v3179 = vld [vmem:[%s3162 + $0x80] sm:$0xff]
    %v3180 = vld [vmem:[%s3162 + $0x88] sm:$0xff]
    %v3181 = vld [vmem:[%s3162 + $0x90] sm:$0xff]
    %v3182 = vld [vmem:[%s3162 + $0x98] sm:$0xff]
    %v3183 = vld [vmem:[%s3162 + $0xa0] sm:$0xff]
    %v3184 = vld [vmem:[%s3162 + $0xa8] sm:$0xff]
    %v3185 = vld [vmem:[%s3162 + $0xb0] sm:$0xff]
    %v3186 = vld [vmem:[%s3162 + $0xb8] sm:$0xff]
    %v3187 = vld [vmem:[%s3162 + $0xc0] sm:$0xff]
    %v3188 = vld [vmem:[%s3162 + $0xc8] sm:$0xff]
    %v3189 = vld [vmem:[%s3162 + $0xd0] sm:$0xff]
    %v3190 = vld [vmem:[%s3162 + $0xd8] sm:$0xff]
    %v3191 = vld [vmem:[%s3162 + $0xe0] sm:$0xff]
    %v3192 = vld [vmem:[%s3162 + $0xe8] sm:$0xff]
    %v3193 = vld [vmem:[%s3162 + $0xf0] sm:$0xff]
    %v3194 = vld [vmem:[%s3162 + $0xf8] sm:$0xff]
    %v3195 = vld [vmem:[%s3162 + $0x100] sm:$0xff]
    %v3196 = vld [vmem:[%s3162 + $0x108] sm:$0xff]
    %v3197 = vld [vmem:[%s3162 + $0x110] sm:$0xff]
    %v3198 = vld [vmem:[%s3162 + $0x118] sm:$0xff]
    %v3199 = vld [vmem:[%s3162 + $0x120] sm:$0xff]
    %v3200 = vld [vmem:[%s3162 + $0x128] sm:$0xff]
    %v3201 = vld [vmem:[%s3162 + $0x130] sm:$0xff]
    %v3202 = vld [vmem:[%s3162 + $0x138] sm:$0xff]
    %v3203 = vld [vmem:[%s3162 + $0x140] sm:$0xff]
    %v3204 = vld [vmem:[%s3162 + $0x148] sm:$0xff]
    %v3205 = vld [vmem:[%s3162 + $0x150] sm:$0xff]
    %v3206 = vld [vmem:[%s3162 + $0x158] sm:$0xff]
    %v3207 = vld [vmem:[%s3162 + $0x160] sm:$0xff]
    %v3208 = vld [vmem:[%s3162 + $0x168] sm:$0xff]
    %v3209 = vld [vmem:[%s3162 + $0x170] sm:$0xff]
    %v3210 = vld [vmem:[%s3162 + $0x178] sm:$0xff]
    %v3211 = vld [vmem:[%s3162 + $0x180] sm:$0xff]
    %v3212 = vld [vmem:[%s3162 + $0x188] sm:$0xff]
    %v3213 = vld [vmem:[%s3162 + $0x190] sm:$0xff]
    %v3214 = vld [vmem:[%s3162 + $0x198] sm:$0xff]
    %v3215 = vld [vmem:[%s3162 + $0x1a0] sm:$0xff]
    %v3216 = vld [vmem:[%s3162 + $0x1a8] sm:$0xff]
    %v3217 = vld [vmem:[%s3162 + $0x1b0] sm:$0xff]
    %v3218 = vld [vmem:[%s3162 + $0x1b8] sm:$0xff]
    %v3219 = vld [vmem:[%s3162 + $0x1c0] sm:$0xff]
    %v3220 = vld [vmem:[%s3162 + $0x1c8] sm:$0xff]
    %v3221 = vld [vmem:[%s3162 + $0x1d0] sm:$0xff]
    %v3222 = vld [vmem:[%s3162 + $0x1d8] sm:$0xff]
    %v3223 = vld [vmem:[%s3162 + $0x1e0] sm:$0xff]
    %v3224 = vld [vmem:[%s3162 + $0x1e8] sm:$0xff]
    %v3225 = vld [vmem:[%s3162 + $0x1f0] sm:$0xff]
    %v3226 = vld [vmem:[%s3162 + $0x1f8] sm:$0xff]
    %3227 = vmatpush.msra.mxu0 %v391
    %3228 = vmatpush.msra.mxu0 %v390
    %3229 = vmatpush.msra.mxu0 %v389
    %3230 = vmatpush.msra.mxu0 %v388
    %3231 = vmatpush.msra.mxu0 %v387
    %3232 = vmatpush.msra.mxu0 %v386
    %3233 = vmatpush.msra.mxu0 %v385
    %3234 = vmatpush.msra.mxu0 %v384
    %3235 = vmatpush.msra.mxu0 %v383
    %3236 = vmatpush.msra.mxu0 %v382
    %3237 = vmatpush.msra.mxu0 %v381
    %3238 = vmatpush.msra.mxu0 %v380
    %3239 = vmatpush.msra.mxu0 %v379
    %3240 = vmatpush.msra.mxu0 %v378
    %3241 = vmatpush.msra.mxu0 %v377
    %3242 = vmatpush.msra.mxu0 %v376
    %3243 = vmatmul.f32.gmra.mxu0 %v3163
    %v3244 = vpop.f32.mrf.mxu0
    %v3245 = vadd.f32 0.0, %v3244
    %3246 = vmatmul.f32.gmra.mxu0 %v3167
    %v3247 = vpop.f32.mrf.mxu0
    %v3248 = vadd.f32 0.0, %v3247
    %3249 = vmatmul.f32.gmra.mxu0 %v3171
    %v3250 = vpop.f32.mrf.mxu0
    %v3251 = vadd.f32 0.0, %v3250
    %3252 = vmatmul.f32.gmra.mxu0 %v3175
    %v3253 = vpop.f32.mrf.mxu0
    %v3254 = vadd.f32 0.0, %v3253
    %3255 = vmatmul.f32.gmra.mxu0 %v3179
    %v3256 = vpop.f32.mrf.mxu0
    %v3257 = vadd.f32 0.0, %v3256
    %3258 = vmatmul.f32.gmra.mxu0 %v3183
    %v3259 = vpop.f32.mrf.mxu0
    %v3260 = vadd.f32 0.0, %v3259
    %3261 = vmatmul.f32.gmra.mxu0 %v3187
    %v3262 = vpop.f32.mrf.mxu0
    %v3263 = vadd.f32 0.0, %v3262
    %3264 = vmatmul.f32.gmra.mxu0 %v3191
    %v3265 = vpop.f32.mrf.mxu0
    %v3266 = vadd.f32 0.0, %v3265
    %3267 = vmatmul.f32.gmra.mxu0 %v3195
    %v3268 = vpop.f32.mrf.mxu0
    %v3269 = vadd.f32 0.0, %v3268
    %3270 = vmatmul.f32.gmra.mxu0 %v3199
    %v3271 = vpop.f32.mrf.mxu0
    %v3272 = vadd.f32 0.0, %v3271
    %3273 = vmatmul.f32.gmra.mxu0 %v3203
    %v3274 = vpop.f32.mrf.mxu0
    %v3275 = vadd.f32 0.0, %v3274
    %3276 = vmatmul.f32.gmra.mxu0 %v3207
    %v3277 = vpop.f32.mrf.mxu0
    %v3278 = vadd.f32 0.0, %v3277
    %3279 = vmatmul.f32.gmra.mxu0 %v3211
    %v3280 = vpop.f32.mrf.mxu0
    %v3281 = vadd.f32 0.0, %v3280
    %3282 = vmatmul.f32.gmra.mxu0 %v3215
    %v3283 = vpop.f32.mrf.mxu0
    %v3284 = vadd.f32 0.0, %v3283
    %3285 = vmatmul.f32.gmra.mxu0 %v3219
    %v3286 = vpop.f32.mrf.mxu0
    %v3287 = vadd.f32 0.0, %v3286
    %3288 = vmatmul.f32.gmra.mxu0 %v3223
    %v3289 = vpop.f32.mrf.mxu0
    %v3290 = vadd.f32 0.0, %v3289
    %3291 = vdwg.mxu0
    %3292 = vmatpush.msra.mxu0 %v407
    %3293 = vmatpush.msra.mxu0 %v406
    %3294 = vmatpush.msra.mxu0 %v405
    %3295 = vmatpush.msra.mxu0 %v404
    %3296 = vmatpush.msra.mxu0 %v403
    %3297 = vmatpush.msra.mxu0 %v402
    %3298 = vmatpush.msra.mxu0 %v401
    %3299 = vmatpush.msra.mxu0 %v400
    %3300 = vmatpush.msra.mxu0 %v399
    %3301 = vmatpush.msra.mxu0 %v398
    %3302 = vmatpush.msra.mxu0 %v397
    %3303 = vmatpush.msra.mxu0 %v396
    %3304 = vmatpush.msra.mxu0 %v395
    %3305 = vmatpush.msra.mxu0 %v394
    %3306 = vmatpush.msra.mxu0 %v393
    %3307 = vmatpush.msra.mxu0 %v392
    %3308 = vmatmul.f32.gmra.mxu0 %v3164
    %v3309 = vpop.f32.mrf.mxu0
    %v3310 = vadd.f32 %v3245, %v3309
    %3311 = vmatmul.f32.gmra.mxu0 %v3168
    %v3312 = vpop.f32.mrf.mxu0
    %v3313 = vadd.f32 %v3248, %v3312
    %3314 = vmatmul.f32.gmra.mxu0 %v3172
    %v3315 = vpop.f32.mrf.mxu0
    %v3316 = vadd.f32 %v3251, %v3315
    %3317 = vmatmul.f32.gmra.mxu0 %v3176
    %v3318 = vpop.f32.mrf.mxu0
    %v3319 = vadd.f32 %v3254, %v3318
    %3320 = vmatmul.f32.gmra.mxu0 %v3180
    %v3321 = vpop.f32.mrf.mxu0
    %v3322 = vadd.f32 %v3257, %v3321
    %3323 = vmatmul.f32.gmra.mxu0 %v3184
    %v3324 = vpop.f32.mrf.mxu0
    %v3325 = vadd.f32 %v3260, %v3324
    %3326 = vmatmul.f32.gmra.mxu0 %v3188
    %v3327 = vpop.f32.mrf.mxu0
    %v3328 = vadd.f32 %v3263, %v3327
    %3329 = vmatmul.f32.gmra.mxu0 %v3192
    %v3330 = vpop.f32.mrf.mxu0
    %v3331 = vadd.f32 %v3266, %v3330
    %3332 = vmatmul.f32.gmra.mxu0 %v3196
    %v3333 = vpop.f32.mrf.mxu0
    %v3334 = vadd.f32 %v3269, %v3333
    %3335 = vmatmul.f32.gmra.mxu0 %v3200
    %v3336 = vpop.f32.mrf.mxu0
    %v3337 = vadd.f32 %v3272, %v3336
    %3338 = vmatmul.f32.gmra.mxu0 %v3204
    %v3339 = vpop.f32.mrf.mxu0
    %v3340 = vadd.f32 %v3275, %v3339
    %3341 = vmatmul.f32.gmra.mxu0 %v3208
    %v3342 = vpop.f32.mrf.mxu0
    %v3343 = vadd.f32 %v3278, %v3342
    %3344 = vmatmul.f32.gmra.mxu0 %v3212
    %v3345 = vpop.f32.mrf.mxu0
    %v3346 = vadd.f32 %v3281, %v3345
    %3347 = vmatmul.f32.gmra.mxu0 %v3216
    %v3348 = vpop.f32.mrf.mxu0
    %v3349 = vadd.f32 %v3284, %v3348
    %3350 = vmatmul.f32.gmra.mxu0 %v3220
    %v3351 = vpop.f32.mrf.mxu0
    %v3352 = vadd.f32 %v3287, %v3351
    %3353 = vmatmul.f32.gmra.mxu0 %v3224
    %v3354 = vpop.f32.mrf.mxu0
    %v3355 = vadd.f32 %v3290, %v3354
    %3356 = vdwg.mxu0
    %3357 = vmatpush.msra.mxu0 %v423
    %3358 = vmatpush.msra.mxu0 %v422
    %3359 = vmatpush.msra.mxu0 %v421
    %3360 = vmatpush.msra.mxu0 %v420
    %3361 = vmatpush.msra.mxu0 %v419
    %3362 = vmatpush.msra.mxu0 %v418
    %3363 = vmatpush.msra.mxu0 %v417
    %3364 = vmatpush.msra.mxu0 %v416
    %3365 = vmatpush.msra.mxu0 %v415
    %3366 = vmatpush.msra.mxu0 %v414
    %3367 = vmatpush.msra.mxu0 %v413
    %3368 = vmatpush.msra.mxu0 %v412
    %3369 = vmatpush.msra.mxu0 %v411
    %3370 = vmatpush.msra.mxu0 %v410
    %3371 = vmatpush.msra.mxu0 %v409
    %3372 = vmatpush.msra.mxu0 %v408
    %3373 = vmatmul.f32.gmra.mxu0 %v3165
    %v3374 = vpop.f32.mrf.mxu0
    %v3375 = vadd.f32 %v3310, %v3374
    %3376 = vmatmul.f32.gmra.mxu0 %v3169
    %v3377 = vpop.f32.mrf.mxu0
    %v3378 = vadd.f32 %v3313, %v3377
    %3379 = vmatmul.f32.gmra.mxu0 %v3173
    %v3380 = vpop.f32.mrf.mxu0
    %v3381 = vadd.f32 %v3316, %v3380
    %3382 = vmatmul.f32.gmra.mxu0 %v3177
    %v3383 = vpop.f32.mrf.mxu0
    %v3384 = vadd.f32 %v3319, %v3383
    %3385 = vmatmul.f32.gmra.mxu0 %v3181
    %v3386 = vpop.f32.mrf.mxu0
    %v3387 = vadd.f32 %v3322, %v3386
    %3388 = vmatmul.f32.gmra.mxu0 %v3185
    %v3389 = vpop.f32.mrf.mxu0
    %v3390 = vadd.f32 %v3325, %v3389
    %3391 = vmatmul.f32.gmra.mxu0 %v3189
    %v3392 = vpop.f32.mrf.mxu0
    %v3393 = vadd.f32 %v3328, %v3392
    %3394 = vmatmul.f32.gmra.mxu0 %v3193
    %v3395 = vpop.f32.mrf.mxu0
    %v3396 = vadd.f32 %v3331, %v3395
    %3397 = vmatmul.f32.gmra.mxu0 %v3197
    %v3398 = vpop.f32.mrf.mxu0
    %v3399 = vadd.f32 %v3334, %v3398
    %3400 = vmatmul.f32.gmra.mxu0 %v3201
    %v3401 = vpop.f32.mrf.mxu0
    %v3402 = vadd.f32 %v3337, %v3401
    %3403 = vmatmul.f32.gmra.mxu0 %v3205
    %v3404 = vpop.f32.mrf.mxu0
    %v3405 = vadd.f32 %v3340, %v3404
    %3406 = vmatmul.f32.gmra.mxu0 %v3209
    %v3407 = vpop.f32.mrf.mxu0
    %v3408 = vadd.f32 %v3343, %v3407
    %3409 = vmatmul.f32.gmra.mxu0 %v3213
    %v3410 = vpop.f32.mrf.mxu0
    %v3411 = vadd.f32 %v3346, %v3410
    %3412 = vmatmul.f32.gmra.mxu0 %v3217
    %v3413 = vpop.f32.mrf.mxu0
    %v3414 = vadd.f32 %v3349, %v3413
    %3415 = vmatmul.f32.gmra.mxu0 %v3221
    %v3416 = vpop.f32.mrf.mxu0
    %v3417 = vadd.f32 %v3352, %v3416
    %3418 = vmatmul.f32.gmra.mxu0 %v3225
    %v3419 = vpop.f32.mrf.mxu0
    %v3420 = vadd.f32 %v3355, %v3419
    %3421 = vdwg.mxu0
    %3422 = vmatpush.msra.mxu0 %v439
    %3423 = vmatpush.msra.mxu0 %v438
    %3424 = vmatpush.msra.mxu0 %v437
    %3425 = vmatpush.msra.mxu0 %v436
    %3426 = vmatpush.msra.mxu0 %v435
    %3427 = vmatpush.msra.mxu0 %v434
    %3428 = vmatpush.msra.mxu0 %v433
    %3429 = vmatpush.msra.mxu0 %v432
    %3430 = vmatpush.msra.mxu0 %v431
    %3431 = vmatpush.msra.mxu0 %v430
    %3432 = vmatpush.msra.mxu0 %v429
    %3433 = vmatpush.msra.mxu0 %v428
    %3434 = vmatpush.msra.mxu0 %v427
    %3435 = vmatpush.msra.mxu0 %v426
    %3436 = vmatpush.msra.mxu0 %v425
    %3437 = vmatpush.msra.mxu0 %v424
    %3438 = vmatmul.f32.gmra.mxu0 %v3166
    %v3439 = vpop.f32.mrf.mxu0
    %v3440 = vadd.f32 %v3375, %v3439
    %3441 = vmatmul.f32.gmra.mxu0 %v3170
    %v3442 = vpop.f32.mrf.mxu0
    %v3443 = vadd.f32 %v3378, %v3442
    %3444 = vmatmul.f32.gmra.mxu0 %v3174
    %v3445 = vpop.f32.mrf.mxu0
    %v3446 = vadd.f32 %v3381, %v3445
    %3447 = vmatmul.f32.gmra.mxu0 %v3178
    %v3448 = vpop.f32.mrf.mxu0
    %v3449 = vadd.f32 %v3384, %v3448
    %3450 = vmatmul.f32.gmra.mxu0 %v3182
    %v3451 = vpop.f32.mrf.mxu0
    %v3452 = vadd.f32 %v3387, %v3451
    %3453 = vmatmul.f32.gmra.mxu0 %v3186
    %v3454 = vpop.f32.mrf.mxu0
    %v3455 = vadd.f32 %v3390, %v3454
    %3456 = vmatmul.f32.gmra.mxu0 %v3190
    %v3457 = vpop.f32.mrf.mxu0
    %v3458 = vadd.f32 %v3393, %v3457
    %3459 = vmatmul.f32.gmra.mxu0 %v3194
    %v3460 = vpop.f32.mrf.mxu0
    %v3461 = vadd.f32 %v3396, %v3460
    %3462 = vmatmul.f32.gmra.mxu0 %v3198
    %v3463 = vpop.f32.mrf.mxu0
    %v3464 = vadd.f32 %v3399, %v3463
    %3465 = vmatmul.f32.gmra.mxu0 %v3202
    %v3466 = vpop.f32.mrf.mxu0
    %v3467 = vadd.f32 %v3402, %v3466
    %3468 = vmatmul.f32.gmra.mxu0 %v3206
    %v3469 = vpop.f32.mrf.mxu0
    %v3470 = vadd.f32 %v3405, %v3469
    %3471 = vmatmul.f32.gmra.mxu0 %v3210
    %v3472 = vpop.f32.mrf.mxu0
    %v3473 = vadd.f32 %v3408, %v3472
    %3474 = vmatmul.f32.gmra.mxu0 %v3214
    %v3475 = vpop.f32.mrf.mxu0
    %v3476 = vadd.f32 %v3411, %v3475
    %3477 = vmatmul.f32.gmra.mxu0 %v3218
    %v3478 = vpop.f32.mrf.mxu0
    %v3479 = vadd.f32 %v3414, %v3478
    %3480 = vmatmul.f32.gmra.mxu0 %v3222
    %v3481 = vpop.f32.mrf.mxu0
    %v3482 = vadd.f32 %v3417, %v3481
    %3483 = vmatmul.f32.gmra.mxu0 %v3226
    %v3484 = vpop.f32.mrf.mxu0
    %v3485 = vadd.f32 %v3420, %v3484
    %3486 = vdwg.mxu0
    %s3487 = scalar_lea.vmem [#allocation4], 24
    %v3488 = vld [vmem:[%s3487] sm:$0x7]
    %v3490 = vsel %vm1092, %v3440, 0
    %v3493 = vsel %vm1092, %v3443, 0
    %v3496 = vsel %vm1092, %v3446, 0
    %v3499 = vsel %vm1092, %v3449, 0
    %v3502 = vsel %vm1092, %v3452, 0
    %v3505 = vsel %vm1092, %v3455, 0
    %v3508 = vsel %vm1092, %v3458, 0
    %v3511 = vsel %vm1092, %v3461, 0
    %v3514 = vsel %vm1092, %v3464, 0
    %v3517 = vsel %vm1092, %v3467, 0
    %v3520 = vsel %vm1092, %v3470, 0
    %v3523 = vsel %vm1092, %v3473, 0
    %v3526 = vsel %vm1092, %v3476, 0
    %v3529 = vsel %vm1092, %v3479, 0
    %v3532 = vsel %vm1092, %v3482, 0
    %v3535 = vsel %vm1092, %v3485, 0
    %v3538 = vsel %vm1141, %v3488, 0
    %3540 = vmatpush.msra.mxu0 0.0
    %3541 = vmatpush.msra.mxu0 0.0
    %3542 = vmatpush.msra.mxu0 0.0
    %3543 = vmatpush.msra.mxu0 0.0
    %3544 = vmatpush.msra.mxu0 0.0
    %3545 = vmatpush.msra.mxu0 0.0
    %3546 = vmatpush.msra.mxu0 0.0
    %3547 = vmatpush.msra.mxu0 0.0
    %3548 = vmatpush.msra.mxu0 0.0
    %3549 = vmatpush.msra.mxu0 0.0
    %3550 = vmatpush.msra.mxu0 0.0
    %3551 = vmatpush.msra.mxu0 0.0
    %3552 = vmatpush.msra.mxu0 0.0
    %3553 = vmatpush.msra.mxu0 0.0
    %3554 = vmatpush.msra.mxu0 0.0
    %3555 = vmatpush.msra.mxu0 %v3538
    %3556 = vmatmul.f32.gmra.mxu0 %v3490
    %v3557 = vpop.f32.mrf.mxu0
    %v3558 = vadd.f32 0.0, %v3557
    %3559 = vmatmul.f32.gmra.mxu0 %v3493
    %v3560 = vpop.f32.mrf.mxu0
    %v3561 = vadd.f32 0.0, %v3560
    %3562 = vmatmul.f32.gmra.mxu0 %v3496
    %v3563 = vpop.f32.mrf.mxu0
    %v3564 = vadd.f32 0.0, %v3563
    %3565 = vmatmul.f32.gmra.mxu0 %v3499
    %v3566 = vpop.f32.mrf.mxu0
    %v3567 = vadd.f32 0.0, %v3566
    %3568 = vmatmul.f32.gmra.mxu0 %v3502
    %v3569 = vpop.f32.mrf.mxu0
    %v3570 = vadd.f32 0.0, %v3569
    %3571 = vmatmul.f32.gmra.mxu0 %v3505
    %v3572 = vpop.f32.mrf.mxu0
    %v3573 = vadd.f32 0.0, %v3572
    %3574 = vmatmul.f32.gmra.mxu0 %v3508
    %v3575 = vpop.f32.mrf.mxu0
    %v3576 = vadd.f32 0.0, %v3575
    %3577 = vmatmul.f32.gmra.mxu0 %v3511
    %v3578 = vpop.f32.mrf.mxu0
    %v3579 = vadd.f32 0.0, %v3578
    %3580 = vmatmul.f32.gmra.mxu0 %v3514
    %v3581 = vpop.f32.mrf.mxu0
    %v3582 = vadd.f32 0.0, %v3581
    %3583 = vmatmul.f32.gmra.mxu0 %v3517
    %v3584 = vpop.f32.mrf.mxu0
    %v3585 = vadd.f32 0.0, %v3584
    %3586 = vmatmul.f32.gmra.mxu0 %v3520
    %v3587 = vpop.f32.mrf.mxu0
    %v3588 = vadd.f32 0.0, %v3587
    %3589 = vmatmul.f32.gmra.mxu0 %v3523
    %v3590 = vpop.f32.mrf.mxu0
    %v3591 = vadd.f32 0.0, %v3590
    %3592 = vmatmul.f32.gmra.mxu0 %v3526
    %v3593 = vpop.f32.mrf.mxu0
    %v3594 = vadd.f32 0.0, %v3593
    %3595 = vmatmul.f32.gmra.mxu0 %v3529
    %v3596 = vpop.f32.mrf.mxu0
    %v3597 = vadd.f32 0.0, %v3596
    %3598 = vmatmul.f32.gmra.mxu0 %v3532
    %v3599 = vpop.f32.mrf.mxu0
    %v3600 = vadd.f32 0.0, %v3599
    %3601 = vmatmul.f32.gmra.mxu0 %v3535
    %v3602 = vpop.f32.mrf.mxu0
    %v3603 = vadd.f32 0.0, %v3602
    %3604 = vdwg.mxu0
    %v3605 = vadd.f32 %v3146, %v3558
    %v3606 = vadd.f32 %v3147, %v3561
    %v3607 = vadd.f32 %v3148, %v3564
    %v3608 = vadd.f32 %v3149, %v3567
    %v3609 = vadd.f32 %v3150, %v3570
    %v3610 = vadd.f32 %v3151, %v3573
    %v3611 = vadd.f32 %v3152, %v3576
    %v3612 = vadd.f32 %v3153, %v3579
    %v3613 = vadd.f32 %v3154, %v3582
    %v3614 = vadd.f32 %v3155, %v3585
    %v3615 = vadd.f32 %v3156, %v3588
    %v3616 = vadd.f32 %v3157, %v3591
    %v3617 = vadd.f32 %v3158, %v3594
    %v3618 = vadd.f32 %v3159, %v3597
    %v3619 = vadd.f32 %v3160, %v3600
    %v3620 = vadd.f32 %v3161, %v3603
    %s3621 = scalar_lea.vmem [#allocation2], 3584
    %v3622 = vld [vmem:[%s3621] sm:$0xff]
    %v3623 = vld [vmem:[%s3621 + $0x8] sm:$0xff]
    %v3624 = vld [vmem:[%s3621 + $0x10] sm:$0xff]
    %v3625 = vld [vmem:[%s3621 + $0x18] sm:$0xff]
    %v3626 = vld [vmem:[%s3621 + $0x20] sm:$0xff]
    %v3627 = vld [vmem:[%s3621 + $0x28] sm:$0xff]
    %v3628 = vld [vmem:[%s3621 + $0x30] sm:$0xff]
    %v3629 = vld [vmem:[%s3621 + $0x38] sm:$0xff]
    %v3630 = vld [vmem:[%s3621 + $0x40] sm:$0xff]
    %v3631 = vld [vmem:[%s3621 + $0x48] sm:$0xff]
    %v3632 = vld [vmem:[%s3621 + $0x50] sm:$0xff]
    %v3633 = vld [vmem:[%s3621 + $0x58] sm:$0xff]
    %v3634 = vld [vmem:[%s3621 + $0x60] sm:$0xff]
    %v3635 = vld [vmem:[%s3621 + $0x68] sm:$0xff]
    %v3636 = vld [vmem:[%s3621 + $0x70] sm:$0xff]
    %v3637 = vld [vmem:[%s3621 + $0x78] sm:$0xff]
    %v3638 = vld [vmem:[%s3621 + $0x80] sm:$0xff]
    %v3639 = vld [vmem:[%s3621 + $0x88] sm:$0xff]
    %v3640 = vld [vmem:[%s3621 + $0x90] sm:$0xff]
    %v3641 = vld [vmem:[%s3621 + $0x98] sm:$0xff]
    %v3642 = vld [vmem:[%s3621 + $0xa0] sm:$0xff]
    %v3643 = vld [vmem:[%s3621 + $0xa8] sm:$0xff]
    %v3644 = vld [vmem:[%s3621 + $0xb0] sm:$0xff]
    %v3645 = vld [vmem:[%s3621 + $0xb8] sm:$0xff]
    %v3646 = vld [vmem:[%s3621 + $0xc0] sm:$0xff]
    %v3647 = vld [vmem:[%s3621 + $0xc8] sm:$0xff]
    %v3648 = vld [vmem:[%s3621 + $0xd0] sm:$0xff]
    %v3649 = vld [vmem:[%s3621 + $0xd8] sm:$0xff]
    %v3650 = vld [vmem:[%s3621 + $0xe0] sm:$0xff]
    %v3651 = vld [vmem:[%s3621 + $0xe8] sm:$0xff]
    %v3652 = vld [vmem:[%s3621 + $0xf0] sm:$0xff]
    %v3653 = vld [vmem:[%s3621 + $0xf8] sm:$0xff]
    %v3654 = vld [vmem:[%s3621 + $0x100] sm:$0xff]
    %v3655 = vld [vmem:[%s3621 + $0x108] sm:$0xff]
    %v3656 = vld [vmem:[%s3621 + $0x110] sm:$0xff]
    %v3657 = vld [vmem:[%s3621 + $0x118] sm:$0xff]
    %v3658 = vld [vmem:[%s3621 + $0x120] sm:$0xff]
    %v3659 = vld [vmem:[%s3621 + $0x128] sm:$0xff]
    %v3660 = vld [vmem:[%s3621 + $0x130] sm:$0xff]
    %v3661 = vld [vmem:[%s3621 + $0x138] sm:$0xff]
    %v3662 = vld [vmem:[%s3621 + $0x140] sm:$0xff]
    %v3663 = vld [vmem:[%s3621 + $0x148] sm:$0xff]
    %v3664 = vld [vmem:[%s3621 + $0x150] sm:$0xff]
    %v3665 = vld [vmem:[%s3621 + $0x158] sm:$0xff]
    %v3666 = vld [vmem:[%s3621 + $0x160] sm:$0xff]
    %v3667 = vld [vmem:[%s3621 + $0x168] sm:$0xff]
    %v3668 = vld [vmem:[%s3621 + $0x170] sm:$0xff]
    %v3669 = vld [vmem:[%s3621 + $0x178] sm:$0xff]
    %v3670 = vld [vmem:[%s3621 + $0x180] sm:$0xff]
    %v3671 = vld [vmem:[%s3621 + $0x188] sm:$0xff]
    %v3672 = vld [vmem:[%s3621 + $0x190] sm:$0xff]
    %v3673 = vld [vmem:[%s3621 + $0x198] sm:$0xff]
    %v3674 = vld [vmem:[%s3621 + $0x1a0] sm:$0xff]
    %v3675 = vld [vmem:[%s3621 + $0x1a8] sm:$0xff]
    %v3676 = vld [vmem:[%s3621 + $0x1b0] sm:$0xff]
    %v3677 = vld [vmem:[%s3621 + $0x1b8] sm:$0xff]
    %v3678 = vld [vmem:[%s3621 + $0x1c0] sm:$0xff]
    %v3679 = vld [vmem:[%s3621 + $0x1c8] sm:$0xff]
    %v3680 = vld [vmem:[%s3621 + $0x1d0] sm:$0xff]
    %v3681 = vld [vmem:[%s3621 + $0x1d8] sm:$0xff]
    %v3682 = vld [vmem:[%s3621 + $0x1e0] sm:$0xff]
    %v3683 = vld [vmem:[%s3621 + $0x1e8] sm:$0xff]
    %v3684 = vld [vmem:[%s3621 + $0x1f0] sm:$0xff]
    %v3685 = vld [vmem:[%s3621 + $0x1f8] sm:$0xff]
    %3686 = vmatpush.msra.mxu0 %v391
    %3687 = vmatpush.msra.mxu0 %v390
    %3688 = vmatpush.msra.mxu0 %v389
    %3689 = vmatpush.msra.mxu0 %v388
    %3690 = vmatpush.msra.mxu0 %v387
    %3691 = vmatpush.msra.mxu0 %v386
    %3692 = vmatpush.msra.mxu0 %v385
    %3693 = vmatpush.msra.mxu0 %v384
    %3694 = vmatpush.msra.mxu0 %v383
    %3695 = vmatpush.msra.mxu0 %v382
    %3696 = vmatpush.msra.mxu0 %v381
    %3697 = vmatpush.msra.mxu0 %v380
    %3698 = vmatpush.msra.mxu0 %v379
    %3699 = vmatpush.msra.mxu0 %v378
    %3700 = vmatpush.msra.mxu0 %v377
    %3701 = vmatpush.msra.mxu0 %v376
    %3702 = vmatmul.f32.gmra.mxu0 %v3622
    %v3703 = vpop.f32.mrf.mxu0
    %v3704 = vadd.f32 0.0, %v3703
    %3705 = vmatmul.f32.gmra.mxu0 %v3626
    %v3706 = vpop.f32.mrf.mxu0
    %v3707 = vadd.f32 0.0, %v3706
    %3708 = vmatmul.f32.gmra.mxu0 %v3630
    %v3709 = vpop.f32.mrf.mxu0
    %v3710 = vadd.f32 0.0, %v3709
    %3711 = vmatmul.f32.gmra.mxu0 %v3634
    %v3712 = vpop.f32.mrf.mxu0
    %v3713 = vadd.f32 0.0, %v3712
    %3714 = vmatmul.f32.gmra.mxu0 %v3638
    %v3715 = vpop.f32.mrf.mxu0
    %v3716 = vadd.f32 0.0, %v3715
    %3717 = vmatmul.f32.gmra.mxu0 %v3642
    %v3718 = vpop.f32.mrf.mxu0
    %v3719 = vadd.f32 0.0, %v3718
    %3720 = vmatmul.f32.gmra.mxu0 %v3646
    %v3721 = vpop.f32.mrf.mxu0
    %v3722 = vadd.f32 0.0, %v3721
    %3723 = vmatmul.f32.gmra.mxu0 %v3650
    %v3724 = vpop.f32.mrf.mxu0
    %v3725 = vadd.f32 0.0, %v3724
    %3726 = vmatmul.f32.gmra.mxu0 %v3654
    %v3727 = vpop.f32.mrf.mxu0
    %v3728 = vadd.f32 0.0, %v3727
    %3729 = vmatmul.f32.gmra.mxu0 %v3658
    %v3730 = vpop.f32.mrf.mxu0
    %v3731 = vadd.f32 0.0, %v3730
    %3732 = vmatmul.f32.gmra.mxu0 %v3662
    %v3733 = vpop.f32.mrf.mxu0
    %v3734 = vadd.f32 0.0, %v3733
    %3735 = vmatmul.f32.gmra.mxu0 %v3666
    %v3736 = vpop.f32.mrf.mxu0
    %v3737 = vadd.f32 0.0, %v3736
    %3738 = vmatmul.f32.gmra.mxu0 %v3670
    %v3739 = vpop.f32.mrf.mxu0
    %v3740 = vadd.f32 0.0, %v3739
    %3741 = vmatmul.f32.gmra.mxu0 %v3674
    %v3742 = vpop.f32.mrf.mxu0
    %v3743 = vadd.f32 0.0, %v3742
    %3744 = vmatmul.f32.gmra.mxu0 %v3678
    %v3745 = vpop.f32.mrf.mxu0
    %v3746 = vadd.f32 0.0, %v3745
    %3747 = vmatmul.f32.gmra.mxu0 %v3682
    %v3748 = vpop.f32.mrf.mxu0
    %v3749 = vadd.f32 0.0, %v3748
    %3750 = vdwg.mxu0
    %3751 = vmatpush.msra.mxu0 %v407
    %3752 = vmatpush.msra.mxu0 %v406
    %3753 = vmatpush.msra.mxu0 %v405
    %3754 = vmatpush.msra.mxu0 %v404
    %3755 = vmatpush.msra.mxu0 %v403
    %3756 = vmatpush.msra.mxu0 %v402
    %3757 = vmatpush.msra.mxu0 %v401
    %3758 = vmatpush.msra.mxu0 %v400
    %3759 = vmatpush.msra.mxu0 %v399
    %3760 = vmatpush.msra.mxu0 %v398
    %3761 = vmatpush.msra.mxu0 %v397
    %3762 = vmatpush.msra.mxu0 %v396
    %3763 = vmatpush.msra.mxu0 %v395
    %3764 = vmatpush.msra.mxu0 %v394
    %3765 = vmatpush.msra.mxu0 %v393
    %3766 = vmatpush.msra.mxu0 %v392
    %3767 = vmatmul.f32.gmra.mxu0 %v3623
    %v3768 = vpop.f32.mrf.mxu0
    %v3769 = vadd.f32 %v3704, %v3768
    %3770 = vmatmul.f32.gmra.mxu0 %v3627
    %v3771 = vpop.f32.mrf.mxu0
    %v3772 = vadd.f32 %v3707, %v3771
    %3773 = vmatmul.f32.gmra.mxu0 %v3631
    %v3774 = vpop.f32.mrf.mxu0
    %v3775 = vadd.f32 %v3710, %v3774
    %3776 = vmatmul.f32.gmra.mxu0 %v3635
    %v3777 = vpop.f32.mrf.mxu0
    %v3778 = vadd.f32 %v3713, %v3777
    %3779 = vmatmul.f32.gmra.mxu0 %v3639
    %v3780 = vpop.f32.mrf.mxu0
    %v3781 = vadd.f32 %v3716, %v3780
    %3782 = vmatmul.f32.gmra.mxu0 %v3643
    %v3783 = vpop.f32.mrf.mxu0
    %v3784 = vadd.f32 %v3719, %v3783
    %3785 = vmatmul.f32.gmra.mxu0 %v3647
    %v3786 = vpop.f32.mrf.mxu0
    %v3787 = vadd.f32 %v3722, %v3786
    %3788 = vmatmul.f32.gmra.mxu0 %v3651
    %v3789 = vpop.f32.mrf.mxu0
    %v3790 = vadd.f32 %v3725, %v3789
    %3791 = vmatmul.f32.gmra.mxu0 %v3655
    %v3792 = vpop.f32.mrf.mxu0
    %v3793 = vadd.f32 %v3728, %v3792
    %3794 = vmatmul.f32.gmra.mxu0 %v3659
    %v3795 = vpop.f32.mrf.mxu0
    %v3796 = vadd.f32 %v3731, %v3795
    %3797 = vmatmul.f32.gmra.mxu0 %v3663
    %v3798 = vpop.f32.mrf.mxu0
    %v3799 = vadd.f32 %v3734, %v3798
    %3800 = vmatmul.f32.gmra.mxu0 %v3667
    %v3801 = vpop.f32.mrf.mxu0
    %v3802 = vadd.f32 %v3737, %v3801
    %3803 = vmatmul.f32.gmra.mxu0 %v3671
    %v3804 = vpop.f32.mrf.mxu0
    %v3805 = vadd.f32 %v3740, %v3804
    %3806 = vmatmul.f32.gmra.mxu0 %v3675
    %v3807 = vpop.f32.mrf.mxu0
    %v3808 = vadd.f32 %v3743, %v3807
    %3809 = vmatmul.f32.gmra.mxu0 %v3679
    %v3810 = vpop.f32.mrf.mxu0
    %v3811 = vadd.f32 %v3746, %v3810
    %3812 = vmatmul.f32.gmra.mxu0 %v3683
    %v3813 = vpop.f32.mrf.mxu0
    %v3814 = vadd.f32 %v3749, %v3813
    %3815 = vdwg.mxu0
    %3816 = vmatpush.msra.mxu0 %v423
    %3817 = vmatpush.msra.mxu0 %v422
    %3818 = vmatpush.msra.mxu0 %v421
    %3819 = vmatpush.msra.mxu0 %v420
    %3820 = vmatpush.msra.mxu0 %v419
    %3821 = vmatpush.msra.mxu0 %v418
    %3822 = vmatpush.msra.mxu0 %v417
    %3823 = vmatpush.msra.mxu0 %v416
    %3824 = vmatpush.msra.mxu0 %v415
    %3825 = vmatpush.msra.mxu0 %v414
    %3826 = vmatpush.msra.mxu0 %v413
    %3827 = vmatpush.msra.mxu0 %v412
    %3828 = vmatpush.msra.mxu0 %v411
    %3829 = vmatpush.msra.mxu0 %v410
    %3830 = vmatpush.msra.mxu0 %v409
    %3831 = vmatpush.msra.mxu0 %v408
    %3832 = vmatmul.f32.gmra.mxu0 %v3624
    %v3833 = vpop.f32.mrf.mxu0
    %v3834 = vadd.f32 %v3769, %v3833
    %3835 = vmatmul.f32.gmra.mxu0 %v3628
    %v3836 = vpop.f32.mrf.mxu0
    %v3837 = vadd.f32 %v3772, %v3836
    %3838 = vmatmul.f32.gmra.mxu0 %v3632
    %v3839 = vpop.f32.mrf.mxu0
    %v3840 = vadd.f32 %v3775, %v3839
    %3841 = vmatmul.f32.gmra.mxu0 %v3636
    %v3842 = vpop.f32.mrf.mxu0
    %v3843 = vadd.f32 %v3778, %v3842
    %3844 = vmatmul.f32.gmra.mxu0 %v3640
    %v3845 = vpop.f32.mrf.mxu0
    %v3846 = vadd.f32 %v3781, %v3845
    %3847 = vmatmul.f32.gmra.mxu0 %v3644
    %v3848 = vpop.f32.mrf.mxu0
    %v3849 = vadd.f32 %v3784, %v3848
    %3850 = vmatmul.f32.gmra.mxu0 %v3648
    %v3851 = vpop.f32.mrf.mxu0
    %v3852 = vadd.f32 %v3787, %v3851
    %3853 = vmatmul.f32.gmra.mxu0 %v3652
    %v3854 = vpop.f32.mrf.mxu0
    %v3855 = vadd.f32 %v3790, %v3854
    %3856 = vmatmul.f32.gmra.mxu0 %v3656
    %v3857 = vpop.f32.mrf.mxu0
    %v3858 = vadd.f32 %v3793, %v3857
    %3859 = vmatmul.f32.gmra.mxu0 %v3660
    %v3860 = vpop.f32.mrf.mxu0
    %v3861 = vadd.f32 %v3796, %v3860
    %3862 = vmatmul.f32.gmra.mxu0 %v3664
    %v3863 = vpop.f32.mrf.mxu0
    %v3864 = vadd.f32 %v3799, %v3863
    %3865 = vmatmul.f32.gmra.mxu0 %v3668
    %v3866 = vpop.f32.mrf.mxu0
    %v3867 = vadd.f32 %v3802, %v3866
    %3868 = vmatmul.f32.gmra.mxu0 %v3672
    %v3869 = vpop.f32.mrf.mxu0
    %v3870 = vadd.f32 %v3805, %v3869
    %3871 = vmatmul.f32.gmra.mxu0 %v3676
    %v3872 = vpop.f32.mrf.mxu0
    %v3873 = vadd.f32 %v3808, %v3872
    %3874 = vmatmul.f32.gmra.mxu0 %v3680
    %v3875 = vpop.f32.mrf.mxu0
    %v3876 = vadd.f32 %v3811, %v3875
    %3877 = vmatmul.f32.gmra.mxu0 %v3684
    %v3878 = vpop.f32.mrf.mxu0
    %v3879 = vadd.f32 %v3814, %v3878
    %3880 = vdwg.mxu0
    %3881 = vmatpush.msra.mxu0 %v439
    %3882 = vmatpush.msra.mxu0 %v438
    %3883 = vmatpush.msra.mxu0 %v437
    %3884 = vmatpush.msra.mxu0 %v436
    %3885 = vmatpush.msra.mxu0 %v435
    %3886 = vmatpush.msra.mxu0 %v434
    %3887 = vmatpush.msra.mxu0 %v433
    %3888 = vmatpush.msra.mxu0 %v432
    %3889 = vmatpush.msra.mxu0 %v431
    %3890 = vmatpush.msra.mxu0 %v430
    %3891 = vmatpush.msra.mxu0 %v429
    %3892 = vmatpush.msra.mxu0 %v428
    %3893 = vmatpush.msra.mxu0 %v427
    %3894 = vmatpush.msra.mxu0 %v426
    %3895 = vmatpush.msra.mxu0 %v425
    %3896 = vmatpush.msra.mxu0 %v424
    %3897 = vmatmul.f32.gmra.mxu0 %v3625
    %v3898 = vpop.f32.mrf.mxu0
    %v3899 = vadd.f32 %v3834, %v3898
    %3900 = vmatmul.f32.gmra.mxu0 %v3629
    %v3901 = vpop.f32.mrf.mxu0
    %v3902 = vadd.f32 %v3837, %v3901
    %3903 = vmatmul.f32.gmra.mxu0 %v3633
    %v3904 = vpop.f32.mrf.mxu0
    %v3905 = vadd.f32 %v3840, %v3904
    %3906 = vmatmul.f32.gmra.mxu0 %v3637
    %v3907 = vpop.f32.mrf.mxu0
    %v3908 = vadd.f32 %v3843, %v3907
    %3909 = vmatmul.f32.gmra.mxu0 %v3641
    %v3910 = vpop.f32.mrf.mxu0
    %v3911 = vadd.f32 %v3846, %v3910
    %3912 = vmatmul.f32.gmra.mxu0 %v3645
    %v3913 = vpop.f32.mrf.mxu0
    %v3914 = vadd.f32 %v3849, %v3913
    %3915 = vmatmul.f32.gmra.mxu0 %v3649
    %v3916 = vpop.f32.mrf.mxu0
    %v3917 = vadd.f32 %v3852, %v3916
    %3918 = vmatmul.f32.gmra.mxu0 %v3653
    %v3919 = vpop.f32.mrf.mxu0
    %v3920 = vadd.f32 %v3855, %v3919
    %3921 = vmatmul.f32.gmra.mxu0 %v3657
    %v3922 = vpop.f32.mrf.mxu0
    %v3923 = vadd.f32 %v3858, %v3922
    %3924 = vmatmul.f32.gmra.mxu0 %v3661
    %v3925 = vpop.f32.mrf.mxu0
    %v3926 = vadd.f32 %v3861, %v3925
    %3927 = vmatmul.f32.gmra.mxu0 %v3665
    %v3928 = vpop.f32.mrf.mxu0
    %v3929 = vadd.f32 %v3864, %v3928
    %3930 = vmatmul.f32.gmra.mxu0 %v3669
    %v3931 = vpop.f32.mrf.mxu0
    %v3932 = vadd.f32 %v3867, %v3931
    %3933 = vmatmul.f32.gmra.mxu0 %v3673
    %v3934 = vpop.f32.mrf.mxu0
    %v3935 = vadd.f32 %v3870, %v3934
    %3936 = vmatmul.f32.gmra.mxu0 %v3677
    %v3937 = vpop.f32.mrf.mxu0
    %v3938 = vadd.f32 %v3873, %v3937
    %3939 = vmatmul.f32.gmra.mxu0 %v3681
    %v3940 = vpop.f32.mrf.mxu0
    %v3941 = vadd.f32 %v3876, %v3940
    %3942 = vmatmul.f32.gmra.mxu0 %v3685
    %v3943 = vpop.f32.mrf.mxu0
    %v3944 = vadd.f32 %v3879, %v3943
    %3945 = vdwg.mxu0
    %s3946 = scalar_lea.vmem [#allocation4], 28
    %v3947 = vld [vmem:[%s3946] sm:$0x7]
    %v3949 = vsel %vm1092, %v3899, 0
    %v3952 = vsel %vm1092, %v3902, 0
    %v3955 = vsel %vm1092, %v3905, 0
    %v3958 = vsel %vm1092, %v3908, 0
    %v3961 = vsel %vm1092, %v3911, 0
    %v3964 = vsel %vm1092, %v3914, 0
    %v3967 = vsel %vm1092, %v3917, 0
    %v3970 = vsel %vm1092, %v3920, 0
    %v3973 = vsel %vm1092, %v3923, 0
    %v3976 = vsel %vm1092, %v3926, 0
    %v3979 = vsel %vm1092, %v3929, 0
    %v3982 = vsel %vm1092, %v3932, 0
    %v3985 = vsel %vm1092, %v3935, 0
    %v3988 = vsel %vm1092, %v3938, 0
    %v3991 = vsel %vm1092, %v3941, 0
    %v3994 = vsel %vm1092, %v3944, 0
    %v3997 = vsel %vm1141, %v3947, 0
    %3999 = vmatpush.msra.mxu0 0.0
    %4000 = vmatpush.msra.mxu0 0.0
    %4001 = vmatpush.msra.mxu0 0.0
    %4002 = vmatpush.msra.mxu0 0.0
    %4003 = vmatpush.msra.mxu0 0.0
    %4004 = vmatpush.msra.mxu0 0.0
    %4005 = vmatpush.msra.mxu0 0.0
    %4006 = vmatpush.msra.mxu0 0.0
    %4007 = vmatpush.msra.mxu0 0.0
    %4008 = vmatpush.msra.mxu0 0.0
    %4009 = vmatpush.msra.mxu0 0.0
    %4010 = vmatpush.msra.mxu0 0.0
    %4011 = vmatpush.msra.mxu0 0.0
    %4012 = vmatpush.msra.mxu0 0.0
    %4013 = vmatpush.msra.mxu0 0.0
    %4014 = vmatpush.msra.mxu0 %v3997
    %4015 = vmatmul.f32.gmra.mxu0 %v3949
    %v4016 = vpop.f32.mrf.mxu0
    %v4017 = vadd.f32 0.0, %v4016
    %4018 = vmatmul.f32.gmra.mxu0 %v3952
    %v4019 = vpop.f32.mrf.mxu0
    %v4020 = vadd.f32 0.0, %v4019
    %4021 = vmatmul.f32.gmra.mxu0 %v3955
    %v4022 = vpop.f32.mrf.mxu0
    %v4023 = vadd.f32 0.0, %v4022
    %4024 = vmatmul.f32.gmra.mxu0 %v3958
    %v4025 = vpop.f32.mrf.mxu0
    %v4026 = vadd.f32 0.0, %v4025
    %4027 = vmatmul.f32.gmra.mxu0 %v3961
    %v4028 = vpop.f32.mrf.mxu0
    %v4029 = vadd.f32 0.0, %v4028
    %4030 = vmatmul.f32.gmra.mxu0 %v3964
    %v4031 = vpop.f32.mrf.mxu0
    %v4032 = vadd.f32 0.0, %v4031
    %4033 = vmatmul.f32.gmra.mxu0 %v3967
    %v4034 = vpop.f32.mrf.mxu0
    %v4035 = vadd.f32 0.0, %v4034
    %4036 = vmatmul.f32.gmra.mxu0 %v3970
    %v4037 = vpop.f32.mrf.mxu0
    %v4038 = vadd.f32 0.0, %v4037
    %4039 = vmatmul.f32.gmra.mxu0 %v3973
    %v4040 = vpop.f32.mrf.mxu0
    %v4041 = vadd.f32 0.0, %v4040
    %4042 = vmatmul.f32.gmra.mxu0 %v3976
    %v4043 = vpop.f32.mrf.mxu0
    %v4044 = vadd.f32 0.0, %v4043
    %4045 = vmatmul.f32.gmra.mxu0 %v3979
    %v4046 = vpop.f32.mrf.mxu0
    %v4047 = vadd.f32 0.0, %v4046
    %4048 = vmatmul.f32.gmra.mxu0 %v3982
    %v4049 = vpop.f32.mrf.mxu0
    %v4050 = vadd.f32 0.0, %v4049
    %4051 = vmatmul.f32.gmra.mxu0 %v3985
    %v4052 = vpop.f32.mrf.mxu0
    %v4053 = vadd.f32 0.0, %v4052
    %4054 = vmatmul.f32.gmra.mxu0 %v3988
    %v4055 = vpop.f32.mrf.mxu0
    %v4056 = vadd.f32 0.0, %v4055
    %4057 = vmatmul.f32.gmra.mxu0 %v3991
    %v4058 = vpop.f32.mrf.mxu0
    %v4059 = vadd.f32 0.0, %v4058
    %4060 = vmatmul.f32.gmra.mxu0 %v3994
    %v4061 = vpop.f32.mrf.mxu0
    %v4062 = vadd.f32 0.0, %v4061
    %4063 = vdwg.mxu0
    %v4064 = vadd.f32 %v3605, %v4017
    %v4065 = vadd.f32 %v3606, %v4020
    %v4066 = vadd.f32 %v3607, %v4023
    %v4067 = vadd.f32 %v3608, %v4026
    %v4068 = vadd.f32 %v3609, %v4029
    %v4069 = vadd.f32 %v3610, %v4032
    %v4070 = vadd.f32 %v3611, %v4035
    %v4071 = vadd.f32 %v3612, %v4038
    %v4072 = vadd.f32 %v3613, %v4041
    %v4073 = vadd.f32 %v3614, %v4044
    %v4074 = vadd.f32 %v3615, %v4047
    %v4075 = vadd.f32 %v3616, %v4050
    %v4076 = vadd.f32 %v3617, %v4053
    %v4077 = vadd.f32 %v3618, %v4056
    %v4078 = vadd.f32 %v3619, %v4059
    %v4079 = vadd.f32 %v3620, %v4062
    %s4080 = scalar_lea.vmem [#allocation2], 4096
    %v4081 = vld [vmem:[%s4080] sm:$0xff]
    %v4082 = vld [vmem:[%s4080 + $0x8] sm:$0xff]
    %v4083 = vld [vmem:[%s4080 + $0x10] sm:$0xff]
    %v4084 = vld [vmem:[%s4080 + $0x18] sm:$0xff]
    %v4085 = vld [vmem:[%s4080 + $0x20] sm:$0xff]
    %v4086 = vld [vmem:[%s4080 + $0x28] sm:$0xff]
    %v4087 = vld [vmem:[%s4080 + $0x30] sm:$0xff]
    %v4088 = vld [vmem:[%s4080 + $0x38] sm:$0xff]
    %v4089 = vld [vmem:[%s4080 + $0x40] sm:$0xff]
    %v4090 = vld [vmem:[%s4080 + $0x48] sm:$0xff]
    %v4091 = vld [vmem:[%s4080 + $0x50] sm:$0xff]
    %v4092 = vld [vmem:[%s4080 + $0x58] sm:$0xff]
    %v4093 = vld [vmem:[%s4080 + $0x60] sm:$0xff]
    %v4094 = vld [vmem:[%s4080 + $0x68] sm:$0xff]
    %v4095 = vld [vmem:[%s4080 + $0x70] sm:$0xff]
    %v4096 = vld [vmem:[%s4080 + $0x78] sm:$0xff]
    %v4097 = vld [vmem:[%s4080 + $0x80] sm:$0xff]
    %v4098 = vld [vmem:[%s4080 + $0x88] sm:$0xff]
    %v4099 = vld [vmem:[%s4080 + $0x90] sm:$0xff]
    %v4100 = vld [vmem:[%s4080 + $0x98] sm:$0xff]
    %v4101 = vld [vmem:[%s4080 + $0xa0] sm:$0xff]
    %v4102 = vld [vmem:[%s4080 + $0xa8] sm:$0xff]
    %v4103 = vld [vmem:[%s4080 + $0xb0] sm:$0xff]
    %v4104 = vld [vmem:[%s4080 + $0xb8] sm:$0xff]
    %v4105 = vld [vmem:[%s4080 + $0xc0] sm:$0xff]
    %v4106 = vld [vmem:[%s4080 + $0xc8] sm:$0xff]
    %v4107 = vld [vmem:[%s4080 + $0xd0] sm:$0xff]
    %v4108 = vld [vmem:[%s4080 + $0xd8] sm:$0xff]
    %v4109 = vld [vmem:[%s4080 + $0xe0] sm:$0xff]
    %v4110 = vld [vmem:[%s4080 + $0xe8] sm:$0xff]
    %v4111 = vld [vmem:[%s4080 + $0xf0] sm:$0xff]
    %v4112 = vld [vmem:[%s4080 + $0xf8] sm:$0xff]
    %v4113 = vld [vmem:[%s4080 + $0x100] sm:$0xff]
    %v4114 = vld [vmem:[%s4080 + $0x108] sm:$0xff]
    %v4115 = vld [vmem:[%s4080 + $0x110] sm:$0xff]
    %v4116 = vld [vmem:[%s4080 + $0x118] sm:$0xff]
    %v4117 = vld [vmem:[%s4080 + $0x120] sm:$0xff]
    %v4118 = vld [vmem:[%s4080 + $0x128] sm:$0xff]
    %v4119 = vld [vmem:[%s4080 + $0x130] sm:$0xff]
    %v4120 = vld [vmem:[%s4080 + $0x138] sm:$0xff]
    %v4121 = vld [vmem:[%s4080 + $0x140] sm:$0xff]
    %v4122 = vld [vmem:[%s4080 + $0x148] sm:$0xff]
    %v4123 = vld [vmem:[%s4080 + $0x150] sm:$0xff]
    %v4124 = vld [vmem:[%s4080 + $0x158] sm:$0xff]
    %v4125 = vld [vmem:[%s4080 + $0x160] sm:$0xff]
    %v4126 = vld [vmem:[%s4080 + $0x168] sm:$0xff]
    %v4127 = vld [vmem:[%s4080 + $0x170] sm:$0xff]
    %v4128 = vld [vmem:[%s4080 + $0x178] sm:$0xff]
    %v4129 = vld [vmem:[%s4080 + $0x180] sm:$0xff]
    %v4130 = vld [vmem:[%s4080 + $0x188] sm:$0xff]
    %v4131 = vld [vmem:[%s4080 + $0x190] sm:$0xff]
    %v4132 = vld [vmem:[%s4080 + $0x198] sm:$0xff]
    %v4133 = vld [vmem:[%s4080 + $0x1a0] sm:$0xff]
    %v4134 = vld [vmem:[%s4080 + $0x1a8] sm:$0xff]
    %v4135 = vld [vmem:[%s4080 + $0x1b0] sm:$0xff]
    %v4136 = vld [vmem:[%s4080 + $0x1b8] sm:$0xff]
    %v4137 = vld [vmem:[%s4080 + $0x1c0] sm:$0xff]
    %v4138 = vld [vmem:[%s4080 + $0x1c8] sm:$0xff]
    %v4139 = vld [vmem:[%s4080 + $0x1d0] sm:$0xff]
    %v4140 = vld [vmem:[%s4080 + $0x1d8] sm:$0xff]
    %v4141 = vld [vmem:[%s4080 + $0x1e0] sm:$0xff]
    %v4142 = vld [vmem:[%s4080 + $0x1e8] sm:$0xff]
    %v4143 = vld [vmem:[%s4080 + $0x1f0] sm:$0xff]
    %v4144 = vld [vmem:[%s4080 + $0x1f8] sm:$0xff]
    %4145 = vmatpush.msra.mxu0 %v391
    %4146 = vmatpush.msra.mxu0 %v390
    %4147 = vmatpush.msra.mxu0 %v389
    %4148 = vmatpush.msra.mxu0 %v388
    %4149 = vmatpush.msra.mxu0 %v387
    %4150 = vmatpush.msra.mxu0 %v386
    %4151 = vmatpush.msra.mxu0 %v385
    %4152 = vmatpush.msra.mxu0 %v384
    %4153 = vmatpush.msra.mxu0 %v383
    %4154 = vmatpush.msra.mxu0 %v382
    %4155 = vmatpush.msra.mxu0 %v381
    %4156 = vmatpush.msra.mxu0 %v380
    %4157 = vmatpush.msra.mxu0 %v379
    %4158 = vmatpush.msra.mxu0 %v378
    %4159 = vmatpush.msra.mxu0 %v377
    %4160 = vmatpush.msra.mxu0 %v376
    %4161 = vmatmul.f32.gmra.mxu0 %v4081
    %v4162 = vpop.f32.mrf.mxu0
    %v4163 = vadd.f32 0.0, %v4162
    %4164 = vmatmul.f32.gmra.mxu0 %v4085
    %v4165 = vpop.f32.mrf.mxu0
    %v4166 = vadd.f32 0.0, %v4165
    %4167 = vmatmul.f32.gmra.mxu0 %v4089
    %v4168 = vpop.f32.mrf.mxu0
    %v4169 = vadd.f32 0.0, %v4168
    %4170 = vmatmul.f32.gmra.mxu0 %v4093
    %v4171 = vpop.f32.mrf.mxu0
    %v4172 = vadd.f32 0.0, %v4171
    %4173 = vmatmul.f32.gmra.mxu0 %v4097
    %v4174 = vpop.f32.mrf.mxu0
    %v4175 = vadd.f32 0.0, %v4174
    %4176 = vmatmul.f32.gmra.mxu0 %v4101
    %v4177 = vpop.f32.mrf.mxu0
    %v4178 = vadd.f32 0.0, %v4177
    %4179 = vmatmul.f32.gmra.mxu0 %v4105
    %v4180 = vpop.f32.mrf.mxu0
    %v4181 = vadd.f32 0.0, %v4180
    %4182 = vmatmul.f32.gmra.mxu0 %v4109
    %v4183 = vpop.f32.mrf.mxu0
    %v4184 = vadd.f32 0.0, %v4183
    %4185 = vmatmul.f32.gmra.mxu0 %v4113
    %v4186 = vpop.f32.mrf.mxu0
    %v4187 = vadd.f32 0.0, %v4186
    %4188 = vmatmul.f32.gmra.mxu0 %v4117
    %v4189 = vpop.f32.mrf.mxu0
    %v4190 = vadd.f32 0.0, %v4189
    %4191 = vmatmul.f32.gmra.mxu0 %v4121
    %v4192 = vpop.f32.mrf.mxu0
    %v4193 = vadd.f32 0.0, %v4192
    %4194 = vmatmul.f32.gmra.mxu0 %v4125
    %v4195 = vpop.f32.mrf.mxu0
    %v4196 = vadd.f32 0.0, %v4195
    %4197 = vmatmul.f32.gmra.mxu0 %v4129
    %v4198 = vpop.f32.mrf.mxu0
    %v4199 = vadd.f32 0.0, %v4198
    %4200 = vmatmul.f32.gmra.mxu0 %v4133
    %v4201 = vpop.f32.mrf.mxu0
    %v4202 = vadd.f32 0.0, %v4201
    %4203 = vmatmul.f32.gmra.mxu0 %v4137
    %v4204 = vpop.f32.mrf.mxu0
    %v4205 = vadd.f32 0.0, %v4204
    %4206 = vmatmul.f32.gmra.mxu0 %v4141
    %v4207 = vpop.f32.mrf.mxu0
    %v4208 = vadd.f32 0.0, %v4207
    %4209 = vdwg.mxu0
    %4210 = vmatpush.msra.mxu0 %v407
    %4211 = vmatpush.msra.mxu0 %v406
    %4212 = vmatpush.msra.mxu0 %v405
    %4213 = vmatpush.msra.mxu0 %v404
    %4214 = vmatpush.msra.mxu0 %v403
    %4215 = vmatpush.msra.mxu0 %v402
    %4216 = vmatpush.msra.mxu0 %v401
    %4217 = vmatpush.msra.mxu0 %v400
    %4218 = vmatpush.msra.mxu0 %v399
    %4219 = vmatpush.msra.mxu0 %v398
    %4220 = vmatpush.msra.mxu0 %v397
    %4221 = vmatpush.msra.mxu0 %v396
    %4222 = vmatpush.msra.mxu0 %v395
    %4223 = vmatpush.msra.mxu0 %v394
    %4224 = vmatpush.msra.mxu0 %v393
    %4225 = vmatpush.msra.mxu0 %v392
    %4226 = vmatmul.f32.gmra.mxu0 %v4082
    %v4227 = vpop.f32.mrf.mxu0
    %v4228 = vadd.f32 %v4163, %v4227
    %4229 = vmatmul.f32.gmra.mxu0 %v4086
    %v4230 = vpop.f32.mrf.mxu0
    %v4231 = vadd.f32 %v4166, %v4230
    %4232 = vmatmul.f32.gmra.mxu0 %v4090
    %v4233 = vpop.f32.mrf.mxu0
    %v4234 = vadd.f32 %v4169, %v4233
    %4235 = vmatmul.f32.gmra.mxu0 %v4094
    %v4236 = vpop.f32.mrf.mxu0
    %v4237 = vadd.f32 %v4172, %v4236
    %4238 = vmatmul.f32.gmra.mxu0 %v4098
    %v4239 = vpop.f32.mrf.mxu0
    %v4240 = vadd.f32 %v4175, %v4239
    %4241 = vmatmul.f32.gmra.mxu0 %v4102
    %v4242 = vpop.f32.mrf.mxu0
    %v4243 = vadd.f32 %v4178, %v4242
    %4244 = vmatmul.f32.gmra.mxu0 %v4106
    %v4245 = vpop.f32.mrf.mxu0
    %v4246 = vadd.f32 %v4181, %v4245
    %4247 = vmatmul.f32.gmra.mxu0 %v4110
    %v4248 = vpop.f32.mrf.mxu0
    %v4249 = vadd.f32 %v4184, %v4248
    %4250 = vmatmul.f32.gmra.mxu0 %v4114
    %v4251 = vpop.f32.mrf.mxu0
    %v4252 = vadd.f32 %v4187, %v4251
    %4253 = vmatmul.f32.gmra.mxu0 %v4118
    %v4254 = vpop.f32.mrf.mxu0
    %v4255 = vadd.f32 %v4190, %v4254
    %4256 = vmatmul.f32.gmra.mxu0 %v4122
    %v4257 = vpop.f32.mrf.mxu0
    %v4258 = vadd.f32 %v4193, %v4257
    %4259 = vmatmul.f32.gmra.mxu0 %v4126
    %v4260 = vpop.f32.mrf.mxu0
    %v4261 = vadd.f32 %v4196, %v4260
    %4262 = vmatmul.f32.gmra.mxu0 %v4130
    %v4263 = vpop.f32.mrf.mxu0
    %v4264 = vadd.f32 %v4199, %v4263
    %4265 = vmatmul.f32.gmra.mxu0 %v4134
    %v4266 = vpop.f32.mrf.mxu0
    %v4267 = vadd.f32 %v4202, %v4266
    %4268 = vmatmul.f32.gmra.mxu0 %v4138
    %v4269 = vpop.f32.mrf.mxu0
    %v4270 = vadd.f32 %v4205, %v4269
    %4271 = vmatmul.f32.gmra.mxu0 %v4142
    %v4272 = vpop.f32.mrf.mxu0
    %v4273 = vadd.f32 %v4208, %v4272
    %4274 = vdwg.mxu0
    %4275 = vmatpush.msra.mxu0 %v423
    %4276 = vmatpush.msra.mxu0 %v422
    %4277 = vmatpush.msra.mxu0 %v421
    %4278 = vmatpush.msra.mxu0 %v420
    %4279 = vmatpush.msra.mxu0 %v419
    %4280 = vmatpush.msra.mxu0 %v418
    %4281 = vmatpush.msra.mxu0 %v417
    %4282 = vmatpush.msra.mxu0 %v416
    %4283 = vmatpush.msra.mxu0 %v415
    %4284 = vmatpush.msra.mxu0 %v414
    %4285 = vmatpush.msra.mxu0 %v413
    %4286 = vmatpush.msra.mxu0 %v412
    %4287 = vmatpush.msra.mxu0 %v411
    %4288 = vmatpush.msra.mxu0 %v410
    %4289 = vmatpush.msra.mxu0 %v409
    %4290 = vmatpush.msra.mxu0 %v408
    %4291 = vmatmul.f32.gmra.mxu0 %v4083
    %v4292 = vpop.f32.mrf.mxu0
    %v4293 = vadd.f32 %v4228, %v4292
    %4294 = vmatmul.f32.gmra.mxu0 %v4087
    %v4295 = vpop.f32.mrf.mxu0
    %v4296 = vadd.f32 %v4231, %v4295
    %4297 = vmatmul.f32.gmra.mxu0 %v4091
    %v4298 = vpop.f32.mrf.mxu0
    %v4299 = vadd.f32 %v4234, %v4298
    %4300 = vmatmul.f32.gmra.mxu0 %v4095
    %v4301 = vpop.f32.mrf.mxu0
    %v4302 = vadd.f32 %v4237, %v4301
    %4303 = vmatmul.f32.gmra.mxu0 %v4099
    %v4304 = vpop.f32.mrf.mxu0
    %v4305 = vadd.f32 %v4240, %v4304
    %4306 = vmatmul.f32.gmra.mxu0 %v4103
    %v4307 = vpop.f32.mrf.mxu0
    %v4308 = vadd.f32 %v4243, %v4307
    %4309 = vmatmul.f32.gmra.mxu0 %v4107
    %v4310 = vpop.f32.mrf.mxu0
    %v4311 = vadd.f32 %v4246, %v4310
    %4312 = vmatmul.f32.gmra.mxu0 %v4111
    %v4313 = vpop.f32.mrf.mxu0
    %v4314 = vadd.f32 %v4249, %v4313
    %4315 = vmatmul.f32.gmra.mxu0 %v4115
    %v4316 = vpop.f32.mrf.mxu0
    %v4317 = vadd.f32 %v4252, %v4316
    %4318 = vmatmul.f32.gmra.mxu0 %v4119
    %v4319 = vpop.f32.mrf.mxu0
    %v4320 = vadd.f32 %v4255, %v4319
    %4321 = vmatmul.f32.gmra.mxu0 %v4123
    %v4322 = vpop.f32.mrf.mxu0
    %v4323 = vadd.f32 %v4258, %v4322
    %4324 = vmatmul.f32.gmra.mxu0 %v4127
    %v4325 = vpop.f32.mrf.mxu0
    %v4326 = vadd.f32 %v4261, %v4325
    %4327 = vmatmul.f32.gmra.mxu0 %v4131
    %v4328 = vpop.f32.mrf.mxu0
    %v4329 = vadd.f32 %v4264, %v4328
    %4330 = vmatmul.f32.gmra.mxu0 %v4135
    %v4331 = vpop.f32.mrf.mxu0
    %v4332 = vadd.f32 %v4267, %v4331
    %4333 = vmatmul.f32.gmra.mxu0 %v4139
    %v4334 = vpop.f32.mrf.mxu0
    %v4335 = vadd.f32 %v4270, %v4334
    %4336 = vmatmul.f32.gmra.mxu0 %v4143
    %v4337 = vpop.f32.mrf.mxu0
    %v4338 = vadd.f32 %v4273, %v4337
    %4339 = vdwg.mxu0
    %4340 = vmatpush.msra.mxu0 %v439
    %4341 = vmatpush.msra.mxu0 %v438
    %4342 = vmatpush.msra.mxu0 %v437
    %4343 = vmatpush.msra.mxu0 %v436
    %4344 = vmatpush.msra.mxu0 %v435
    %4345 = vmatpush.msra.mxu0 %v434
    %4346 = vmatpush.msra.mxu0 %v433
    %4347 = vmatpush.msra.mxu0 %v432
    %4348 = vmatpush.msra.mxu0 %v431
    %4349 = vmatpush.msra.mxu0 %v430
    %4350 = vmatpush.msra.mxu0 %v429
    %4351 = vmatpush.msra.mxu0 %v428
    %4352 = vmatpush.msra.mxu0 %v427
    %4353 = vmatpush.msra.mxu0 %v426
    %4354 = vmatpush.msra.mxu0 %v425
    %4355 = vmatpush.msra.mxu0 %v424
    %4356 = vmatmul.f32.gmra.mxu0 %v4084
    %v4357 = vpop.f32.mrf.mxu0
    %v4358 = vadd.f32 %v4293, %v4357
    %4359 = vmatmul.f32.gmra.mxu0 %v4088
    %v4360 = vpop.f32.mrf.mxu0
    %v4361 = vadd.f32 %v4296, %v4360
    %4362 = vmatmul.f32.gmra.mxu0 %v4092
    %v4363 = vpop.f32.mrf.mxu0
    %v4364 = vadd.f32 %v4299, %v4363
    %4365 = vmatmul.f32.gmra.mxu0 %v4096
    %v4366 = vpop.f32.mrf.mxu0
    %v4367 = vadd.f32 %v4302, %v4366
    %4368 = vmatmul.f32.gmra.mxu0 %v4100
    %v4369 = vpop.f32.mrf.mxu0
    %v4370 = vadd.f32 %v4305, %v4369
    %4371 = vmatmul.f32.gmra.mxu0 %v4104
    %v4372 = vpop.f32.mrf.mxu0
    %v4373 = vadd.f32 %v4308, %v4372
    %4374 = vmatmul.f32.gmra.mxu0 %v4108
    %v4375 = vpop.f32.mrf.mxu0
    %v4376 = vadd.f32 %v4311, %v4375
    %4377 = vmatmul.f32.gmra.mxu0 %v4112
    %v4378 = vpop.f32.mrf.mxu0
    %v4379 = vadd.f32 %v4314, %v4378
    %4380 = vmatmul.f32.gmra.mxu0 %v4116
    %v4381 = vpop.f32.mrf.mxu0
    %v4382 = vadd.f32 %v4317, %v4381
    %4383 = vmatmul.f32.gmra.mxu0 %v4120
    %v4384 = vpop.f32.mrf.mxu0
    %v4385 = vadd.f32 %v4320, %v4384
    %4386 = vmatmul.f32.gmra.mxu0 %v4124
    %v4387 = vpop.f32.mrf.mxu0
    %v4388 = vadd.f32 %v4323, %v4387
    %4389 = vmatmul.f32.gmra.mxu0 %v4128
    %v4390 = vpop.f32.mrf.mxu0
    %v4391 = vadd.f32 %v4326, %v4390
    %4392 = vmatmul.f32.gmra.mxu0 %v4132
    %v4393 = vpop.f32.mrf.mxu0
    %v4394 = vadd.f32 %v4329, %v4393
    %4395 = vmatmul.f32.gmra.mxu0 %v4136
    %v4396 = vpop.f32.mrf.mxu0
    %v4397 = vadd.f32 %v4332, %v4396
    %4398 = vmatmul.f32.gmra.mxu0 %v4140
    %v4399 = vpop.f32.mrf.mxu0
    %v4400 = vadd.f32 %v4335, %v4399
    %4401 = vmatmul.f32.gmra.mxu0 %v4144
    %v4402 = vpop.f32.mrf.mxu0
    %v4403 = vadd.f32 %v4338, %v4402
    %4404 = vdwg.mxu0
    %s4405 = scalar_lea.vmem [#allocation4], 32
    %v4406 = vld [vmem:[%s4405] sm:$0x7]
    %v4408 = vsel %vm1092, %v4358, 0
    %v4411 = vsel %vm1092, %v4361, 0
    %v4414 = vsel %vm1092, %v4364, 0
    %v4417 = vsel %vm1092, %v4367, 0
    %v4420 = vsel %vm1092, %v4370, 0
    %v4423 = vsel %vm1092, %v4373, 0
    %v4426 = vsel %vm1092, %v4376, 0
    %v4429 = vsel %vm1092, %v4379, 0
    %v4432 = vsel %vm1092, %v4382, 0
    %v4435 = vsel %vm1092, %v4385, 0
    %v4438 = vsel %vm1092, %v4388, 0
    %v4441 = vsel %vm1092, %v4391, 0
    %v4444 = vsel %vm1092, %v4394, 0
    %v4447 = vsel %vm1092, %v4397, 0
    %v4450 = vsel %vm1092, %v4400, 0
    %v4453 = vsel %vm1092, %v4403, 0
    %v4456 = vsel %vm1141, %v4406, 0
    %4458 = vmatpush.msra.mxu0 0.0
    %4459 = vmatpush.msra.mxu0 0.0
    %4460 = vmatpush.msra.mxu0 0.0
    %4461 = vmatpush.msra.mxu0 0.0
    %4462 = vmatpush.msra.mxu0 0.0
    %4463 = vmatpush.msra.mxu0 0.0
    %4464 = vmatpush.msra.mxu0 0.0
    %4465 = vmatpush.msra.mxu0 0.0
    %4466 = vmatpush.msra.mxu0 0.0
    %4467 = vmatpush.msra.mxu0 0.0
    %4468 = vmatpush.msra.mxu0 0.0
    %4469 = vmatpush.msra.mxu0 0.0
    %4470 = vmatpush.msra.mxu0 0.0
    %4471 = vmatpush.msra.mxu0 0.0
    %4472 = vmatpush.msra.mxu0 0.0
    %4473 = vmatpush.msra.mxu0 %v4456
    %4474 = vmatmul.f32.gmra.mxu0 %v4408
    %v4475 = vpop.f32.mrf.mxu0
    %v4476 = vadd.f32 0.0, %v4475
    %4477 = vmatmul.f32.gmra.mxu0 %v4411
    %v4478 = vpop.f32.mrf.mxu0
    %v4479 = vadd.f32 0.0, %v4478
    %4480 = vmatmul.f32.gmra.mxu0 %v4414
    %v4481 = vpop.f32.mrf.mxu0
    %v4482 = vadd.f32 0.0, %v4481
    %4483 = vmatmul.f32.gmra.mxu0 %v4417
    %v4484 = vpop.f32.mrf.mxu0
    %v4485 = vadd.f32 0.0, %v4484
    %4486 = vmatmul.f32.gmra.mxu0 %v4420
    %v4487 = vpop.f32.mrf.mxu0
    %v4488 = vadd.f32 0.0, %v4487
    %4489 = vmatmul.f32.gmra.mxu0 %v4423
    %v4490 = vpop.f32.mrf.mxu0
    %v4491 = vadd.f32 0.0, %v4490
    %4492 = vmatmul.f32.gmra.mxu0 %v4426
    %v4493 = vpop.f32.mrf.mxu0
    %v4494 = vadd.f32 0.0, %v4493
    %4495 = vmatmul.f32.gmra.mxu0 %v4429
    %v4496 = vpop.f32.mrf.mxu0
    %v4497 = vadd.f32 0.0, %v4496
    %4498 = vmatmul.f32.gmra.mxu0 %v4432
    %v4499 = vpop.f32.mrf.mxu0
    %v4500 = vadd.f32 0.0, %v4499
    %4501 = vmatmul.f32.gmra.mxu0 %v4435
    %v4502 = vpop.f32.mrf.mxu0
    %v4503 = vadd.f32 0.0, %v4502
    %4504 = vmatmul.f32.gmra.mxu0 %v4438
    %v4505 = vpop.f32.mrf.mxu0
    %v4506 = vadd.f32 0.0, %v4505
    %4507 = vmatmul.f32.gmra.mxu0 %v4441
    %v4508 = vpop.f32.mrf.mxu0
    %v4509 = vadd.f32 0.0, %v4508
    %4510 = vmatmul.f32.gmra.mxu0 %v4444
    %v4511 = vpop.f32.mrf.mxu0
    %v4512 = vadd.f32 0.0, %v4511
    %4513 = vmatmul.f32.gmra.mxu0 %v4447
    %v4514 = vpop.f32.mrf.mxu0
    %v4515 = vadd.f32 0.0, %v4514
    %4516 = vmatmul.f32.gmra.mxu0 %v4450
    %v4517 = vpop.f32.mrf.mxu0
    %v4518 = vadd.f32 0.0, %v4517
    %4519 = vmatmul.f32.gmra.mxu0 %v4453
    %v4520 = vpop.f32.mrf.mxu0
    %v4521 = vadd.f32 0.0, %v4520
    %4522 = vdwg.mxu0
    %v4523 = vadd.f32 %v4064, %v4476
    %v4524 = vadd.f32 %v4065, %v4479
    %v4525 = vadd.f32 %v4066, %v4482
    %v4526 = vadd.f32 %v4067, %v4485
    %v4527 = vadd.f32 %v4068, %v4488
    %v4528 = vadd.f32 %v4069, %v4491
    %v4529 = vadd.f32 %v4070, %v4494
    %v4530 = vadd.f32 %v4071, %v4497
    %v4531 = vadd.f32 %v4072, %v4500
    %v4532 = vadd.f32 %v4073, %v4503
    %v4533 = vadd.f32 %v4074, %v4506
    %v4534 = vadd.f32 %v4075, %v4509
    %v4535 = vadd.f32 %v4076, %v4512
    %v4536 = vadd.f32 %v4077, %v4515
    %v4537 = vadd.f32 %v4078, %v4518
    %v4538 = vadd.f32 %v4079, %v4521
    %vm4539 = vcmask 130048
    %v4540 = vsel %vm4539, %v4523, 0.0
    %v4541 = vsel %vm4539, %v4524, 0.0
    %v4542 = vadd.f32 %v4540, %v4541
    %v4543 = vsel %vm4539, %v4525, 0.0
    %v4544 = vadd.f32 %v4542, %v4543
    %v4545 = vsel %vm4539, %v4526, 0.0
    %v4546 = vadd.f32 %v4544, %v4545
    %v4547 = vsel %vm4539, %v4527, 0.0
    %v4548 = vadd.f32 %v4546, %v4547
    %v4549 = vsel %vm4539, %v4528, 0.0
    %v4550 = vadd.f32 %v4548, %v4549
    %v4551 = vsel %vm4539, %v4529, 0.0
    %v4552 = vadd.f32 %v4550, %v4551
    %v4553 = vsel %vm4539, %v4530, 0.0
    %v4554 = vadd.f32 %v4552, %v4553
    %v4555 = vsel %vm4539, %v4531, 0.0
    %v4556 = vadd.f32 %v4554, %v4555
    %v4557 = vsel %vm4539, %v4532, 0.0
    %v4558 = vadd.f32 %v4556, %v4557
    %v4559 = vsel %vm4539, %v4533, 0.0
    %v4560 = vadd.f32 %v4558, %v4559
    %v4561 = vsel %vm4539, %v4534, 0.0
    %v4562 = vadd.f32 %v4560, %v4561
    %v4563 = vsel %vm4539, %v4535, 0.0
    %v4564 = vadd.f32 %v4562, %v4563
    %v4565 = vsel %vm4539, %v4536, 0.0
    %v4566 = vadd.f32 %v4564, %v4565
    %v4567 = vsel %vm4539, %v4537, 0.0
    %v4568 = vadd.f32 %v4566, %v4567
    %v4569 = vsel %vm4539, %v4538, 0.0
    %v4570 = vadd.f32 %v4568, %v4569
    %v4571 = vrot.slane %v4570, 4
    %v4572 = vadd.f32 %v4570, %v4571
    %v4573 = vrot.slane %v4572, 2
    %v4574 = vadd.f32 %v4572, %v4573
    %v4575 = vrot.slane %v4574, 1
    %v4576 = vadd.f32 %v4574, %v4575
    %v4577 = vmul.f32 %v4576, 0.0078125
    %v4578 = vmul.f32 %v4523, %v4523
    %v4579 = vmul.f32 %v4524, %v4524
    %v4580 = vmul.f32 %v4525, %v4525
    %v4581 = vmul.f32 %v4526, %v4526
    %v4582 = vmul.f32 %v4527, %v4527
    %v4583 = vmul.f32 %v4528, %v4528
    %v4584 = vmul.f32 %v4529, %v4529
    %v4585 = vmul.f32 %v4530, %v4530
    %v4586 = vmul.f32 %v4531, %v4531
    %v4587 = vmul.f32 %v4532, %v4532
    %v4588 = vmul.f32 %v4533, %v4533
    %v4589 = vmul.f32 %v4534, %v4534
    %v4590 = vmul.f32 %v4535, %v4535
    %v4591 = vmul.f32 %v4536, %v4536
    %v4592 = vmul.f32 %v4537, %v4537
    %v4593 = vmul.f32 %v4538, %v4538
    %v4594 = vsel %vm4539, %v4578, 0.0
    %v4595 = vsel %vm4539, %v4579, 0.0
    %v4596 = vadd.f32 %v4594, %v4595
    %v4597 = vsel %vm4539, %v4580, 0.0
    %v4598 = vadd.f32 %v4596, %v4597
    %v4599 = vsel %vm4539, %v4581, 0.0
    %v4600 = vadd.f32 %v4598, %v4599
    %v4601 = vsel %vm4539, %v4582, 0.0
    %v4602 = vadd.f32 %v4600, %v4601
    %v4603 = vsel %vm4539, %v4583, 0.0
    %v4604 = vadd.f32 %v4602, %v4603
    %v4605 = vsel %vm4539, %v4584, 0.0
    %v4606 = vadd.f32 %v4604, %v4605
    %v4607 = vsel %vm4539, %v4585, 0.0
    %v4608 = vadd.f32 %v4606, %v4607
    %v4609 = vsel %vm4539, %v4586, 0.0
    %v4610 = vadd.f32 %v4608, %v4609
    %v4611 = vsel %vm4539, %v4587, 0.0
    %v4612 = vadd.f32 %v4610, %v4611
    %v4613 = vsel %vm4539, %v4588, 0.0
    %v4614 = vadd.f32 %v4612, %v4613
    %v4615 = vsel %vm4539, %v4589, 0.0
    %v4616 = vadd.f32 %v4614, %v4615
    %v4617 = vsel %vm4539, %v4590, 0.0
    %v4618 = vadd.f32 %v4616, %v4617
    %v4619 = vsel %vm4539, %v4591, 0.0
    %v4620 = vadd.f32 %v4618, %v4619
    %v4621 = vsel %vm4539, %v4592, 0.0
    %v4622 = vadd.f32 %v4620, %v4621
    %v4623 = vsel %vm4539, %v4593, 0.0
    %v4624 = vadd.f32 %v4622, %v4623
    %v4625 = vrot.slane %v4624, 4
    %v4626 = vadd.f32 %v4624, %v4625
    %v4627 = vrot.slane %v4626, 2
    %v4628 = vadd.f32 %v4626, %v4627
    %v4629 = vrot.slane %v4628, 1
    %v4630 = vadd.f32 %v4628, %v4629
    %v4631 = vmul.f32 %v4630, 0.0078125
    %v4632 = vmul.f32 %v4577, %v4577
    %v4633 = vsub.f32 %v4631, %v4632
    %v4634 = vmax.f32 %v4633, 0.0
    %v4635 = vld [vmem:[#allocation6] sm:$0x1]
    %v4636 = vadd.f32 %v4634, 1e-05
    %v4637 = vrsqrt.pop %v4636
    %v4638 = vmul.f32 %v4637, %v4636
    %v4639 = vmul.f32 %v4638, %v4637
    %v4640 = vmul.f32 0.5, %v4639
    %v4641 = vsub.f32 1.5, %v4640
    %v4642 = vmul.f32 %v4637, %v4641
    %vm4643 = vweird.f32 %v4636
    %vm4644 = vweird.f32 %v4637
    %vm4645 = vmor %vm4643, %vm4644
    %v4646 = vsel %vm4645, %v4637, %v4642
    %v4647 = vmul.f32 %v4635, %v4646
    %v4648 = vld [vmem:[#allocation7] sm:$0x1]
    %v4649 = vmul.f32 %v4577, %v4647
    %v4650 = vsub.f32 %v4648, %v4649
    %v4652 = vperm.slane %v4647, 0
    %v4654 = vmul.f32 %v4523, %v4652
    %v4655 = vmul.f32 %v4524, %v4652
    %v4656 = vmul.f32 %v4525, %v4652
    %v4657 = vmul.f32 %v4526, %v4652
    %v4658 = vmul.f32 %v4527, %v4652
    %v4659 = vmul.f32 %v4528, %v4652
    %v4660 = vmul.f32 %v4529, %v4652
    %v4661 = vmul.f32 %v4530, %v4652
    %v4662 = vmul.f32 %v4531, %v4652
    %v4663 = vmul.f32 %v4532, %v4652
    %v4664 = vmul.f32 %v4533, %v4652
    %v4665 = vmul.f32 %v4534, %v4652
    %v4666 = vmul.f32 %v4535, %v4652
    %v4667 = vmul.f32 %v4536, %v4652
    %v4668 = vmul.f32 %v4537, %v4652
    %v4669 = vmul.f32 %v4538, %v4652
    %v4671 = vperm.slane %v4650, 0
    %v4673 = vadd.f32 %v4654, %v4671
    %v4674 = vadd.f32 %v4655, %v4671
    %v4675 = vadd.f32 %v4656, %v4671
    %v4676 = vadd.f32 %v4657, %v4671
    %v4677 = vadd.f32 %v4658, %v4671
    %v4678 = vadd.f32 %v4659, %v4671
    %v4679 = vadd.f32 %v4660, %v4671
    %v4680 = vadd.f32 %v4661, %v4671
    %v4681 = vadd.f32 %v4662, %v4671
    %v4682 = vadd.f32 %v4663, %v4671
    %v4683 = vadd.f32 %v4664, %v4671
    %v4684 = vadd.f32 %v4665, %v4671
    %v4685 = vadd.f32 %v4666, %v4671
    %v4686 = vadd.f32 %v4667, %v4671
    %v4687 = vadd.f32 %v4668, %v4671
    %v4688 = vadd.f32 %v4669, %v4671
    %v4689 = vmul.f32 %v4673, 0.5
    %v4690 = vmul.f32 %v4674, 0.5
    %v4691 = vmul.f32 %v4675, 0.5
    %v4692 = vmul.f32 %v4676, 0.5
    %v4693 = vmul.f32 %v4677, 0.5
    %v4694 = vmul.f32 %v4678, 0.5
    %v4695 = vmul.f32 %v4679, 0.5
    %v4696 = vmul.f32 %v4680, 0.5
    %v4697 = vmul.f32 %v4681, 0.5
    %v4698 = vmul.f32 %v4682, 0.5
    %v4699 = vmul.f32 %v4683, 0.5
    %v4700 = vmul.f32 %v4684, 0.5
    %v4701 = vmul.f32 %v4685, 0.5
    %v4702 = vmul.f32 %v4686, 0.5
    %v4703 = vmul.f32 %v4687, 0.5
    %v4704 = vmul.f32 %v4688, 0.5
    %v4705 = vmul.f32 %v4673, 0.70710677
    %v4706 = vmul.f32 %v4674, 0.70710677
    %v4707 = vmul.f32 %v4675, 0.70710677
    %v4708 = vmul.f32 %v4676, 0.70710677
    %v4709 = vmul.f32 %v4677, 0.70710677
    %v4710 = vmul.f32 %v4678, 0.70710677
    %v4711 = vmul.f32 %v4679, 0.70710677
    %v4712 = vmul.f32 %v4680, 0.70710677
    %v4713 = vmul.f32 %v4681, 0.70710677
    %v4714 = vmul.f32 %v4682, 0.70710677
    %v4715 = vmul.f32 %v4683, 0.70710677
    %v4716 = vmul.f32 %v4684, 0.70710677
    %v4717 = vmul.f32 %v4685, 0.70710677
    %v4718 = vmul.f32 %v4686, 0.70710677
    %v4719 = vmul.f32 %v4687, 0.70710677
    %v4720 = vmul.f32 %v4688, 0.70710677
    %v4721 = vmul.f32 %v4705, %v4705
    %v4722 = vmin.f32 16.0, %v4721
    %v4723 = vmul.f32 %v4722, 2.1237322e-06
    %v4724 = vadd.f32 %v4723, 0.00028619796
    %v4725 = vmul.f32 %v4722, %v4724
    %v4726 = vadd.f32 %v4725, 0.0036580483
    %v4727 = vmul.f32 %v4722, %v4726
    %v4728 = vadd.f32 %v4727, 0.05243302
    %v4729 = vmul.f32 %v4722, %v4728
    %v4730 = vadd.f32 %v4729, 0.18741608
    %v4731 = vmul.f32 %v4722, %v4730
    %v4732 = vadd.f32 %v4731, 1.1283791
    %v4733 = vmul.f32 %v4705, %v4732
    %v4734 = vmul.f32 %v4722, 3.8918573e-05
    %v4735 = vadd.f32 %v4734, 0.001143296
    %v4736 = vmul.f32 %v4722, %v4735
    %v4737 = vadd.f32 %v4736, 0.014752088
    %v4738 = vmul.f32 %v4722, %v4737
    %v4739 = vadd.f32 %v4738, 0.112945676
    %v4740 = vmul.f32 %v4722, %v4739
    %v4741 = vadd.f32 %v4740, 0.4994258
    %v4742 = vmul.f32 %v4722, %v4741
    %v4743 = vadd.f32 %v4742, 1.0
    %v4744 = vrcp.pop %v4743
    %v4745 = vmul.f32 %v4743, %v4744
    %v4746 = vsub.f32 1.0, %v4745
    %v4747 = vmul.f32 %v4744, %v4746
    %v4748 = vadd.f32 %v4744, %v4747
    %vm4749 = vweird.f32 %v4743
    %vm4750 = vweird.f32 %v4744
    %vm4751 = vmor %vm4749, %vm4750
    %v4752 = vsel %vm4751, %v4744, %v4748
    %v4753 = vand.u32 2147483647, %v4743
    %vm4754 = vcmp.eq.f32.partialorder %v4753, 8.507059e+37
    %v4755 = vand.u32 %v4743, 2147483648
    %v4756 = vor.u32 1.1754944e-38, %v4755
    %v4757 = vsel %vm4754, %v4756, %v4752
    %v4758 = vmul.f32 %v4733, %v4757
    %v4759 = vmin.f32 %v4758, 1.0
    %v4760 = vmax.f32 %v4759, -1.0
    %v4761 = vmul.f32 %v4706, %v4706
    %v4762 = vmin.f32 16.0, %v4761
    %v4763 = vmul.f32 %v4762, 2.1237322e-06
    %v4764 = vadd.f32 %v4763, 0.00028619796
    %v4765 = vmul.f32 %v4762, %v4764
    %v4766 = vadd.f32 %v4765, 0.0036580483
    %v4767 = vmul.f32 %v4762, %v4766
    %v4768 = vadd.f32 %v4767, 0.05243302
    %v4769 = vmul.f32 %v4762, %v4768
    %v4770 = vadd.f32 %v4769, 0.18741608
    %v4771 = vmul.f32 %v4762, %v4770
    %v4772 = vadd.f32 %v4771, 1.1283791
    %v4773 = vmul.f32 %v4706, %v4772
    %v4774 = vmul.f32 %v4762, 3.8918573e-05
    %v4775 = vadd.f32 %v4774, 0.001143296
    %v4776 = vmul.f32 %v4762, %v4775
    %v4777 = vadd.f32 %v4776, 0.014752088
    %v4778 = vmul.f32 %v4762, %v4777
    %v4779 = vadd.f32 %v4778, 0.112945676
    %v4780 = vmul.f32 %v4762, %v4779
    %v4781 = vadd.f32 %v4780, 0.4994258
    %v4782 = vmul.f32 %v4762, %v4781
    %v4783 = vadd.f32 %v4782, 1.0
    %v4784 = vrcp.pop %v4783
    %v4785 = vmul.f32 %v4783, %v4784
    %v4786 = vsub.f32 1.0, %v4785
    %v4787 = vmul.f32 %v4784, %v4786
    %v4788 = vadd.f32 %v4784, %v4787
    %vm4789 = vweird.f32 %v4783
    %vm4790 = vweird.f32 %v4784
    %vm4791 = vmor %vm4789, %vm4790
    %v4792 = vsel %vm4791, %v4784, %v4788
    %v4793 = vand.u32 2147483647, %v4783
    %vm4794 = vcmp.eq.f32.partialorder %v4793, 8.507059e+37
    %v4795 = vand.u32 %v4783, 2147483648
    %v4796 = vor.u32 1.1754944e-38, %v4795
    %v4797 = vsel %vm4794, %v4796, %v4792
    %v4798 = vmul.f32 %v4773, %v4797
    %v4799 = vmin.f32 %v4798, 1.0
    %v4800 = vmax.f32 %v4799, -1.0
    %v4801 = vmul.f32 %v4707, %v4707
    %v4802 = vmin.f32 16.0, %v4801
    %v4803 = vmul.f32 %v4802, 2.1237322e-06
    %v4804 = vadd.f32 %v4803, 0.00028619796
    %v4805 = vmul.f32 %v4802, %v4804
    %v4806 = vadd.f32 %v4805, 0.0036580483
    %v4807 = vmul.f32 %v4802, %v4806
    %v4808 = vadd.f32 %v4807, 0.05243302
    %v4809 = vmul.f32 %v4802, %v4808
    %v4810 = vadd.f32 %v4809, 0.18741608
    %v4811 = vmul.f32 %v4802, %v4810
    %v4812 = vadd.f32 %v4811, 1.1283791
    %v4813 = vmul.f32 %v4707, %v4812
    %v4814 = vmul.f32 %v4802, 3.8918573e-05
    %v4815 = vadd.f32 %v4814, 0.001143296
    %v4816 = vmul.f32 %v4802, %v4815
    %v4817 = vadd.f32 %v4816, 0.014752088
    %v4818 = vmul.f32 %v4802, %v4817
    %v4819 = vadd.f32 %v4818, 0.112945676
    %v4820 = vmul.f32 %v4802, %v4819
    %v4821 = vadd.f32 %v4820, 0.4994258
    %v4822 = vmul.f32 %v4802, %v4821
    %v4823 = vadd.f32 %v4822, 1.0
    %v4824 = vrcp.pop %v4823
    %v4825 = vmul.f32 %v4823, %v4824
    %v4826 = vsub.f32 1.0, %v4825
    %v4827 = vmul.f32 %v4824, %v4826
    %v4828 = vadd.f32 %v4824, %v4827
    %vm4829 = vweird.f32 %v4823
    %vm4830 = vweird.f32 %v4824
    %vm4831 = vmor %vm4829, %vm4830
    %v4832 = vsel %vm4831, %v4824, %v4828
    %v4833 = vand.u32 2147483647, %v4823
    %vm4834 = vcmp.eq.f32.partialorder %v4833, 8.507059e+37
    %v4835 = vand.u32 %v4823, 2147483648
    %v4836 = vor.u32 1.1754944e-38, %v4835
    %v4837 = vsel %vm4834, %v4836, %v4832
    %v4838 = vmul.f32 %v4813, %v4837
    %v4839 = vmin.f32 %v4838, 1.0
    %v4840 = vmax.f32 %v4839, -1.0
    %v4841 = vmul.f32 %v4708, %v4708
    %v4842 = vmin.f32 16.0, %v4841
    %v4843 = vmul.f32 %v4842, 2.1237322e-06
    %v4844 = vadd.f32 %v4843, 0.00028619796
    %v4845 = vmul.f32 %v4842, %v4844
    %v4846 = vadd.f32 %v4845, 0.0036580483
    %v4847 = vmul.f32 %v4842, %v4846
    %v4848 = vadd.f32 %v4847, 0.05243302
    %v4849 = vmul.f32 %v4842, %v4848
    %v4850 = vadd.f32 %v4849, 0.18741608
    %v4851 = vmul.f32 %v4842, %v4850
    %v4852 = vadd.f32 %v4851, 1.1283791
    %v4853 = vmul.f32 %v4708, %v4852
    %v4854 = vmul.f32 %v4842, 3.8918573e-05
    %v4855 = vadd.f32 %v4854, 0.001143296
    %v4856 = vmul.f32 %v4842, %v4855
    %v4857 = vadd.f32 %v4856, 0.014752088
    %v4858 = vmul.f32 %v4842, %v4857
    %v4859 = vadd.f32 %v4858, 0.112945676
    %v4860 = vmul.f32 %v4842, %v4859
    %v4861 = vadd.f32 %v4860, 0.4994258
    %v4862 = vmul.f32 %v4842, %v4861
    %v4863 = vadd.f32 %v4862, 1.0
    %v4864 = vrcp.pop %v4863
    %v4865 = vmul.f32 %v4863, %v4864
    %v4866 = vsub.f32 1.0, %v4865
    %v4867 = vmul.f32 %v4864, %v4866
    %v4868 = vadd.f32 %v4864, %v4867
    %vm4869 = vweird.f32 %v4863
    %vm4870 = vweird.f32 %v4864
    %vm4871 = vmor %vm4869, %vm4870
    %v4872 = vsel %vm4871, %v4864, %v4868
    %v4873 = vand.u32 2147483647, %v4863
    %vm4874 = vcmp.eq.f32.partialorder %v4873, 8.507059e+37
    %v4875 = vand.u32 %v4863, 2147483648
    %v4876 = vor.u32 1.1754944e-38, %v4875
    %v4877 = vsel %vm4874, %v4876, %v4872
    %v4878 = vmul.f32 %v4853, %v4877
    %v4879 = vmin.f32 %v4878, 1.0
    %v4880 = vmax.f32 %v4879, -1.0
    %v4881 = vmul.f32 %v4709, %v4709
    %v4882 = vmin.f32 16.0, %v4881
    %v4883 = vmul.f32 %v4882, 2.1237322e-06
    %v4884 = vadd.f32 %v4883, 0.00028619796
    %v4885 = vmul.f32 %v4882, %v4884
    %v4886 = vadd.f32 %v4885, 0.0036580483
    %v4887 = vmul.f32 %v4882, %v4886
    %v4888 = vadd.f32 %v4887, 0.05243302
    %v4889 = vmul.f32 %v4882, %v4888
    %v4890 = vadd.f32 %v4889, 0.18741608
    %v4891 = vmul.f32 %v4882, %v4890
    %v4892 = vadd.f32 %v4891, 1.1283791
    %v4893 = vmul.f32 %v4709, %v4892
    %v4894 = vmul.f32 %v4882, 3.8918573e-05
    %v4895 = vadd.f32 %v4894, 0.001143296
    %v4896 = vmul.f32 %v4882, %v4895
    %v4897 = vadd.f32 %v4896, 0.014752088
    %v4898 = vmul.f32 %v4882, %v4897
    %v4899 = vadd.f32 %v4898, 0.112945676
    %v4900 = vmul.f32 %v4882, %v4899
    %v4901 = vadd.f32 %v4900, 0.4994258
    %v4902 = vmul.f32 %v4882, %v4901
    %v4903 = vadd.f32 %v4902, 1.0
    %v4904 = vrcp.pop %v4903
    %v4905 = vmul.f32 %v4903, %v4904
    %v4906 = vsub.f32 1.0, %v4905
    %v4907 = vmul.f32 %v4904, %v4906
    %v4908 = vadd.f32 %v4904, %v4907
    %vm4909 = vweird.f32 %v4903
    %vm4910 = vweird.f32 %v4904
    %vm4911 = vmor %vm4909, %vm4910
    %v4912 = vsel %vm4911, %v4904, %v4908
    %v4913 = vand.u32 2147483647, %v4903
    %vm4914 = vcmp.eq.f32.partialorder %v4913, 8.507059e+37
    %v4915 = vand.u32 %v4903, 2147483648
    %v4916 = vor.u32 1.1754944e-38, %v4915
    %v4917 = vsel %vm4914, %v4916, %v4912
    %v4918 = vmul.f32 %v4893, %v4917
    %v4919 = vmin.f32 %v4918, 1.0
    %v4920 = vmax.f32 %v4919, -1.0
    %v4921 = vmul.f32 %v4710, %v4710
    %v4922 = vmin.f32 16.0, %v4921
    %v4923 = vmul.f32 %v4922, 2.1237322e-06
    %v4924 = vadd.f32 %v4923, 0.00028619796
    %v4925 = vmul.f32 %v4922, %v4924
    %v4926 = vadd.f32 %v4925, 0.0036580483
    %v4927 = vmul.f32 %v4922, %v4926
    %v4928 = vadd.f32 %v4927, 0.05243302
    %v4929 = vmul.f32 %v4922, %v4928
    %v4930 = vadd.f32 %v4929, 0.18741608
    %v4931 = vmul.f32 %v4922, %v4930
    %v4932 = vadd.f32 %v4931, 1.1283791
    %v4933 = vmul.f32 %v4710, %v4932
    %v4934 = vmul.f32 %v4922, 3.8918573e-05
    %v4935 = vadd.f32 %v4934, 0.001143296
    %v4936 = vmul.f32 %v4922, %v4935
    %v4937 = vadd.f32 %v4936, 0.014752088
    %v4938 = vmul.f32 %v4922, %v4937
    %v4939 = vadd.f32 %v4938, 0.112945676
    %v4940 = vmul.f32 %v4922, %v4939
    %v4941 = vadd.f32 %v4940, 0.4994258
    %v4942 = vmul.f32 %v4922, %v4941
    %v4943 = vadd.f32 %v4942, 1.0
    %v4944 = vrcp.pop %v4943
    %v4945 = vmul.f32 %v4943, %v4944
    %v4946 = vsub.f32 1.0, %v4945
    %v4947 = vmul.f32 %v4944, %v4946
    %v4948 = vadd.f32 %v4944, %v4947
    %vm4949 = vweird.f32 %v4943
    %vm4950 = vweird.f32 %v4944
    %vm4951 = vmor %vm4949, %vm4950
    %v4952 = vsel %vm4951, %v4944, %v4948
    %v4953 = vand.u32 2147483647, %v4943
    %vm4954 = vcmp.eq.f32.partialorder %v4953, 8.507059e+37
    %v4955 = vand.u32 %v4943, 2147483648
    %v4956 = vor.u32 1.1754944e-38, %v4955
    %v4957 = vsel %vm4954, %v4956, %v4952
    %v4958 = vmul.f32 %v4933, %v4957
    %v4959 = vmin.f32 %v4958, 1.0
    %v4960 = vmax.f32 %v4959, -1.0
    %v4961 = vmul.f32 %v4711, %v4711
    %v4962 = vmin.f32 16.0, %v4961
    %v4963 = vmul.f32 %v4962, 2.1237322e-06
    %v4964 = vadd.f32 %v4963, 0.00028619796
    %v4965 = vmul.f32 %v4962, %v4964
    %v4966 = vadd.f32 %v4965, 0.0036580483
    %v4967 = vmul.f32 %v4962, %v4966
    %v4968 = vadd.f32 %v4967, 0.05243302
    %v4969 = vmul.f32 %v4962, %v4968
    %v4970 = vadd.f32 %v4969, 0.18741608
    %v4971 = vmul.f32 %v4962, %v4970
    %v4972 = vadd.f32 %v4971, 1.1283791
    %v4973 = vmul.f32 %v4711, %v4972
    %v4974 = vmul.f32 %v4962, 3.8918573e-05
    %v4975 = vadd.f32 %v4974, 0.001143296
    %v4976 = vmul.f32 %v4962, %v4975
    %v4977 = vadd.f32 %v4976, 0.014752088
    %v4978 = vmul.f32 %v4962, %v4977
    %v4979 = vadd.f32 %v4978, 0.112945676
    %v4980 = vmul.f32 %v4962, %v4979
    %v4981 = vadd.f32 %v4980, 0.4994258
    %v4982 = vmul.f32 %v4962, %v4981
    %v4983 = vadd.f32 %v4982, 1.0
    %v4984 = vrcp.pop %v4983
    %v4985 = vmul.f32 %v4983, %v4984
    %v4986 = vsub.f32 1.0, %v4985
    %v4987 = vmul.f32 %v4984, %v4986
    %v4988 = vadd.f32 %v4984, %v4987
    %vm4989 = vweird.f32 %v4983
    %vm4990 = vweird.f32 %v4984
    %vm4991 = vmor %vm4989, %vm4990
    %v4992 = vsel %vm4991, %v4984, %v4988
    %v4993 = vand.u32 2147483647, %v4983
    %vm4994 = vcmp.eq.f32.partialorder %v4993, 8.507059e+37
    %v4995 = vand.u32 %v4983, 2147483648
    %v4996 = vor.u32 1.1754944e-38, %v4995
    %v4997 = vsel %vm4994, %v4996, %v4992
    %v4998 = vmul.f32 %v4973, %v4997
    %v4999 = vmin.f32 %v4998, 1.0
    %v5000 = vmax.f32 %v4999, -1.0
    %v5001 = vmul.f32 %v4712, %v4712
    %v5002 = vmin.f32 16.0, %v5001
    %v5003 = vmul.f32 %v5002, 2.1237322e-06
    %v5004 = vadd.f32 %v5003, 0.00028619796
    %v5005 = vmul.f32 %v5002, %v5004
    %v5006 = vadd.f32 %v5005, 0.0036580483
    %v5007 = vmul.f32 %v5002, %v5006
    %v5008 = vadd.f32 %v5007, 0.05243302
    %v5009 = vmul.f32 %v5002, %v5008
    %v5010 = vadd.f32 %v5009, 0.18741608
    %v5011 = vmul.f32 %v5002, %v5010
    %v5012 = vadd.f32 %v5011, 1.1283791
    %v5013 = vmul.f32 %v4712, %v5012
    %v5014 = vmul.f32 %v5002, 3.8918573e-05
    %v5015 = vadd.f32 %v5014, 0.001143296
    %v5016 = vmul.f32 %v5002, %v5015
    %v5017 = vadd.f32 %v5016, 0.014752088
    %v5018 = vmul.f32 %v5002, %v5017
    %v5019 = vadd.f32 %v5018, 0.112945676
    %v5020 = vmul.f32 %v5002, %v5019
    %v5021 = vadd.f32 %v5020, 0.4994258
    %v5022 = vmul.f32 %v5002, %v5021
    %v5023 = vadd.f32 %v5022, 1.0
    %v5024 = vrcp.pop %v5023
    %v5025 = vmul.f32 %v5023, %v5024
    %v5026 = vsub.f32 1.0, %v5025
    %v5027 = vmul.f32 %v5024, %v5026
    %v5028 = vadd.f32 %v5024, %v5027
    %vm5029 = vweird.f32 %v5023
    %vm5030 = vweird.f32 %v5024
    %vm5031 = vmor %vm5029, %vm5030
    %v5032 = vsel %vm5031, %v5024, %v5028
    %v5033 = vand.u32 2147483647, %v5023
    %vm5034 = vcmp.eq.f32.partialorder %v5033, 8.507059e+37
    %v5035 = vand.u32 %v5023, 2147483648
    %v5036 = vor.u32 1.1754944e-38, %v5035
    %v5037 = vsel %vm5034, %v5036, %v5032
    %v5038 = vmul.f32 %v5013, %v5037
    %v5039 = vmin.f32 %v5038, 1.0
    %v5040 = vmax.f32 %v5039, -1.0
    %v5041 = vmul.f32 %v4713, %v4713
    %v5042 = vmin.f32 16.0, %v5041
    %v5043 = vmul.f32 %v5042, 2.1237322e-06
    %v5044 = vadd.f32 %v5043, 0.00028619796
    %v5045 = vmul.f32 %v5042, %v5044
    %v5046 = vadd.f32 %v5045, 0.0036580483
    %v5047 = vmul.f32 %v5042, %v5046
    %v5048 = vadd.f32 %v5047, 0.05243302
    %v5049 = vmul.f32 %v5042, %v5048
    %v5050 = vadd.f32 %v5049, 0.18741608
    %v5051 = vmul.f32 %v5042, %v5050
    %v5052 = vadd.f32 %v5051, 1.1283791
    %v5053 = vmul.f32 %v4713, %v5052
    %v5054 = vmul.f32 %v5042, 3.8918573e-05
    %v5055 = vadd.f32 %v5054, 0.001143296
    %v5056 = vmul.f32 %v5042, %v5055
    %v5057 = vadd.f32 %v5056, 0.014752088
    %v5058 = vmul.f32 %v5042, %v5057
    %v5059 = vadd.f32 %v5058, 0.112945676
    %v5060 = vmul.f32 %v5042, %v5059
    %v5061 = vadd.f32 %v5060, 0.4994258
    %v5062 = vmul.f32 %v5042, %v5061
    %v5063 = vadd.f32 %v5062, 1.0
    %v5064 = vrcp.pop %v5063
    %v5065 = vmul.f32 %v5063, %v5064
    %v5066 = vsub.f32 1.0, %v5065
    %v5067 = vmul.f32 %v5064, %v5066
    %v5068 = vadd.f32 %v5064, %v5067
    %vm5069 = vweird.f32 %v5063
    %vm5070 = vweird.f32 %v5064
    %vm5071 = vmor %vm5069, %vm5070
    %v5072 = vsel %vm5071, %v5064, %v5068
    %v5073 = vand.u32 2147483647, %v5063
    %vm5074 = vcmp.eq.f32.partialorder %v5073, 8.507059e+37
    %v5075 = vand.u32 %v5063, 2147483648
    %v5076 = vor.u32 1.1754944e-38, %v5075
    %v5077 = vsel %vm5074, %v5076, %v5072
    %v5078 = vmul.f32 %v5053, %v5077
    %v5079 = vmin.f32 %v5078, 1.0
    %v5080 = vmax.f32 %v5079, -1.0
    %v5081 = vmul.f32 %v4714, %v4714
    %v5082 = vmin.f32 16.0, %v5081
    %v5083 = vmul.f32 %v5082, 2.1237322e-06
    %v5084 = vadd.f32 %v5083, 0.00028619796
    %v5085 = vmul.f32 %v5082, %v5084
    %v5086 = vadd.f32 %v5085, 0.0036580483
    %v5087 = vmul.f32 %v5082, %v5086
    %v5088 = vadd.f32 %v5087, 0.05243302
    %v5089 = vmul.f32 %v5082, %v5088
    %v5090 = vadd.f32 %v5089, 0.18741608
    %v5091 = vmul.f32 %v5082, %v5090
    %v5092 = vadd.f32 %v5091, 1.1283791
    %v5093 = vmul.f32 %v4714, %v5092
    %v5094 = vmul.f32 %v5082, 3.8918573e-05
    %v5095 = vadd.f32 %v5094, 0.001143296
    %v5096 = vmul.f32 %v5082, %v5095
    %v5097 = vadd.f32 %v5096, 0.014752088
    %v5098 = vmul.f32 %v5082, %v5097
    %v5099 = vadd.f32 %v5098, 0.112945676
    %v5100 = vmul.f32 %v5082, %v5099
    %v5101 = vadd.f32 %v5100, 0.4994258
    %v5102 = vmul.f32 %v5082, %v5101
    %v5103 = vadd.f32 %v5102, 1.0
    %v5104 = vrcp.pop %v5103
    %v5105 = vmul.f32 %v5103, %v5104
    %v5106 = vsub.f32 1.0, %v5105
    %v5107 = vmul.f32 %v5104, %v5106
    %v5108 = vadd.f32 %v5104, %v5107
    %vm5109 = vweird.f32 %v5103
    %vm5110 = vweird.f32 %v5104
    %vm5111 = vmor %vm5109, %vm5110
    %v5112 = vsel %vm5111, %v5104, %v5108
    %v5113 = vand.u32 2147483647, %v5103
    %vm5114 = vcmp.eq.f32.partialorder %v5113, 8.507059e+37
    %v5115 = vand.u32 %v5103, 2147483648
    %v5116 = vor.u32 1.1754944e-38, %v5115
    %v5117 = vsel %vm5114, %v5116, %v5112
    %v5118 = vmul.f32 %v5093, %v5117
    %v5119 = vmin.f32 %v5118, 1.0
    %v5120 = vmax.f32 %v5119, -1.0
    %v5121 = vmul.f32 %v4715, %v4715
    %v5122 = vmin.f32 16.0, %v5121
    %v5123 = vmul.f32 %v5122, 2.1237322e-06
    %v5124 = vadd.f32 %v5123, 0.00028619796
    %v5125 = vmul.f32 %v5122, %v5124
    %v5126 = vadd.f32 %v5125, 0.0036580483
    %v5127 = vmul.f32 %v5122, %v5126
    %v5128 = vadd.f32 %v5127, 0.05243302
    %v5129 = vmul.f32 %v5122, %v5128
    %v5130 = vadd.f32 %v5129, 0.18741608
    %v5131 = vmul.f32 %v5122, %v5130
    %v5132 = vadd.f32 %v5131, 1.1283791
    %v5133 = vmul.f32 %v4715, %v5132
    %v5134 = vmul.f32 %v5122, 3.8918573e-05
    %v5135 = vadd.f32 %v5134, 0.001143296
    %v5136 = vmul.f32 %v5122, %v5135
    %v5137 = vadd.f32 %v5136, 0.014752088
    %v5138 = vmul.f32 %v5122, %v5137
    %v5139 = vadd.f32 %v5138, 0.112945676
    %v5140 = vmul.f32 %v5122, %v5139
    %v5141 = vadd.f32 %v5140, 0.4994258
    %v5142 = vmul.f32 %v5122, %v5141
    %v5143 = vadd.f32 %v5142, 1.0
    %v5144 = vrcp.pop %v5143
    %v5145 = vmul.f32 %v5143, %v5144
    %v5146 = vsub.f32 1.0, %v5145
    %v5147 = vmul.f32 %v5144, %v5146
    %v5148 = vadd.f32 %v5144, %v5147
    %vm5149 = vweird.f32 %v5143
    %vm5150 = vweird.f32 %v5144
    %vm5151 = vmor %vm5149, %vm5150
    %v5152 = vsel %vm5151, %v5144, %v5148
    %v5153 = vand.u32 2147483647, %v5143
    %vm5154 = vcmp.eq.f32.partialorder %v5153, 8.507059e+37
    %v5155 = vand.u32 %v5143, 2147483648
    %v5156 = vor.u32 1.1754944e-38, %v5155
    %v5157 = vsel %vm5154, %v5156, %v5152
    %v5158 = vmul.f32 %v5133, %v5157
    %v5159 = vmin.f32 %v5158, 1.0
    %v5160 = vmax.f32 %v5159, -1.0
    %v5161 = vmul.f32 %v4716, %v4716
    %v5162 = vmin.f32 16.0, %v5161
    %v5163 = vmul.f32 %v5162, 2.1237322e-06
    %v5164 = vadd.f32 %v5163, 0.00028619796
    %v5165 = vmul.f32 %v5162, %v5164
    %v5166 = vadd.f32 %v5165, 0.0036580483
    %v5167 = vmul.f32 %v5162, %v5166
    %v5168 = vadd.f32 %v5167, 0.05243302
    %v5169 = vmul.f32 %v5162, %v5168
    %v5170 = vadd.f32 %v5169, 0.18741608
    %v5171 = vmul.f32 %v5162, %v5170
    %v5172 = vadd.f32 %v5171, 1.1283791
    %v5173 = vmul.f32 %v4716, %v5172
    %v5174 = vmul.f32 %v5162, 3.8918573e-05
    %v5175 = vadd.f32 %v5174, 0.001143296
    %v5176 = vmul.f32 %v5162, %v5175
    %v5177 = vadd.f32 %v5176, 0.014752088
    %v5178 = vmul.f32 %v5162, %v5177
    %v5179 = vadd.f32 %v5178, 0.112945676
    %v5180 = vmul.f32 %v5162, %v5179
    %v5181 = vadd.f32 %v5180, 0.4994258
    %v5182 = vmul.f32 %v5162, %v5181
    %v5183 = vadd.f32 %v5182, 1.0
    %v5184 = vrcp.pop %v5183
    %v5185 = vmul.f32 %v5183, %v5184
    %v5186 = vsub.f32 1.0, %v5185
    %v5187 = vmul.f32 %v5184, %v5186
    %v5188 = vadd.f32 %v5184, %v5187
    %vm5189 = vweird.f32 %v5183
    %vm5190 = vweird.f32 %v5184
    %vm5191 = vmor %vm5189, %vm5190
    %v5192 = vsel %vm5191, %v5184, %v5188
    %v5193 = vand.u32 2147483647, %v5183
    %vm5194 = vcmp.eq.f32.partialorder %v5193, 8.507059e+37
    %v5195 = vand.u32 %v5183, 2147483648
    %v5196 = vor.u32 1.1754944e-38, %v5195
    %v5197 = vsel %vm5194, %v5196, %v5192
    %v5198 = vmul.f32 %v5173, %v5197
    %v5199 = vmin.f32 %v5198, 1.0
    %v5200 = vmax.f32 %v5199, -1.0
    %v5201 = vmul.f32 %v4717, %v4717
    %v5202 = vmin.f32 16.0, %v5201
    %v5203 = vmul.f32 %v5202, 2.1237322e-06
    %v5204 = vadd.f32 %v5203, 0.00028619796
    %v5205 = vmul.f32 %v5202, %v5204
    %v5206 = vadd.f32 %v5205, 0.0036580483
    %v5207 = vmul.f32 %v5202, %v5206
    %v5208 = vadd.f32 %v5207, 0.05243302
    %v5209 = vmul.f32 %v5202, %v5208
    %v5210 = vadd.f32 %v5209, 0.18741608
    %v5211 = vmul.f32 %v5202, %v5210
    %v5212 = vadd.f32 %v5211, 1.1283791
    %v5213 = vmul.f32 %v4717, %v5212
    %v5214 = vmul.f32 %v5202, 3.8918573e-05
    %v5215 = vadd.f32 %v5214, 0.001143296
    %v5216 = vmul.f32 %v5202, %v5215
    %v5217 = vadd.f32 %v5216, 0.014752088
    %v5218 = vmul.f32 %v5202, %v5217
    %v5219 = vadd.f32 %v5218, 0.112945676
    %v5220 = vmul.f32 %v5202, %v5219
    %v5221 = vadd.f32 %v5220, 0.4994258
    %v5222 = vmul.f32 %v5202, %v5221
    %v5223 = vadd.f32 %v5222, 1.0
    %v5224 = vrcp.pop %v5223
    %v5225 = vmul.f32 %v5223, %v5224
    %v5226 = vsub.f32 1.0, %v5225
    %v5227 = vmul.f32 %v5224, %v5226
    %v5228 = vadd.f32 %v5224, %v5227
    %vm5229 = vweird.f32 %v5223
    %vm5230 = vweird.f32 %v5224
    %vm5231 = vmor %vm5229, %vm5230
    %v5232 = vsel %vm5231, %v5224, %v5228
    %v5233 = vand.u32 2147483647, %v5223
    %vm5234 = vcmp.eq.f32.partialorder %v5233, 8.507059e+37
    %v5235 = vand.u32 %v5223, 2147483648
    %v5236 = vor.u32 1.1754944e-38, %v5235
    %v5237 = vsel %vm5234, %v5236, %v5232
    %v5238 = vmul.f32 %v5213, %v5237
    %v5239 = vmin.f32 %v5238, 1.0
    %v5240 = vmax.f32 %v5239, -1.0
    %v5241 = vmul.f32 %v4718, %v4718
    %v5242 = vmin.f32 16.0, %v5241
    %v5243 = vmul.f32 %v5242, 2.1237322e-06
    %v5244 = vadd.f32 %v5243, 0.00028619796
    %v5245 = vmul.f32 %v5242, %v5244
    %v5246 = vadd.f32 %v5245, 0.0036580483
    %v5247 = vmul.f32 %v5242, %v5246
    %v5248 = vadd.f32 %v5247, 0.05243302
    %v5249 = vmul.f32 %v5242, %v5248
    %v5250 = vadd.f32 %v5249, 0.18741608
    %v5251 = vmul.f32 %v5242, %v5250
    %v5252 = vadd.f32 %v5251, 1.1283791
    %v5253 = vmul.f32 %v4718, %v5252
    %v5254 = vmul.f32 %v5242, 3.8918573e-05
    %v5255 = vadd.f32 %v5254, 0.001143296
    %v5256 = vmul.f32 %v5242, %v5255
    %v5257 = vadd.f32 %v5256, 0.014752088
    %v5258 = vmul.f32 %v5242, %v5257
    %v5259 = vadd.f32 %v5258, 0.112945676
    %v5260 = vmul.f32 %v5242, %v5259
    %v5261 = vadd.f32 %v5260, 0.4994258
    %v5262 = vmul.f32 %v5242, %v5261
    %v5263 = vadd.f32 %v5262, 1.0
    %v5264 = vrcp.pop %v5263
    %v5265 = vmul.f32 %v5263, %v5264
    %v5266 = vsub.f32 1.0, %v5265
    %v5267 = vmul.f32 %v5264, %v5266
    %v5268 = vadd.f32 %v5264, %v5267
    %vm5269 = vweird.f32 %v5263
    %vm5270 = vweird.f32 %v5264
    %vm5271 = vmor %vm5269, %vm5270
    %v5272 = vsel %vm5271, %v5264, %v5268
    %v5273 = vand.u32 2147483647, %v5263
    %vm5274 = vcmp.eq.f32.partialorder %v5273, 8.507059e+37
    %v5275 = vand.u32 %v5263, 2147483648
    %v5276 = vor.u32 1.1754944e-38, %v5275
    %v5277 = vsel %vm5274, %v5276, %v5272
    %v5278 = vmul.f32 %v5253, %v5277
    %v5279 = vmin.f32 %v5278, 1.0
    %v5280 = vmax.f32 %v5279, -1.0
    %v5281 = vmul.f32 %v4719, %v4719
    %v5282 = vmin.f32 16.0, %v5281
    %v5283 = vmul.f32 %v5282, 2.1237322e-06
    %v5284 = vadd.f32 %v5283, 0.00028619796
    %v5285 = vmul.f32 %v5282, %v5284
    %v5286 = vadd.f32 %v5285, 0.0036580483
    %v5287 = vmul.f32 %v5282, %v5286
    %v5288 = vadd.f32 %v5287, 0.05243302
    %v5289 = vmul.f32 %v5282, %v5288
    %v5290 = vadd.f32 %v5289, 0.18741608
    %v5291 = vmul.f32 %v5282, %v5290
    %v5292 = vadd.f32 %v5291, 1.1283791
    %v5293 = vmul.f32 %v4719, %v5292
    %v5294 = vmul.f32 %v5282, 3.8918573e-05
    %v5295 = vadd.f32 %v5294, 0.001143296
    %v5296 = vmul.f32 %v5282, %v5295
    %v5297 = vadd.f32 %v5296, 0.014752088
    %v5298 = vmul.f32 %v5282, %v5297
    %v5299 = vadd.f32 %v5298, 0.112945676
    %v5300 = vmul.f32 %v5282, %v5299
    %v5301 = vadd.f32 %v5300, 0.4994258
    %v5302 = vmul.f32 %v5282, %v5301
    %v5303 = vadd.f32 %v5302, 1.0
    %v5304 = vrcp.pop %v5303
    %v5305 = vmul.f32 %v5303, %v5304
    %v5306 = vsub.f32 1.0, %v5305
    %v5307 = vmul.f32 %v5304, %v5306
    %v5308 = vadd.f32 %v5304, %v5307
    %vm5309 = vweird.f32 %v5303
    %vm5310 = vweird.f32 %v5304
    %vm5311 = vmor %vm5309, %vm5310
    %v5312 = vsel %vm5311, %v5304, %v5308
    %v5313 = vand.u32 2147483647, %v5303
    %vm5314 = vcmp.eq.f32.partialorder %v5313, 8.507059e+37
    %v5315 = vand.u32 %v5303, 2147483648
    %v5316 = vor.u32 1.1754944e-38, %v5315
    %v5317 = vsel %vm5314, %v5316, %v5312
    %v5318 = vmul.f32 %v5293, %v5317
    %v5319 = vmin.f32 %v5318, 1.0
    %v5320 = vmax.f32 %v5319, -1.0
    %v5321 = vmul.f32 %v4720, %v4720
    %v5322 = vmin.f32 16.0, %v5321
    %v5323 = vmul.f32 %v5322, 2.1237322e-06
    %v5324 = vadd.f32 %v5323, 0.00028619796
    %v5325 = vmul.f32 %v5322, %v5324
    %v5326 = vadd.f32 %v5325, 0.0036580483
    %v5327 = vmul.f32 %v5322, %v5326
    %v5328 = vadd.f32 %v5327, 0.05243302
    %v5329 = vmul.f32 %v5322, %v5328
    %v5330 = vadd.f32 %v5329, 0.18741608
    %v5331 = vmul.f32 %v5322, %v5330
    %v5332 = vadd.f32 %v5331, 1.1283791
    %v5333 = vmul.f32 %v4720, %v5332
    %v5334 = vmul.f32 %v5322, 3.8918573e-05
    %v5335 = vadd.f32 %v5334, 0.001143296
    %v5336 = vmul.f32 %v5322, %v5335
    %v5337 = vadd.f32 %v5336, 0.014752088
    %v5338 = vmul.f32 %v5322, %v5337
    %v5339 = vadd.f32 %v5338, 0.112945676
    %v5340 = vmul.f32 %v5322, %v5339
    %v5341 = vadd.f32 %v5340, 0.4994258
    %v5342 = vmul.f32 %v5322, %v5341
    %v5343 = vadd.f32 %v5342, 1.0
    %v5344 = vrcp.pop %v5343
    %v5345 = vmul.f32 %v5343, %v5344
    %v5346 = vsub.f32 1.0, %v5345
    %v5347 = vmul.f32 %v5344, %v5346
    %v5348 = vadd.f32 %v5344, %v5347
    %vm5349 = vweird.f32 %v5343
    %vm5350 = vweird.f32 %v5344
    %vm5351 = vmor %vm5349, %vm5350
    %v5352 = vsel %vm5351, %v5344, %v5348
    %v5353 = vand.u32 2147483647, %v5343
    %vm5354 = vcmp.eq.f32.partialorder %v5353, 8.507059e+37
    %v5355 = vand.u32 %v5343, 2147483648
    %v5356 = vor.u32 1.1754944e-38, %v5355
    %v5357 = vsel %vm5354, %v5356, %v5352
    %v5358 = vmul.f32 %v5333, %v5357
    %v5359 = vmin.f32 %v5358, 1.0
    %v5360 = vmax.f32 %v5359, -1.0
    %v5361 = vadd.f32 %v4760, 1.0
    %v5362 = vadd.f32 %v4800, 1.0
    %v5363 = vadd.f32 %v4840, 1.0
    %v5364 = vadd.f32 %v4880, 1.0
    %v5365 = vadd.f32 %v4920, 1.0
    %v5366 = vadd.f32 %v4960, 1.0
    %v5367 = vadd.f32 %v5000, 1.0
    %v5368 = vadd.f32 %v5040, 1.0
    %v5369 = vadd.f32 %v5080, 1.0
    %v5370 = vadd.f32 %v5120, 1.0
    %v5371 = vadd.f32 %v5160, 1.0
    %v5372 = vadd.f32 %v5200, 1.0
    %v5373 = vadd.f32 %v5240, 1.0
    %v5374 = vadd.f32 %v5280, 1.0
    %v5375 = vadd.f32 %v5320, 1.0
    %v5376 = vadd.f32 %v5360, 1.0
    %v5377 = vmul.f32 %v4689, %v5361
    %v5378 = vmul.f32 %v4690, %v5362
    %v5379 = vmul.f32 %v4691, %v5363
    %v5380 = vmul.f32 %v4692, %v5364
    %v5381 = vmul.f32 %v4693, %v5365
    %v5382 = vmul.f32 %v4694, %v5366
    %v5383 = vmul.f32 %v4695, %v5367
    %v5384 = vmul.f32 %v4696, %v5368
    %v5385 = vmul.f32 %v4697, %v5369
    %v5386 = vmul.f32 %v4698, %v5370
    %v5387 = vmul.f32 %v4699, %v5371
    %v5388 = vmul.f32 %v4700, %v5372
    %v5389 = vmul.f32 %v4701, %v5373
    %v5390 = vmul.f32 %v4702, %v5374
    %v5391 = vmul.f32 %v4703, %v5375
    %v5392 = vmul.f32 %v4704, %v5376
    %v5393 = vld [vmem:[#allocation9] sm:$0xff]
    %v5394 = vld [vmem:[#allocation9 + $0x8] sm:$0xff]
    %v5395 = vld [vmem:[#allocation9 + $0x10] sm:$0xff]
    %v5396 = vld [vmem:[#allocation9 + $0x18] sm:$0xff]
    %5397 = vmatpush.msra.mxu0 %v5392
    %5398 = vmatpush.msra.mxu0 %v5391
    %5399 = vmatpush.msra.mxu0 %v5390
    %5400 = vmatpush.msra.mxu0 %v5389
    %5401 = vmatpush.msra.mxu0 %v5388
    %5402 = vmatpush.msra.mxu0 %v5387
    %5403 = vmatpush.msra.mxu0 %v5386
    %5404 = vmatpush.msra.mxu0 %v5385
    %5405 = vmatpush.msra.mxu0 %v5384
    %5406 = vmatpush.msra.mxu0 %v5383
    %5407 = vmatpush.msra.mxu0 %v5382
    %5408 = vmatpush.msra.mxu0 %v5381
    %5409 = vmatpush.msra.mxu0 %v5380
    %5410 = vmatpush.msra.mxu0 %v5379
    %5411 = vmatpush.msra.mxu0 %v5378
    %5412 = vmatpush.msra.mxu0 %v5377
    %5413 = vmatmul.f32.gmra.mxu0 %v5393
    %v5414 = vpop.f32.mrf.mxu0
    %v5415 = vadd.f32 0.0, %v5414
    %5416 = vmatmul.f32.gmra.mxu0 %v5394
    %v5417 = vpop.f32.mrf.mxu0
    %v5418 = vadd.f32 0.0, %v5417
    %5419 = vmatmul.f32.gmra.mxu0 %v5395
    %v5420 = vpop.f32.mrf.mxu0
    %v5421 = vadd.f32 0.0, %v5420
    %5422 = vmatmul.f32.gmra.mxu0 %v5396
    %v5423 = vpop.f32.mrf.mxu0
    %v5424 = vadd.f32 0.0, %v5423
    %5425 = vdwg.mxu0
    %v5426 = vld [vmem:[#allocation10] sm:$0xff]
    %v5427 = vld [vmem:[#allocation10 + $0x8] sm:$0xff]
    %s5428 = scalar_lea.vmem [#allocation9], 32
    %v5429 = vld [vmem:[%s5428] sm:$0xff]
    %v5430 = vld [vmem:[%s5428 + $0x8] sm:$0xff]
    %v5431 = vld [vmem:[%s5428 + $0x10] sm:$0xff]
    %v5432 = vld [vmem:[%s5428 + $0x18] sm:$0xff]
    %5433 = vmatpush.msra.mxu0 %v5392
    %5434 = vmatpush.msra.mxu0 %v5391
    %5435 = vmatpush.msra.mxu0 %v5390
    %5436 = vmatpush.msra.mxu0 %v5389
    %5437 = vmatpush.msra.mxu0 %v5388
    %5438 = vmatpush.msra.mxu0 %v5387
    %5439 = vmatpush.msra.mxu0 %v5386
    %5440 = vmatpush.msra.mxu0 %v5385
    %5441 = vmatpush.msra.mxu0 %v5384
    %5442 = vmatpush.msra.mxu0 %v5383
    %5443 = vmatpush.msra.mxu0 %v5382
    %5444 = vmatpush.msra.mxu0 %v5381
    %5445 = vmatpush.msra.mxu0 %v5380
    %5446 = vmatpush.msra.mxu0 %v5379
    %5447 = vmatpush.msra.mxu0 %v5378
    %5448 = vmatpush.msra.mxu0 %v5377
    %5449 = vmatmul.f32.gmra.mxu0 %v5429
    %v5450 = vpop.f32.mrf.mxu0
    %v5451 = vadd.f32 0.0, %v5450
    %5452 = vmatmul.f32.gmra.mxu0 %v5430
    %v5453 = vpop.f32.mrf.mxu0
    %v5454 = vadd.f32 0.0, %v5453
    %5455 = vmatmul.f32.gmra.mxu0 %v5431
    %v5456 = vpop.f32.mrf.mxu0
    %v5457 = vadd.f32 0.0, %v5456
    %5458 = vmatmul.f32.gmra.mxu0 %v5432
    %v5459 = vpop.f32.mrf.mxu0
    %v5460 = vadd.f32 0.0, %v5459
    %5461 = vdwg.mxu0
    %s5462 = scalar_lea.vmem [#allocation10], 16
    %v5463 = vld [vmem:[%s5462] sm:$0xff]
    %v5464 = vld [vmem:[%s5462 + $0x8] sm:$0xff]
    %v5466 = vsel %vm4539, %v5451, 0
    %v5469 = vsel %vm4539, %v5454, 0
    %v5472 = vsel %vm4539, %v5457, 0
    %v5475 = vsel %vm4539, %v5460, 0
    %5477 = vmatpush.msra.mxu0 0.0
    %5478 = vmatpush.msra.mxu0 0.0
    %5479 = vmatpush.msra.mxu0 0.0
    %5480 = vmatpush.msra.mxu0 0.0
    %5481 = vmatpush.msra.mxu0 0.0
    %5482 = vmatpush.msra.mxu0 0.0
    %5483 = vmatpush.msra.mxu0 0.0
    %5484 = vmatpush.msra.mxu0 0.0
    %5485 = vmatpush.msra.mxu0 0.0
    %5486 = vmatpush.msra.mxu0 0.0
    %5487 = vmatpush.msra.mxu0 0.0
    %5488 = vmatpush.msra.mxu0 0.0
    %5489 = vmatpush.msra.mxu0 0.0
    %5490 = vmatpush.msra.mxu0 0.0
    %5491 = vmatpush.msra.mxu0 %v5464
    %5492 = vmatpush.msra.mxu0 %v5463
    %5493 = vmatmul.f32.gmra.mxu0 %v5466
    %v5494 = vpop.f32.mrf.mxu0
    %v5495 = vadd.f32 0.0, %v5494
    %5496 = vmatmul.f32.gmra.mxu0 %v5469
    %v5497 = vpop.f32.mrf.mxu0
    %v5498 = vadd.f32 0.0, %v5497
    %5499 = vmatmul.f32.gmra.mxu0 %v5472
    %v5500 = vpop.f32.mrf.mxu0
    %v5501 = vadd.f32 0.0, %v5500
    %5502 = vmatmul.f32.gmra.mxu0 %v5475
    %v5503 = vpop.f32.mrf.mxu0
    %v5504 = vadd.f32 0.0, %v5503
    %5505 = vdwg.mxu0
    %v5507 = vsel %vm4539, %v5415, 0
    %v5510 = vsel %vm4539, %v5418, 0
    %v5513 = vsel %vm4539, %v5421, 0
    %v5516 = vsel %vm4539, %v5424, 0
    %5518 = vmatpush.msra.mxu0 0.0
    %5519 = vmatpush.msra.mxu0 0.0
    %5520 = vmatpush.msra.mxu0 0.0
    %5521 = vmatpush.msra.mxu0 0.0
    %5522 = vmatpush.msra.mxu0 0.0
    %5523 = vmatpush.msra.mxu0 0.0
    %5524 = vmatpush.msra.mxu0 0.0
    %5525 = vmatpush.msra.mxu0 0.0
    %5526 = vmatpush.msra.mxu0 0.0
    %5527 = vmatpush.msra.mxu0 0.0
    %5528 = vmatpush.msra.mxu0 0.0
    %5529 = vmatpush.msra.mxu0 0.0
    %5530 = vmatpush.msra.mxu0 0.0
    %5531 = vmatpush.msra.mxu0 0.0
    %5532 = vmatpush.msra.mxu0 %v5427
    %5533 = vmatpush.msra.mxu0 %v5426
    %5534 = vmatmul.f32.gmra.mxu0 %v5507
    %v5535 = vpop.f32.mrf.mxu0
    %v5536 = vadd.f32 %v5495, %v5535
    %5537 = vmatmul.f32.gmra.mxu0 %v5510
    %v5538 = vpop.f32.mrf.mxu0
    %v5539 = vadd.f32 %v5498, %v5538
    %5540 = vmatmul.f32.gmra.mxu0 %v5513
    %v5541 = vpop.f32.mrf.mxu0
    %v5542 = vadd.f32 %v5501, %v5541
    %5543 = vmatmul.f32.gmra.mxu0 %v5516
    %v5544 = vpop.f32.mrf.mxu0
    %v5545 = vadd.f32 %v5504, %v5544
    %5546 = vdwg.mxu0
    %s5547 = scalar_lea.vmem [#allocation9], 64
    %v5548 = vld [vmem:[%s5547] sm:$0xff]
    %v5549 = vld [vmem:[%s5547 + $0x8] sm:$0xff]
    %v5550 = vld [vmem:[%s5547 + $0x10] sm:$0xff]
    %v5551 = vld [vmem:[%s5547 + $0x18] sm:$0xff]
    %5552 = vmatpush.msra.mxu0 %v5392
    %5553 = vmatpush.msra.mxu0 %v5391
    %5554 = vmatpush.msra.mxu0 %v5390
    %5555 = vmatpush.msra.mxu0 %v5389
    %5556 = vmatpush.msra.mxu0 %v5388
    %5557 = vmatpush.msra.mxu0 %v5387
    %5558 = vmatpush.msra.mxu0 %v5386
    %5559 = vmatpush.msra.mxu0 %v5385
    %5560 = vmatpush.msra.mxu0 %v5384
    %5561 = vmatpush.msra.mxu0 %v5383
    %5562 = vmatpush.msra.mxu0 %v5382
    %5563 = vmatpush.msra.mxu0 %v5381
    %5564 = vmatpush.msra.mxu0 %v5380
    %5565 = vmatpush.msra.mxu0 %v5379
    %5566 = vmatpush.msra.mxu0 %v5378
    %5567 = vmatpush.msra.mxu0 %v5377
    %5568 = vmatmul.f32.gmra.mxu0 %v5548
    %v5569 = vpop.f32.mrf.mxu0
    %v5570 = vadd.f32 0.0, %v5569
    %5571 = vmatmul.f32.gmra.mxu0 %v5549
    %v5572 = vpop.f32.mrf.mxu0
    %v5573 = vadd.f32 0.0, %v5572
    %5574 = vmatmul.f32.gmra.mxu0 %v5550
    %v5575 = vpop.f32.mrf.mxu0
    %v5576 = vadd.f32 0.0, %v5575
    %5577 = vmatmul.f32.gmra.mxu0 %v5551
    %v5578 = vpop.f32.mrf.mxu0
    %v5579 = vadd.f32 0.0, %v5578
    %5580 = vdwg.mxu0
    %s5581 = scalar_lea.vmem [#allocation10], 32
    %v5582 = vld [vmem:[%s5581] sm:$0xff]
    %v5583 = vld [vmem:[%s5581 + $0x8] sm:$0xff]
    %v5585 = vsel %vm4539, %v5570, 0
    %v5588 = vsel %vm4539, %v5573, 0
    %v5591 = vsel %vm4539, %v5576, 0
    %v5594 = vsel %vm4539, %v5579, 0
    %5596 = vmatpush.msra.mxu0 0.0
    %5597 = vmatpush.msra.mxu0 0.0
    %5598 = vmatpush.msra.mxu0 0.0
    %5599 = vmatpush.msra.mxu0 0.0
    %5600 = vmatpush.msra.mxu0 0.0
    %5601 = vmatpush.msra.mxu0 0.0
    %5602 = vmatpush.msra.mxu0 0.0
    %5603 = vmatpush.msra.mxu0 0.0
    %5604 = vmatpush.msra.mxu0 0.0
    %5605 = vmatpush.msra.mxu0 0.0
    %5606 = vmatpush.msra.mxu0 0.0
    %5607 = vmatpush.msra.mxu0 0.0
    %5608 = vmatpush.msra.mxu0 0.0
    %5609 = vmatpush.msra.mxu0 0.0
    %5610 = vmatpush.msra.mxu0 %v5583
    %5611 = vmatpush.msra.mxu0 %v5582
    %5612 = vmatmul.f32.gmra.mxu0 %v5585
    %v5613 = vpop.f32.mrf.mxu0
    %v5614 = vadd.f32 0.0, %v5613
    %5615 = vmatmul.f32.gmra.mxu0 %v5588
    %v5616 = vpop.f32.mrf.mxu0
    %v5617 = vadd.f32 0.0, %v5616
    %5618 = vmatmul.f32.gmra.mxu0 %v5591
    %v5619 = vpop.f32.mrf.mxu0
    %v5620 = vadd.f32 0.0, %v5619
    %5621 = vmatmul.f32.gmra.mxu0 %v5594
    %v5622 = vpop.f32.mrf.mxu0
    %v5623 = vadd.f32 0.0, %v5622
    %5624 = vdwg.mxu0
    %v5625 = vadd.f32 %v5536, %v5614
    %v5626 = vadd.f32 %v5539, %v5617
    %v5627 = vadd.f32 %v5542, %v5620
    %v5628 = vadd.f32 %v5545, %v5623
    %s5629 = scalar_lea.vmem [#allocation9], 96
    %v5630 = vld [vmem:[%s5629] sm:$0xff]
    %v5631 = vld [vmem:[%s5629 + $0x8] sm:$0xff]
    %v5632 = vld [vmem:[%s5629 + $0x10] sm:$0xff]
    %v5633 = vld [vmem:[%s5629 + $0x18] sm:$0xff]
    %5634 = vmatpush.msra.mxu0 %v5392
    %5635 = vmatpush.msra.mxu0 %v5391
    %5636 = vmatpush.msra.mxu0 %v5390
    %5637 = vmatpush.msra.mxu0 %v5389
    %5638 = vmatpush.msra.mxu0 %v5388
    %5639 = vmatpush.msra.mxu0 %v5387
    %5640 = vmatpush.msra.mxu0 %v5386
    %5641 = vmatpush.msra.mxu0 %v5385
    %5642 = vmatpush.msra.mxu0 %v5384
    %5643 = vmatpush.msra.mxu0 %v5383
    %5644 = vmatpush.msra.mxu0 %v5382
    %5645 = vmatpush.msra.mxu0 %v5381
    %5646 = vmatpush.msra.mxu0 %v5380
    %5647 = vmatpush.msra.mxu0 %v5379
    %5648 = vmatpush.msra.mxu0 %v5378
    %5649 = vmatpush.msra.mxu0 %v5377
    %5650 = vmatmul.f32.gmra.mxu0 %v5630
    %v5651 = vpop.f32.mrf.mxu0
    %v5652 = vadd.f32 0.0, %v5651
    %5653 = vmatmul.f32.gmra.mxu0 %v5631
    %v5654 = vpop.f32.mrf.mxu0
    %v5655 = vadd.f32 0.0, %v5654
    %5656 = vmatmul.f32.gmra.mxu0 %v5632
    %v5657 = vpop.f32.mrf.mxu0
    %v5658 = vadd.f32 0.0, %v5657
    %5659 = vmatmul.f32.gmra.mxu0 %v5633
    %v5660 = vpop.f32.mrf.mxu0
    %v5661 = vadd.f32 0.0, %v5660
    %5662 = vdwg.mxu0
    %s5663 = scalar_lea.vmem [#allocation10], 48
    %v5664 = vld [vmem:[%s5663] sm:$0xff]
    %v5665 = vld [vmem:[%s5663 + $0x8] sm:$0xff]
    %v5667 = vsel %vm4539, %v5652, 0
    %v5670 = vsel %vm4539, %v5655, 0
    %v5673 = vsel %vm4539, %v5658, 0
    %v5676 = vsel %vm4539, %v5661, 0
    %5678 = vmatpush.msra.mxu0 0.0
    %5679 = vmatpush.msra.mxu0 0.0
    %5680 = vmatpush.msra.mxu0 0.0
    %5681 = vmatpush.msra.mxu0 0.0
    %5682 = vmatpush.msra.mxu0 0.0
    %5683 = vmatpush.msra.mxu0 0.0
    %5684 = vmatpush.msra.mxu0 0.0
    %5685 = vmatpush.msra.mxu0 0.0
    %5686 = vmatpush.msra.mxu0 0.0
    %5687 = vmatpush.msra.mxu0 0.0
    %5688 = vmatpush.msra.mxu0 0.0
    %5689 = vmatpush.msra.mxu0 0.0
    %5690 = vmatpush.msra.mxu0 0.0
    %5691 = vmatpush.msra.mxu0 0.0
    %5692 = vmatpush.msra.mxu0 %v5665
    %5693 = vmatpush.msra.mxu0 %v5664
    %5694 = vmatmul.f32.gmra.mxu0 %v5667
    %v5695 = vpop.f32.mrf.mxu0
    %v5696 = vadd.f32 0.0, %v5695
    %5697 = vmatmul.f32.gmra.mxu0 %v5670
    %v5698 = vpop.f32.mrf.mxu0
    %v5699 = vadd.f32 0.0, %v5698
    %5700 = vmatmul.f32.gmra.mxu0 %v5673
    %v5701 = vpop.f32.mrf.mxu0
    %v5702 = vadd.f32 0.0, %v5701
    %5703 = vmatmul.f32.gmra.mxu0 %v5676
    %v5704 = vpop.f32.mrf.mxu0
    %v5705 = vadd.f32 0.0, %v5704
    %5706 = vdwg.mxu0
    %v5707 = vadd.f32 %v5625, %v5696
    %v5708 = vadd.f32 %v5626, %v5699
    %v5709 = vadd.f32 %v5627, %v5702
    %v5710 = vadd.f32 %v5628, %v5705
    %s5711 = scalar_lea.vmem [#allocation9], 128
    %v5712 = vld [vmem:[%s5711] sm:$0xff]
    %v5713 = vld [vmem:[%s5711 + $0x8] sm:$0xff]
    %v5714 = vld [vmem:[%s5711 + $0x10] sm:$0xff]
    %v5715 = vld [vmem:[%s5711 + $0x18] sm:$0xff]
    %5716 = vmatpush.msra.mxu0 %v5392
    %5717 = vmatpush.msra.mxu0 %v5391
    %5718 = vmatpush.msra.mxu0 %v5390
    %5719 = vmatpush.msra.mxu0 %v5389
    %5720 = vmatpush.msra.mxu0 %v5388
    %5721 = vmatpush.msra.mxu0 %v5387
    %5722 = vmatpush.msra.mxu0 %v5386
    %5723 = vmatpush.msra.mxu0 %v5385
    %5724 = vmatpush.msra.mxu0 %v5384
    %5725 = vmatpush.msra.mxu0 %v5383
    %5726 = vmatpush.msra.mxu0 %v5382
    %5727 = vmatpush.msra.mxu0 %v5381
    %5728 = vmatpush.msra.mxu0 %v5380
    %5729 = vmatpush.msra.mxu0 %v5379
    %5730 = vmatpush.msra.mxu0 %v5378
    %5731 = vmatpush.msra.mxu0 %v5377
    %5732 = vmatmul.f32.gmra.mxu0 %v5712
    %v5733 = vpop.f32.mrf.mxu0
    %v5734 = vadd.f32 0.0, %v5733
    %5735 = vmatmul.f32.gmra.mxu0 %v5713
    %v5736 = vpop.f32.mrf.mxu0
    %v5737 = vadd.f32 0.0, %v5736
    %5738 = vmatmul.f32.gmra.mxu0 %v5714
    %v5739 = vpop.f32.mrf.mxu0
    %v5740 = vadd.f32 0.0, %v5739
    %5741 = vmatmul.f32.gmra.mxu0 %v5715
    %v5742 = vpop.f32.mrf.mxu0
    %v5743 = vadd.f32 0.0, %v5742
    %5744 = vdwg.mxu0
    %s5745 = scalar_lea.vmem [#allocation10], 64
    %v5746 = vld [vmem:[%s5745] sm:$0xff]
    %v5747 = vld [vmem:[%s5745 + $0x8] sm:$0xff]
    %v5749 = vsel %vm4539, %v5734, 0
    %v5752 = vsel %vm4539, %v5737, 0
    %v5755 = vsel %vm4539, %v5740, 0
    %v5758 = vsel %vm4539, %v5743, 0
    %5760 = vmatpush.msra.mxu0 0.0
    %5761 = vmatpush.msra.mxu0 0.0
    %5762 = vmatpush.msra.mxu0 0.0
    %5763 = vmatpush.msra.mxu0 0.0
    %5764 = vmatpush.msra.mxu0 0.0
    %5765 = vmatpush.msra.mxu0 0.0
    %5766 = vmatpush.msra.mxu0 0.0
    %5767 = vmatpush.msra.mxu0 0.0
    %5768 = vmatpush.msra.mxu0 0.0
    %5769 = vmatpush.msra.mxu0 0.0
    %5770 = vmatpush.msra.mxu0 0.0
    %5771 = vmatpush.msra.mxu0 0.0
    %5772 = vmatpush.msra.mxu0 0.0
    %5773 = vmatpush.msra.mxu0 0.0
    %5774 = vmatpush.msra.mxu0 %v5747
    %5775 = vmatpush.msra.mxu0 %v5746
    %5776 = vmatmul.f32.gmra.mxu0 %v5749
    %v5777 = vpop.f32.mrf.mxu0
    %v5778 = vadd.f32 0.0, %v5777
    %5779 = vmatmul.f32.gmra.mxu0 %v5752
    %v5780 = vpop.f32.mrf.mxu0
    %v5781 = vadd.f32 0.0, %v5780
    %5782 = vmatmul.f32.gmra.mxu0 %v5755
    %v5783 = vpop.f32.mrf.mxu0
    %v5784 = vadd.f32 0.0, %v5783
    %5785 = vmatmul.f32.gmra.mxu0 %v5758
    %v5786 = vpop.f32.mrf.mxu0
    %v5787 = vadd.f32 0.0, %v5786
    %5788 = vdwg.mxu0
    %v5789 = vadd.f32 %v5707, %v5778
    %v5790 = vadd.f32 %v5708, %v5781
    %v5791 = vadd.f32 %v5709, %v5784
    %v5792 = vadd.f32 %v5710, %v5787
    %s5793 = scalar_lea.vmem [#allocation9], 160
    %v5794 = vld [vmem:[%s5793] sm:$0xff]
    %v5795 = vld [vmem:[%s5793 + $0x8] sm:$0xff]
    %v5796 = vld [vmem:[%s5793 + $0x10] sm:$0xff]
    %v5797 = vld [vmem:[%s5793 + $0x18] sm:$0xff]
    %5798 = vmatpush.msra.mxu0 %v5392
    %5799 = vmatpush.msra.mxu0 %v5391
    %5800 = vmatpush.msra.mxu0 %v5390
    %5801 = vmatpush.msra.mxu0 %v5389
    %5802 = vmatpush.msra.mxu0 %v5388
    %5803 = vmatpush.msra.mxu0 %v5387
    %5804 = vmatpush.msra.mxu0 %v5386
    %5805 = vmatpush.msra.mxu0 %v5385
    %5806 = vmatpush.msra.mxu0 %v5384
    %5807 = vmatpush.msra.mxu0 %v5383
    %5808 = vmatpush.msra.mxu0 %v5382
    %5809 = vmatpush.msra.mxu0 %v5381
    %5810 = vmatpush.msra.mxu0 %v5380
    %5811 = vmatpush.msra.mxu0 %v5379
    %5812 = vmatpush.msra.mxu0 %v5378
    %5813 = vmatpush.msra.mxu0 %v5377
    %5814 = vmatmul.f32.gmra.mxu0 %v5794
    %v5815 = vpop.f32.mrf.mxu0
    %v5816 = vadd.f32 0.0, %v5815
    %5817 = vmatmul.f32.gmra.mxu0 %v5795
    %v5818 = vpop.f32.mrf.mxu0
    %v5819 = vadd.f32 0.0, %v5818
    %5820 = vmatmul.f32.gmra.mxu0 %v5796
    %v5821 = vpop.f32.mrf.mxu0
    %v5822 = vadd.f32 0.0, %v5821
    %5823 = vmatmul.f32.gmra.mxu0 %v5797
    %v5824 = vpop.f32.mrf.mxu0
    %v5825 = vadd.f32 0.0, %v5824
    %5826 = vdwg.mxu0
    %s5827 = scalar_lea.vmem [#allocation10], 80
    %v5828 = vld [vmem:[%s5827] sm:$0xff]
    %v5829 = vld [vmem:[%s5827 + $0x8] sm:$0xff]
    %v5831 = vsel %vm4539, %v5816, 0
    %v5834 = vsel %vm4539, %v5819, 0
    %v5837 = vsel %vm4539, %v5822, 0
    %v5840 = vsel %vm4539, %v5825, 0
    %5842 = vmatpush.msra.mxu0 0.0
    %5843 = vmatpush.msra.mxu0 0.0
    %5844 = vmatpush.msra.mxu0 0.0
    %5845 = vmatpush.msra.mxu0 0.0
    %5846 = vmatpush.msra.mxu0 0.0
    %5847 = vmatpush.msra.mxu0 0.0
    %5848 = vmatpush.msra.mxu0 0.0
    %5849 = vmatpush.msra.mxu0 0.0
    %5850 = vmatpush.msra.mxu0 0.0
    %5851 = vmatpush.msra.mxu0 0.0
    %5852 = vmatpush.msra.mxu0 0.0
    %5853 = vmatpush.msra.mxu0 0.0
    %5854 = vmatpush.msra.mxu0 0.0
    %5855 = vmatpush.msra.mxu0 0.0
    %5856 = vmatpush.msra.mxu0 %v5829
    %5857 = vmatpush.msra.mxu0 %v5828
    %5858 = vmatmul.f32.gmra.mxu0 %v5831
    %v5859 = vpop.f32.mrf.mxu0
    %v5860 = vadd.f32 0.0, %v5859
    %5861 = vmatmul.f32.gmra.mxu0 %v5834
    %v5862 = vpop.f32.mrf.mxu0
    %v5863 = vadd.f32 0.0, %v5862
    %5864 = vmatmul.f32.gmra.mxu0 %v5837
    %v5865 = vpop.f32.mrf.mxu0
    %v5866 = vadd.f32 0.0, %v5865
    %5867 = vmatmul.f32.gmra.mxu0 %v5840
    %v5868 = vpop.f32.mrf.mxu0
    %v5869 = vadd.f32 0.0, %v5868
    %5870 = vdwg.mxu0
    %v5871 = vadd.f32 %v5789, %v5860
    %v5872 = vadd.f32 %v5790, %v5863
    %v5873 = vadd.f32 %v5791, %v5866
    %v5874 = vadd.f32 %v5792, %v5869
    %s5875 = scalar_lea.vmem [#allocation9], 192
    %v5876 = vld [vmem:[%s5875] sm:$0xff]
    %v5877 = vld [vmem:[%s5875 + $0x8] sm:$0xff]
    %v5878 = vld [vmem:[%s5875 + $0x10] sm:$0xff]
    %v5879 = vld [vmem:[%s5875 + $0x18] sm:$0xff]
    %5880 = vmatpush.msra.mxu0 %v5392
    %5881 = vmatpush.msra.mxu0 %v5391
    %5882 = vmatpush.msra.mxu0 %v5390
    %5883 = vmatpush.msra.mxu0 %v5389
    %5884 = vmatpush.msra.mxu0 %v5388
    %5885 = vmatpush.msra.mxu0 %v5387
    %5886 = vmatpush.msra.mxu0 %v5386
    %5887 = vmatpush.msra.mxu0 %v5385
    %5888 = vmatpush.msra.mxu0 %v5384
    %5889 = vmatpush.msra.mxu0 %v5383
    %5890 = vmatpush.msra.mxu0 %v5382
    %5891 = vmatpush.msra.mxu0 %v5381
    %5892 = vmatpush.msra.mxu0 %v5380
    %5893 = vmatpush.msra.mxu0 %v5379
    %5894 = vmatpush.msra.mxu0 %v5378
    %5895 = vmatpush.msra.mxu0 %v5377
    %5896 = vmatmul.f32.gmra.mxu0 %v5876
    %v5897 = vpop.f32.mrf.mxu0
    %v5898 = vadd.f32 0.0, %v5897
    %5899 = vmatmul.f32.gmra.mxu0 %v5877
    %v5900 = vpop.f32.mrf.mxu0
    %v5901 = vadd.f32 0.0, %v5900
    %5902 = vmatmul.f32.gmra.mxu0 %v5878
    %v5903 = vpop.f32.mrf.mxu0
    %v5904 = vadd.f32 0.0, %v5903
    %5905 = vmatmul.f32.gmra.mxu0 %v5879
    %v5906 = vpop.f32.mrf.mxu0
    %v5907 = vadd.f32 0.0, %v5906
    %5908 = vdwg.mxu0
    %s5909 = scalar_lea.vmem [#allocation10], 96
    %v5910 = vld [vmem:[%s5909] sm:$0xff]
    %v5911 = vld [vmem:[%s5909 + $0x8] sm:$0xff]
    %v5913 = vsel %vm4539, %v5898, 0
    %v5916 = vsel %vm4539, %v5901, 0
    %v5919 = vsel %vm4539, %v5904, 0
    %v5922 = vsel %vm4539, %v5907, 0
    %5924 = vmatpush.msra.mxu0 0.0
    %5925 = vmatpush.msra.mxu0 0.0
    %5926 = vmatpush.msra.mxu0 0.0
    %5927 = vmatpush.msra.mxu0 0.0
    %5928 = vmatpush.msra.mxu0 0.0
    %5929 = vmatpush.msra.mxu0 0.0
    %5930 = vmatpush.msra.mxu0 0.0
    %5931 = vmatpush.msra.mxu0 0.0
    %5932 = vmatpush.msra.mxu0 0.0
    %5933 = vmatpush.msra.mxu0 0.0
    %5934 = vmatpush.msra.mxu0 0.0
    %5935 = vmatpush.msra.mxu0 0.0
    %5936 = vmatpush.msra.mxu0 0.0
    %5937 = vmatpush.msra.mxu0 0.0
    %5938 = vmatpush.msra.mxu0 %v5911
    %5939 = vmatpush.msra.mxu0 %v5910
    %5940 = vmatmul.f32.gmra.mxu0 %v5913
    %v5941 = vpop.f32.mrf.mxu0
    %v5942 = vadd.f32 0.0, %v5941
    %5943 = vmatmul.f32.gmra.mxu0 %v5916
    %v5944 = vpop.f32.mrf.mxu0
    %v5945 = vadd.f32 0.0, %v5944
    %5946 = vmatmul.f32.gmra.mxu0 %v5919
    %v5947 = vpop.f32.mrf.mxu0
    %v5948 = vadd.f32 0.0, %v5947
    %5949 = vmatmul.f32.gmra.mxu0 %v5922
    %v5950 = vpop.f32.mrf.mxu0
    %v5951 = vadd.f32 0.0, %v5950
    %5952 = vdwg.mxu0
    %v5953 = vadd.f32 %v5871, %v5942
    %v5954 = vadd.f32 %v5872, %v5945
    %v5955 = vadd.f32 %v5873, %v5948
    %v5956 = vadd.f32 %v5874, %v5951
    %s5957 = scalar_lea.vmem [#allocation9], 224
    %v5958 = vld [vmem:[%s5957] sm:$0xff]
    %v5959 = vld [vmem:[%s5957 + $0x8] sm:$0xff]
    %v5960 = vld [vmem:[%s5957 + $0x10] sm:$0xff]
    %v5961 = vld [vmem:[%s5957 + $0x18] sm:$0xff]
    %5962 = vmatpush.msra.mxu0 %v5392
    %5963 = vmatpush.msra.mxu0 %v5391
    %5964 = vmatpush.msra.mxu0 %v5390
    %5965 = vmatpush.msra.mxu0 %v5389
    %5966 = vmatpush.msra.mxu0 %v5388
    %5967 = vmatpush.msra.mxu0 %v5387
    %5968 = vmatpush.msra.mxu0 %v5386
    %5969 = vmatpush.msra.mxu0 %v5385
    %5970 = vmatpush.msra.mxu0 %v5384
    %5971 = vmatpush.msra.mxu0 %v5383
    %5972 = vmatpush.msra.mxu0 %v5382
    %5973 = vmatpush.msra.mxu0 %v5381
    %5974 = vmatpush.msra.mxu0 %v5380
    %5975 = vmatpush.msra.mxu0 %v5379
    %5976 = vmatpush.msra.mxu0 %v5378
    %5977 = vmatpush.msra.mxu0 %v5377
    %5978 = vmatmul.f32.gmra.mxu0 %v5958
    %v5979 = vpop.f32.mrf.mxu0
    %v5980 = vadd.f32 0.0, %v5979
    %5981 = vmatmul.f32.gmra.mxu0 %v5959
    %v5982 = vpop.f32.mrf.mxu0
    %v5983 = vadd.f32 0.0, %v5982
    %5984 = vmatmul.f32.gmra.mxu0 %v5960
    %v5985 = vpop.f32.mrf.mxu0
    %v5986 = vadd.f32 0.0, %v5985
    %5987 = vmatmul.f32.gmra.mxu0 %v5961
    %v5988 = vpop.f32.mrf.mxu0
    %v5989 = vadd.f32 0.0, %v5988
    %5990 = vdwg.mxu0
    %s5991 = scalar_lea.vmem [#allocation10], 112
    %v5992 = vld [vmem:[%s5991] sm:$0xff]
    %v5993 = vld [vmem:[%s5991 + $0x8] sm:$0xff]
    %v5995 = vsel %vm4539, %v5980, 0
    %v5998 = vsel %vm4539, %v5983, 0
    %v6001 = vsel %vm4539, %v5986, 0
    %v6004 = vsel %vm4539, %v5989, 0
    %6006 = vmatpush.msra.mxu0 0.0
    %6007 = vmatpush.msra.mxu0 0.0
    %6008 = vmatpush.msra.mxu0 0.0
    %6009 = vmatpush.msra.mxu0 0.0
    %6010 = vmatpush.msra.mxu0 0.0
    %6011 = vmatpush.msra.mxu0 0.0
    %6012 = vmatpush.msra.mxu0 0.0
    %6013 = vmatpush.msra.mxu0 0.0
    %6014 = vmatpush.msra.mxu0 0.0
    %6015 = vmatpush.msra.mxu0 0.0
    %6016 = vmatpush.msra.mxu0 0.0
    %6017 = vmatpush.msra.mxu0 0.0
    %6018 = vmatpush.msra.mxu0 0.0
    %6019 = vmatpush.msra.mxu0 0.0
    %6020 = vmatpush.msra.mxu0 %v5993
    %6021 = vmatpush.msra.mxu0 %v5992
    %6022 = vmatmul.f32.gmra.mxu0 %v5995
    %v6023 = vpop.f32.mrf.mxu0
    %v6024 = vadd.f32 0.0, %v6023
    %6025 = vmatmul.f32.gmra.mxu0 %v5998
    %v6026 = vpop.f32.mrf.mxu0
    %v6027 = vadd.f32 0.0, %v6026
    %6028 = vmatmul.f32.gmra.mxu0 %v6001
    %v6029 = vpop.f32.mrf.mxu0
    %v6030 = vadd.f32 0.0, %v6029
    %6031 = vmatmul.f32.gmra.mxu0 %v6004
    %v6032 = vpop.f32.mrf.mxu0
    %v6033 = vadd.f32 0.0, %v6032
    %6034 = vdwg.mxu0
    %v6035 = vadd.f32 %v5953, %v6024
    %v6036 = vadd.f32 %v5954, %v6027
    %v6037 = vadd.f32 %v5955, %v6030
    %v6038 = vadd.f32 %v5956, %v6033
    %s6039 = scalar_lea.vmem [#allocation9], 256
    %v6040 = vld [vmem:[%s6039] sm:$0xff]
    %v6041 = vld [vmem:[%s6039 + $0x8] sm:$0xff]
    %v6042 = vld [vmem:[%s6039 + $0x10] sm:$0xff]
    %v6043 = vld [vmem:[%s6039 + $0x18] sm:$0xff]
    %6044 = vmatpush.msra.mxu0 %v5392
    %6045 = vmatpush.msra.mxu0 %v5391
    %6046 = vmatpush.msra.mxu0 %v5390
    %6047 = vmatpush.msra.mxu0 %v5389
    %6048 = vmatpush.msra.mxu0 %v5388
    %6049 = vmatpush.msra.mxu0 %v5387
    %6050 = vmatpush.msra.mxu0 %v5386
    %6051 = vmatpush.msra.mxu0 %v5385
    %6052 = vmatpush.msra.mxu0 %v5384
    %6053 = vmatpush.msra.mxu0 %v5383
    %6054 = vmatpush.msra.mxu0 %v5382
    %6055 = vmatpush.msra.mxu0 %v5381
    %6056 = vmatpush.msra.mxu0 %v5380
    %6057 = vmatpush.msra.mxu0 %v5379
    %6058 = vmatpush.msra.mxu0 %v5378
    %6059 = vmatpush.msra.mxu0 %v5377
    %6060 = vmatmul.f32.gmra.mxu0 %v6040
    %v6061 = vpop.f32.mrf.mxu0
    %v6062 = vadd.f32 0.0, %v6061
    %6063 = vmatmul.f32.gmra.mxu0 %v6041
    %v6064 = vpop.f32.mrf.mxu0
    %v6065 = vadd.f32 0.0, %v6064
    %6066 = vmatmul.f32.gmra.mxu0 %v6042
    %v6067 = vpop.f32.mrf.mxu0
    %v6068 = vadd.f32 0.0, %v6067
    %6069 = vmatmul.f32.gmra.mxu0 %v6043
    %v6070 = vpop.f32.mrf.mxu0
    %v6071 = vadd.f32 0.0, %v6070
    %6072 = vdwg.mxu0
    %s6073 = scalar_lea.vmem [#allocation10], 128
    %v6074 = vld [vmem:[%s6073] sm:$0xff]
    %v6075 = vld [vmem:[%s6073 + $0x8] sm:$0xff]
    %v6077 = vsel %vm4539, %v6062, 0
    %v6080 = vsel %vm4539, %v6065, 0
    %v6083 = vsel %vm4539, %v6068, 0
    %v6086 = vsel %vm4539, %v6071, 0
    %6088 = vmatpush.msra.mxu0 0.0
    %6089 = vmatpush.msra.mxu0 0.0
    %6090 = vmatpush.msra.mxu0 0.0
    %6091 = vmatpush.msra.mxu0 0.0
    %6092 = vmatpush.msra.mxu0 0.0
    %6093 = vmatpush.msra.mxu0 0.0
    %6094 = vmatpush.msra.mxu0 0.0
    %6095 = vmatpush.msra.mxu0 0.0
    %6096 = vmatpush.msra.mxu0 0.0
    %6097 = vmatpush.msra.mxu0 0.0
    %6098 = vmatpush.msra.mxu0 0.0
    %6099 = vmatpush.msra.mxu0 0.0
    %6100 = vmatpush.msra.mxu0 0.0
    %6101 = vmatpush.msra.mxu0 0.0
    %6102 = vmatpush.msra.mxu0 %v6075
    %6103 = vmatpush.msra.mxu0 %v6074
    %6104 = vmatmul.f32.gmra.mxu0 %v6077
    %v6105 = vpop.f32.mrf.mxu0
    %v6106 = vadd.f32 0.0, %v6105
    %6107 = vmatmul.f32.gmra.mxu0 %v6080
    %v6108 = vpop.f32.mrf.mxu0
    %v6109 = vadd.f32 0.0, %v6108
    %6110 = vmatmul.f32.gmra.mxu0 %v6083
    %v6111 = vpop.f32.mrf.mxu0
    %v6112 = vadd.f32 0.0, %v6111
    %6113 = vmatmul.f32.gmra.mxu0 %v6086
    %v6114 = vpop.f32.mrf.mxu0
    %v6115 = vadd.f32 0.0, %v6114
    %6116 = vdwg.mxu0
    %v6117 = vadd.f32 %v6035, %v6106
    %v6118 = vadd.f32 %v6036, %v6109
    %v6119 = vadd.f32 %v6037, %v6112
    %v6120 = vadd.f32 %v6038, %v6115
    %vm6121 = vcmask 261120
    %v6122 = vsel %vm6121, %v6117, 0.0
    %v6123 = vsel %vm6121, %v6118, 0.0
    %v6124 = vadd.f32 %v6122, %v6123
    %v6125 = vsel %vm6121, %v6119, 0.0
    %v6126 = vadd.f32 %v6124, %v6125
    %v6127 = vsel %vm6121, %v6120, 0.0
    %v6128 = vadd.f32 %v6126, %v6127
    %v6129 = vrot.slane %v6128, 4
    %v6130 = vadd.f32 %v6128, %v6129
    %v6131 = vrot.slane %v6130, 2
    %v6132 = vadd.f32 %v6130, %v6131
    %v6133 = vrot.slane %v6132, 1
    %v6134 = vadd.f32 %v6132, %v6133
    %v6135 = vmul.f32 %v6134, 0.03125
    %v6136 = vmul.f32 %v6117, %v6117
    %v6137 = vmul.f32 %v6118, %v6118
    %v6138 = vmul.f32 %v6119, %v6119
    %v6139 = vmul.f32 %v6120, %v6120
    %v6140 = vsel %vm6121, %v6136, 0.0
    %v6141 = vsel %vm6121, %v6137, 0.0
    %v6142 = vadd.f32 %v6140, %v6141
    %v6143 = vsel %vm6121, %v6138, 0.0
    %v6144 = vadd.f32 %v6142, %v6143
    %v6145 = vsel %vm6121, %v6139, 0.0
    %v6146 = vadd.f32 %v6144, %v6145
    %v6147 = vrot.slane %v6146, 4
    %v6148 = vadd.f32 %v6146, %v6147
    %v6149 = vrot.slane %v6148, 2
    %v6150 = vadd.f32 %v6148, %v6149
    %v6151 = vrot.slane %v6150, 1
    %v6152 = vadd.f32 %v6150, %v6151
    %v6153 = vmul.f32 %v6152, 0.03125
    %v6154 = vmul.f32 %v6135, %v6135
    %v6155 = vsub.f32 %v6153, %v6154
    %v6156 = vmax.f32 %v6155, 0.0
    %v6157 = vld [vmem:[#allocation12] sm:$0x1]
    %v6158 = vadd.f32 %v6156, 1e-05
    %v6159 = vrsqrt.pop %v6158
    %v6160 = vmul.f32 %v6159, %v6158
    %v6161 = vmul.f32 %v6160, %v6159
    %v6162 = vmul.f32 0.5, %v6161
    %v6163 = vsub.f32 1.5, %v6162
    %v6164 = vmul.f32 %v6159, %v6163
    %vm6165 = vweird.f32 %v6158
    %vm6166 = vweird.f32 %v6159
    %vm6167 = vmor %vm6165, %vm6166
    %v6168 = vsel %vm6167, %v6159, %v6164
    %v6169 = vmul.f32 %v6157, %v6168
    %v6170 = vld [vmem:[#allocation13] sm:$0x1]
    %v6171 = vmul.f32 %v6135, %v6169
    %v6172 = vsub.f32 %v6170, %v6171
    %v6174 = vperm.slane %v6169, 0
    %v6176 = vmul.f32 %v6117, %v6174
    %v6177 = vmul.f32 %v6118, %v6174
    %v6178 = vmul.f32 %v6119, %v6174
    %v6179 = vmul.f32 %v6120, %v6174
    %v6181 = vperm.slane %v6172, 0
    %v6183 = vadd.f32 %v6176, %v6181
    %v6184 = vadd.f32 %v6177, %v6181
    %v6185 = vadd.f32 %v6178, %v6181
    %v6186 = vadd.f32 %v6179, %v6181
    %v6187 = vmul.f32 %v6183, 0.5
    %v6188 = vmul.f32 %v6184, 0.5
    %v6189 = vmul.f32 %v6185, 0.5
    %v6190 = vmul.f32 %v6186, 0.5
    %v6191 = vmul.f32 %v6183, 0.70710677
    %v6192 = vmul.f32 %v6184, 0.70710677
    %v6193 = vmul.f32 %v6185, 0.70710677
    %v6194 = vmul.f32 %v6186, 0.70710677
    %v6195 = vmul.f32 %v6191, %v6191
    %v6196 = vmin.f32 16.0, %v6195
    %v6197 = vmul.f32 %v6196, 2.1237322e-06
    %v6198 = vadd.f32 %v6197, 0.00028619796
    %v6199 = vmul.f32 %v6196, %v6198
    %v6200 = vadd.f32 %v6199, 0.0036580483
    %v6201 = vmul.f32 %v6196, %v6200
    %v6202 = vadd.f32 %v6201, 0.05243302
    %v6203 = vmul.f32 %v6196, %v6202
    %v6204 = vadd.f32 %v6203, 0.18741608
    %v6205 = vmul.f32 %v6196, %v6204
    %v6206 = vadd.f32 %v6205, 1.1283791
    %v6207 = vmul.f32 %v6191, %v6206
    %v6208 = vmul.f32 %v6196, 3.8918573e-05
    %v6209 = vadd.f32 %v6208, 0.001143296
    %v6210 = vmul.f32 %v6196, %v6209
    %v6211 = vadd.f32 %v6210, 0.014752088
    %v6212 = vmul.f32 %v6196, %v6211
    %v6213 = vadd.f32 %v6212, 0.112945676
    %v6214 = vmul.f32 %v6196, %v6213
    %v6215 = vadd.f32 %v6214, 0.4994258
    %v6216 = vmul.f32 %v6196, %v6215
    %v6217 = vadd.f32 %v6216, 1.0
    %v6218 = vrcp.pop %v6217
    %v6219 = vmul.f32 %v6217, %v6218
    %v6220 = vsub.f32 1.0, %v6219
    %v6221 = vmul.f32 %v6218, %v6220
    %v6222 = vadd.f32 %v6218, %v6221
    %vm6223 = vweird.f32 %v6217
    %vm6224 = vweird.f32 %v6218
    %vm6225 = vmor %vm6223, %vm6224
    %v6226 = vsel %vm6225, %v6218, %v6222
    %v6227 = vand.u32 2147483647, %v6217
    %vm6228 = vcmp.eq.f32.partialorder %v6227, 8.507059e+37
    %v6229 = vand.u32 %v6217, 2147483648
    %v6230 = vor.u32 1.1754944e-38, %v6229
    %v6231 = vsel %vm6228, %v6230, %v6226
    %v6232 = vmul.f32 %v6207, %v6231
    %v6233 = vmin.f32 %v6232, 1.0
    %v6234 = vmax.f32 %v6233, -1.0
    %v6235 = vmul.f32 %v6192, %v6192
    %v6236 = vmin.f32 16.0, %v6235
    %v6237 = vmul.f32 %v6236, 2.1237322e-06
    %v6238 = vadd.f32 %v6237, 0.00028619796
    %v6239 = vmul.f32 %v6236, %v6238
    %v6240 = vadd.f32 %v6239, 0.0036580483
    %v6241 = vmul.f32 %v6236, %v6240
    %v6242 = vadd.f32 %v6241, 0.05243302
    %v6243 = vmul.f32 %v6236, %v6242
    %v6244 = vadd.f32 %v6243, 0.18741608
    %v6245 = vmul.f32 %v6236, %v6244
    %v6246 = vadd.f32 %v6245, 1.1283791
    %v6247 = vmul.f32 %v6192, %v6246
    %v6248 = vmul.f32 %v6236, 3.8918573e-05
    %v6249 = vadd.f32 %v6248, 0.001143296
    %v6250 = vmul.f32 %v6236, %v6249
    %v6251 = vadd.f32 %v6250, 0.014752088
    %v6252 = vmul.f32 %v6236, %v6251
    %v6253 = vadd.f32 %v6252, 0.112945676
    %v6254 = vmul.f32 %v6236, %v6253
    %v6255 = vadd.f32 %v6254, 0.4994258
    %v6256 = vmul.f32 %v6236, %v6255
    %v6257 = vadd.f32 %v6256, 1.0
    %v6258 = vrcp.pop %v6257
    %v6259 = vmul.f32 %v6257, %v6258
    %v6260 = vsub.f32 1.0, %v6259
    %v6261 = vmul.f32 %v6258, %v6260
    %v6262 = vadd.f32 %v6258, %v6261
    %vm6263 = vweird.f32 %v6257
    %vm6264 = vweird.f32 %v6258
    %vm6265 = vmor %vm6263, %vm6264
    %v6266 = vsel %vm6265, %v6258, %v6262
    %v6267 = vand.u32 2147483647, %v6257
    %vm6268 = vcmp.eq.f32.partialorder %v6267, 8.507059e+37
    %v6269 = vand.u32 %v6257, 2147483648
    %v6270 = vor.u32 1.1754944e-38, %v6269
    %v6271 = vsel %vm6268, %v6270, %v6266
    %v6272 = vmul.f32 %v6247, %v6271
    %v6273 = vmin.f32 %v6272, 1.0
    %v6274 = vmax.f32 %v6273, -1.0
    %v6275 = vmul.f32 %v6193, %v6193
    %v6276 = vmin.f32 16.0, %v6275
    %v6277 = vmul.f32 %v6276, 2.1237322e-06
    %v6278 = vadd.f32 %v6277, 0.00028619796
    %v6279 = vmul.f32 %v6276, %v6278
    %v6280 = vadd.f32 %v6279, 0.0036580483
    %v6281 = vmul.f32 %v6276, %v6280
    %v6282 = vadd.f32 %v6281, 0.05243302
    %v6283 = vmul.f32 %v6276, %v6282
    %v6284 = vadd.f32 %v6283, 0.18741608
    %v6285 = vmul.f32 %v6276, %v6284
    %v6286 = vadd.f32 %v6285, 1.1283791
    %v6287 = vmul.f32 %v6193, %v6286
    %v6288 = vmul.f32 %v6276, 3.8918573e-05
    %v6289 = vadd.f32 %v6288, 0.001143296
    %v6290 = vmul.f32 %v6276, %v6289
    %v6291 = vadd.f32 %v6290, 0.014752088
    %v6292 = vmul.f32 %v6276, %v6291
    %v6293 = vadd.f32 %v6292, 0.112945676
    %v6294 = vmul.f32 %v6276, %v6293
    %v6295 = vadd.f32 %v6294, 0.4994258
    %v6296 = vmul.f32 %v6276, %v6295
    %v6297 = vadd.f32 %v6296, 1.0
    %v6298 = vrcp.pop %v6297
    %v6299 = vmul.f32 %v6297, %v6298
    %v6300 = vsub.f32 1.0, %v6299
    %v6301 = vmul.f32 %v6298, %v6300
    %v6302 = vadd.f32 %v6298, %v6301
    %vm6303 = vweird.f32 %v6297
    %vm6304 = vweird.f32 %v6298
    %vm6305 = vmor %vm6303, %vm6304
    %v6306 = vsel %vm6305, %v6298, %v6302
    %v6307 = vand.u32 2147483647, %v6297
    %vm6308 = vcmp.eq.f32.partialorder %v6307, 8.507059e+37
    %v6309 = vand.u32 %v6297, 2147483648
    %v6310 = vor.u32 1.1754944e-38, %v6309
    %v6311 = vsel %vm6308, %v6310, %v6306
    %v6312 = vmul.f32 %v6287, %v6311
    %v6313 = vmin.f32 %v6312, 1.0
    %v6314 = vmax.f32 %v6313, -1.0
    %v6315 = vmul.f32 %v6194, %v6194
    %v6316 = vmin.f32 16.0, %v6315
    %v6317 = vmul.f32 %v6316, 2.1237322e-06
    %v6318 = vadd.f32 %v6317, 0.00028619796
    %v6319 = vmul.f32 %v6316, %v6318
    %v6320 = vadd.f32 %v6319, 0.0036580483
    %v6321 = vmul.f32 %v6316, %v6320
    %v6322 = vadd.f32 %v6321, 0.05243302
    %v6323 = vmul.f32 %v6316, %v6322
    %v6324 = vadd.f32 %v6323, 0.18741608
    %v6325 = vmul.f32 %v6316, %v6324
    %v6326 = vadd.f32 %v6325, 1.1283791
    %v6327 = vmul.f32 %v6194, %v6326
    %v6328 = vmul.f32 %v6316, 3.8918573e-05
    %v6329 = vadd.f32 %v6328, 0.001143296
    %v6330 = vmul.f32 %v6316, %v6329
    %v6331 = vadd.f32 %v6330, 0.014752088
    %v6332 = vmul.f32 %v6316, %v6331
    %v6333 = vadd.f32 %v6332, 0.112945676
    %v6334 = vmul.f32 %v6316, %v6333
    %v6335 = vadd.f32 %v6334, 0.4994258
    %v6336 = vmul.f32 %v6316, %v6335
    %v6337 = vadd.f32 %v6336, 1.0
    %v6338 = vrcp.pop %v6337
    %v6339 = vmul.f32 %v6337, %v6338
    %v6340 = vsub.f32 1.0, %v6339
    %v6341 = vmul.f32 %v6338, %v6340
    %v6342 = vadd.f32 %v6338, %v6341
    %vm6343 = vweird.f32 %v6337
    %vm6344 = vweird.f32 %v6338
    %vm6345 = vmor %vm6343, %vm6344
    %v6346 = vsel %vm6345, %v6338, %v6342
    %v6347 = vand.u32 2147483647, %v6337
    %vm6348 = vcmp.eq.f32.partialorder %v6347, 8.507059e+37
    %v6349 = vand.u32 %v6337, 2147483648
    %v6350 = vor.u32 1.1754944e-38, %v6349
    %v6351 = vsel %vm6348, %v6350, %v6346
    %v6352 = vmul.f32 %v6327, %v6351
    %v6353 = vmin.f32 %v6352, 1.0
    %v6354 = vmax.f32 %v6353, -1.0
    %v6355 = vadd.f32 %v6234, 1.0
    %v6356 = vadd.f32 %v6274, 1.0
    %v6357 = vadd.f32 %v6314, 1.0
    %v6358 = vadd.f32 %v6354, 1.0
    %v6359 = vmul.f32 %v6187, %v6355
    %v6360 = vmul.f32 %v6188, %v6356
    %v6361 = vmul.f32 %v6189, %v6357
    %v6362 = vmul.f32 %v6190, %v6358
    %v6363 = vld [vmem:[#allocation15] sm:$0xff]
    %v6365 = vsel %vm6121, %v6363, 0
    %6367 = vmatpush.msra.mxu0 0.0
    %6368 = vmatpush.msra.mxu0 0.0
    %6369 = vmatpush.msra.mxu0 0.0
    %6370 = vmatpush.msra.mxu0 0.0
    %6371 = vmatpush.msra.mxu0 0.0
    %6372 = vmatpush.msra.mxu0 0.0
    %6373 = vmatpush.msra.mxu0 0.0
    %6374 = vmatpush.msra.mxu0 0.0
    %6375 = vmatpush.msra.mxu0 0.0
    %6376 = vmatpush.msra.mxu0 0.0
    %6377 = vmatpush.msra.mxu0 0.0
    %6378 = vmatpush.msra.mxu0 0.0
    %6379 = vmatpush.msra.mxu0 %v6362
    %6380 = vmatpush.msra.mxu0 %v6361
    %6381 = vmatpush.msra.mxu0 %v6360
    %6382 = vmatpush.msra.mxu0 %v6359
    %6383 = vmatmul.f32.gmra.mxu0 %v6365
    %v6384 = vpop.f32.mrf.mxu0
    %v6385 = vadd.f32 0.0, %v6384
    %6386 = vdwg.mxu0
    %v6387 = vld [vmem:[#allocation16] sm:$0xff]
    %v6388 = vld [vmem:[#allocation16 + $0x8] sm:$0xff]
    %v6389 = vld [vmem:[#allocation16 + $0x10] sm:$0xff]
    %v6390 = vld [vmem:[#allocation16 + $0x18] sm:$0xff]
    %s6391 = scalar_lea.vmem [#allocation15], 8
    %v6392 = vld [vmem:[%s6391] sm:$0xff]
    %v6394 = vsel %vm6121, %v6392, 0
    %6396 = vmatpush.msra.mxu0 0.0
    %6397 = vmatpush.msra.mxu0 0.0
    %6398 = vmatpush.msra.mxu0 0.0
    %6399 = vmatpush.msra.mxu0 0.0
    %6400 = vmatpush.msra.mxu0 0.0
    %6401 = vmatpush.msra.mxu0 0.0
    %6402 = vmatpush.msra.mxu0 0.0
    %6403 = vmatpush.msra.mxu0 0.0
    %6404 = vmatpush.msra.mxu0 0.0
    %6405 = vmatpush.msra.mxu0 0.0
    %6406 = vmatpush.msra.mxu0 0.0
    %6407 = vmatpush.msra.mxu0 0.0
    %6408 = vmatpush.msra.mxu0 %v6362
    %6409 = vmatpush.msra.mxu0 %v6361
    %6410 = vmatpush.msra.mxu0 %v6360
    %6411 = vmatpush.msra.mxu0 %v6359
    %6412 = vmatmul.f32.gmra.mxu0 %v6394
    %v6413 = vpop.f32.mrf.mxu0
    %v6414 = vadd.f32 0.0, %v6413
    %6415 = vdwg.mxu0
    %s6416 = scalar_lea.vmem [#allocation16], 32
    %v6417 = vld [vmem:[%s6416] sm:$0xff]
    %v6418 = vld [vmem:[%s6416 + $0x8] sm:$0xff]
    %v6419 = vld [vmem:[%s6416 + $0x10] sm:$0xff]
    %v6420 = vld [vmem:[%s6416 + $0x18] sm:$0xff]
    %v6422 = vsel %vm6121, %v6414, 0
    %6424 = vmatpush.msra.mxu0 0.0
    %6425 = vmatpush.msra.mxu0 0.0
    %6426 = vmatpush.msra.mxu0 0.0
    %6427 = vmatpush.msra.mxu0 0.0
    %6428 = vmatpush.msra.mxu0 0.0
    %6429 = vmatpush.msra.mxu0 0.0
    %6430 = vmatpush.msra.mxu0 0.0
    %6431 = vmatpush.msra.mxu0 0.0
    %6432 = vmatpush.msra.mxu0 0.0
    %6433 = vmatpush.msra.mxu0 0.0
    %6434 = vmatpush.msra.mxu0 0.0
    %6435 = vmatpush.msra.mxu0 0.0
    %6436 = vmatpush.msra.mxu0 %v6420
    %6437 = vmatpush.msra.mxu0 %v6419
    %6438 = vmatpush.msra.mxu0 %v6418
    %6439 = vmatpush.msra.mxu0 %v6417
    %6440 = vmatmul.f32.gmra.mxu0 %v6422
    %v6441 = vpop.f32.mrf.mxu0
    %v6442 = vadd.f32 0.0, %v6441
    %6443 = vdwg.mxu0
    %v6445 = vsel %vm6121, %v6385, 0
    %6447 = vmatpush.msra.mxu0 0.0
    %6448 = vmatpush.msra.mxu0 0.0
    %6449 = vmatpush.msra.mxu0 0.0
    %6450 = vmatpush.msra.mxu0 0.0
    %6451 = vmatpush.msra.mxu0 0.0
    %6452 = vmatpush.msra.mxu0 0.0
    %6453 = vmatpush.msra.mxu0 0.0
    %6454 = vmatpush.msra.mxu0 0.0
    %6455 = vmatpush.msra.mxu0 0.0
    %6456 = vmatpush.msra.mxu0 0.0
    %6457 = vmatpush.msra.mxu0 0.0
    %6458 = vmatpush.msra.mxu0 0.0
    %6459 = vmatpush.msra.mxu0 %v6390
    %6460 = vmatpush.msra.mxu0 %v6389
    %6461 = vmatpush.msra.mxu0 %v6388
    %6462 = vmatpush.msra.mxu0 %v6387
    %6463 = vmatmul.f32.gmra.mxu0 %v6445
    %v6464 = vpop.f32.mrf.mxu0
    %v6465 = vadd.f32 %v6442, %v6464
    %6466 = vdwg.mxu0
    %s6467 = scalar_lea.vmem [#allocation15], 16
    %v6468 = vld [vmem:[%s6467] sm:$0xff]
    %v6470 = vsel %vm6121, %v6468, 0
    %6472 = vmatpush.msra.mxu0 0.0
    %6473 = vmatpush.msra.mxu0 0.0
    %6474 = vmatpush.msra.mxu0 0.0
    %6475 = vmatpush.msra.mxu0 0.0
    %6476 = vmatpush.msra.mxu0 0.0
    %6477 = vmatpush.msra.mxu0 0.0
    %6478 = vmatpush.msra.mxu0 0.0
    %6479 = vmatpush.msra.mxu0 0.0
    %6480 = vmatpush.msra.mxu0 0.0
    %6481 = vmatpush.msra.mxu0 0.0
    %6482 = vmatpush.msra.mxu0 0.0
    %6483 = vmatpush.msra.mxu0 0.0
    %6484 = vmatpush.msra.mxu0 %v6362
    %6485 = vmatpush.msra.mxu0 %v6361
    %6486 = vmatpush.msra.mxu0 %v6360
    %6487 = vmatpush.msra.mxu0 %v6359
    %6488 = vmatmul.f32.gmra.mxu0 %v6470
    %v6489 = vpop.f32.mrf.mxu0
    %v6490 = vadd.f32 0.0, %v6489
    %6491 = vdwg.mxu0
    %s6492 = scalar_lea.vmem [#allocation16], 64
    %v6493 = vld [vmem:[%s6492] sm:$0xff]
    %v6494 = vld [vmem:[%s6492 + $0x8] sm:$0xff]
    %v6495 = vld [vmem:[%s6492 + $0x10] sm:$0xff]
    %v6496 = vld [vmem:[%s6492 + $0x18] sm:$0xff]
    %v6498 = vsel %vm6121, %v6490, 0
    %6500 = vmatpush.msra.mxu0 0.0
    %6501 = vmatpush.msra.mxu0 0.0
    %6502 = vmatpush.msra.mxu0 0.0
    %6503 = vmatpush.msra.mxu0 0.0
    %6504 = vmatpush.msra.mxu0 0.0
    %6505 = vmatpush.msra.mxu0 0.0
    %6506 = vmatpush.msra.mxu0 0.0
    %6507 = vmatpush.msra.mxu0 0.0
    %6508 = vmatpush.msra.mxu0 0.0
    %6509 = vmatpush.msra.mxu0 0.0
    %6510 = vmatpush.msra.mxu0 0.0
    %6511 = vmatpush.msra.mxu0 0.0
    %6512 = vmatpush.msra.mxu0 %v6496
    %6513 = vmatpush.msra.mxu0 %v6495
    %6514 = vmatpush.msra.mxu0 %v6494
    %6515 = vmatpush.msra.mxu0 %v6493
    %6516 = vmatmul.f32.gmra.mxu0 %v6498
    %v6517 = vpop.f32.mrf.mxu0
    %v6518 = vadd.f32 0.0, %v6517
    %6519 = vdwg.mxu0
    %v6520 = vadd.f32 %v6465, %v6518
    %s6521 = scalar_lea.vmem [#allocation15], 24
    %v6522 = vld [vmem:[%s6521] sm:$0xff]
    %v6524 = vsel %vm6121, %v6522, 0
    %6526 = vmatpush.msra.mxu0 0.0
    %6527 = vmatpush.msra.mxu0 0.0
    %6528 = vmatpush.msra.mxu0 0.0
    %6529 = vmatpush.msra.mxu0 0.0
    %6530 = vmatpush.msra.mxu0 0.0
    %6531 = vmatpush.msra.mxu0 0.0
    %6532 = vmatpush.msra.mxu0 0.0
    %6533 = vmatpush.msra.mxu0 0.0
    %6534 = vmatpush.msra.mxu0 0.0
    %6535 = vmatpush.msra.mxu0 0.0
    %6536 = vmatpush.msra.mxu0 0.0
    %6537 = vmatpush.msra.mxu0 0.0
    %6538 = vmatpush.msra.mxu0 %v6362
    %6539 = vmatpush.msra.mxu0 %v6361
    %6540 = vmatpush.msra.mxu0 %v6360
    %6541 = vmatpush.msra.mxu0 %v6359
    %6542 = vmatmul.f32.gmra.mxu0 %v6524
    %v6543 = vpop.f32.mrf.mxu0
    %v6544 = vadd.f32 0.0, %v6543
    %6545 = vdwg.mxu0
    %s6546 = scalar_lea.vmem [#allocation16], 96
    %v6547 = vld [vmem:[%s6546] sm:$0xff]
    %v6548 = vld [vmem:[%s6546 + $0x8] sm:$0xff]
    %v6549 = vld [vmem:[%s6546 + $0x10] sm:$0xff]
    %v6550 = vld [vmem:[%s6546 + $0x18] sm:$0xff]
    %v6552 = vsel %vm6121, %v6544, 0
    %6554 = vmatpush.msra.mxu0 0.0
    %6555 = vmatpush.msra.mxu0 0.0
    %6556 = vmatpush.msra.mxu0 0.0
    %6557 = vmatpush.msra.mxu0 0.0
    %6558 = vmatpush.msra.mxu0 0.0
    %6559 = vmatpush.msra.mxu0 0.0
    %6560 = vmatpush.msra.mxu0 0.0
    %6561 = vmatpush.msra.mxu0 0.0
    %6562 = vmatpush.msra.mxu0 0.0
    %6563 = vmatpush.msra.mxu0 0.0
    %6564 = vmatpush.msra.mxu0 0.0
    %6565 = vmatpush.msra.mxu0 0.0
    %6566 = vmatpush.msra.mxu0 %v6550
    %6567 = vmatpush.msra.mxu0 %v6549
    %6568 = vmatpush.msra.mxu0 %v6548
    %6569 = vmatpush.msra.mxu0 %v6547
    %6570 = vmatmul.f32.gmra.mxu0 %v6552
    %v6571 = vpop.f32.mrf.mxu0
    %v6572 = vadd.f32 0.0, %v6571
    %6573 = vdwg.mxu0
    %v6574 = vadd.f32 %v6520, %v6572
    %s6575 = scalar_lea.vmem [#allocation15], 32
    %v6576 = vld [vmem:[%s6575] sm:$0xff]
    %v6578 = vsel %vm6121, %v6576, 0
    %6580 = vmatpush.msra.mxu0 0.0
    %6581 = vmatpush.msra.mxu0 0.0
    %6582 = vmatpush.msra.mxu0 0.0
    %6583 = vmatpush.msra.mxu0 0.0
    %6584 = vmatpush.msra.mxu0 0.0
    %6585 = vmatpush.msra.mxu0 0.0
    %6586 = vmatpush.msra.mxu0 0.0
    %6587 = vmatpush.msra.mxu0 0.0
    %6588 = vmatpush.msra.mxu0 0.0
    %6589 = vmatpush.msra.mxu0 0.0
    %6590 = vmatpush.msra.mxu0 0.0
    %6591 = vmatpush.msra.mxu0 0.0
    %6592 = vmatpush.msra.mxu0 %v6362
    %6593 = vmatpush.msra.mxu0 %v6361
    %6594 = vmatpush.msra.mxu0 %v6360
    %6595 = vmatpush.msra.mxu0 %v6359
    %6596 = vmatmul.f32.gmra.mxu0 %v6578
    %v6597 = vpop.f32.mrf.mxu0
    %v6598 = vadd.f32 0.0, %v6597
    %6599 = vdwg.mxu0
    %s6600 = scalar_lea.vmem [#allocation16], 128
    %v6601 = vld [vmem:[%s6600] sm:$0xff]
    %v6602 = vld [vmem:[%s6600 + $0x8] sm:$0xff]
    %v6603 = vld [vmem:[%s6600 + $0x10] sm:$0xff]
    %v6604 = vld [vmem:[%s6600 + $0x18] sm:$0xff]
    %v6606 = vsel %vm6121, %v6598, 0
    %6608 = vmatpush.msra.mxu0 0.0
    %6609 = vmatpush.msra.mxu0 0.0
    %6610 = vmatpush.msra.mxu0 0.0
    %6611 = vmatpush.msra.mxu0 0.0
    %6612 = vmatpush.msra.mxu0 0.0
    %6613 = vmatpush.msra.mxu0 0.0
    %6614 = vmatpush.msra.mxu0 0.0
    %6615 = vmatpush.msra.mxu0 0.0
    %6616 = vmatpush.msra.mxu0 0.0
    %6617 = vmatpush.msra.mxu0 0.0
    %6618 = vmatpush.msra.mxu0 0.0
    %6619 = vmatpush.msra.mxu0 0.0
    %6620 = vmatpush.msra.mxu0 %v6604
    %6621 = vmatpush.msra.mxu0 %v6603
    %6622 = vmatpush.msra.mxu0 %v6602
    %6623 = vmatpush.msra.mxu0 %v6601
    %6624 = vmatmul.f32.gmra.mxu0 %v6606
    %v6625 = vpop.f32.mrf.mxu0
    %v6626 = vadd.f32 0.0, %v6625
    %6627 = vdwg.mxu0
    %v6628 = vadd.f32 %v6574, %v6626
    %s6629 = scalar_lea.vmem [#allocation15], 40
    %v6630 = vld [vmem:[%s6629] sm:$0xff]
    %v6632 = vsel %vm6121, %v6630, 0
    %6634 = vmatpush.msra.mxu0 0.0
    %6635 = vmatpush.msra.mxu0 0.0
    %6636 = vmatpush.msra.mxu0 0.0
    %6637 = vmatpush.msra.mxu0 0.0
    %6638 = vmatpush.msra.mxu0 0.0
    %6639 = vmatpush.msra.mxu0 0.0
    %6640 = vmatpush.msra.mxu0 0.0
    %6641 = vmatpush.msra.mxu0 0.0
    %6642 = vmatpush.msra.mxu0 0.0
    %6643 = vmatpush.msra.mxu0 0.0
    %6644 = vmatpush.msra.mxu0 0.0
    %6645 = vmatpush.msra.mxu0 0.0
    %6646 = vmatpush.msra.mxu0 %v6362
    %6647 = vmatpush.msra.mxu0 %v6361
    %6648 = vmatpush.msra.mxu0 %v6360
    %6649 = vmatpush.msra.mxu0 %v6359
    %6650 = vmatmul.f32.gmra.mxu0 %v6632
    %v6651 = vpop.f32.mrf.mxu0
    %v6652 = vadd.f32 0.0, %v6651
    %6653 = vdwg.mxu0
    %s6654 = scalar_lea.vmem [#allocation16], 160
    %v6655 = vld [vmem:[%s6654] sm:$0xff]
    %v6656 = vld [vmem:[%s6654 + $0x8] sm:$0xff]
    %v6657 = vld [vmem:[%s6654 + $0x10] sm:$0xff]
    %v6658 = vld [vmem:[%s6654 + $0x18] sm:$0xff]
    %v6660 = vsel %vm6121, %v6652, 0
    %6662 = vmatpush.msra.mxu0 0.0
    %6663 = vmatpush.msra.mxu0 0.0
    %6664 = vmatpush.msra.mxu0 0.0
    %6665 = vmatpush.msra.mxu0 0.0
    %6666 = vmatpush.msra.mxu0 0.0
    %6667 = vmatpush.msra.mxu0 0.0
    %6668 = vmatpush.msra.mxu0 0.0
    %6669 = vmatpush.msra.mxu0 0.0
    %6670 = vmatpush.msra.mxu0 0.0
    %6671 = vmatpush.msra.mxu0 0.0
    %6672 = vmatpush.msra.mxu0 0.0
    %6673 = vmatpush.msra.mxu0 0.0
    %6674 = vmatpush.msra.mxu0 %v6658
    %6675 = vmatpush.msra.mxu0 %v6657
    %6676 = vmatpush.msra.mxu0 %v6656
    %6677 = vmatpush.msra.mxu0 %v6655
    %6678 = vmatmul.f32.gmra.mxu0 %v6660
    %v6679 = vpop.f32.mrf.mxu0
    %v6680 = vadd.f32 0.0, %v6679
    %6681 = vdwg.mxu0
    %v6682 = vadd.f32 %v6628, %v6680
    %s6683 = scalar_lea.vmem [#allocation15], 48
    %v6684 = vld [vmem:[%s6683] sm:$0xff]
    %v6686 = vsel %vm6121, %v6684, 0
    %6688 = vmatpush.msra.mxu0 0.0
    %6689 = vmatpush.msra.mxu0 0.0
    %6690 = vmatpush.msra.mxu0 0.0
    %6691 = vmatpush.msra.mxu0 0.0
    %6692 = vmatpush.msra.mxu0 0.0
    %6693 = vmatpush.msra.mxu0 0.0
    %6694 = vmatpush.msra.mxu0 0.0
    %6695 = vmatpush.msra.mxu0 0.0
    %6696 = vmatpush.msra.mxu0 0.0
    %6697 = vmatpush.msra.mxu0 0.0
    %6698 = vmatpush.msra.mxu0 0.0
    %6699 = vmatpush.msra.mxu0 0.0
    %6700 = vmatpush.msra.mxu0 %v6362
    %6701 = vmatpush.msra.mxu0 %v6361
    %6702 = vmatpush.msra.mxu0 %v6360
    %6703 = vmatpush.msra.mxu0 %v6359
    %6704 = vmatmul.f32.gmra.mxu0 %v6686
    %v6705 = vpop.f32.mrf.mxu0
    %v6706 = vadd.f32 0.0, %v6705
    %6707 = vdwg.mxu0
    %s6708 = scalar_lea.vmem [#allocation16], 192
    %v6709 = vld [vmem:[%s6708] sm:$0xff]
    %v6710 = vld [vmem:[%s6708 + $0x8] sm:$0xff]
    %v6711 = vld [vmem:[%s6708 + $0x10] sm:$0xff]
    %v6712 = vld [vmem:[%s6708 + $0x18] sm:$0xff]
    %v6714 = vsel %vm6121, %v6706, 0
    %6716 = vmatpush.msra.mxu0 0.0
    %6717 = vmatpush.msra.mxu0 0.0
    %6718 = vmatpush.msra.mxu0 0.0
    %6719 = vmatpush.msra.mxu0 0.0
    %6720 = vmatpush.msra.mxu0 0.0
    %6721 = vmatpush.msra.mxu0 0.0
    %6722 = vmatpush.msra.mxu0 0.0
    %6723 = vmatpush.msra.mxu0 0.0
    %6724 = vmatpush.msra.mxu0 0.0
    %6725 = vmatpush.msra.mxu0 0.0
    %6726 = vmatpush.msra.mxu0 0.0
    %6727 = vmatpush.msra.mxu0 0.0
    %6728 = vmatpush.msra.mxu0 %v6712
    %6729 = vmatpush.msra.mxu0 %v6711
    %6730 = vmatpush.msra.mxu0 %v6710
    %6731 = vmatpush.msra.mxu0 %v6709
    %6732 = vmatmul.f32.gmra.mxu0 %v6714
    %v6733 = vpop.f32.mrf.mxu0
    %v6734 = vadd.f32 0.0, %v6733
    %6735 = vdwg.mxu0
    %v6736 = vadd.f32 %v6682, %v6734
    %s6737 = scalar_lea.vmem [#allocation15], 56
    %v6738 = vld [vmem:[%s6737] sm:$0xff]
    %v6740 = vsel %vm6121, %v6738, 0
    %6742 = vmatpush.msra.mxu0 0.0
    %6743 = vmatpush.msra.mxu0 0.0
    %6744 = vmatpush.msra.mxu0 0.0
    %6745 = vmatpush.msra.mxu0 0.0
    %6746 = vmatpush.msra.mxu0 0.0
    %6747 = vmatpush.msra.mxu0 0.0
    %6748 = vmatpush.msra.mxu0 0.0
    %6749 = vmatpush.msra.mxu0 0.0
    %6750 = vmatpush.msra.mxu0 0.0
    %6751 = vmatpush.msra.mxu0 0.0
    %6752 = vmatpush.msra.mxu0 0.0
    %6753 = vmatpush.msra.mxu0 0.0
    %6754 = vmatpush.msra.mxu0 %v6362
    %6755 = vmatpush.msra.mxu0 %v6361
    %6756 = vmatpush.msra.mxu0 %v6360
    %6757 = vmatpush.msra.mxu0 %v6359
    %6758 = vmatmul.f32.gmra.mxu0 %v6740
    %v6759 = vpop.f32.mrf.mxu0
    %v6760 = vadd.f32 0.0, %v6759
    %6761 = vdwg.mxu0
    %s6762 = scalar_lea.vmem [#allocation16], 224
    %v6763 = vld [vmem:[%s6762] sm:$0xff]
    %v6764 = vld [vmem:[%s6762 + $0x8] sm:$0xff]
    %v6765 = vld [vmem:[%s6762 + $0x10] sm:$0xff]
    %v6766 = vld [vmem:[%s6762 + $0x18] sm:$0xff]
    %v6768 = vsel %vm6121, %v6760, 0
    %6770 = vmatpush.msra.mxu0 0.0
    %6771 = vmatpush.msra.mxu0 0.0
    %6772 = vmatpush.msra.mxu0 0.0
    %6773 = vmatpush.msra.mxu0 0.0
    %6774 = vmatpush.msra.mxu0 0.0
    %6775 = vmatpush.msra.mxu0 0.0
    %6776 = vmatpush.msra.mxu0 0.0
    %6777 = vmatpush.msra.mxu0 0.0
    %6778 = vmatpush.msra.mxu0 0.0
    %6779 = vmatpush.msra.mxu0 0.0
    %6780 = vmatpush.msra.mxu0 0.0
    %6781 = vmatpush.msra.mxu0 0.0
    %6782 = vmatpush.msra.mxu0 %v6766
    %6783 = vmatpush.msra.mxu0 %v6765
    %6784 = vmatpush.msra.mxu0 %v6764
    %6785 = vmatpush.msra.mxu0 %v6763
    %6786 = vmatmul.f32.gmra.mxu0 %v6768
    %v6787 = vpop.f32.mrf.mxu0
    %v6788 = vadd.f32 0.0, %v6787
    %6789 = vdwg.mxu0
    %v6790 = vadd.f32 %v6736, %v6788
    %s6791 = scalar_lea.vmem [#allocation15], 64
    %v6792 = vld [vmem:[%s6791] sm:$0xff]
    %v6794 = vsel %vm6121, %v6792, 0
    %6796 = vmatpush.msra.mxu0 0.0
    %6797 = vmatpush.msra.mxu0 0.0
    %6798 = vmatpush.msra.mxu0 0.0
    %6799 = vmatpush.msra.mxu0 0.0
    %6800 = vmatpush.msra.mxu0 0.0
    %6801 = vmatpush.msra.mxu0 0.0
    %6802 = vmatpush.msra.mxu0 0.0
    %6803 = vmatpush.msra.mxu0 0.0
    %6804 = vmatpush.msra.mxu0 0.0
    %6805 = vmatpush.msra.mxu0 0.0
    %6806 = vmatpush.msra.mxu0 0.0
    %6807 = vmatpush.msra.mxu0 0.0
    %6808 = vmatpush.msra.mxu0 %v6362
    %6809 = vmatpush.msra.mxu0 %v6361
    %6810 = vmatpush.msra.mxu0 %v6360
    %6811 = vmatpush.msra.mxu0 %v6359
    %6812 = vmatmul.f32.gmra.mxu0 %v6794
    %v6813 = vpop.f32.mrf.mxu0
    %v6814 = vadd.f32 0.0, %v6813
    %6815 = vdwg.mxu0
    %s6816 = scalar_lea.vmem [#allocation16], 256
    %v6817 = vld [vmem:[%s6816] sm:$0xff]
    %v6818 = vld [vmem:[%s6816 + $0x8] sm:$0xff]
    %v6819 = vld [vmem:[%s6816 + $0x10] sm:$0xff]
    %v6820 = vld [vmem:[%s6816 + $0x18] sm:$0xff]
    %v6822 = vsel %vm6121, %v6814, 0
    %6824 = vmatpush.msra.mxu0 0.0
    %6825 = vmatpush.msra.mxu0 0.0
    %6826 = vmatpush.msra.mxu0 0.0
    %6827 = vmatpush.msra.mxu0 0.0
    %6828 = vmatpush.msra.mxu0 0.0
    %6829 = vmatpush.msra.mxu0 0.0
    %6830 = vmatpush.msra.mxu0 0.0
    %6831 = vmatpush.msra.mxu0 0.0
    %6832 = vmatpush.msra.mxu0 0.0
    %6833 = vmatpush.msra.mxu0 0.0
    %6834 = vmatpush.msra.mxu0 0.0
    %6835 = vmatpush.msra.mxu0 0.0
    %6836 = vmatpush.msra.mxu0 %v6820
    %6837 = vmatpush.msra.mxu0 %v6819
    %6838 = vmatpush.msra.mxu0 %v6818
    %6839 = vmatpush.msra.mxu0 %v6817
    %6840 = vmatmul.f32.gmra.mxu0 %v6822
    %v6841 = vpop.f32.mrf.mxu0
    %v6842 = vadd.f32 0.0, %v6841
    %6843 = vdwg.mxu0
    %v6844 = vadd.f32 %v6790, %v6842
    %vm6845 = vcmask 523264
    %v6846 = vsel %vm6845, %v6844, 0.0
    %v6847 = vrot.slane %v6846, 4
    %v6848 = vadd.f32 %v6846, %v6847
    %v6849 = vrot.slane %v6848, 2
    %v6850 = vadd.f32 %v6848, %v6849
    %v6851 = vrot.slane %v6850, 1
    %v6852 = vadd.f32 %v6850, %v6851
    %v6853 = vmul.f32 %v6852, 0.125
    %v6854 = vmul.f32 %v6844, %v6844
    %v6855 = vsel %vm6845, %v6854, 0.0
    %v6856 = vrot.slane %v6855, 4
    %v6857 = vadd.f32 %v6855, %v6856
    %v6858 = vrot.slane %v6857, 2
    %v6859 = vadd.f32 %v6857, %v6858
    %v6860 = vrot.slane %v6859, 1
    %v6861 = vadd.f32 %v6859, %v6860
    %v6862 = vmul.f32 %v6861, 0.125
    %v6863 = vmul.f32 %v6853, %v6853
    %v6864 = vsub.f32 %v6862, %v6863
    %v6865 = vmax.f32 %v6864, 0.0
    %v6866 = vld [vmem:[#allocation18] sm:$0x1]
    %v6867 = vadd.f32 %v6865, 1e-05
    %v6868 = vrsqrt.pop %v6867
    %v6869 = vmul.f32 %v6868, %v6867
    %v6870 = vmul.f32 %v6869, %v6868
    %v6871 = vmul.f32 0.5, %v6870
    %v6872 = vsub.f32 1.5, %v6871
    %v6873 = vmul.f32 %v6868, %v6872
    %vm6874 = vweird.f32 %v6867
    %vm6875 = vweird.f32 %v6868
    %vm6876 = vmor %vm6874, %vm6875
    %v6877 = vsel %vm6876, %v6868, %v6873
    %v6878 = vmul.f32 %v6866, %v6877
    %v6879 = vld [vmem:[#allocation19] sm:$0x1]
    %v6880 = vmul.f32 %v6853, %v6878
    %v6881 = vsub.f32 %v6879, %v6880
    %v6883 = vperm.slane %v6878, 0
    %v6885 = vmul.f32 %v6844, %v6883
    %v6887 = vperm.slane %v6881, 0
    %v6889 = vadd.f32 %v6885, %v6887
    %v6890 = vmul.f32 %v6889, 0.5
    %v6891 = vmul.f32 %v6889, 0.70710677
    %v6892 = vmul.f32 %v6891, %v6891
    %v6893 = vmin.f32 16.0, %v6892
    %v6894 = vmul.f32 %v6893, 2.1237322e-06
    %v6895 = vadd.f32 %v6894, 0.00028619796
    %v6896 = vmul.f32 %v6893, %v6895
    %v6897 = vadd.f32 %v6896, 0.0036580483
    %v6898 = vmul.f32 %v6893, %v6897
    %v6899 = vadd.f32 %v6898, 0.05243302
    %v6900 = vmul.f32 %v6893, %v6899
    %v6901 = vadd.f32 %v6900, 0.18741608
    %v6902 = vmul.f32 %v6893, %v6901
    %v6903 = vadd.f32 %v6902, 1.1283791
    %v6904 = vmul.f32 %v6891, %v6903
    %v6905 = vmul.f32 %v6893, 3.8918573e-05
    %v6906 = vadd.f32 %v6905, 0.001143296
    %v6907 = vmul.f32 %v6893, %v6906
    %v6908 = vadd.f32 %v6907, 0.014752088
    %v6909 = vmul.f32 %v6893, %v6908
    %v6910 = vadd.f32 %v6909, 0.112945676
    %v6911 = vmul.f32 %v6893, %v6910
    %v6912 = vadd.f32 %v6911, 0.4994258
    %v6913 = vmul.f32 %v6893, %v6912
    %v6914 = vadd.f32 %v6913, 1.0
    %v6915 = vrcp.pop %v6914
    %v6916 = vmul.f32 %v6914, %v6915
    %v6917 = vsub.f32 1.0, %v6916
    %v6918 = vmul.f32 %v6915, %v6917
    %v6919 = vadd.f32 %v6915, %v6918
    %vm6920 = vweird.f32 %v6914
    %vm6921 = vweird.f32 %v6915
    %vm6922 = vmor %vm6920, %vm6921
    %v6923 = vsel %vm6922, %v6915, %v6919
    %v6924 = vand.u32 2147483647, %v6914
    %vm6925 = vcmp.eq.f32.partialorder %v6924, 8.507059e+37
    %v6926 = vand.u32 %v6914, 2147483648
    %v6927 = vor.u32 1.1754944e-38, %v6926
    %v6928 = vsel %vm6925, %v6927, %v6923
    %v6929 = vmul.f32 %v6904, %v6928
    %v6930 = vmin.f32 %v6929, 1.0
    %v6931 = vmax.f32 %v6930, -1.0
    %v6932 = vadd.f32 %v6931, 1.0
    %v6933 = vmul.f32 %v6890, %v6932
    %v6934 = vld [vmem:[#allocation21] sm:$0x3]
    %vm6935 = vcmask 64512
    %v6937 = vsel %vm6935, %v6934, 0
    %6939 = vmatpush.msra.mxu0 0.0
    %6940 = vmatpush.msra.mxu0 0.0
    %6941 = vmatpush.msra.mxu0 0.0
    %6942 = vmatpush.msra.mxu0 0.0
    %6943 = vmatpush.msra.mxu0 0.0
    %6944 = vmatpush.msra.mxu0 0.0
    %6945 = vmatpush.msra.mxu0 0.0
    %6946 = vmatpush.msra.mxu0 0.0
    %6947 = vmatpush.msra.mxu0 0.0
    %6948 = vmatpush.msra.mxu0 0.0
    %6949 = vmatpush.msra.mxu0 0.0
    %6950 = vmatpush.msra.mxu0 0.0
    %6951 = vmatpush.msra.mxu0 0.0
    %6952 = vmatpush.msra.mxu0 0.0
    %6953 = vmatpush.msra.mxu0 0.0
    %6954 = vmatpush.msra.mxu0 %v6933
    %6955 = vmatmul.f32.gmra.mxu0 %v6937
    %v6956 = vpop.f32.mrf.mxu0
    %v6957 = vadd.f32 0.0, %v6956
    %6958 = vdwg.mxu0
    %v6959 = vld [vmem:[#allocation22] sm:$0xff]
    %v6960 = vld [vmem:[#allocation22 + $0x8] sm:$0xff]
    %v6961 = vld [vmem:[#allocation22 + $0x10] sm:$0xff]
    %v6962 = vld [vmem:[#allocation22 + $0x18] sm:$0xff]
    %v6963 = vld [vmem:[#allocation22 + $0x20] sm:$0xff]
    %v6964 = vld [vmem:[#allocation22 + $0x28] sm:$0xff]
    %v6965 = vld [vmem:[#allocation22 + $0x30] sm:$0xff]
    %v6966 = vld [vmem:[#allocation22 + $0x38] sm:$0xff]
    %s6967 = scalar_lea.vmem [#allocation21], 2
    %v6968 = vld [vmem:[%s6967] sm:$0x3]
    %v6970 = vsel %vm6935, %v6968, 0
    %6972 = vmatpush.msra.mxu0 0.0
    %6973 = vmatpush.msra.mxu0 0.0
    %6974 = vmatpush.msra.mxu0 0.0
    %6975 = vmatpush.msra.mxu0 0.0
    %6976 = vmatpush.msra.mxu0 0.0
    %6977 = vmatpush.msra.mxu0 0.0
    %6978 = vmatpush.msra.mxu0 0.0
    %6979 = vmatpush.msra.mxu0 0.0
    %6980 = vmatpush.msra.mxu0 0.0
    %6981 = vmatpush.msra.mxu0 0.0
    %6982 = vmatpush.msra.mxu0 0.0
    %6983 = vmatpush.msra.mxu0 0.0
    %6984 = vmatpush.msra.mxu0 0.0
    %6985 = vmatpush.msra.mxu0 0.0
    %6986 = vmatpush.msra.mxu0 0.0
    %6987 = vmatpush.msra.mxu0 %v6933
    %6988 = vmatmul.f32.gmra.mxu0 %v6970
    %v6989 = vpop.f32.mrf.mxu0
    %v6990 = vadd.f32 0.0, %v6989
    %6991 = vdwg.mxu0
    %s6992 = scalar_lea.vmem [#allocation22], 64
    %v6993 = vld [vmem:[%s6992] sm:$0xff]
    %v6994 = vld [vmem:[%s6992 + $0x8] sm:$0xff]
    %v6995 = vld [vmem:[%s6992 + $0x10] sm:$0xff]
    %v6996 = vld [vmem:[%s6992 + $0x18] sm:$0xff]
    %v6997 = vld [vmem:[%s6992 + $0x20] sm:$0xff]
    %v6998 = vld [vmem:[%s6992 + $0x28] sm:$0xff]
    %v6999 = vld [vmem:[%s6992 + $0x30] sm:$0xff]
    %v7000 = vld [vmem:[%s6992 + $0x38] sm:$0xff]
    %v7002 = vsel %vm6845, %v6990, 0
    %7004 = vmatpush.msra.mxu0 0.0
    %7005 = vmatpush.msra.mxu0 0.0
    %7006 = vmatpush.msra.mxu0 0.0
    %7007 = vmatpush.msra.mxu0 0.0
    %7008 = vmatpush.msra.mxu0 0.0
    %7009 = vmatpush.msra.mxu0 0.0
    %7010 = vmatpush.msra.mxu0 0.0
    %7011 = vmatpush.msra.mxu0 0.0
    %7012 = vmatpush.msra.mxu0 %v7000
    %7013 = vmatpush.msra.mxu0 %v6999
    %7014 = vmatpush.msra.mxu0 %v6998
    %7015 = vmatpush.msra.mxu0 %v6997
    %7016 = vmatpush.msra.mxu0 %v6996
    %7017 = vmatpush.msra.mxu0 %v6995
    %7018 = vmatpush.msra.mxu0 %v6994
    %7019 = vmatpush.msra.mxu0 %v6993
    %7020 = vmatmul.f32.gmra.mxu0 %v7002
    %v7021 = vpop.f32.mrf.mxu0
    %v7022 = vadd.f32 0.0, %v7021
    %7023 = vdwg.mxu0
    %v7025 = vsel %vm6845, %v6957, 0
    %7027 = vmatpush.msra.mxu0 0.0
    %7028 = vmatpush.msra.mxu0 0.0
    %7029 = vmatpush.msra.mxu0 0.0
    %7030 = vmatpush.msra.mxu0 0.0
    %7031 = vmatpush.msra.mxu0 0.0
    %7032 = vmatpush.msra.mxu0 0.0
    %7033 = vmatpush.msra.mxu0 0.0
    %7034 = vmatpush.msra.mxu0 0.0
    %7035 = vmatpush.msra.mxu0 %v6966
    %7036 = vmatpush.msra.mxu0 %v6965
    %7037 = vmatpush.msra.mxu0 %v6964
    %7038 = vmatpush.msra.mxu0 %v6963
    %7039 = vmatpush.msra.mxu0 %v6962
    %7040 = vmatpush.msra.mxu0 %v6961
    %7041 = vmatpush.msra.mxu0 %v6960
    %7042 = vmatpush.msra.mxu0 %v6959
    %7043 = vmatmul.f32.gmra.mxu0 %v7025
    %v7044 = vpop.f32.mrf.mxu0
    %v7045 = vadd.f32 %v7022, %v7044
    %7046 = vdwg.mxu0
    %s7047 = scalar_lea.vmem [#allocation21], 4
    %v7048 = vld [vmem:[%s7047] sm:$0x3]
    %v7050 = vsel %vm6935, %v7048, 0
    %7052 = vmatpush.msra.mxu0 0.0
    %7053 = vmatpush.msra.mxu0 0.0
    %7054 = vmatpush.msra.mxu0 0.0
    %7055 = vmatpush.msra.mxu0 0.0
    %7056 = vmatpush.msra.mxu0 0.0
    %7057 = vmatpush.msra.mxu0 0.0
    %7058 = vmatpush.msra.mxu0 0.0
    %7059 = vmatpush.msra.mxu0 0.0
    %7060 = vmatpush.msra.mxu0 0.0
    %7061 = vmatpush.msra.mxu0 0.0
    %7062 = vmatpush.msra.mxu0 0.0
    %7063 = vmatpush.msra.mxu0 0.0
    %7064 = vmatpush.msra.mxu0 0.0
    %7065 = vmatpush.msra.mxu0 0.0
    %7066 = vmatpush.msra.mxu0 0.0
    %7067 = vmatpush.msra.mxu0 %v6933
    %7068 = vmatmul.f32.gmra.mxu0 %v7050
    %v7069 = vpop.f32.mrf.mxu0
    %v7070 = vadd.f32 0.0, %v7069
    %7071 = vdwg.mxu0
    %s7072 = scalar_lea.vmem [#allocation22], 128
    %v7073 = vld [vmem:[%s7072] sm:$0xff]
    %v7074 = vld [vmem:[%s7072 + $0x8] sm:$0xff]
    %v7075 = vld [vmem:[%s7072 + $0x10] sm:$0xff]
    %v7076 = vld [vmem:[%s7072 + $0x18] sm:$0xff]
    %v7077 = vld [vmem:[%s7072 + $0x20] sm:$0xff]
    %v7078 = vld [vmem:[%s7072 + $0x28] sm:$0xff]
    %v7079 = vld [vmem:[%s7072 + $0x30] sm:$0xff]
    %v7080 = vld [vmem:[%s7072 + $0x38] sm:$0xff]
    %v7082 = vsel %vm6845, %v7070, 0
    %7084 = vmatpush.msra.mxu0 0.0
    %7085 = vmatpush.msra.mxu0 0.0
    %7086 = vmatpush.msra.mxu0 0.0
    %7087 = vmatpush.msra.mxu0 0.0
    %7088 = vmatpush.msra.mxu0 0.0
    %7089 = vmatpush.msra.mxu0 0.0
    %7090 = vmatpush.msra.mxu0 0.0
    %7091 = vmatpush.msra.mxu0 0.0
    %7092 = vmatpush.msra.mxu0 %v7080
    %7093 = vmatpush.msra.mxu0 %v7079
    %7094 = vmatpush.msra.mxu0 %v7078
    %7095 = vmatpush.msra.mxu0 %v7077
    %7096 = vmatpush.msra.mxu0 %v7076
    %7097 = vmatpush.msra.mxu0 %v7075
    %7098 = vmatpush.msra.mxu0 %v7074
    %7099 = vmatpush.msra.mxu0 %v7073
    %7100 = vmatmul.f32.gmra.mxu0 %v7082
    %v7101 = vpop.f32.mrf.mxu0
    %v7102 = vadd.f32 0.0, %v7101
    %7103 = vdwg.mxu0
    %v7104 = vadd.f32 %v7045, %v7102
    %s7105 = scalar_lea.vmem [#allocation21], 6
    %v7106 = vld [vmem:[%s7105] sm:$0x3]
    %v7108 = vsel %vm6935, %v7106, 0
    %7110 = vmatpush.msra.mxu0 0.0
    %7111 = vmatpush.msra.mxu0 0.0
    %7112 = vmatpush.msra.mxu0 0.0
    %7113 = vmatpush.msra.mxu0 0.0
    %7114 = vmatpush.msra.mxu0 0.0
    %7115 = vmatpush.msra.mxu0 0.0
    %7116 = vmatpush.msra.mxu0 0.0
    %7117 = vmatpush.msra.mxu0 0.0
    %7118 = vmatpush.msra.mxu0 0.0
    %7119 = vmatpush.msra.mxu0 0.0
    %7120 = vmatpush.msra.mxu0 0.0
    %7121 = vmatpush.msra.mxu0 0.0
    %7122 = vmatpush.msra.mxu0 0.0
    %7123 = vmatpush.msra.mxu0 0.0
    %7124 = vmatpush.msra.mxu0 0.0
    %7125 = vmatpush.msra.mxu0 %v6933
    %7126 = vmatmul.f32.gmra.mxu0 %v7108
    %v7127 = vpop.f32.mrf.mxu0
    %v7128 = vadd.f32 0.0, %v7127
    %7129 = vdwg.mxu0
    %s7130 = scalar_lea.vmem [#allocation22], 192
    %v7131 = vld [vmem:[%s7130] sm:$0xff]
    %v7132 = vld [vmem:[%s7130 + $0x8] sm:$0xff]
    %v7133 = vld [vmem:[%s7130 + $0x10] sm:$0xff]
    %v7134 = vld [vmem:[%s7130 + $0x18] sm:$0xff]
    %v7135 = vld [vmem:[%s7130 + $0x20] sm:$0xff]
    %v7136 = vld [vmem:[%s7130 + $0x28] sm:$0xff]
    %v7137 = vld [vmem:[%s7130 + $0x30] sm:$0xff]
    %v7138 = vld [vmem:[%s7130 + $0x38] sm:$0xff]
    %v7140 = vsel %vm6845, %v7128, 0
    %7142 = vmatpush.msra.mxu0 0.0
    %7143 = vmatpush.msra.mxu0 0.0
    %7144 = vmatpush.msra.mxu0 0.0
    %7145 = vmatpush.msra.mxu0 0.0
    %7146 = vmatpush.msra.mxu0 0.0
    %7147 = vmatpush.msra.mxu0 0.0
    %7148 = vmatpush.msra.mxu0 0.0
    %7149 = vmatpush.msra.mxu0 0.0
    %7150 = vmatpush.msra.mxu0 %v7138
    %7151 = vmatpush.msra.mxu0 %v7137
    %7152 = vmatpush.msra.mxu0 %v7136
    %7153 = vmatpush.msra.mxu0 %v7135
    %7154 = vmatpush.msra.mxu0 %v7134
    %7155 = vmatpush.msra.mxu0 %v7133
    %7156 = vmatpush.msra.mxu0 %v7132
    %7157 = vmatpush.msra.mxu0 %v7131
    %7158 = vmatmul.f32.gmra.mxu0 %v7140
    %v7159 = vpop.f32.mrf.mxu0
    %v7160 = vadd.f32 0.0, %v7159
    %7161 = vdwg.mxu0
    %v7162 = vadd.f32 %v7104, %v7160
    %vm7163 = vcmask 1041408
    %v7164 = vsel %vm7163, %v7162, 0.0
    %v7165 = vrot.slane %v7164, 4
    %v7166 = vadd.f32 %v7164, %v7165
    %v7167 = vrot.slane %v7166, 2
    %v7168 = vadd.f32 %v7166, %v7167
    %v7169 = vrot.slane %v7168, 1
    %v7170 = vadd.f32 %v7168, %v7169
    %v7171 = vmul.f32 %v7170, 0.5
    %v7172 = vmul.f32 %v7162, %v7162
    %v7173 = vsel %vm7163, %v7172, 0.0
    %v7174 = vrot.slane %v7173, 4
    %v7175 = vadd.f32 %v7173, %v7174
    %v7176 = vrot.slane %v7175, 2
    %v7177 = vadd.f32 %v7175, %v7176
    %v7178 = vrot.slane %v7177, 1
    %v7179 = vadd.f32 %v7177, %v7178
    %v7180 = vmul.f32 %v7179, 0.5
    %v7181 = vmul.f32 %v7171, %v7171
    %v7182 = vsub.f32 %v7180, %v7181
    %v7183 = vmax.f32 %v7182, 0.0
    %v7184 = vld [vmem:[#allocation24] sm:$0x1]
    %v7185 = vadd.f32 %v7183, 1e-05
    %v7186 = vrsqrt.pop %v7185
    %v7187 = vmul.f32 %v7186, %v7185
    %v7188 = vmul.f32 %v7187, %v7186
    %v7189 = vmul.f32 0.5, %v7188
    %v7190 = vsub.f32 1.5, %v7189
    %v7191 = vmul.f32 %v7186, %v7190
    %vm7192 = vweird.f32 %v7185
    %vm7193 = vweird.f32 %v7186
    %vm7194 = vmor %vm7192, %vm7193
    %v7195 = vsel %vm7194, %v7186, %v7191
    %v7196 = vmul.f32 %v7184, %v7195
    %v7197 = vld [vmem:[#allocation25] sm:$0x1]
    %v7198 = vmul.f32 %v7171, %v7196
    %v7199 = vsub.f32 %v7197, %v7198
    %v7201 = vperm.slane %v7196, 0
    %v7203 = vmul.f32 %v7162, %v7201
    %v7205 = vperm.slane %v7199, 0
    %v7207 = vadd.f32 %v7203, %v7205
    %v7208 = vmul.f32 %v7207, 0.5
    %v7209 = vmul.f32 %v7207, 0.70710677
    %v7210 = vmul.f32 %v7209, %v7209
    %v7211 = vmin.f32 16.0, %v7210
    %v7212 = vmul.f32 %v7211, 2.1237322e-06
    %v7213 = vadd.f32 %v7212, 0.00028619796
    %v7214 = vmul.f32 %v7211, %v7213
    %v7215 = vadd.f32 %v7214, 0.0036580483
    %v7216 = vmul.f32 %v7211, %v7215
    %v7217 = vadd.f32 %v7216, 0.05243302
    %v7218 = vmul.f32 %v7211, %v7217
    %v7219 = vadd.f32 %v7218, 0.18741608
    %v7220 = vmul.f32 %v7211, %v7219
    %v7221 = vadd.f32 %v7220, 1.1283791
    %v7222 = vmul.f32 %v7209, %v7221
    %v7223 = vmul.f32 %v7211, 3.8918573e-05
    %v7224 = vadd.f32 %v7223, 0.001143296
    %v7225 = vmul.f32 %v7211, %v7224
    %v7226 = vadd.f32 %v7225, 0.014752088
    %v7227 = vmul.f32 %v7211, %v7226
    %v7228 = vadd.f32 %v7227, 0.112945676
    %v7229 = vmul.f32 %v7211, %v7228
    %v7230 = vadd.f32 %v7229, 0.4994258
    %v7231 = vmul.f32 %v7211, %v7230
    %v7232 = vadd.f32 %v7231, 1.0
    %v7233 = vrcp.pop %v7232
    %v7234 = vmul.f32 %v7232, %v7233
    %v7235 = vsub.f32 1.0, %v7234
    %v7236 = vmul.f32 %v7233, %v7235
    %v7237 = vadd.f32 %v7233, %v7236
    %vm7238 = vweird.f32 %v7232
    %vm7239 = vweird.f32 %v7233
    %vm7240 = vmor %vm7238, %vm7239
    %v7241 = vsel %vm7240, %v7233, %v7237
    %v7242 = vand.u32 2147483647, %v7232
    %vm7243 = vcmp.eq.f32.partialorder %v7242, 8.507059e+37
    %v7244 = vand.u32 %v7232, 2147483648
    %v7245 = vor.u32 1.1754944e-38, %v7244
    %v7246 = vsel %vm7243, %v7245, %v7241
    %v7247 = vmul.f32 %v7222, %v7246
    %v7248 = vmin.f32 %v7247, 1.0
    %v7249 = vmax.f32 %v7248, -1.0
    %v7250 = vadd.f32 %v7249, 1.0
    %v7251 = vmul.f32 %v7208, %v7250
    %v7252 = vld [vmem:[#allocation27] sm:$0x3]
    %vm7253 = vcmask 15360
    %v7255 = vsel %vm7253, %v7252, 0
    %v7258 = vsel %vm7163, %v7251, 0
    %7260 = vmatpush.msra.mxu0 0.0
    %7261 = vmatpush.msra.mxu0 0.0
    %7262 = vmatpush.msra.mxu0 0.0
    %7263 = vmatpush.msra.mxu0 0.0
    %7264 = vmatpush.msra.mxu0 0.0
    %7265 = vmatpush.msra.mxu0 0.0
    %7266 = vmatpush.msra.mxu0 0.0
    %7267 = vmatpush.msra.mxu0 0.0
    %7268 = vmatpush.msra.mxu0 0.0
    %7269 = vmatpush.msra.mxu0 0.0
    %7270 = vmatpush.msra.mxu0 0.0
    %7271 = vmatpush.msra.mxu0 0.0
    %7272 = vmatpush.msra.mxu0 0.0
    %7273 = vmatpush.msra.mxu0 0.0
    %7274 = vmatpush.msra.mxu0 0.0
    %7275 = vmatpush.msra.mxu0 %v7258
    %7276 = vmatmul.f32.gmra.mxu0 %v7255
    %v7277 = vpop.f32.mrf.mxu0
    %v7278 = vadd.f32 0.0, %v7277
    %7279 = vdwg.mxu0
    %v7280 = vld [vmem:[#allocation28] sm:$0xff]
    %v7281 = vld [vmem:[#allocation28 + $0x8] sm:$0xff]
    %v7282 = vld [vmem:[#allocation28 + $0x10] sm:$0xff]
    %v7283 = vld [vmem:[#allocation28 + $0x18] sm:$0xff]
    %v7284 = vld [vmem:[#allocation28 + $0x20] sm:$0xff]
    %v7285 = vld [vmem:[#allocation28 + $0x28] sm:$0xff]
    %v7286 = vld [vmem:[#allocation28 + $0x30] sm:$0xff]
    %v7287 = vld [vmem:[#allocation28 + $0x38] sm:$0xff]
    %v7288 = vld [vmem:[#allocation28 + $0x40] sm:$0xff]
    %v7289 = vld [vmem:[#allocation28 + $0x48] sm:$0xff]
    %v7290 = vld [vmem:[#allocation28 + $0x50] sm:$0xff]
    %v7291 = vld [vmem:[#allocation28 + $0x58] sm:$0xff]
    %v7292 = vld [vmem:[#allocation28 + $0x60] sm:$0xff]
    %v7293 = vld [vmem:[#allocation28 + $0x68] sm:$0xff]
    %v7294 = vld [vmem:[#allocation28 + $0x70] sm:$0xff]
    %v7295 = vld [vmem:[#allocation28 + $0x78] sm:$0xff]
    %v7296 = vld [vmem:[#allocation28 + $0x80] sm:$0xff]
    %v7297 = vld [vmem:[#allocation28 + $0x88] sm:$0xff]
    %v7298 = vld [vmem:[#allocation28 + $0x90] sm:$0xff]
    %v7299 = vld [vmem:[#allocation28 + $0x98] sm:$0xff]
    %v7300 = vld [vmem:[#allocation28 + $0xa0] sm:$0xff]
    %v7301 = vld [vmem:[#allocation28 + $0xa8] sm:$0xff]
    %v7302 = vld [vmem:[#allocation28 + $0xb0] sm:$0xff]
    %v7303 = vld [vmem:[#allocation28 + $0xb8] sm:$0xff]
    %v7304 = vld [vmem:[#allocation28 + $0xc0] sm:$0xff]
    %v7305 = vld [vmem:[#allocation28 + $0xc8] sm:$0xff]
    %v7306 = vld [vmem:[#allocation28 + $0xd0] sm:$0xff]
    %v7307 = vld [vmem:[#allocation28 + $0xd8] sm:$0xff]
    %v7308 = vld [vmem:[#allocation28 + $0xe0] sm:$0xff]
    %v7309 = vld [vmem:[#allocation28 + $0xe8] sm:$0xff]
    %v7310 = vld [vmem:[#allocation28 + $0xf0] sm:$0xff]
    %v7311 = vld [vmem:[#allocation28 + $0xf8] sm:$0xff]
    %7312 = vmatpush.msra.mxu0 %v7310
    %7313 = vmatpush.msra.mxu0 %v7308
    %7314 = vmatpush.msra.mxu0 %v7306
    %7315 = vmatpush.msra.mxu0 %v7304
    %7316 = vmatpush.msra.mxu0 %v7302
    %7317 = vmatpush.msra.mxu0 %v7300
    %7318 = vmatpush.msra.mxu0 %v7298
    %7319 = vmatpush.msra.mxu0 %v7296
    %7320 = vmatpush.msra.mxu0 %v7294
    %7321 = vmatpush.msra.mxu0 %v7292
    %7322 = vmatpush.msra.mxu0 %v7290
    %7323 = vmatpush.msra.mxu0 %v7288
    %7324 = vmatpush.msra.mxu0 %v7286
    %7325 = vmatpush.msra.mxu0 %v7284
    %7326 = vmatpush.msra.mxu0 %v7282
    %7327 = vmatpush.msra.mxu0 %v7280
    %7328 = vmatmul.f32.gmra.mxu0 %v7278
    %v7329 = vpop.f32.mrf.mxu0
    %v7330 = vadd.f32 0.0, %v7329
    %7331 = vdwg.mxu0
    %7332 = vmatpush.msra.mxu0 %v7311
    %7333 = vmatpush.msra.mxu0 %v7309
    %7334 = vmatpush.msra.mxu0 %v7307
    %7335 = vmatpush.msra.mxu0 %v7305
    %7336 = vmatpush.msra.mxu0 %v7303
    %7337 = vmatpush.msra.mxu0 %v7301
    %7338 = vmatpush.msra.mxu0 %v7299
    %7339 = vmatpush.msra.mxu0 %v7297
    %7340 = vmatpush.msra.mxu0 %v7295
    %7341 = vmatpush.msra.mxu0 %v7293
    %7342 = vmatpush.msra.mxu0 %v7291
    %7343 = vmatpush.msra.mxu0 %v7289
    %7344 = vmatpush.msra.mxu0 %v7287
    %7345 = vmatpush.msra.mxu0 %v7285
    %7346 = vmatpush.msra.mxu0 %v7283
    %7347 = vmatpush.msra.mxu0 %v7281
    %7348 = vmatmul.f32.gmra.mxu0 %v7278
    %v7349 = vpop.f32.mrf.mxu0
    %v7350 = vadd.f32 0.0, %v7349
    %7351 = vdwg.mxu0
    %v7352 = vsel %vm7163, %v7330, 0.0
    %v7353 = vrot.slane %v7352, 4
    %v7354 = vadd.f32 %v7352, %v7353
    %v7355 = vrot.slane %v7354, 2
    %v7356 = vadd.f32 %v7354, %v7355
    %v7357 = vrot.slane %v7356, 1
    %v7358 = vadd.f32 %v7356, %v7357
    %v7359 = vsel %vm7163, %v7350, 0.0
    %v7360 = vrot.slane %v7359, 4
    %v7361 = vadd.f32 %v7359, %v7360
    %v7362 = vrot.slane %v7361, 2
    %v7363 = vadd.f32 %v7361, %v7362
    %v7364 = vrot.slane %v7363, 1
    %v7365 = vadd.f32 %v7363, %v7364
    %v7366 = vmul.f32 %v7358, 0.5
    %v7367 = vmul.f32 %v7365, 0.5
    %v7368 = vmul.f32 %v7330, %v7330
    %v7369 = vmul.f32 %v7350, %v7350
    %v7370 = vsel %vm7163, %v7368, 0.0
    %v7371 = vrot.slane %v7370, 4
    %v7372 = vadd.f32 %v7370, %v7371
    %v7373 = vrot.slane %v7372, 2
    %v7374 = vadd.f32 %v7372, %v7373
    %v7375 = vrot.slane %v7374, 1
    %v7376 = vadd.f32 %v7374, %v7375
    %v7377 = vsel %vm7163, %v7369, 0.0
    %v7378 = vrot.slane %v7377, 4
    %v7379 = vadd.f32 %v7377, %v7378
    %v7380 = vrot.slane %v7379, 2
    %v7381 = vadd.f32 %v7379, %v7380
    %v7382 = vrot.slane %v7381, 1
    %v7383 = vadd.f32 %v7381, %v7382
    %v7384 = vmul.f32 %v7376, 0.5
    %v7385 = vmul.f32 %v7383, 0.5
    %v7386 = vmul.f32 %v7366, %v7366
    %v7387 = vmul.f32 %v7367, %v7367
    %v7388 = vsub.f32 %v7384, %v7386
    %v7389 = vsub.f32 %v7385, %v7387
    %v7390 = vmax.f32 %v7388, 0.0
    %v7391 = vmax.f32 %v7389, 0.0
    %v7392 = vld [vmem:[#allocation30] sm:$0x3]
    %v7393 = vadd.f32 %v7390, 1e-05
    %v7394 = vadd.f32 %v7391, 1e-05
    %v7395 = vrsqrt.pop %v7393
    %v7396 = vmul.f32 %v7395, %v7393
    %v7397 = vmul.f32 %v7396, %v7395
    %v7398 = vmul.f32 0.5, %v7397
    %v7399 = vsub.f32 1.5, %v7398
    %v7400 = vmul.f32 %v7395, %v7399
    %vm7401 = vweird.f32 %v7393
    %vm7402 = vweird.f32 %v7395
    %vm7403 = vmor %vm7401, %vm7402
    %v7404 = vsel %vm7403, %v7395, %v7400
    %v7405 = vrsqrt.pop %v7394
    %v7406 = vmul.f32 %v7405, %v7394
    %v7407 = vmul.f32 %v7406, %v7405
    %v7408 = vmul.f32 0.5, %v7407
    %v7409 = vsub.f32 1.5, %v7408
    %v7410 = vmul.f32 %v7405, %v7409
    %vm7411 = vweird.f32 %v7394
    %vm7412 = vweird.f32 %v7405
    %vm7413 = vmor %vm7411, %vm7412
    %v7414 = vsel %vm7413, %v7405, %v7410
    %v7417 = vrot.slane %v7414, 7
    %vm7418 = vcmask 1040384
    %v7419 = vsel %vm7418, %v7404, %v7417
    %v7421 = vmul.f32 %v7392, %v7419
    %v7422 = vld [vmem:[#allocation31] sm:$0x3]
    %v7424 = vperm.slane %v7421, 0
    %v7425 = vperm.slane %v7421, 1
    %v7428 = vmul.f32 %v7366, %v7424
    %v7429 = vmul.f32 %v7367, %v7425
    %v7432 = vrot.slane %v7429, 7
    %v7433 = vsel %vm7418, %v7428, %v7432
    %v7435 = vsub.f32 %v7422, %v7433
    %v7436 = vmul.f32 %v7330, %v7424
    %v7437 = vmul.f32 %v7350, %v7425
    %v7439 = vperm.slane %v7435, 0
    %v7440 = vperm.slane %v7435, 1
    %v7443 = vadd.f32 %v7436, %v7439
    %v7444 = vadd.f32 %v7437, %v7440
    %v7445 = vmul.f32 %v7443, 0.5
    %v7446 = vmul.f32 %v7444, 0.5
    %v7447 = vmul.f32 %v7443, 0.70710677
    %v7448 = vmul.f32 %v7444, 0.70710677
    %v7449 = vmul.f32 %v7447, %v7447
    %v7450 = vmin.f32 16.0, %v7449
    %v7451 = vmul.f32 %v7450, 2.1237322e-06
    %v7452 = vadd.f32 %v7451, 0.00028619796
    %v7453 = vmul.f32 %v7450, %v7452
    %v7454 = vadd.f32 %v7453, 0.0036580483
    %v7455 = vmul.f32 %v7450, %v7454
    %v7456 = vadd.f32 %v7455, 0.05243302
    %v7457 = vmul.f32 %v7450, %v7456
    %v7458 = vadd.f32 %v7457, 0.18741608
    %v7459 = vmul.f32 %v7450, %v7458
    %v7460 = vadd.f32 %v7459, 1.1283791
    %v7461 = vmul.f32 %v7447, %v7460
    %v7462 = vmul.f32 %v7450, 3.8918573e-05
    %v7463 = vadd.f32 %v7462, 0.001143296
    %v7464 = vmul.f32 %v7450, %v7463
    %v7465 = vadd.f32 %v7464, 0.014752088
    %v7466 = vmul.f32 %v7450, %v7465
    %v7467 = vadd.f32 %v7466, 0.112945676
    %v7468 = vmul.f32 %v7450, %v7467
    %v7469 = vadd.f32 %v7468, 0.4994258
    %v7470 = vmul.f32 %v7450, %v7469
    %v7471 = vadd.f32 %v7470, 1.0
    %v7472 = vrcp.pop %v7471
    %v7473 = vmul.f32 %v7471, %v7472
    %v7474 = vsub.f32 1.0, %v7473
    %v7475 = vmul.f32 %v7472, %v7474
    %v7476 = vadd.f32 %v7472, %v7475
    %vm7477 = vweird.f32 %v7471
    %vm7478 = vweird.f32 %v7472
    %vm7479 = vmor %vm7477, %vm7478
    %v7480 = vsel %vm7479, %v7472, %v7476
    %v7481 = vand.u32 2147483647, %v7471
    %vm7482 = vcmp.eq.f32.partialorder %v7481, 8.507059e+37
    %v7483 = vand.u32 %v7471, 2147483648
    %v7484 = vor.u32 1.1754944e-38, %v7483
    %v7485 = vsel %vm7482, %v7484, %v7480
    %v7486 = vmul.f32 %v7461, %v7485
    %v7487 = vmin.f32 %v7486, 1.0
    %v7488 = vmax.f32 %v7487, -1.0
    %v7489 = vmul.f32 %v7448, %v7448
    %v7490 = vmin.f32 16.0, %v7489
    %v7491 = vmul.f32 %v7490, 2.1237322e-06
    %v7492 = vadd.f32 %v7491, 0.00028619796
    %v7493 = vmul.f32 %v7490, %v7492
    %v7494 = vadd.f32 %v7493, 0.0036580483
    %v7495 = vmul.f32 %v7490, %v7494
    %v7496 = vadd.f32 %v7495, 0.05243302
    %v7497 = vmul.f32 %v7490, %v7496
    %v7498 = vadd.f32 %v7497, 0.18741608
    %v7499 = vmul.f32 %v7490, %v7498
    %v7500 = vadd.f32 %v7499, 1.1283791
    %v7501 = vmul.f32 %v7448, %v7500
    %v7502 = vmul.f32 %v7490, 3.8918573e-05
    %v7503 = vadd.f32 %v7502, 0.001143296
    %v7504 = vmul.f32 %v7490, %v7503
    %v7505 = vadd.f32 %v7504, 0.014752088
    %v7506 = vmul.f32 %v7490, %v7505
    %v7507 = vadd.f32 %v7506, 0.112945676
    %v7508 = vmul.f32 %v7490, %v7507
    %v7509 = vadd.f32 %v7508, 0.4994258
    %v7510 = vmul.f32 %v7490, %v7509
    %v7511 = vadd.f32 %v7510, 1.0
    %v7512 = vrcp.pop %v7511
    %v7513 = vmul.f32 %v7511, %v7512
    %v7514 = vsub.f32 1.0, %v7513
    %v7515 = vmul.f32 %v7512, %v7514
    %v7516 = vadd.f32 %v7512, %v7515
    %vm7517 = vweird.f32 %v7511
    %vm7518 = vweird.f32 %v7512
    %vm7519 = vmor %vm7517, %vm7518
    %v7520 = vsel %vm7519, %v7512, %v7516
    %v7521 = vand.u32 2147483647, %v7511
    %vm7522 = vcmp.eq.f32.partialorder %v7521, 8.507059e+37
    %v7523 = vand.u32 %v7511, 2147483648
    %v7524 = vor.u32 1.1754944e-38, %v7523
    %v7525 = vsel %vm7522, %v7524, %v7520
    %v7526 = vmul.f32 %v7501, %v7525
    %v7527 = vmin.f32 %v7526, 1.0
    %v7528 = vmax.f32 %v7527, -1.0
    %v7529 = vadd.f32 %v7488, 1.0
    %v7530 = vadd.f32 %v7528, 1.0
    %v7531 = vmul.f32 %v7445, %v7529
    %v7532 = vmul.f32 %v7446, %v7530
    %v7533 = vld [vmem:[#allocation33] sm:$0x3]
    %v7535 = vsel %vm7253, %v7533, 0
    %v7538 = vsel %vm7163, %v7531, 0
    %v7541 = vsel %vm7163, %v7532, 0
    %7543 = vmatpush.msra.mxu0 0.0
    %7544 = vmatpush.msra.mxu0 0.0
    %7545 = vmatpush.msra.mxu0 0.0
    %7546 = vmatpush.msra.mxu0 0.0
    %7547 = vmatpush.msra.mxu0 0.0
    %7548 = vmatpush.msra.mxu0 0.0
    %7549 = vmatpush.msra.mxu0 0.0
    %7550 = vmatpush.msra.mxu0 0.0
    %7551 = vmatpush.msra.mxu0 0.0
    %7552 = vmatpush.msra.mxu0 0.0
    %7553 = vmatpush.msra.mxu0 0.0
    %7554 = vmatpush.msra.mxu0 0.0
    %7555 = vmatpush.msra.mxu0 0.0
    %7556 = vmatpush.msra.mxu0 0.0
    %7557 = vmatpush.msra.mxu0 0.0
    %7558 = vmatpush.msra.mxu0 %v7538
    %7559 = vmatmul.f32.gmra.mxu0 %v7535
    %v7560 = vpop.f32.mrf.mxu0
    %v7561 = vadd.f32 0.0, %v7560
    %7562 = vdwg.mxu0
    %7563 = vmatpush.msra.mxu0 0.0
    %7564 = vmatpush.msra.mxu0 0.0
    %7565 = vmatpush.msra.mxu0 0.0
    %7566 = vmatpush.msra.mxu0 0.0
    %7567 = vmatpush.msra.mxu0 0.0
    %7568 = vmatpush.msra.mxu0 0.0
    %7569 = vmatpush.msra.mxu0 0.0
    %7570 = vmatpush.msra.mxu0 0.0
    %7571 = vmatpush.msra.mxu0 0.0
    %7572 = vmatpush.msra.mxu0 0.0
    %7573 = vmatpush.msra.mxu0 0.0
    %7574 = vmatpush.msra.mxu0 0.0
    %7575 = vmatpush.msra.mxu0 0.0
    %7576 = vmatpush.msra.mxu0 0.0
    %7577 = vmatpush.msra.mxu0 0.0
    %7578 = vmatpush.msra.mxu0 %v7541
    %7579 = vmatmul.f32.gmra.mxu0 %v7535
    %v7580 = vpop.f32.mrf.mxu0
    %v7581 = vadd.f32 0.0, %v7580
    %7582 = vdwg.mxu0
    %v7583 = vld [vmem:[%s22] sm:$0xff]
    %v7584 = vld [vmem:[%s22 + $0x8] sm:$0xff]
    %v7585 = vld [vmem:[%s22 + $0x10] sm:$0xff]
    %v7586 = vld [vmem:[%s22 + $0x18] sm:$0xff]
    %v7587 = vld [vmem:[%s22 + $0x20] sm:$0xff]
    %v7588 = vld [vmem:[%s22 + $0x28] sm:$0xff]
    %v7589 = vld [vmem:[%s22 + $0x30] sm:$0xff]
    %v7590 = vld [vmem:[%s22 + $0x38] sm:$0xff]
    %v7591 = vld [vmem:[%s22 + $0x40] sm:$0xff]
    %v7592 = vld [vmem:[%s22 + $0x48] sm:$0xff]
    %v7593 = vld [vmem:[%s22 + $0x50] sm:$0xff]
    %v7594 = vld [vmem:[%s22 + $0x58] sm:$0xff]
    %v7595 = vld [vmem:[%s22 + $0x60] sm:$0xff]
    %v7596 = vld [vmem:[%s22 + $0x68] sm:$0xff]
    %v7597 = vld [vmem:[%s22 + $0x70] sm:$0xff]
    %v7598 = vld [vmem:[%s22 + $0x78] sm:$0xff]
    %v7599 = vld [vmem:[%s22 + $0x80] sm:$0xff]
    %v7600 = vld [vmem:[%s22 + $0x88] sm:$0xff]
    %v7601 = vld [vmem:[%s22 + $0x90] sm:$0xff]
    %v7602 = vld [vmem:[%s22 + $0x98] sm:$0xff]
    %v7603 = vld [vmem:[%s22 + $0xa0] sm:$0xff]
    %v7604 = vld [vmem:[%s22 + $0xa8] sm:$0xff]
    %v7605 = vld [vmem:[%s22 + $0xb0] sm:$0xff]
    %v7606 = vld [vmem:[%s22 + $0xb8] sm:$0xff]
    %v7607 = vld [vmem:[%s22 + $0xc0] sm:$0xff]
    %v7608 = vld [vmem:[%s22 + $0xc8] sm:$0xff]
    %v7609 = vld [vmem:[%s22 + $0xd0] sm:$0xff]
    %v7610 = vld [vmem:[%s22 + $0xd8] sm:$0xff]
    %v7611 = vld [vmem:[%s22 + $0xe0] sm:$0xff]
    %v7612 = vld [vmem:[%s22 + $0xe8] sm:$0xff]
    %v7613 = vld [vmem:[%s22 + $0xf0] sm:$0xff]
    %v7614 = vld [vmem:[%s22 + $0xf8] sm:$0xff]
    %7615 = vmatpush.msra.mxu0 %v7598
    %7616 = vmatpush.msra.mxu0 %v7597
    %7617 = vmatpush.msra.mxu0 %v7596
    %7618 = vmatpush.msra.mxu0 %v7595
    %7619 = vmatpush.msra.mxu0 %v7594
    %7620 = vmatpush.msra.mxu0 %v7593
    %7621 = vmatpush.msra.mxu0 %v7592
    %7622 = vmatpush.msra.mxu0 %v7591
    %7623 = vmatpush.msra.mxu0 %v7590
    %7624 = vmatpush.msra.mxu0 %v7589
    %7625 = vmatpush.msra.mxu0 %v7588
    %7626 = vmatpush.msra.mxu0 %v7587
    %7627 = vmatpush.msra.mxu0 %v7586
    %7628 = vmatpush.msra.mxu0 %v7585
    %7629 = vmatpush.msra.mxu0 %v7584
    %7630 = vmatpush.msra.mxu0 %v7583
    %7631 = vmatmul.f32.gmra.mxu0 %v7561
    %v7632 = vpop.f32.mrf.mxu0
    %v7633 = vadd.f32 0.0, %v7632
    %7634 = vdwg.mxu0
    %7635 = vmatpush.msra.mxu0 %v7614
    %7636 = vmatpush.msra.mxu0 %v7613
    %7637 = vmatpush.msra.mxu0 %v7612
    %7638 = vmatpush.msra.mxu0 %v7611
    %7639 = vmatpush.msra.mxu0 %v7610
    %7640 = vmatpush.msra.mxu0 %v7609
    %7641 = vmatpush.msra.mxu0 %v7608
    %7642 = vmatpush.msra.mxu0 %v7607
    %7643 = vmatpush.msra.mxu0 %v7606
    %7644 = vmatpush.msra.mxu0 %v7605
    %7645 = vmatpush.msra.mxu0 %v7604
    %7646 = vmatpush.msra.mxu0 %v7603
    %7647 = vmatpush.msra.mxu0 %v7602
    %7648 = vmatpush.msra.mxu0 %v7601
    %7649 = vmatpush.msra.mxu0 %v7600
    %7650 = vmatpush.msra.mxu0 %v7599
    %7651 = vmatmul.f32.gmra.mxu0 %v7581
    %v7652 = vpop.f32.mrf.mxu0
    %v7653 = vadd.f32 %v7633, %v7652
    %7654 = vdwg.mxu0
    %vm7655 = vcmask 1024
    %7656 = vst.msk [vmem:[%s23] sm:$0x3] %vm7655, %v7653
    // Predicated region
    $region178: #{tpu_custom_call.1} parent=1 // pred_check
      _
    $region179: #{tpu_custom_call.1} parent=1 // pred_check_branch
      %7658 = sbr.rel (0) target = $region181
    $region180: #{tpu_custom_call.1} parent=1 // pred_region
      _
    $region181: #{tpu_custom_call.1} parent=1 // pred_fallthru
      _
    // Predicated region
    $region182: #{tpu_custom_call.1} parent=1 // pred_check
      _
    $region183: #{tpu_custom_call.1} parent=1 // pred_check_branch
      %7660 = sbr.rel (0) target = $region185
    $region184: #{tpu_custom_call.1} parent=1 // pred_region
      _
    $region185: #{tpu_custom_call.1} parent=1 // pred_fallthru
      _
    %7661 = vsyncpa [#allocation3], 1
    %7662 = vsyncpa [#allocation5], 1
    %7663 = vsyncpa [#allocation8], 1
    %7664 = vsyncpa [#allocation11], 1
    %7665 = vsyncpa [#allocation14], 1
    %7666 = vsyncpa [#allocation17], 1
    %7667 = vsyncpa [#allocation20], 1
    %7668 = vsyncpa [#allocation23], 1
    %7669 = vsyncpa [#allocation26], 1
    %7670 = vsyncpa [#allocation29], 1
    %7671 = vsyncpa [#allocation32], 1

</llo_original>
